<compile_context>
chip_gen: v5e
topology: v5e:2x2
jax: 0.10.0
libtpu: 0.0.40
codegen_flags: <defaults>
</compile_context>

<pallas_src>
import functools
import math

import jax
import jax.numpy as jnp
from jax.experimental import pallas as pl
from jax.experimental.pallas import tpu as pltpu

NEG_INF = -1e9            # additive mask value (finite; softmax subtracts max)
VMEM_LIMIT = 48 * 1024 * 1024   # <= v7x 64 MiB physical, > v5e/v6e defaults


def _round_up(x, m):
    return (x + m - 1) // m * m


def _pick_tile(dim, target, align):
    """Largest multiple of `align` dividing `dim` and <= target; else full dim."""
    if dim <= target:
        return dim
    best = 0
    t = align
    while t <= target:
        if dim % t == 0:
            best = t
        t += align
    return best if best else dim


def _row_tiling(M, target):
    """Return (padded_M, tm): tm is a multiple of 8 dividing padded_M."""
    Mp = _round_up(M, 8)
    if Mp <= target:
        return Mp, Mp
    t = (target // 8) * 8
    while t >= 8:
        if Mp % t == 0:
            return Mp, t
        t -= 8
    return Mp, 8   # unreachable: 8 always divides Mp


# ----------------------------------------------------------------------------
# Tiled linear:  y = act(x @ w + b)   (bf16 MXU matmul, f32 accumulation)
# ----------------------------------------------------------------------------
def _linear_kernel(x_ref, w_ref, b_ref, o_ref, acc_ref, *, activation):
    @pl.when(pl.program_id(2) == 0)
    def _init():
        acc_ref[...] = jnp.zeros_like(acc_ref)

    acc_ref[...] += jnp.dot(x_ref[...].astype(jnp.bfloat16),  # no-op when bf16
                            w_ref[...],
                            preferred_element_type=jnp.float32)

    @pl.when(pl.program_id(2) == pl.num_programs(2) - 1)
    def _flush():
        y = acc_ref[...] + b_ref[...]
        if activation == "relu":
            y = jnp.maximum(y, 0.0)
        o_ref[...] = y.astype(o_ref.dtype)


def linear(x2d, w, b, activation=None, out_dtype=jnp.bfloat16):
    """x2d: (M, K), w: (K, N) bf16, b: (N,) f32  ->  (M, N) out_dtype."""
    M, K = x2d.shape
    N = w.shape[1]
    Mp, tm = _row_tiling(M, 512)
    if Mp != M:
        x2d = jnp.pad(x2d, ((0, Mp - M), (0, 0)))
    tn = _pick_tile(N, 256, 128)   # TODO(synk): tn=128 + Buffered(3) on v5e
    tk = _pick_tile(K, 512, 128)
    grid = (Mp // tm, N // tn, K // tk)
    out = pl.pallas_call(
        functools.partial(_linear_kernel, activation=activation),
        grid=grid,
        out_shape=jax.ShapeDtypeStruct((Mp, N), out_dtype),
        in_specs=[
            pl.BlockSpec((tm, tk), lambda i, j, k: (i, k)),
            pl.BlockSpec((tk, tn), lambda i, j, k: (k, j)),
            pl.BlockSpec((1, tn), lambda i, j, k: (0, j)),
        ],
        out_specs=pl.BlockSpec((tm, tn), lambda i, j, k: (i, j)),
        scratch_shapes=[pltpu.VMEM((tm, tn), jnp.float32)],
        compiler_params=pltpu.CompilerParams(
            dimension_semantics=("parallel", "parallel", "arbitrary"),
            vmem_limit_bytes=VMEM_LIMIT),
    )(x2d, w, b.reshape(1, N))
    return out[:M] if Mp != M else out


# ----------------------------------------------------------------------------
# Fused linear + residual add + post-norm LayerNorm (tn == full D row)
#   out = LayerNorm(residual + x @ w + b) * gamma + beta
# ----------------------------------------------------------------------------
def _linear_add_ln_kernel(x_ref, w_ref, b_ref, r_ref, g_ref, b2_ref,
                          o_ref, acc_ref, *, eps):
    @pl.when(pl.program_id(1) == 0)
    def _init():
        acc_ref[...] = jnp.zeros_like(acc_ref)

    acc_ref[...] += jnp.dot(x_ref[...].astype(jnp.bfloat16),
                            w_ref[...],
                            preferred_element_type=jnp.float32)

    @pl.when(pl.program_id(1) == pl.num_programs(1) - 1)
    def _flush():
        y = acc_ref[...] + b_ref[...] + r_ref[...].astype(jnp.float32)
        mean = jnp.mean(y, axis=-1, keepdims=True)
        yc = y - mean
        var = jnp.mean(yc * yc, axis=-1, keepdims=True)
        o_ref[...] = (yc * jax.lax.rsqrt(var + eps) * g_ref[...]
                      + b2_ref[...]).astype(o_ref.dtype)


def linear_add_ln(x2d, w, b, res2d, gamma, beta, eps=1e-5):
    """LayerNorm(res + x @ w + b); x:(M,K), w:(K,D) bf16, res:(M,D) bf16."""
    M, K = x2d.shape
    D = w.shape[1]
    Mp, tm = _row_tiling(M, 256)
    if Mp != M:
        x2d = jnp.pad(x2d, ((0, Mp - M), (0, 0)))
        res2d = jnp.pad(res2d, ((0, Mp - M), (0, 0)))
    tk = _pick_tile(K, 512, 128)
    grid = (Mp // tm, K // tk)
    out = pl.pallas_call(
        functools.partial(_linear_add_ln_kernel, eps=eps),
        grid=grid,
        out_shape=jax.ShapeDtypeStruct((Mp, D), jnp.bfloat16),
        in_specs=[
            pl.BlockSpec((tm, tk), lambda i, k: (i, k)),
            pl.BlockSpec((tk, D), lambda i, k: (k, 0)),
            pl.BlockSpec((1, D), lambda i, k: (0, 0)),
            pl.BlockSpec((tm, D), lambda i, k: (i, 0)),
            pl.BlockSpec((1, D), lambda i, k: (0, 0)),
            pl.BlockSpec((1, D), lambda i, k: (0, 0)),
        ],
        out_specs=pl.BlockSpec((tm, D), lambda i, k: (i, 0)),
        scratch_shapes=[pltpu.VMEM((tm, D), jnp.float32)],
        compiler_params=pltpu.CompilerParams(
            dimension_semantics=("parallel", "arbitrary"),
            vmem_limit_bytes=VMEM_LIMIT),
    )(x2d, w, b.reshape(1, D), res2d, gamma.reshape(1, D), beta.reshape(1, D))
    return out[:M] if Mp != M else out


# ----------------------------------------------------------------------------
# Stand-alone LayerNorm (encoder/decoder final norms), f32 statistics
# ----------------------------------------------------------------------------
def _ln_kernel(x_ref, g_ref, b_ref, o_ref, *, eps):
    x = x_ref[...].astype(jnp.float32)
    mean = jnp.mean(x, axis=-1, keepdims=True)
    xc = x - mean
    var = jnp.mean(xc * xc, axis=-1, keepdims=True)
    o_ref[...] = (xc * jax.lax.rsqrt(var + eps) * g_ref[...]
                  + b_ref[...]).astype(o_ref.dtype)


def layer_norm(x2d, gamma, beta, eps=1e-5):
    M, D = x2d.shape
    tm = _pick_tile(M, 512, 8)
    row_spec = pl.BlockSpec((tm, D), lambda i: (i, 0))
    par_spec = pl.BlockSpec((1, D), lambda i: (0, 0))
    return pl.pallas_call(
        functools.partial(_ln_kernel, eps=eps),
        grid=(M // tm,),
        out_shape=jax.ShapeDtypeStruct((M, D), jnp.bfloat16),
        in_specs=[row_spec, par_spec, par_spec],
        out_specs=row_spec,
        compiler_params=pltpu.CompilerParams(dimension_semantics=("parallel",)),
    )(x2d, gamma.reshape(1, D), beta.reshape(1, D))


# ----------------------------------------------------------------------------
# Multi-head attention core
#   q:  (B, Tq, D) bf16     kv: (B, Tk, 2D) bf16 (K cols then V cols)
#   kbias: (B, 1, Tk) f32 additive key-padding bias; causal mask built in-kernel
#   output: lane-dense (B, Tq, D) bf16 (context, BEFORE the out-projection)
# ----------------------------------------------------------------------------
def _attn_kernel(q_ref, kv_ref, kbias_ref, o_ref, *, scale, causal, nhead, dh):
    D = nhead * dh
    tq = q_ref.shape[1]
    tk = kv_ref.shape[1]
    kb = kbias_ref[0]                                       # (1, Tk) f32

    if causal:
        q0 = pl.program_id(1) * tq
        qi = q0 + jax.lax.broadcasted_iota(jnp.int32, (tq, tk), 0)
        ki = jax.lax.broadcasted_iota(jnp.int32, (tq, tk), 1)
        cbias = jnp.where(ki > qi, NEG_INF, 0.0)
    else:
        cbias = None

    # One head at a time: only one (tq, Tk) f32 score tile is live, bounding
    # VMEM/vreg pressure.  TODO(synk): pack heads to fill the 256-wide MXU.
    for h in range(nhead):
        q = q_ref[0, :, h * dh:(h + 1) * dh] * scale        # (tq, dh) bf16
        k = kv_ref[0, :, h * dh:(h + 1) * dh]                # (tk, dh) bf16
        v = kv_ref[0, :, D + h * dh:D + (h + 1) * dh]        # (tk, dh) bf16

        s = jax.lax.dot_general(q, k, (((1,), (1,)), ((), ())),
                                preferred_element_type=jnp.float32)  # (tq, tk)
        s = s + kb
        if cbias is not None:
            s = s + cbias

        m = jnp.max(s, axis=-1, keepdims=True)
        p = jnp.exp(s - m)
        inv_l = pl.reciprocal(jnp.sum(p, axis=-1, keepdims=True), approx=True)
        ctx = jnp.dot(p.astype(jnp.bfloat16), v,
                      preferred_element_type=jnp.float32)    # (tq, dh) f32
        o_ref[0, :, h * dh:(h + 1) * dh] = (ctx * inv_l).astype(o_ref.dtype)


def mha_attention(q3d, kv3d, kbias, *, nhead, causal):
    """q3d: (B, Tq, D), kv3d: (B, Tk, 2D), kbias: (B, 1, Tk) -> (B, Tq, D)."""
    # TODO(synk): stream K/V in Tk blocks with online softmax for T >> 1024.
    B, Tq, D = q3d.shape
    Tk = kv3d.shape[1]
    dh = D // nhead
    scale = 1.0 / math.sqrt(dh)
    tq = _pick_tile(Tq, 256, 8)
    return pl.pallas_call(
        functools.partial(_attn_kernel, scale=scale, causal=causal,
                          nhead=nhead, dh=dh),
        grid=(B, Tq // tq),
        out_shape=jax.ShapeDtypeStruct((B, Tq, D), jnp.bfloat16),
        in_specs=[
            pl.BlockSpec((1, tq, D), lambda b, qi: (b, qi, 0)),
            pl.BlockSpec((1, Tk, 2 * D), lambda b, qi: (b, 0, 0)),
            pl.BlockSpec((1, 1, Tk), lambda b, qi: (b, 0, 0)),
        ],
        out_specs=pl.BlockSpec((1, tq, D), lambda b, qi: (b, qi, 0)),
        compiler_params=pltpu.CompilerParams(
            dimension_semantics=("parallel", "parallel"),
            vmem_limit_bytes=VMEM_LIMIT),
    )(q3d, kv3d, kbias)


# ----------------------------------------------------------------------------
# Embedding / input-projection epilogues (fused "2*x + pe")
# ----------------------------------------------------------------------------
def _scale_add_pe_kernel(x_ref, pe_ref, o_ref):
    o_ref[0] = (2.0 * x_ref[0] + pe_ref[...]).astype(o_ref.dtype)


def scale_add_pe(x3d, pe):
    """x3d: (B,T,D) f32, pe: (T,D) f32  ->  bf16 (2*x + pe)  ('x += PE(x)')."""
    B, T, D = x3d.shape
    tt = _pick_tile(T, 512, 8)
    return pl.pallas_call(
        _scale_add_pe_kernel,
        grid=(B, T // tt),
        out_shape=jax.ShapeDtypeStruct((B, T, D), jnp.bfloat16),
        in_specs=[
            pl.BlockSpec((1, tt, D), lambda b, t: (b, t, 0)),
            pl.BlockSpec((tt, D), lambda b, t: (t, 0)),
        ],
        out_specs=pl.BlockSpec((1, tt, D), lambda b, t: (b, t, 0)),
        compiler_params=pltpu.CompilerParams(
            dimension_semantics=("parallel", "parallel")),
    )(x3d, pe)


def _inproj_pe_kernel(x_ref, w_ref, b_ref, pe_ref, o_ref):
    y = jnp.dot(x_ref[0].astype(jnp.bfloat16), w_ref[...],
                preferred_element_type=jnp.float32) + b_ref[...]
    o_ref[0] = (2.0 * y + pe_ref[...]).astype(o_ref.dtype)


def input_proj_with_pe(x3d, w, b, pe):
    """tgt path: 2*(x @ w + b) + pe fused into one kernel (x: (B,T,n_mel))."""
    B, T, K = x3d.shape
    D = w.shape[1]
    tt = _pick_tile(T, 256, 8)
    return pl.pallas_call(
        _inproj_pe_kernel,
        grid=(B, T // tt),
        out_shape=jax.ShapeDtypeStruct((B, T, D), jnp.bfloat16),
        in_specs=[
            pl.BlockSpec((1, tt, K), lambda b, t: (b, t, 0)),
            pl.BlockSpec((K, D), lambda b, t: (0, 0)),
            pl.BlockSpec((1, D), lambda b, t: (0, 0)),
            pl.BlockSpec((tt, D), lambda b, t: (t, 0)),
        ],
        out_specs=pl.BlockSpec((1, tt, D), lambda b, t: (b, t, 0)),
        compiler_params=pltpu.CompilerParams(
            dimension_semantics=("parallel", "parallel")),
    )(x3d, w, b.reshape(1, D), pe)


# ----------------------------------------------------------------------------
# Model glue (plain JAX around the Pallas kernels)
# ----------------------------------------------------------------------------
def attention_ctx(q_in3d, kv_in3d, p, nhead, kbias, causal):
    """Q projection + fused (D,2D) K/V projection + softmax(QK^T)V context."""
    B, Tq, D = q_in3d.shape
    Tk = kv_in3d.shape[1]
    q = linear(q_in3d.reshape(-1, D), p["wq"], p["bq"]).reshape(B, Tq, D)
    kv = linear(kv_in3d.reshape(-1, D), p["w_kv"], p["b_kv"]).reshape(B, Tk, 2 * D)
    return mha_attention(q, kv, kbias, nhead=nhead, causal=causal)


def encoder_layer(x, lp, nhead, src_kbias):
    B, T, D = x.shape
    ctx = attention_ctx(x, x, lp["self_attn"], nhead, src_kbias, causal=False)
    # LN1(x + Wo@ctx + bo) fused into the out-projection epilogue
    x1 = linear_add_ln(ctx.reshape(-1, D), lp["self_attn"]["wo"],
                       lp["self_attn"]["bo"], x.reshape(-1, D),
                       lp["ln1_g"], lp["ln1_b"])
    h = linear(x1, lp["ff_w1"], lp["ff_b1"], activation="relu")
    x2 = linear_add_ln(h, lp["ff_w2"], lp["ff_b2"], x1,
                       lp["ln2_g"], lp["ln2_b"])
    return x2.reshape(B, T, D)


def decoder_layer(x, mem, lp, nhead, tgt_kbias, mem_kbias):
    B, T, D = x.shape
    sa = attention_ctx(x, x, lp["self_attn"], nhead, tgt_kbias, causal=True)
    x1 = linear_add_ln(sa.reshape(-1, D), lp["self_attn"]["wo"],
                       lp["self_attn"]["bo"], x.reshape(-1, D),
                       lp["ln1_g"], lp["ln1_b"])
    ca = attention_ctx(x1.reshape(B, T, D), mem, lp["cross_attn"], nhead,
                       mem_kbias, causal=False)
    x2 = linear_add_ln(ca.reshape(-1, D), lp["cross_attn"]["wo"],
                       lp["cross_attn"]["bo"], x1,
                       lp["ln2_g"], lp["ln2_b"])
    h = linear(x2, lp["ff_w1"], lp["ff_b1"], activation="relu")
    x3 = linear_add_ln(h, lp["ff_w2"], lp["ff_b2"], x2,
                       lp["ln3_g"], lp["ln3_b"])
    return x3.reshape(B, T, D)


def make_positional_encoding(max_len, d_model):
    position = jnp.arange(max_len, dtype=jnp.float32)[:, None]
    div_term = jnp.exp(jnp.arange(0, d_model, 2, dtype=jnp.float32)
                       * -(math.log(10000.0) / d_model))
    pe = jnp.zeros((max_len, d_model), jnp.float32)
    pe = pe.at[:, 0::2].set(jnp.sin(position * div_term))
    pe = pe.at[:, 1::2].set(jnp.cos(position * div_term))
    return pe


def transformer_tts_forward(params, src_ids, src_kpm, tgt_mel, tgt_kpm, *, cfg):
    nhead = cfg["nhead"]
    D = cfg["d_model"]
    n_mel = cfg["n_mel"]
    B, S_src = src_ids.shape
    S_tgt = tgt_mel.shape[1]

    # --- embeddings + positional encodings (x += PE(x)  =>  2*x + pe) ---
    # TODO(synk): the embedding row-gather stays as an XLA jnp.take; a Pallas
    # per-row DMA gather would add launch overhead per row here.
    src = jnp.take(params["embedding"], src_ids, axis=0)            # (B,Ssrc,D)
    src = scale_add_pe(src, params["pe_src"][:S_src])                # bf16

    tgt = input_proj_with_pe(tgt_mel, params["w_in"], params["b_in"],
                             params["pe_tgt"][:S_tgt])               # bf16

    # --- tiny additive key-padding biases (masks are built in-kernel) ---
    src_kbias = jnp.where(src_kpm, NEG_INF, 0.0).astype(jnp.float32)[:, None, :]
    tgt_kbias = jnp.where(tgt_kpm, NEG_INF, 0.0).astype(jnp.float32)[:, None, :]
    mem_kbias = jnp.zeros((B, 1, S_src), jnp.float32)  # no memory padding mask

    # --- encoder ---
    x = src
    for lp in params["encoder_layers"]:
        x = encoder_layer(x, lp, nhead, src_kbias)
    memory = layer_norm(x.reshape(-1, D), params["enc_norm_g"],
                        params["enc_norm_b"]).reshape(B, S_src, D)

    # --- decoder ---
    y = tgt
    for lp in params["decoder_layers"]:
        y = decoder_layer(y, memory, lp, nhead, tgt_kbias, mem_kbias)
    y = layer_norm(y.reshape(-1, D), params["dec_norm_g"], params["dec_norm_b"])

    # --- output projection d_model -> n_mel (N zero-padded to 128 lanes) ---
    out = linear(y, params["w_out"], params["b_out"], out_dtype=jnp.float32)
    out = out[:, :n_mel]
    return out.reshape(B, S_tgt, n_mel)


# ----------------------------------------------------------------------------
# Deterministic parameter initialization (matmul weights stored in bf16)
# ----------------------------------------------------------------------------
def init_params(key, cfg):
    D, n_mel = cfg["d_model"], cfg["n_mel"]
    dff = 4 * D
    n_out_pad = _round_up(n_mel, 128)
    keys = iter(jax.random.split(key, 1024))

    def nrm(shape, scale=0.02, dtype=jnp.float32):
        return (scale * jax.random.normal(next(keys), shape)).astype(dtype)

    def w(shape):  # MXU matmul weights in bf16 (halves HBM traffic / VMEM)
        return nrm(shape, dtype=jnp.bfloat16)

    def zeros(shape):
        return jnp.zeros(shape, jnp.float32)

    def ones(shape):
        return jnp.ones(shape, jnp.float32)

    def attn_params():
        return dict(wq=w((D, D)), bq=zeros((D,)),
                    w_kv=w((D, 2 * D)), b_kv=zeros((2 * D,)),
                    wo=w((D, D)), bo=zeros((D,)))

    def enc_layer():
        return dict(self_attn=attn_params(),
                    ln1_g=ones((D,)), ln1_b=zeros((D,)),
                    ff_w1=w((D, dff)), ff_b1=zeros((dff,)),
                    ff_w2=w((dff, D)), ff_b2=zeros((D,)),
                    ln2_g=ones((D,)), ln2_b=zeros((D,)))

    def dec_layer():
        return dict(self_attn=attn_params(), cross_attn=attn_params(),
                    ln1_g=ones((D,)), ln1_b=zeros((D,)),
                    ln2_g=ones((D,)), ln2_b=zeros((D,)),
                    ff_w1=w((D, dff)), ff_b1=zeros((dff,)),
                    ff_w2=w((dff, D)), ff_b2=zeros((D,)),
                    ln3_g=ones((D,)), ln3_b=zeros((D,)))

    embedding = nrm((cfg["vocab_size"], D))
    embedding = embedding.at[0].set(0.0)  # padding_idx=0 row zeroed

    # Output projection padded to a full lane group (unmasked stores); the
    # extra columns are zero and sliced off in XLA.
    w_out = jnp.zeros((D, n_out_pad), jnp.bfloat16)
    w_out = w_out.at[:, :n_mel].set(nrm((D, n_mel), dtype=jnp.bfloat16))

    return dict(
        embedding=embedding,
        pe_src=make_positional_encoding(cfg["max_length_src"], D),
        pe_tgt=make_positional_encoding(cfg["max_length_tgt"], D),
        w_in=w((n_mel, D)), b_in=zeros((D,)),
        encoder_layers=[enc_layer() for _ in range(cfg["num_encoder_layers"])],
        decoder_layers=[dec_layer() for _ in range(cfg["num_decoder_layers"])],
        enc_norm_g=ones((D,)), enc_norm_b=zeros((D,)),
        dec_norm_g=ones((D,)), dec_norm_b=zeros((D,)),
        w_out=w_out, b_out=zeros((n_out_pad,)),
    )


# ----------------------------------------------------------------------------
# Driver
# ----------------------------------------------------------------------------
if __name__ == "__main__":
    # TODO(synk): for tiny d_model like this demo config, padding D to 128 or
    # fusing whole sub-blocks into single pallas_calls would remove per-call
    # launch overhead; the tiling here is sized for realistic D >= 256.
    cfg = dict(max_length_src=8, max_length_tgt=8, vocab_size=50,
               n_mel=16, d_model=32, nhead=4,
               num_encoder_layers=2, num_decoder_layers=2)

    B, S_SRC, S_TGT = 2, 8, 8
    key = jax.random.PRNGKey(0)
    pkey, k_src, k_tgt = jax.random.split(key, 3)

    params = init_params(pkey, cfg)

    src_kpm = jnp.zeros((B, S_SRC), bool).at[1, 6:].set(True)   # True = padded
    src_ids = jax.random.randint(k_src, (B, S_SRC), 1, cfg["vocab_size"]).astype(jnp.int32)
    src_ids = jnp.where(src_kpm, 0, src_ids)                    # pad token = 0

    tgt_mel = jax.random.normal(k_tgt, (B, S_TGT, cfg["n_mel"]), jnp.float32)
    tgt_kpm = jnp.zeros((B, S_TGT), bool).at[1, 7:].set(True)

    fwd = jax.jit(functools.partial(transformer_tts_forward, cfg=cfg))
    out = fwd(params, src_ids, src_kpm, tgt_mel, tgt_kpm)
    jax.block_until_ready(out)

    assert out.shape == (B, S_TGT, cfg["n_mel"])
    assert out.dtype == jnp.float32
    assert bool(jnp.all(jnp.isfinite(out)))
    print("KERNEL_OK")
</pallas_src>

<mosaic_0001>
module attributes {stable_mosaic.version = 11 : i64} {
  func.func @_scale_add_pe_kernel(%arg0: i32, %arg1: i32, %arg2: memref<1x8x32xf32, #tpu.memory_space<vmem>>, %arg3: memref<8x32xf32, #tpu.memory_space<vmem>>, %arg4: memref<1x8x32xbf16, #tpu.memory_space<vmem>>) attributes {dimension_semantics = [#tpu.dimension_semantics<parallel>, #tpu.dimension_semantics<parallel>], iteration_bounds = array<i64: 2, 1>, scalar_prefetch = 0 : i64, scratch_operands = 0 : i64, tpu.core_type = #tpu.core_type<tc>, window_params = [{transform_indices = @transform_0, window_bounds = array<i64: 1, 8, 32>}, {transform_indices = @transform_1, window_bounds = array<i64: 8, 32>}, {transform_indices = @transform_2, window_bounds = array<i64: 1, 8, 32>}]} {
    %c0 = arith.constant 0 : index
    %c0_0 = arith.constant 0 : index
    %c0_1 = arith.constant 0 : index
    %0 = vector.load %arg2[%c0, %c0_0, %c0_1] : memref<1x8x32xf32, #tpu.memory_space<vmem>>, vector<1x8x32xf32>
    %1 = vector.shape_cast %0 : vector<1x8x32xf32> to vector<8x32xf32>
    %cst = arith.constant 2.000000e+00 : f32
    %2 = vector.broadcast %cst : f32 to vector<8x32xf32>
    %3 = arith.mulf %2, %1 : vector<8x32xf32>
    %c0_2 = arith.constant 0 : index
    %c0_3 = arith.constant 0 : index
    %4 = vector.load %arg3[%c0_2, %c0_3] : memref<8x32xf32, #tpu.memory_space<vmem>>, vector<8x32xf32>
    %5 = arith.addf %3, %4 : vector<8x32xf32>
    %6 = arith.truncf %5 : vector<8x32xf32> to vector<8x32xbf16>
    %c0_4 = arith.constant 0 : index
    %c0_5 = arith.constant 0 : index
    %c0_6 = arith.constant 0 : index
    %7 = vector.load %arg4[%c0_4, %c0_5, %c0_6] : memref<1x8x32xbf16, #tpu.memory_space<vmem>>, vector<1x8x32xbf16>
    %8 = vector.shape_cast %7 : vector<1x8x32xbf16> to vector<8x32xbf16>
    %9 = vector.shape_cast %6 : vector<8x32xbf16> to vector<1x8x32xbf16>
    tpu.vector_store %arg4[%c0_4, %c0_5, %c0_6], %9 {strides = array<i32>} : memref<1x8x32xbf16, #tpu.memory_space<vmem>>, vector<1x8x32xbf16>,
    return
  }
  func.func @transform_0(%arg0: i32, %arg1: i32) -> (i32, i32, i32) {
    %c0_i32 = arith.constant 0 : i32
    %c0_i32_0 = arith.constant 0 : i32
    return %arg0, %arg1, %c0_i32 : i32, i32, i32
  }
  func.func @transform_1(%arg0: i32, %arg1: i32) -> (i32, i32) {
    %c0_i32 = arith.constant 0 : i32
    %c0_i32_0 = arith.constant 0 : i32
    return %arg1, %c0_i32 : i32, i32
  }
  func.func @transform_2(%arg0: i32, %arg1: i32) -> (i32, i32, i32) {
    %c0_i32 = arith.constant 0 : i32
    %c0_i32_0 = arith.constant 0 : i32
    return %arg0, %arg1, %c0_i32 : i32, i32, i32
  }
}

module attributes {stable_mosaic.version = 11 : i64} {
  func.func @_linear_kernel(%arg0: i32, %arg1: i32, %arg2: i32, %arg3: memref<16x32xbf16, #tpu.memory_space<vmem>>, %arg4: memref<32x32xbf16, #tpu.memory_space<vmem>>, %arg5: memref<1x32xf32, #tpu.memory_space<vmem>>, %arg6: memref<16x32xbf16, #tpu.memory_space<vmem>>, %arg7: memref<16x32xf32, #tpu.memory_space<vmem>>) attributes {dimension_semantics = [#tpu.dimension_semantics<parallel>, #tpu.dimension_semantics<parallel>, #tpu.dimension_semantics<arbitrary>], iteration_bounds = array<i64: 1, 1, 1>, scalar_prefetch = 0 : i64, scratch_operands = 1 : i64, tpu.core_type = #tpu.core_type<tc>, window_params = [{transform_indices = @transform_0, window_bounds = array<i64: 16, 32>}, {transform_indices = @transform_1, window_bounds = array<i64: 32, 32>}, {transform_indices = @transform_2, window_bounds = array<i64: 1, 32>}, {transform_indices = @transform_3, window_bounds = array<i64: 16, 32>}]} {
    %c0_i32 = arith.constant 0 : i32
    %0 = arith.cmpi eq, %arg2, %c0_i32 : i32
    %1 = arith.extui %0 : i1 to i32
    %c0_i32_0 = arith.constant 0 : i32
    %2 = arith.cmpi ne, %1, %c0_i32_0 : i32
    scf.if %2 {
      %cst_10 = arith.constant 0.000000e+00 : f32
      %12 = vector.broadcast %cst_10 : f32 to vector<16x32xf32>
      %c0_11 = arith.constant 0 : index
      %c0_12 = arith.constant 0 : index
      %13 = vector.load %arg7[%c0_11, %c0_12] : memref<16x32xf32, #tpu.memory_space<vmem>>, vector<16x32xf32>
      tpu.vector_store %arg7[%c0_11, %c0_12], %12 {strides = array<i32>} : memref<16x32xf32, #tpu.memory_space<vmem>>, vector<16x32xf32>,
    } else {
    }
    %c0 = arith.constant 0 : index
    %c0_1 = arith.constant 0 : index
    %3 = vector.load %arg7[%c0, %c0_1] : memref<16x32xf32, #tpu.memory_space<vmem>>, vector<16x32xf32>
    %c0_2 = arith.constant 0 : index
    %c0_3 = arith.constant 0 : index
    %4 = vector.load %arg3[%c0_2, %c0_3] : memref<16x32xbf16, #tpu.memory_space<vmem>>, vector<16x32xbf16>
    %c0_4 = arith.constant 0 : index
    %c0_5 = arith.constant 0 : index
    %5 = vector.load %arg4[%c0_4, %c0_5] : memref<32x32xbf16, #tpu.memory_space<vmem>>, vector<32x32xbf16>
    %cst = arith.constant dense<0.000000e+00> : vector<16x32xf32>
    %6 = tpu.matmul %4, %5, %cst {dimension_numbers = #tpu.dot_dimension_numbers<[1], [0], [0], [1], [0, 0, 1, 1], [], []>} : vector<16x32xbf16>, vector<32x32xbf16>, vector<16x32xf32> -> vector<16x32xf32>
    %7 = arith.addf %3, %6 : vector<16x32xf32>
    %c0_6 = arith.constant 0 : index
    %c0_7 = arith.constant 0 : index
    %8 = vector.load %arg7[%c0_6, %c0_7] : memref<16x32xf32, #tpu.memory_space<vmem>>, vector<16x32xf32>
    tpu.vector_store %arg7[%c0_6, %c0_7], %7 {strides = array<i32>} : memref<16x32xf32, #tpu.memory_space<vmem>>, vector<16x32xf32>,
    %c0_i32_8 = arith.constant 0 : i32
    %9 = arith.cmpi eq, %arg2, %c0_i32_8 : i32
    %10 = arith.extui %9 : i1 to i32
    %c0_i32_9 = arith.constant 0 : i32
    %11 = arith.cmpi ne, %10, %c0_i32_9 : i32
    scf.if %11 {
      %c0_10 = arith.constant 0 : index
      %c0_11 = arith.constant 0 : index
      %12 = vector.load %arg7[%c0_10, %c0_11] : memref<16x32xf32, #tpu.memory_space<vmem>>, vector<16x32xf32>
      %c0_12 = arith.constant 0 : index
      %c0_13 = arith.constant 0 : index
      %13 = vector.load %arg5[%c0_12, %c0_13] : memref<1x32xf32, #tpu.memory_space<vmem>>, vector<1x32xf32>
      %14 = vector.broadcast %13 : vector<1x32xf32> to vector<16x32xf32>
      %15 = arith.addf %12, %14 : vector<16x32xf32>
      %16 = arith.truncf %15 : vector<16x32xf32> to vector<16x32xbf16>
      %c0_14 = arith.constant 0 : index
      %c0_15 = arith.constant 0 : index
      %17 = vector.load %arg6[%c0_14, %c0_15] : memref<16x32xbf16, #tpu.memory_space<vmem>>, vector<16x32xbf16>
      tpu.vector_store %arg6[%c0_14, %c0_15], %16 {strides = array<i32>} : memref<16x32xbf16, #tpu.memory_space<vmem>>, vector<16x32xbf16>,
    } else {
    }
    return
  }
  func.func @transform_0(%arg0: i32, %arg1: i32, %arg2: i32) -> (i32, i32) {
    %c0_i32 = arith.constant 0 : i32
    return %arg0, %arg2 : i32, i32
  }
  func.func @transform_1(%arg0: i32, %arg1: i32, %arg2: i32) -> (i32, i32) {
    %c0_i32 = arith.constant 0 : i32
    return %arg2, %arg1 : i32, i32
  }
  func.func @transform_2(%arg0: i32, %arg1: i32, %arg2: i32) -> (i32, i32) {
    %c0_i32 = arith.constant 0 : i32
    %c0_i32_0 = arith.constant 0 : i32
    return %c0_i32, %arg1 : i32, i32
  }
  func.func @transform_3(%arg0: i32, %arg1: i32, %arg2: i32) -> (i32, i32) {
    %c0_i32 = arith.constant 0 : i32
    return %arg0, %arg1 : i32, i32
  }
}

module attributes {stable_mosaic.version = 11 : i64} {
  func.func @_linear_kernel(%arg0: i32, %arg1: i32, %arg2: i32, %arg3: memref<16x32xbf16, #tpu.memory_space<vmem>>, %arg4: memref<32x64xbf16, #tpu.memory_space<vmem>>, %arg5: memref<1x64xf32, #tpu.memory_space<vmem>>, %arg6: memref<16x64xbf16, #tpu.memory_space<vmem>>, %arg7: memref<16x64xf32, #tpu.memory_space<vmem>>) attributes {dimension_semantics = [#tpu.dimension_semantics<parallel>, #tpu.dimension_semantics<parallel>, #tpu.dimension_semantics<arbitrary>], iteration_bounds = array<i64: 1, 1, 1>, scalar_prefetch = 0 : i64, scratch_operands = 1 : i64, tpu.core_type = #tpu.core_type<tc>, window_params = [{transform_indices = @transform_0, window_bounds = array<i64: 16, 32>}, {transform_indices = @transform_1, window_bounds = array<i64: 32, 64>}, {transform_indices = @transform_2, window_bounds = array<i64: 1, 64>}, {transform_indices = @transform_3, window_bounds = array<i64: 16, 64>}]} {
    %c0_i32 = arith.constant 0 : i32
    %0 = arith.cmpi eq, %arg2, %c0_i32 : i32
    %1 = arith.extui %0 : i1 to i32
    %c0_i32_0 = arith.constant 0 : i32
    %2 = arith.cmpi ne, %1, %c0_i32_0 : i32
    scf.if %2 {
      %cst_10 = arith.constant 0.000000e+00 : f32
      %12 = vector.broadcast %cst_10 : f32 to vector<16x64xf32>
      %c0_11 = arith.constant 0 : index
      %c0_12 = arith.constant 0 : index
      %13 = vector.load %arg7[%c0_11, %c0_12] : memref<16x64xf32, #tpu.memory_space<vmem>>, vector<16x64xf32>
      tpu.vector_store %arg7[%c0_11, %c0_12], %12 {strides = array<i32>} : memref<16x64xf32, #tpu.memory_space<vmem>>, vector<16x64xf32>,
    } else {
    }
    %c0 = arith.constant 0 : index
    %c0_1 = arith.constant 0 : index
    %3 = vector.load %arg7[%c0, %c0_1] : memref<16x64xf32, #tpu.memory_space<vmem>>, vector<16x64xf32>
    %c0_2 = arith.constant 0 : index
    %c0_3 = arith.constant 0 : index
    %4 = vector.load %arg3[%c0_2, %c0_3] : memref<16x32xbf16, #tpu.memory_space<vmem>>, vector<16x32xbf16>
    %c0_4 = arith.constant 0 : index
    %c0_5 = arith.constant 0 : index
    %5 = vector.load %arg4[%c0_4, %c0_5] : memref<32x64xbf16, #tpu.memory_space<vmem>>, vector<32x64xbf16>
    %cst = arith.constant dense<0.000000e+00> : vector<16x64xf32>
    %6 = tpu.matmul %4, %5, %cst {dimension_numbers = #tpu.dot_dimension_numbers<[1], [0], [0], [1], [0, 0, 1, 1], [], []>} : vector<16x32xbf16>, vector<32x64xbf16>, vector<16x64xf32> -> vector<16x64xf32>
    %7 = arith.addf %3, %6 : vector<16x64xf32>
    %c0_6 = arith.constant 0 : index
    %c0_7 = arith.constant 0 : index
    %8 = vector.load %arg7[%c0_6, %c0_7] : memref<16x64xf32, #tpu.memory_space<vmem>>, vector<16x64xf32>
    tpu.vector_store %arg7[%c0_6, %c0_7], %7 {strides = array<i32>} : memref<16x64xf32, #tpu.memory_space<vmem>>, vector<16x64xf32>,
    %c0_i32_8 = arith.constant 0 : i32
    %9 = arith.cmpi eq, %arg2, %c0_i32_8 : i32
    %10 = arith.extui %9 : i1 to i32
    %c0_i32_9 = arith.constant 0 : i32
    %11 = arith.cmpi ne, %10, %c0_i32_9 : i32
    scf.if %11 {
      %c0_10 = arith.constant 0 : index
      %c0_11 = arith.constant 0 : index
      %12 = vector.load %arg7[%c0_10, %c0_11] : memref<16x64xf32, #tpu.memory_space<vmem>>, vector<16x64xf32>
      %c0_12 = arith.constant 0 : index
      %c0_13 = arith.constant 0 : index
      %13 = vector.load %arg5[%c0_12, %c0_13] : memref<1x64xf32, #tpu.memory_space<vmem>>, vector<1x64xf32>
      %14 = vector.broadcast %13 : vector<1x64xf32> to vector<16x64xf32>
      %15 = arith.addf %12, %14 : vector<16x64xf32>
      %16 = arith.truncf %15 : vector<16x64xf32> to vector<16x64xbf16>
      %c0_14 = arith.constant 0 : index
      %c0_15 = arith.constant 0 : index
      %17 = vector.load %arg6[%c0_14, %c0_15] : memref<16x64xbf16, #tpu.memory_space<vmem>>, vector<16x64xbf16>
      tpu.vector_store %arg6[%c0_14, %c0_15], %16 {strides = array<i32>} : memref<16x64xbf16, #tpu.memory_space<vmem>>, vector<16x64xbf16>,
    } else {
    }
    return
  }
  func.func @transform_0(%arg0: i32, %arg1: i32, %arg2: i32) -> (i32, i32) {
    %c0_i32 = arith.constant 0 : i32
    return %arg0, %arg2 : i32, i32
  }
  func.func @transform_1(%arg0: i32, %arg1: i32, %arg2: i32) -> (i32, i32) {
    %c0_i32 = arith.constant 0 : i32
    return %arg2, %arg1 : i32, i32
  }
  func.func @transform_2(%arg0: i32, %arg1: i32, %arg2: i32) -> (i32, i32) {
    %c0_i32 = arith.constant 0 : i32
    %c0_i32_0 = arith.constant 0 : i32
    return %c0_i32, %arg1 : i32, i32
  }
  func.func @transform_3(%arg0: i32, %arg1: i32, %arg2: i32) -> (i32, i32) {
    %c0_i32 = arith.constant 0 : i32
    return %arg0, %arg1 : i32, i32
  }
}

module attributes {stable_mosaic.version = 11 : i64} {
  func.func @_attn_kernel(%arg0: i32, %arg1: i32, %arg2: memref<1x8x32xbf16, #tpu.memory_space<vmem>>, %arg3: memref<1x8x64xbf16, #tpu.memory_space<vmem>>, %arg4: memref<1x1x8xf32, #tpu.memory_space<vmem>>, %arg5: memref<1x8x32xbf16, #tpu.memory_space<vmem>>) attributes {dimension_semantics = [#tpu.dimension_semantics<parallel>, #tpu.dimension_semantics<parallel>], iteration_bounds = array<i64: 2, 1>, scalar_prefetch = 0 : i64, scratch_operands = 0 : i64, tpu.core_type = #tpu.core_type<tc>, window_params = [{transform_indices = @transform_0, window_bounds = array<i64: 1, 8, 32>}, {transform_indices = @transform_1, window_bounds = array<i64: 1, 8, 64>}, {transform_indices = @transform_2, window_bounds = array<i64: 1, 1, 8>}, {transform_indices = @transform_3, window_bounds = array<i64: 1, 8, 32>}]} {
    %c0 = arith.constant 0 : index
    %c0_0 = arith.constant 0 : index
    %c0_1 = arith.constant 0 : index
    %0 = vector.load %arg4[%c0, %c0_0, %c0_1] : memref<1x1x8xf32, #tpu.memory_space<vmem>>, vector<1x1x8xf32>
    %1 = vector.shape_cast %0 : vector<1x1x8xf32> to vector<1x8xf32>
    %c0_2 = arith.constant 0 : index
    %c0_3 = arith.constant 0 : index
    %c0_4 = arith.constant 0 : index
    %2 = vector.load %arg2[%c0_2, %c0_3, %c0_4] : memref<1x8x32xbf16, #tpu.memory_space<vmem>>, vector<1x8x8xbf16>
    %3 = vector.shape_cast %2 : vector<1x8x8xbf16> to vector<8x8xbf16>
    %cst = arith.constant 3.535160e-01 : bf16
    %4 = vector.broadcast %cst : bf16 to vector<8x8xbf16>
    %5 = arith.mulf %3, %4 : vector<8x8xbf16>
    %c0_5 = arith.constant 0 : index
    %c0_6 = arith.constant 0 : index
    %c0_7 = arith.constant 0 : index
    %6 = vector.load %arg3[%c0_5, %c0_6, %c0_7] : memref<1x8x64xbf16, #tpu.memory_space<vmem>>, vector<1x8x8xbf16>
    %7 = vector.shape_cast %6 : vector<1x8x8xbf16> to vector<8x8xbf16>
    %c0_8 = arith.constant 0 : index
    %c0_9 = arith.constant 0 : index
    %c32 = arith.constant 32 : index
    %8 = vector.load %arg3[%c0_8, %c0_9, %c32] : memref<1x8x64xbf16, #tpu.memory_space<vmem>>, vector<1x8x8xbf16>
    %9 = vector.shape_cast %8 : vector<1x8x8xbf16> to vector<8x8xbf16>
    %cst_10 = arith.constant dense<0.000000e+00> : vector<8x8xf32>
    %10 = tpu.matmul %5, %7, %cst_10 {dimension_numbers = #tpu.dot_dimension_numbers<[1], [1], [0], [0], [0, 0, 1, 0], [], []>} : vector<8x8xbf16>, vector<8x8xbf16>, vector<8x8xf32> -> vector<8x8xf32>
    %11 = vector.broadcast %1 : vector<1x8xf32> to vector<8x8xf32>
    %12 = arith.addf %10, %11 : vector<8x8xf32>
    %cst_11 = arith.constant dense<0xFF800000> : vector<8xf32>
    %13 = vector.multi_reduction <maximumf>, %12, %cst_11 [1] : vector<8x8xf32> to vector<8xf32>
    %14 = vector.shape_cast %13 : vector<8xf32> to vector<8x1xf32>
    %15 = vector.broadcast %14 : vector<8x1xf32> to vector<8x8xf32>
    %16 = arith.subf %12, %15 : vector<8x8xf32>
    %17 = math.exp %16 : vector<8x8xf32>
    %cst_12 = arith.constant dense<0.000000e+00> : vector<8xf32>
    %18 = vector.multi_reduction <add>, %17, %cst_12 [1] : vector<8x8xf32> to vector<8xf32>
    %19 = vector.shape_cast %18 : vector<8xf32> to vector<8x1xf32>
    %20 = tpu.reciprocal %19 {approx = true} : vector<8x1xf32> -> vector<8x1xf32>
    %21 = arith.truncf %17 : vector<8x8xf32> to vector<8x8xbf16>
    %cst_13 = arith.constant dense<0.000000e+00> : vector<8x8xf32>
    %22 = tpu.matmul %21, %9, %cst_13 {dimension_numbers = #tpu.dot_dimension_numbers<[1], [0], [0], [1], [0, 0, 1, 1], [], []>} : vector<8x8xbf16>, vector<8x8xbf16>, vector<8x8xf32> -> vector<8x8xf32>
    %23 = vector.broadcast %20 : vector<8x1xf32> to vector<8x8xf32>
    %24 = arith.mulf %22, %23 : vector<8x8xf32>
    %25 = arith.truncf %24 : vector<8x8xf32> to vector<8x8xbf16>
    %c0_14 = arith.constant 0 : index
    %c0_15 = arith.constant 0 : index
    %c0_16 = arith.constant 0 : index
    %26 = vector.load %arg5[%c0_14, %c0_15, %c0_16] : memref<1x8x32xbf16, #tpu.memory_space<vmem>>, vector<1x8x8xbf16>
    %27 = vector.shape_cast %26 : vector<1x8x8xbf16> to vector<8x8xbf16>
    %28 = vector.shape_cast %25 : vector<8x8xbf16> to vector<1x8x8xbf16>
    tpu.vector_store %arg5[%c0_14, %c0_15, %c0_16], %28 {strides = array<i32>} : memref<1x8x32xbf16, #tpu.memory_space<vmem>>, vector<1x8x8xbf16>,
    %c0_17 = arith.constant 0 : index
    %c0_18 = arith.constant 0 : index
    %c8 = arith.constant 8 : index
    %29 = vector.load %arg2[%c0_17, %c0_18, %c8] : memref<1x8x32xbf16, #tpu.memory_space<vmem>>, vector<1x8x8xbf16>
    %30 = vector.shape_cast %29 : vector<1x8x8xbf16> to vector<8x8xbf16>
    %cst_19 = arith.constant 3.535160e-01 : bf16
    %31 = vector.broadcast %cst_19 : bf16 to vector<8x8xbf16>
    %32 = arith.mulf %30, %31 : vector<8x8xbf16>
    %c0_20 = arith.constant 0 : index
    %c0_21 = arith.constant 0 : index
    %c8_22 = arith.constant 8 : index
    %33 = vector.load %arg3[%c0_20, %c0_21, %c8_22] : memref<1x8x64xbf16, #tpu.memory_space<vmem>>, vector<1x8x8xbf16>
    %34 = vector.shape_cast %33 : vector<1x8x8xbf16> to vector<8x8xbf16>
    %c0_23 = arith.constant 0 : index
    %c0_24 = arith.constant 0 : index
    %c40 = arith.constant 40 : index
    %35 = vector.load %arg3[%c0_23, %c0_24, %c40] : memref<1x8x64xbf16, #tpu.memory_space<vmem>>, vector<1x8x8xbf16>
    %36 = vector.shape_cast %35 : vector<1x8x8xbf16> to vector<8x8xbf16>
    %cst_25 = arith.constant dense<0.000000e+00> : vector<8x8xf32>
    %37 = tpu.matmul %32, %34, %cst_25 {dimension_numbers = #tpu.dot_dimension_numbers<[1], [1], [0], [0], [0, 0, 1, 0], [], []>} : vector<8x8xbf16>, vector<8x8xbf16>, vector<8x8xf32> -> vector<8x8xf32>
    %38 = vector.broadcast %1 : vector<1x8xf32> to vector<8x8xf32>
    %39 = arith.addf %37, %38 : vector<8x8xf32>
    %cst_26 = arith.constant dense<0xFF800000> : vector<8xf32>
    %40 = vector.multi_reduction <maximumf>, %39, %cst_26 [1] : vector<8x8xf32> to vector<8xf32>
    %41 = vector.shape_cast %40 : vector<8xf32> to vector<8x1xf32>
    %42 = vector.broadcast %41 : vector<8x1xf32> to vector<8x8xf32>
    %43 = arith.subf %39, %42 : vector<8x8xf32>
    %44 = math.exp %43 : vector<8x8xf32>
    %cst_27 = arith.constant dense<0.000000e+00> : vector<8xf32>
    %45 = vector.multi_reduction <add>, %44, %cst_27 [1] : vector<8x8xf32> to vector<8xf32>
    %46 = vector.shape_cast %45 : vector<8xf32> to vector<8x1xf32>
    %47 = tpu.reciprocal %46 {approx = true} : vector<8x1xf32> -> vector<8x1xf32>
    %48 = arith.truncf %44 : vector<8x8xf32> to vector<8x8xbf16>
    %cst_28 = arith.constant dense<0.000000e+00> : vector<8x8xf32>
    %49 = tpu.matmul %48, %36, %cst_28 {dimension_numbers = #tpu.dot_dimension_numbers<[1], [0], [0], [1], [0, 0, 1, 1], [], []>} : vector<8x8xbf16>, vector<8x8xbf16>, vector<8x8xf32> -> vector<8x8xf32>
    %50 = vector.broadcast %47 : vector<8x1xf32> to vector<8x8xf32>
    %51 = arith.mulf %49, %50 : vector<8x8xf32>
    %52 = arith.truncf %51 : vector<8x8xf32> to vector<8x8xbf16>
    %c0_29 = arith.constant 0 : index
    %c0_30 = arith.constant 0 : index
    %c8_31 = arith.constant 8 : index
    %53 = vector.load %arg5[%c0_29, %c0_30, %c8_31] : memref<1x8x32xbf16, #tpu.memory_space<vmem>>, vector<1x8x8xbf16>
    %54 = vector.shape_cast %53 : vector<1x8x8xbf16> to vector<8x8xbf16>
    %55 = vector.shape_cast %52 : vector<8x8xbf16> to vector<1x8x8xbf16>
    tpu.vector_store %arg5[%c0_29, %c0_30, %c8_31], %55 {strides = array<i32>} : memref<1x8x32xbf16, #tpu.memory_space<vmem>>, vector<1x8x8xbf16>,
    %c0_32 = arith.constant 0 : index
    %c0_33 = arith.constant 0 : index
    %c16 = arith.constant 16 : index
    %56 = vector.load %arg2[%c0_32, %c0_33, %c16] : memref<1x8x32xbf16, #tpu.memory_space<vmem>>, vector<1x8x8xbf16>
    %57 = vector.shape_cast %56 : vector<1x8x8xbf16> to vector<8x8xbf16>
    %cst_34 = arith.constant 3.535160e-01 : bf16
    %58 = vector.broadcast %cst_34 : bf16 to vector<8x8xbf16>
    %59 = arith.mulf %57, %58 : vector<8x8xbf16>
    %c0_35 = arith.constant 0 : index
    %c0_36 = arith.constant 0 : index
    %c16_37 = arith.constant 16 : index
    %60 = vector.load %arg3[%c0_35, %c0_36, %c16_37] : memref<1x8x64xbf16, #tpu.memory_space<vmem>>, vector<1x8x8xbf16>
    %61 = vector.shape_cast %60 : vector<1x8x8xbf16> to vector<8x8xbf16>
    %c0_38 = arith.constant 0 : index
    %c0_39 = arith.constant 0 : index
    %c48 = arith.constant 48 : index
    %62 = vector.load %arg3[%c0_38, %c0_39, %c48] : memref<1x8x64xbf16, #tpu.memory_space<vmem>>, vector<1x8x8xbf16>
    %63 = vector.shape_cast %62 : vector<1x8x8xbf16> to vector<8x8xbf16>
    %cst_40 = arith.constant dense<0.000000e+00> : vector<8x8xf32>
    %64 = tpu.matmul %59, %61, %cst_40 {dimension_numbers = #tpu.dot_dimension_numbers<[1], [1], [0], [0], [0, 0, 1, 0], [], []>} : vector<8x8xbf16>, vector<8x8xbf16>, vector<8x8xf32> -> vector<8x8xf32>
    %65 = vector.broadcast %1 : vector<1x8xf32> to vector<8x8xf32>
    %66 = arith.addf %64, %65 : vector<8x8xf32>
    %cst_41 = arith.constant dense<0xFF800000> : vector<8xf32>
    %67 = vector.multi_reduction <maximumf>, %66, %cst_41 [1] : vector<8x8xf32> to vector<8xf32>
    %68 = vector.shape_cast %67 : vector<8xf32> to vector<8x1xf32>
    %69 = vector.broadcast %68 : vector<8x1xf32> to vector<8x8xf32>
    %70 = arith.subf %66, %69 : vector<8x8xf32>
    %71 = math.exp %70 : vector<8x8xf32>
    %cst_42 = arith.constant dense<0.000000e+00> : vector<8xf32>
    %72 = vector.multi_reduction <add>, %71, %cst_42 [1] : vector<8x8xf32> to vector<8xf32>
    %73 = vector.shape_cast %72 : vector<8xf32> to vector<8x1xf32>
    %74 = tpu.reciprocal %73 {approx = true} : vector<8x1xf32> -> vector<8x1xf32>
    %75 = arith.truncf %71 : vector<8x8xf32> to vector<8x8xbf16>
    %cst_43 = arith.constant dense<0.000000e+00> : vector<8x8xf32>
    %76 = tpu.matmul %75, %63, %cst_43 {dimension_numbers = #tpu.dot_dimension_numbers<[1], [0], [0], [1], [0, 0, 1, 1], [], []>} : vector<8x8xbf16>, vector<8x8xbf16>, vector<8x8xf32> -> vector<8x8xf32>
    %77 = vector.broadcast %74 : vector<8x1xf32> to vector<8x8xf32>
    %78 = arith.mulf %76, %77 : vector<8x8xf32>
    %79 = arith.truncf %78 : vector<8x8xf32> to vector<8x8xbf16>
    %c0_44 = arith.constant 0 : index
    %c0_45 = arith.constant 0 : index
    %c16_46 = arith.constant 16 : index
    %80 = vector.load %arg5[%c0_44, %c0_45, %c16_46] : memref<1x8x32xbf16, #tpu.memory_space<vmem>>, vector<1x8x8xbf16>
    %81 = vector.shape_cast %80 : vector<1x8x8xbf16> to vector<8x8xbf16>
    %82 = vector.shape_cast %79 : vector<8x8xbf16> to vector<1x8x8xbf16>
    tpu.vector_store %arg5[%c0_44, %c0_45, %c16_46], %82 {strides = array<i32>} : memref<1x8x32xbf16, #tpu.memory_space<vmem>>, vector<1x8x8xbf16>,
    %c0_47 = arith.constant 0 : index
    %c0_48 = arith.constant 0 : index
    %c24 = arith.constant 24 : index
    %83 = vector.load %arg2[%c0_47, %c0_48, %c24] : memref<1x8x32xbf16, #tpu.memory_space<vmem>>, vector<1x8x8xbf16>
    %84 = vector.shape_cast %83 : vector<1x8x8xbf16> to vector<8x8xbf16>
    %cst_49 = arith.constant 3.535160e-01 : bf16
    %85 = vector.broadcast %cst_49 : bf16 to vector<8x8xbf16>
    %86 = arith.mulf %84, %85 : vector<8x8xbf16>
    %c0_50 = arith.constant 0 : index
    %c0_51 = arith.constant 0 : index
    %c24_52 = arith.constant 24 : index
    %87 = vector.load %arg3[%c0_50, %c0_51, %c24_52] : memref<1x8x64xbf16, #tpu.memory_space<vmem>>, vector<1x8x8xbf16>
    %88 = vector.shape_cast %87 : vector<1x8x8xbf16> to vector<8x8xbf16>
    %c0_53 = arith.constant 0 : index
    %c0_54 = arith.constant 0 : index
    %c56 = arith.constant 56 : index
    %89 = vector.load %arg3[%c0_53, %c0_54, %c56] : memref<1x8x64xbf16, #tpu.memory_space<vmem>>, vector<1x8x8xbf16>
    %90 = vector.shape_cast %89 : vector<1x8x8xbf16> to vector<8x8xbf16>
    %cst_55 = arith.constant dense<0.000000e+00> : vector<8x8xf32>
    %91 = tpu.matmul %86, %88, %cst_55 {dimension_numbers = #tpu.dot_dimension_numbers<[1], [1], [0], [0], [0, 0, 1, 0], [], []>} : vector<8x8xbf16>, vector<8x8xbf16>, vector<8x8xf32> -> vector<8x8xf32>
    %92 = vector.broadcast %1 : vector<1x8xf32> to vector<8x8xf32>
    %93 = arith.addf %91, %92 : vector<8x8xf32>
    %cst_56 = arith.constant dense<0xFF800000> : vector<8xf32>
    %94 = vector.multi_reduction <maximumf>, %93, %cst_56 [1] : vector<8x8xf32> to vector<8xf32>
    %95 = vector.shape_cast %94 : vector<8xf32> to vector<8x1xf32>
    %96 = vector.broadcast %95 : vector<8x1xf32> to vector<8x8xf32>
    %97 = arith.subf %93, %96 : vector<8x8xf32>
    %98 = math.exp %97 : vector<8x8xf32>
    %cst_57 = arith.constant dense<0.000000e+00> : vector<8xf32>
    %99 = vector.multi_reduction <add>, %98, %cst_57 [1] : vector<8x8xf32> to vector<8xf32>
    %100 = vector.shape_cast %99 : vector<8xf32> to vector<8x1xf32>
    %101 = tpu.reciprocal %100 {approx = true} : vector<8x1xf32> -> vector<8x1xf32>
    %102 = arith.truncf %98 : vector<8x8xf32> to vector<8x8xbf16>
    %cst_58 = arith.constant dense<0.000000e+00> : vector<8x8xf32>
    %103 = tpu.matmul %102, %90, %cst_58 {dimension_numbers = #tpu.dot_dimension_numbers<[1], [0], [0], [1], [0, 0, 1, 1], [], []>} : vector<8x8xbf16>, vector<8x8xbf16>, vector<8x8xf32> -> vector<8x8xf32>
    %104 = vector.broadcast %101 : vector<8x1xf32> to vector<8x8xf32>
    %105 = arith.mulf %103, %104 : vector<8x8xf32>
    %106 = arith.truncf %105 : vector<8x8xf32> to vector<8x8xbf16>
    %c0_59 = arith.constant 0 : index
    %c0_60 = arith.constant 0 : index
    %c24_61 = arith.constant 24 : index
    %107 = vector.load %arg5[%c0_59, %c0_60, %c24_61] : memref<1x8x32xbf16, #tpu.memory_space<vmem>>, vector<1x8x8xbf16>
    %108 = vector.shape_cast %107 : vector<1x8x8xbf16> to vector<8x8xbf16>
    %109 = vector.shape_cast %106 : vector<8x8xbf16> to vector<1x8x8xbf16>
    tpu.vector_store %arg5[%c0_59, %c0_60, %c24_61], %109 {strides = array<i32>} : memref<1x8x32xbf16, #tpu.memory_space<vmem>>, vector<1x8x8xbf16>,
    return
  }
  func.func @transform_0(%arg0: i32, %arg1: i32) -> (i32, i32, i32) {
    %c0_i32 = arith.constant 0 : i32
    %c0_i32_0 = arith.constant 0 : i32
    return %arg0, %arg1, %c0_i32 : i32, i32, i32
  }
  func.func @transform_1(%arg0: i32, %arg1: i32) -> (i32, i32, i32) {
    %c0_i32 = arith.constant 0 : i32
    %c0_i32_0 = arith.constant 0 : i32
    %c0_i32_1 = arith.constant 0 : i32
    return %arg0, %c0_i32, %c0_i32_0 : i32, i32, i32
  }
  func.func @transform_2(%arg0: i32, %arg1: i32) -> (i32, i32, i32) {
    %c0_i32 = arith.constant 0 : i32
    %c0_i32_0 = arith.constant 0 : i32
    %c0_i32_1 = arith.constant 0 : i32
    return %arg0, %c0_i32, %c0_i32_0 : i32, i32, i32
  }
  func.func @transform_3(%arg0: i32, %arg1: i32) -> (i32, i32, i32) {
    %c0_i32 = arith.constant 0 : i32
    %c0_i32_0 = arith.constant 0 : i32
    return %arg0, %arg1, %c0_i32 : i32, i32, i32
  }
}

module attributes {stable_mosaic.version = 11 : i64} {
  func.func @_linear_kernel(%arg0: i32, %arg1: i32, %arg2: i32, %arg3: memref<16x32xbf16, #tpu.memory_space<vmem>>, %arg4: memref<32x128xbf16, #tpu.memory_space<vmem>>, %arg5: memref<1x128xf32, #tpu.memory_space<vmem>>, %arg6: memref<16x128xbf16, #tpu.memory_space<vmem>>, %arg7: memref<16x128xf32, #tpu.memory_space<vmem>>) attributes {dimension_semantics = [#tpu.dimension_semantics<parallel>, #tpu.dimension_semantics<parallel>, #tpu.dimension_semantics<arbitrary>], iteration_bounds = array<i64: 1, 1, 1>, scalar_prefetch = 0 : i64, scratch_operands = 1 : i64, tpu.core_type = #tpu.core_type<tc>, window_params = [{transform_indices = @transform_0, window_bounds = array<i64: 16, 32>}, {transform_indices = @transform_1, window_bounds = array<i64: 32, 128>}, {transform_indices = @transform_2, window_bounds = array<i64: 1, 128>}, {transform_indices = @transform_3, window_bounds = array<i64: 16, 128>}]} {
    %c0_i32 = arith.constant 0 : i32
    %0 = arith.cmpi eq, %arg2, %c0_i32 : i32
    %1 = arith.extui %0 : i1 to i32
    %c0_i32_0 = arith.constant 0 : i32
    %2 = arith.cmpi ne, %1, %c0_i32_0 : i32
    scf.if %2 {
      %cst_10 = arith.constant 0.000000e+00 : f32
      %12 = vector.broadcast %cst_10 : f32 to vector<16x128xf32>
      %c0_11 = arith.constant 0 : index
      %c0_12 = arith.constant 0 : index
      %13 = vector.load %arg7[%c0_11, %c0_12] : memref<16x128xf32, #tpu.memory_space<vmem>>, vector<16x128xf32>
      tpu.vector_store %arg7[%c0_11, %c0_12], %12 {strides = array<i32>} : memref<16x128xf32, #tpu.memory_space<vmem>>, vector<16x128xf32>,
    } else {
    }
    %c0 = arith.constant 0 : index
    %c0_1 = arith.constant 0 : index
    %3 = vector.load %arg7[%c0, %c0_1] : memref<16x128xf32, #tpu.memory_space<vmem>>, vector<16x128xf32>
    %c0_2 = arith.constant 0 : index
    %c0_3 = arith.constant 0 : index
    %4 = vector.load %arg3[%c0_2, %c0_3] : memref<16x32xbf16, #tpu.memory_space<vmem>>, vector<16x32xbf16>
    %c0_4 = arith.constant 0 : index
    %c0_5 = arith.constant 0 : index
    %5 = vector.load %arg4[%c0_4, %c0_5] : memref<32x128xbf16, #tpu.memory_space<vmem>>, vector<32x128xbf16>
    %cst = arith.constant dense<0.000000e+00> : vector<16x128xf32>
    %6 = tpu.matmul %4, %5, %cst {dimension_numbers = #tpu.dot_dimension_numbers<[1], [0], [0], [1], [0, 0, 1, 1], [], []>} : vector<16x32xbf16>, vector<32x128xbf16>, vector<16x128xf32> -> vector<16x128xf32>
    %7 = arith.addf %3, %6 : vector<16x128xf32>
    %c0_6 = arith.constant 0 : index
    %c0_7 = arith.constant 0 : index
    %8 = vector.load %arg7[%c0_6, %c0_7] : memref<16x128xf32, #tpu.memory_space<vmem>>, vector<16x128xf32>
    tpu.vector_store %arg7[%c0_6, %c0_7], %7 {strides = array<i32>} : memref<16x128xf32, #tpu.memory_space<vmem>>, vector<16x128xf32>,
    %c0_i32_8 = arith.constant 0 : i32
    %9 = arith.cmpi eq, %arg2, %c0_i32_8 : i32
    %10 = arith.extui %9 : i1 to i32
    %c0_i32_9 = arith.constant 0 : i32
    %11 = arith.cmpi ne, %10, %c0_i32_9 : i32
    scf.if %11 {
      %c0_10 = arith.constant 0 : index
      %c0_11 = arith.constant 0 : index
      %12 = vector.load %arg7[%c0_10, %c0_11] : memref<16x128xf32, #tpu.memory_space<vmem>>, vector<16x128xf32>
      %c0_12 = arith.constant 0 : index
      %c0_13 = arith.constant 0 : index
      %13 = vector.load %arg5[%c0_12, %c0_13] : memref<1x128xf32, #tpu.memory_space<vmem>>, vector<1x128xf32>
      %14 = vector.broadcast %13 : vector<1x128xf32> to vector<16x128xf32>
      %15 = arith.addf %12, %14 : vector<16x128xf32>
      %cst_14 = arith.constant 0.000000e+00 : f32
      %16 = vector.broadcast %cst_14 : f32 to vector<16x128xf32>
      %17 = arith.maximumf %15, %16 : vector<16x128xf32>
      %18 = arith.truncf %17 : vector<16x128xf32> to vector<16x128xbf16>
      %c0_15 = arith.constant 0 : index
      %c0_16 = arith.constant 0 : index
      %19 = vector.load %arg6[%c0_15, %c0_16] : memref<16x128xbf16, #tpu.memory_space<vmem>>, vector<16x128xbf16>
      tpu.vector_store %arg6[%c0_15, %c0_16], %18 {strides = array<i32>} : memref<16x128xbf16, #tpu.memory_space<vmem>>, vector<16x128xbf16>,
    } else {
    }
    return
  }
  func.func @transform_0(%arg0: i32, %arg1: i32, %arg2: i32) -> (i32, i32) {
    %c0_i32 = arith.constant 0 : i32
    return %arg0, %arg2 : i32, i32
  }
  func.func @transform_1(%arg0: i32, %arg1: i32, %arg2: i32) -> (i32, i32) {
    %c0_i32 = arith.constant 0 : i32
    return %arg2, %arg1 : i32, i32
  }
  func.func @transform_2(%arg0: i32, %arg1: i32, %arg2: i32) -> (i32, i32) {
    %c0_i32 = arith.constant 0 : i32
    %c0_i32_0 = arith.constant 0 : i32
    return %c0_i32, %arg1 : i32, i32
  }
  func.func @transform_3(%arg0: i32, %arg1: i32, %arg2: i32) -> (i32, i32) {
    %c0_i32 = arith.constant 0 : i32
    return %arg0, %arg1 : i32, i32
  }
}

module attributes {stable_mosaic.version = 11 : i64} {
  func.func @_linear_add_ln_kernel(%arg0: i32, %arg1: i32, %arg2: memref<16x32xbf16, #tpu.memory_space<vmem>>, %arg3: memref<32x32xbf16, #tpu.memory_space<vmem>>, %arg4: memref<1x32xf32, #tpu.memory_space<vmem>>, %arg5: memref<16x32xbf16, #tpu.memory_space<vmem>>, %arg6: memref<1x32xf32, #tpu.memory_space<vmem>>, %arg7: memref<1x32xf32, #tpu.memory_space<vmem>>, %arg8: memref<16x32xbf16, #tpu.memory_space<vmem>>, %arg9: memref<16x32xf32, #tpu.memory_space<vmem>>) attributes {dimension_semantics = [#tpu.dimension_semantics<parallel>, #tpu.dimension_semantics<arbitrary>], iteration_bounds = array<i64: 1, 1>, scalar_prefetch = 0 : i64, scratch_operands = 1 : i64, tpu.core_type = #tpu.core_type<tc>, window_params = [{transform_indices = @transform_0, window_bounds = array<i64: 16, 32>}, {transform_indices = @transform_1, window_bounds = array<i64: 32, 32>}, {pipeline_mode = #tpu.pipeline_mode<synchronous>, transform_indices = @transform_2, window_bounds = array<i64: 1, 32>}, {transform_indices = @transform_3, window_bounds = array<i64: 16, 32>}, {pipeline_mode = #tpu.pipeline_mode<synchronous>, transform_indices = @transform_4, window_bounds = array<i64: 1, 32>}, {pipeline_mode = #tpu.pipeline_mode<synchronous>, transform_indices = @transform_5, window_bounds = array<i64: 1, 32>}, {transform_indices = @transform_6, window_bounds = array<i64: 16, 32>}]} {
    %c0_i32 = arith.constant 0 : i32
    %0 = arith.cmpi eq, %arg1, %c0_i32 : i32
    %1 = arith.extui %0 : i1 to i32
    %c0_i32_0 = arith.constant 0 : i32
    %2 = arith.cmpi ne, %1, %c0_i32_0 : i32
    scf.if %2 {
      %cst_10 = arith.constant 0.000000e+00 : f32
      %12 = vector.broadcast %cst_10 : f32 to vector<16x32xf32>
      %c0_11 = arith.constant 0 : index
      %c0_12 = arith.constant 0 : index
      %13 = vector.load %arg9[%c0_11, %c0_12] : memref<16x32xf32, #tpu.memory_space<vmem>>, vector<16x32xf32>
      tpu.vector_store %arg9[%c0_11, %c0_12], %12 {strides = array<i32>} : memref<16x32xf32, #tpu.memory_space<vmem>>, vector<16x32xf32>,
    } else {
    }
    %c0 = arith.constant 0 : index
    %c0_1 = arith.constant 0 : index
    %3 = vector.load %arg9[%c0, %c0_1] : memref<16x32xf32, #tpu.memory_space<vmem>>, vector<16x32xf32>
    %c0_2 = arith.constant 0 : index
    %c0_3 = arith.constant 0 : index
    %4 = vector.load %arg2[%c0_2, %c0_3] : memref<16x32xbf16, #tpu.memory_space<vmem>>, vector<16x32xbf16>
    %c0_4 = arith.constant 0 : index
    %c0_5 = arith.constant 0 : index
    %5 = vector.load %arg3[%c0_4, %c0_5] : memref<32x32xbf16, #tpu.memory_space<vmem>>, vector<32x32xbf16>
    %cst = arith.constant dense<0.000000e+00> : vector<16x32xf32>
    %6 = tpu.matmul %4, %5, %cst {dimension_numbers = #tpu.dot_dimension_numbers<[1], [0], [0], [1], [0, 0, 1, 1], [], []>} : vector<16x32xbf16>, vector<32x32xbf16>, vector<16x32xf32> -> vector<16x32xf32>
    %7 = arith.addf %3, %6 : vector<16x32xf32>
    %c0_6 = arith.constant 0 : index
    %c0_7 = arith.constant 0 : index
    %8 = vector.load %arg9[%c0_6, %c0_7] : memref<16x32xf32, #tpu.memory_space<vmem>>, vector<16x32xf32>
    tpu.vector_store %arg9[%c0_6, %c0_7], %7 {strides = array<i32>} : memref<16x32xf32, #tpu.memory_space<vmem>>, vector<16x32xf32>,
    %c0_i32_8 = arith.constant 0 : i32
    %9 = arith.cmpi eq, %arg1, %c0_i32_8 : i32
    %10 = arith.extui %9 : i1 to i32
    %c0_i32_9 = arith.constant 0 : i32
    %11 = arith.cmpi ne, %10, %c0_i32_9 : i32
    scf.if %11 {
      %c0_10 = arith.constant 0 : index
      %c0_11 = arith.constant 0 : index
      %12 = vector.load %arg9[%c0_10, %c0_11] : memref<16x32xf32, #tpu.memory_space<vmem>>, vector<16x32xf32>
      %c0_12 = arith.constant 0 : index
      %c0_13 = arith.constant 0 : index
      %13 = vector.load %arg4[%c0_12, %c0_13] : memref<1x32xf32, #tpu.memory_space<vmem>>, vector<1x32xf32>
      %14 = vector.broadcast %13 : vector<1x32xf32> to vector<16x32xf32>
      %15 = arith.addf %12, %14 : vector<16x32xf32>
      %c0_14 = arith.constant 0 : index
      %c0_15 = arith.constant 0 : index
      %16 = vector.load %arg5[%c0_14, %c0_15] : memref<16x32xbf16, #tpu.memory_space<vmem>>, vector<16x32xbf16>
      %17 = arith.extf %16 : vector<16x32xbf16> to vector<16x32xf32>
      %18 = arith.addf %15, %17 : vector<16x32xf32>
      %cst_16 = arith.constant dense<0.000000e+00> : vector<16xf32>
      %19 = vector.multi_reduction <add>, %18, %cst_16 [1] : vector<16x32xf32> to vector<16xf32>
      %20 = vector.shape_cast %19 : vector<16xf32> to vector<16x1xf32>
      %cst_17 = arith.constant 3.200000e+01 : f32
      %21 = vector.broadcast %cst_17 : f32 to vector<16x1xf32>
      %22 = arith.divf %20, %21 : vector<16x1xf32>
      %23 = vector.broadcast %22 : vector<16x1xf32> to vector<16x32xf32>
      %24 = arith.subf %18, %23 : vector<16x32xf32>
      %25 = arith.mulf %24, %24 : vector<16x32xf32>
      %cst_18 = arith.constant dense<0.000000e+00> : vector<16xf32>
      %26 = vector.multi_reduction <add>, %25, %cst_18 [1] : vector<16x32xf32> to vector<16xf32>
      %27 = vector.shape_cast %26 : vector<16xf32> to vector<16x1xf32>
      %cst_19 = arith.constant 3.200000e+01 : f32
      %28 = vector.broadcast %cst_19 : f32 to vector<16x1xf32>
      %29 = arith.divf %27, %28 : vector<16x1xf32>
      %cst_20 = arith.constant 9.99999974E-6 : f32
      %30 = vector.broadcast %cst_20 : f32 to vector<16x1xf32>
      %31 = arith.addf %29, %30 : vector<16x1xf32>
      %32 = math.rsqrt %31 : vector<16x1xf32>
      %33 = vector.broadcast %32 : vector<16x1xf32> to vector<16x32xf32>
      %34 = arith.mulf %24, %33 : vector<16x32xf32>
      %c0_21 = arith.constant 0 : index
      %c0_22 = arith.constant 0 : index
      %35 = vector.load %arg6[%c0_21, %c0_22] : memref<1x32xf32, #tpu.memory_space<vmem>>, vector<1x32xf32>
      %36 = vector.broadcast %35 : vector<1x32xf32> to vector<16x32xf32>
      %37 = arith.mulf %34, %36 : vector<16x32xf32>
      %c0_23 = arith.constant 0 : index
      %c0_24 = arith.constant 0 : index
      %38 = vector.load %arg7[%c0_23, %c0_24] : memref<1x32xf32, #tpu.memory_space<vmem>>, vector<1x32xf32>
      %39 = vector.broadcast %38 : vector<1x32xf32> to vector<16x32xf32>
      %40 = arith.addf %37, %39 : vector<16x32xf32>
      %41 = arith.truncf %40 : vector<16x32xf32> to vector<16x32xbf16>
      %c0_25 = arith.constant 0 : index
      %c0_26 = arith.constant 0 : index
      %42 = vector.load %arg8[%c0_25, %c0_26] : memref<16x32xbf16, #tpu.memory_space<vmem>>, vector<16x32xbf16>
      tpu.vector_store %arg8[%c0_25, %c0_26], %41 {strides = array<i32>} : memref<16x32xbf16, #tpu.memory_space<vmem>>, vector<16x32xbf16>,
    } else {
    }
    return
  }
  func.func @transform_0(%arg0: i32, %arg1: i32) -> (i32, i32) {
    %c0_i32 = arith.constant 0 : i32
    return %arg0, %arg1 : i32, i32
  }
  func.func @transform_1(%arg0: i32, %arg1: i32) -> (i32, i32) {
    %c0_i32 = arith.constant 0 : i32
    %c0_i32_0 = arith.constant 0 : i32
    return %arg1, %c0_i32 : i32, i32
  }
  func.func @transform_2(%arg0: i32, %arg1: i32) -> (i32, i32) {
    %c0_i32 = arith.constant 0 : i32
    %c0_i32_0 = arith.constant 0 : i32
    %c0_i32_1 = arith.constant 0 : i32
    return %c0_i32, %c0_i32_0 : i32, i32
  }
  func.func @transform_3(%arg0: i32, %arg1: i32) -> (i32, i32) {
    %c0_i32 = arith.constant 0 : i32
    %c0_i32_0 = arith.constant 0 : i32
    return %arg0, %c0_i32 : i32, i32
  }
  func.func @transform_4(%arg0: i32, %arg1: i32) -> (i32, i32) {
    %c0_i32 = arith.constant 0 : i32
    %c0_i32_0 = arith.constant 0 : i32
    %c0_i32_1 = arith.constant 0 : i32
    return %c0_i32, %c0_i32_0 : i32, i32
  }
  func.func @transform_5(%arg0: i32, %arg1: i32) -> (i32, i32) {
    %c0_i32 = arith.constant 0 : i32
    %c0_i32_0 = arith.constant 0 : i32
    %c0_i32_1 = arith.constant 0 : i32
    return %c0_i32, %c0_i32_0 : i32, i32
  }
  func.func @transform_6(%arg0: i32, %arg1: i32) -> (i32, i32) {
    %c0_i32 = arith.constant 0 : i32
    %c0_i32_0 = arith.constant 0 : i32
    return %arg0, %c0_i32 : i32, i32
  }
}

module attributes {stable_mosaic.version = 11 : i64} {
  func.func @_linear_add_ln_kernel(%arg0: i32, %arg1: i32, %arg2: memref<16x128xbf16, #tpu.memory_space<vmem>>, %arg3: memref<128x32xbf16, #tpu.memory_space<vmem>>, %arg4: memref<1x32xf32, #tpu.memory_space<vmem>>, %arg5: memref<16x32xbf16, #tpu.memory_space<vmem>>, %arg6: memref<1x32xf32, #tpu.memory_space<vmem>>, %arg7: memref<1x32xf32, #tpu.memory_space<vmem>>, %arg8: memref<16x32xbf16, #tpu.memory_space<vmem>>, %arg9: memref<16x32xf32, #tpu.memory_space<vmem>>) attributes {dimension_semantics = [#tpu.dimension_semantics<parallel>, #tpu.dimension_semantics<arbitrary>], iteration_bounds = array<i64: 1, 1>, scalar_prefetch = 0 : i64, scratch_operands = 1 : i64, tpu.core_type = #tpu.core_type<tc>, window_params = [{transform_indices = @transform_0, window_bounds = array<i64: 16, 128>}, {transform_indices = @transform_1, window_bounds = array<i64: 128, 32>}, {pipeline_mode = #tpu.pipeline_mode<synchronous>, transform_indices = @transform_2, window_bounds = array<i64: 1, 32>}, {transform_indices = @transform_3, window_bounds = array<i64: 16, 32>}, {pipeline_mode = #tpu.pipeline_mode<synchronous>, transform_indices = @transform_4, window_bounds = array<i64: 1, 32>}, {pipeline_mode = #tpu.pipeline_mode<synchronous>, transform_indices = @transform_5, window_bounds = array<i64: 1, 32>}, {transform_indices = @transform_6, window_bounds = array<i64: 16, 32>}]} {
    %c0_i32 = arith.constant 0 : i32
    %0 = arith.cmpi eq, %arg1, %c0_i32 : i32
    %1 = arith.extui %0 : i1 to i32
    %c0_i32_0 = arith.constant 0 : i32
    %2 = arith.cmpi ne, %1, %c0_i32_0 : i32
    scf.if %2 {
      %cst_10 = arith.constant 0.000000e+00 : f32
      %12 = vector.broadcast %cst_10 : f32 to vector<16x32xf32>
      %c0_11 = arith.constant 0 : index
      %c0_12 = arith.constant 0 : index
      %13 = vector.load %arg9[%c0_11, %c0_12] : memref<16x32xf32, #tpu.memory_space<vmem>>, vector<16x32xf32>
      tpu.vector_store %arg9[%c0_11, %c0_12], %12 {strides = array<i32>} : memref<16x32xf32, #tpu.memory_space<vmem>>, vector<16x32xf32>,
    } else {
    }
    %c0 = arith.constant 0 : index
    %c0_1 = arith.constant 0 : index
    %3 = vector.load %arg9[%c0, %c0_1] : memref<16x32xf32, #tpu.memory_space<vmem>>, vector<16x32xf32>
    %c0_2 = arith.constant 0 : index
    %c0_3 = arith.constant 0 : index
    %4 = vector.load %arg2[%c0_2, %c0_3] : memref<16x128xbf16, #tpu.memory_space<vmem>>, vector<16x128xbf16>
    %c0_4 = arith.constant 0 : index
    %c0_5 = arith.constant 0 : index
    %5 = vector.load %arg3[%c0_4, %c0_5] : memref<128x32xbf16, #tpu.memory_space<vmem>>, vector<128x32xbf16>
    %cst = arith.constant dense<0.000000e+00> : vector<16x32xf32>
    %6 = tpu.matmul %4, %5, %cst {dimension_numbers = #tpu.dot_dimension_numbers<[1], [0], [0], [1], [0, 0, 1, 1], [], []>} : vector<16x128xbf16>, vector<128x32xbf16>, vector<16x32xf32> -> vector<16x32xf32>
    %7 = arith.addf %3, %6 : vector<16x32xf32>
    %c0_6 = arith.constant 0 : index
    %c0_7 = arith.constant 0 : index
    %8 = vector.load %arg9[%c0_6, %c0_7] : memref<16x32xf32, #tpu.memory_space<vmem>>, vector<16x32xf32>
    tpu.vector_store %arg9[%c0_6, %c0_7], %7 {strides = array<i32>} : memref<16x32xf32, #tpu.memory_space<vmem>>, vector<16x32xf32>,
    %c0_i32_8 = arith.constant 0 : i32
    %9 = arith.cmpi eq, %arg1, %c0_i32_8 : i32
    %10 = arith.extui %9 : i1 to i32
    %c0_i32_9 = arith.constant 0 : i32
    %11 = arith.cmpi ne, %10, %c0_i32_9 : i32
    scf.if %11 {
      %c0_10 = arith.constant 0 : index
      %c0_11 = arith.constant 0 : index
      %12 = vector.load %arg9[%c0_10, %c0_11] : memref<16x32xf32, #tpu.memory_space<vmem>>, vector<16x32xf32>
      %c0_12 = arith.constant 0 : index
      %c0_13 = arith.constant 0 : index
      %13 = vector.load %arg4[%c0_12, %c0_13] : memref<1x32xf32, #tpu.memory_space<vmem>>, vector<1x32xf32>
      %14 = vector.broadcast %13 : vector<1x32xf32> to vector<16x32xf32>
      %15 = arith.addf %12, %14 : vector<16x32xf32>
      %c0_14 = arith.constant 0 : index
      %c0_15 = arith.constant 0 : index
      %16 = vector.load %arg5[%c0_14, %c0_15] : memref<16x32xbf16, #tpu.memory_space<vmem>>, vector<16x32xbf16>
      %17 = arith.extf %16 : vector<16x32xbf16> to vector<16x32xf32>
      %18 = arith.addf %15, %17 : vector<16x32xf32>
      %cst_16 = arith.constant dense<0.000000e+00> : vector<16xf32>
      %19 = vector.multi_reduction <add>, %18, %cst_16 [1] : vector<16x32xf32> to vector<16xf32>
      %20 = vector.shape_cast %19 : vector<16xf32> to vector<16x1xf32>
      %cst_17 = arith.constant 3.200000e+01 : f32
      %21 = vector.broadcast %cst_17 : f32 to vector<16x1xf32>
      %22 = arith.divf %20, %21 : vector<16x1xf32>
      %23 = vector.broadcast %22 : vector<16x1xf32> to vector<16x32xf32>
      %24 = arith.subf %18, %23 : vector<16x32xf32>
      %25 = arith.mulf %24, %24 : vector<16x32xf32>
      %cst_18 = arith.constant dense<0.000000e+00> : vector<16xf32>
      %26 = vector.multi_reduction <add>, %25, %cst_18 [1] : vector<16x32xf32> to vector<16xf32>
      %27 = vector.shape_cast %26 : vector<16xf32> to vector<16x1xf32>
      %cst_19 = arith.constant 3.200000e+01 : f32
      %28 = vector.broadcast %cst_19 : f32 to vector<16x1xf32>
      %29 = arith.divf %27, %28 : vector<16x1xf32>
      %cst_20 = arith.constant 9.99999974E-6 : f32
      %30 = vector.broadcast %cst_20 : f32 to vector<16x1xf32>
      %31 = arith.addf %29, %30 : vector<16x1xf32>
      %32 = math.rsqrt %31 : vector<16x1xf32>
      %33 = vector.broadcast %32 : vector<16x1xf32> to vector<16x32xf32>
      %34 = arith.mulf %24, %33 : vector<16x32xf32>
      %c0_21 = arith.constant 0 : index
      %c0_22 = arith.constant 0 : index
      %35 = vector.load %arg6[%c0_21, %c0_22] : memref<1x32xf32, #tpu.memory_space<vmem>>, vector<1x32xf32>
      %36 = vector.broadcast %35 : vector<1x32xf32> to vector<16x32xf32>
      %37 = arith.mulf %34, %36 : vector<16x32xf32>
      %c0_23 = arith.constant 0 : index
      %c0_24 = arith.constant 0 : index
      %38 = vector.load %arg7[%c0_23, %c0_24] : memref<1x32xf32, #tpu.memory_space<vmem>>, vector<1x32xf32>
      %39 = vector.broadcast %38 : vector<1x32xf32> to vector<16x32xf32>
      %40 = arith.addf %37, %39 : vector<16x32xf32>
      %41 = arith.truncf %40 : vector<16x32xf32> to vector<16x32xbf16>
      %c0_25 = arith.constant 0 : index
      %c0_26 = arith.constant 0 : index
      %42 = vector.load %arg8[%c0_25, %c0_26] : memref<16x32xbf16, #tpu.memory_space<vmem>>, vector<16x32xbf16>
      tpu.vector_store %arg8[%c0_25, %c0_26], %41 {strides = array<i32>} : memref<16x32xbf16, #tpu.memory_space<vmem>>, vector<16x32xbf16>,
    } else {
    }
    return
  }
  func.func @transform_0(%arg0: i32, %arg1: i32) -> (i32, i32) {
    %c0_i32 = arith.constant 0 : i32
    return %arg0, %arg1 : i32, i32
  }
  func.func @transform_1(%arg0: i32, %arg1: i32) -> (i32, i32) {
    %c0_i32 = arith.constant 0 : i32
    %c0_i32_0 = arith.constant 0 : i32
    return %arg1, %c0_i32 : i32, i32
  }
  func.func @transform_2(%arg0: i32, %arg1: i32) -> (i32, i32) {
    %c0_i32 = arith.constant 0 : i32
    %c0_i32_0 = arith.constant 0 : i32
    %c0_i32_1 = arith.constant 0 : i32
    return %c0_i32, %c0_i32_0 : i32, i32
  }
  func.func @transform_3(%arg0: i32, %arg1: i32) -> (i32, i32) {
    %c0_i32 = arith.constant 0 : i32
    %c0_i32_0 = arith.constant 0 : i32
    return %arg0, %c0_i32 : i32, i32
  }
  func.func @transform_4(%arg0: i32, %arg1: i32) -> (i32, i32) {
    %c0_i32 = arith.constant 0 : i32
    %c0_i32_0 = arith.constant 0 : i32
    %c0_i32_1 = arith.constant 0 : i32
    return %c0_i32, %c0_i32_0 : i32, i32
  }
  func.func @transform_5(%arg0: i32, %arg1: i32) -> (i32, i32) {
    %c0_i32 = arith.constant 0 : i32
    %c0_i32_0 = arith.constant 0 : i32
    %c0_i32_1 = arith.constant 0 : i32
    return %c0_i32, %c0_i32_0 : i32, i32
  }
  func.func @transform_6(%arg0: i32, %arg1: i32) -> (i32, i32) {
    %c0_i32 = arith.constant 0 : i32
    %c0_i32_0 = arith.constant 0 : i32
    return %arg0, %c0_i32 : i32, i32
  }
}

module attributes {stable_mosaic.version = 11 : i64} {
  func.func @_linear_add_ln_kernel(%arg0: i32, %arg1: i32, %arg2: memref<16x128xbf16, #tpu.memory_space<vmem>>, %arg3: memref<128x32xbf16, #tpu.memory_space<vmem>>, %arg4: memref<1x32xf32, #tpu.memory_space<vmem>>, %arg5: memref<16x32xbf16, #tpu.memory_space<vmem>>, %arg6: memref<1x32xf32, #tpu.memory_space<vmem>>, %arg7: memref<1x32xf32, #tpu.memory_space<vmem>>, %arg8: memref<16x32xbf16, #tpu.memory_space<vmem>>, %arg9: memref<16x32xf32, #tpu.memory_space<vmem>>) attributes {dimension_semantics = [#tpu.dimension_semantics<parallel>, #tpu.dimension_semantics<arbitrary>], iteration_bounds = array<i64: 1, 1>, scalar_prefetch = 0 : i64, scratch_operands = 1 : i64, tpu.core_type = #tpu.core_type<tc>, window_params = [{transform_indices = @transform_0, window_bounds = array<i64: 16, 128>}, {transform_indices = @transform_1, window_bounds = array<i64: 128, 32>}, {pipeline_mode = #tpu.pipeline_mode<synchronous>, transform_indices = @transform_2, window_bounds = array<i64: 1, 32>}, {transform_indices = @transform_3, window_bounds = array<i64: 16, 32>}, {pipeline_mode = #tpu.pipeline_mode<synchronous>, transform_indices = @transform_4, window_bounds = array<i64: 1, 32>}, {pipeline_mode = #tpu.pipeline_mode<synchronous>, transform_indices = @transform_5, window_bounds = array<i64: 1, 32>}, {transform_indices = @transform_6, window_bounds = array<i64: 16, 32>}]} {
    %c0_i32 = arith.constant 0 : i32
    %0 = arith.cmpi eq, %arg1, %c0_i32 : i32
    %1 = arith.extui %0 : i1 to i32
    %c0_i32_0 = arith.constant 0 : i32
    %2 = arith.cmpi ne, %1, %c0_i32_0 : i32
    scf.if %2 {
      %cst_10 = arith.constant 0.000000e+00 : f32
      %12 = vector.broadcast %cst_10 : f32 to vector<16x32xf32>
      %c0_11 = arith.constant 0 : index
      %c0_12 = arith.constant 0 : index
      %13 = vector.load %arg9[%c0_11, %c0_12] : memref<16x32xf32, #tpu.memory_space<vmem>>, vector<16x32xf32>
      tpu.vector_store %arg9[%c0_11, %c0_12], %12 {strides = array<i32>} : memref<16x32xf32, #tpu.memory_space<vmem>>, vector<16x32xf32>,
    } else {
    }
    %c0 = arith.constant 0 : index
    %c0_1 = arith.constant 0 : index
    %3 = vector.load %arg9[%c0, %c0_1] : memref<16x32xf32, #tpu.memory_space<vmem>>, vector<16x32xf32>
    %c0_2 = arith.constant 0 : index
    %c0_3 = arith.constant 0 : index
    %4 = vector.load %arg2[%c0_2, %c0_3] : memref<16x128xbf16, #tpu.memory_space<vmem>>, vector<16x128xbf16>
    %c0_4 = arith.constant 0 : index
    %c0_5 = arith.constant 0 : index
    %5 = vector.load %arg3[%c0_4, %c0_5] : memref<128x32xbf16, #tpu.memory_space<vmem>>, vector<128x32xbf16>
    %cst = arith.constant dense<0.000000e+00> : vector<16x32xf32>
    %6 = tpu.matmul %4, %5, %cst {dimension_numbers = #tpu.dot_dimension_numbers<[1], [0], [0], [1], [0, 0, 1, 1], [], []>} : vector<16x128xbf16>, vector<128x32xbf16>, vector<16x32xf32> -> vector<16x32xf32>
    %7 = arith.addf %3, %6 : vector<16x32xf32>
    %c0_6 = arith.constant 0 : index
    %c0_7 = arith.constant 0 : index
    %8 = vector.load %arg9[%c0_6, %c0_7] : memref<16x32xf32, #tpu.memory_space<vmem>>, vector<16x32xf32>
    tpu.vector_store %arg9[%c0_6, %c0_7], %7 {strides = array<i32>} : memref<16x32xf32, #tpu.memory_space<vmem>>, vector<16x32xf32>,
    %c0_i32_8 = arith.constant 0 : i32
    %9 = arith.cmpi eq, %arg1, %c0_i32_8 : i32
    %10 = arith.extui %9 : i1 to i32
    %c0_i32_9 = arith.constant 0 : i32
    %11 = arith.cmpi ne, %10, %c0_i32_9 : i32
    scf.if %11 {
      %c0_10 = arith.constant 0 : index
      %c0_11 = arith.constant 0 : index
      %12 = vector.load %arg9[%c0_10, %c0_11] : memref<16x32xf32, #tpu.memory_space<vmem>>, vector<16x32xf32>
      %c0_12 = arith.constant 0 : index
      %c0_13 = arith.constant 0 : index
      %13 = vector.load %arg4[%c0_12, %c0_13] : memref<1x32xf32, #tpu.memory_space<vmem>>, vector<1x32xf32>
      %14 = vector.broadcast %13 : vector<1x32xf32> to vector<16x32xf32>
      %15 = arith.addf %12, %14 : vector<16x32xf32>
      %c0_14 = arith.constant 0 : index
      %c0_15 = arith.constant 0 : index
      %16 = vector.load %arg5[%c0_14, %c0_15] : memref<16x32xbf16, #tpu.memory_space<vmem>>, vector<16x32xbf16>
      %17 = arith.extf %16 : vector<16x32xbf16> to vector<16x32xf32>
      %18 = arith.addf %15, %17 : vector<16x32xf32>
      %cst_16 = arith.constant dense<0.000000e+00> : vector<16xf32>
      %19 = vector.multi_reduction <add>, %18, %cst_16 [1] : vector<16x32xf32> to vector<16xf32>
      %20 = vector.shape_cast %19 : vector<16xf32> to vector<16x1xf32>
      %cst_17 = arith.constant 3.200000e+01 : f32
      %21 = vector.broadcast %cst_17 : f32 to vector<16x1xf32>
      %22 = arith.divf %20, %21 : vector<16x1xf32>
      %23 = vector.broadcast %22 : vector<16x1xf32> to vector<16x32xf32>
      %24 = arith.subf %18, %23 : vector<16x32xf32>
      %25 = arith.mulf %24, %24 : vector<16x32xf32>
      %cst_18 = arith.constant dense<0.000000e+00> : vector<16xf32>
      %26 = vector.multi_reduction <add>, %25, %cst_18 [1] : vector<16x32xf32> to vector<16xf32>
      %27 = vector.shape_cast %26 : vector<16xf32> to vector<16x1xf32>
      %cst_19 = arith.constant 3.200000e+01 : f32
      %28 = vector.broadcast %cst_19 : f32 to vector<16x1xf32>
      %29 = arith.divf %27, %28 : vector<16x1xf32>
      %cst_20 = arith.constant 9.99999974E-6 : f32
      %30 = vector.broadcast %cst_20 : f32 to vector<16x1xf32>
      %31 = arith.addf %29, %30 : vector<16x1xf32>
      %32 = math.rsqrt %31 : vector<16x1xf32>
      %33 = vector.broadcast %32 : vector<16x1xf32> to vector<16x32xf32>
      %34 = arith.mulf %24, %33 : vector<16x32xf32>
      %c0_21 = arith.constant 0 : index
      %c0_22 = arith.constant 0 : index
      %35 = vector.load %arg6[%c0_21, %c0_22] : memref<1x32xf32, #tpu.memory_space<vmem>>, vector<1x32xf32>
      %36 = vector.broadcast %35 : vector<1x32xf32> to vector<16x32xf32>
      %37 = arith.mulf %34, %36 : vector<16x32xf32>
      %c0_23 = arith.constant 0 : index
      %c0_24 = arith.constant 0 : index
      %38 = vector.load %arg7[%c0_23, %c0_24] : memref<1x32xf32, #tpu.memory_space<vmem>>, vector<1x32xf32>
      %39 = vector.broadcast %38 : vector<1x32xf32> to vector<16x32xf32>
      %40 = arith.addf %37, %39 : vector<16x32xf32>
      %41 = arith.truncf %40 : vector<16x32xf32> to vector<16x32xbf16>
      %c0_25 = arith.constant 0 : index
      %c0_26 = arith.constant 0 : index
      %42 = vector.load %arg8[%c0_25, %c0_26] : memref<16x32xbf16, #tpu.memory_space<vmem>>, vector<16x32xbf16>
      tpu.vector_store %arg8[%c0_25, %c0_26], %41 {strides = array<i32>} : memref<16x32xbf16, #tpu.memory_space<vmem>>, vector<16x32xbf16>,
    } else {
    }
    return
  }
  func.func @transform_0(%arg0: i32, %arg1: i32) -> (i32, i32) {
    %c0_i32 = arith.constant 0 : i32
    return %arg0, %arg1 : i32, i32
  }
  func.func @transform_1(%arg0: i32, %arg1: i32) -> (i32, i32) {
    %c0_i32 = arith.constant 0 : i32
    %c0_i32_0 = arith.constant 0 : i32
    return %arg1, %c0_i32 : i32, i32
  }
  func.func @transform_2(%arg0: i32, %arg1: i32) -> (i32, i32) {
    %c0_i32 = arith.constant 0 : i32
    %c0_i32_0 = arith.constant 0 : i32
    %c0_i32_1 = arith.constant 0 : i32
    return %c0_i32, %c0_i32_0 : i32, i32
  }
  func.func @transform_3(%arg0: i32, %arg1: i32) -> (i32, i32) {
    %c0_i32 = arith.constant 0 : i32
    %c0_i32_0 = arith.constant 0 : i32
    return %arg0, %c0_i32 : i32, i32
  }
  func.func @transform_4(%arg0: i32, %arg1: i32) -> (i32, i32) {
    %c0_i32 = arith.constant 0 : i32
    %c0_i32_0 = arith.constant 0 : i32
    %c0_i32_1 = arith.constant 0 : i32
    return %c0_i32, %c0_i32_0 : i32, i32
  }
  func.func @transform_5(%arg0: i32, %arg1: i32) -> (i32, i32) {
    %c0_i32 = arith.constant 0 : i32
    %c0_i32_0 = arith.constant 0 : i32
    %c0_i32_1 = arith.constant 0 : i32
    return %c0_i32, %c0_i32_0 : i32, i32
  }
  func.func @transform_6(%arg0: i32, %arg1: i32) -> (i32, i32) {
    %c0_i32 = arith.constant 0 : i32
    %c0_i32_0 = arith.constant 0 : i32
    return %arg0, %c0_i32 : i32, i32
  }
}

module attributes {stable_mosaic.version = 11 : i64} {
  func.func @_ln_kernel(%arg0: i32, %arg1: memref<16x32xbf16, #tpu.memory_space<vmem>>, %arg2: memref<1x32xf32, #tpu.memory_space<vmem>>, %arg3: memref<1x32xf32, #tpu.memory_space<vmem>>, %arg4: memref<16x32xbf16, #tpu.memory_space<vmem>>) attributes {dimension_semantics = [#tpu.dimension_semantics<parallel>], iteration_bounds = array<i64: 1>, scalar_prefetch = 0 : i64, scratch_operands = 0 : i64, tpu.core_type = #tpu.core_type<tc>, window_params = [{transform_indices = @transform_0, window_bounds = array<i64: 16, 32>}, {pipeline_mode = #tpu.pipeline_mode<synchronous>, transform_indices = @transform_1, window_bounds = array<i64: 1, 32>}, {pipeline_mode = #tpu.pipeline_mode<synchronous>, transform_indices = @transform_2, window_bounds = array<i64: 1, 32>}, {transform_indices = @transform_3, window_bounds = array<i64: 16, 32>}]} {
    %c0 = arith.constant 0 : index
    %c0_0 = arith.constant 0 : index
    %0 = vector.load %arg1[%c0, %c0_0] : memref<16x32xbf16, #tpu.memory_space<vmem>>, vector<16x32xbf16>
    %1 = arith.extf %0 : vector<16x32xbf16> to vector<16x32xf32>
    %cst = arith.constant dense<0.000000e+00> : vector<16xf32>
    %2 = vector.multi_reduction <add>, %1, %cst [1] : vector<16x32xf32> to vector<16xf32>
    %3 = vector.shape_cast %2 : vector<16xf32> to vector<16x1xf32>
    %cst_1 = arith.constant 3.200000e+01 : f32
    %4 = vector.broadcast %cst_1 : f32 to vector<16x1xf32>
    %5 = arith.divf %3, %4 : vector<16x1xf32>
    %6 = vector.broadcast %5 : vector<16x1xf32> to vector<16x32xf32>
    %7 = arith.subf %1, %6 : vector<16x32xf32>
    %8 = arith.mulf %7, %7 : vector<16x32xf32>
    %cst_2 = arith.constant dense<0.000000e+00> : vector<16xf32>
    %9 = vector.multi_reduction <add>, %8, %cst_2 [1] : vector<16x32xf32> to vector<16xf32>
    %10 = vector.shape_cast %9 : vector<16xf32> to vector<16x1xf32>
    %cst_3 = arith.constant 3.200000e+01 : f32
    %11 = vector.broadcast %cst_3 : f32 to vector<16x1xf32>
    %12 = arith.divf %10, %11 : vector<16x1xf32>
    %cst_4 = arith.constant 9.99999974E-6 : f32
    %13 = vector.broadcast %cst_4 : f32 to vector<16x1xf32>
    %14 = arith.addf %12, %13 : vector<16x1xf32>
    %15 = math.rsqrt %14 : vector<16x1xf32>
    %16 = vector.broadcast %15 : vector<16x1xf32> to vector<16x32xf32>
    %17 = arith.mulf %7, %16 : vector<16x32xf32>
    %c0_5 = arith.constant 0 : index
    %c0_6 = arith.constant 0 : index
    %18 = vector.load %arg2[%c0_5, %c0_6] : memref<1x32xf32, #tpu.memory_space<vmem>>, vector<1x32xf32>
    %19 = vector.broadcast %18 : vector<1x32xf32> to vector<16x32xf32>
    %20 = arith.mulf %17, %19 : vector<16x32xf32>
    %c0_7 = arith.constant 0 : index
    %c0_8 = arith.constant 0 : index
    %21 = vector.load %arg3[%c0_7, %c0_8] : memref<1x32xf32, #tpu.memory_space<vmem>>, vector<1x32xf32>
    %22 = vector.broadcast %21 : vector<1x32xf32> to vector<16x32xf32>
    %23 = arith.addf %20, %22 : vector<16x32xf32>
    %24 = arith.truncf %23 : vector<16x32xf32> to vector<16x32xbf16>
    %c0_9 = arith.constant 0 : index
    %c0_10 = arith.constant 0 : index
    %25 = vector.load %arg4[%c0_9, %c0_10] : memref<16x32xbf16, #tpu.memory_space<vmem>>, vector<16x32xbf16>
    tpu.vector_store %arg4[%c0_9, %c0_10], %24 {strides = array<i32>} : memref<16x32xbf16, #tpu.memory_space<vmem>>, vector<16x32xbf16>,
    return
  }
  func.func @transform_0(%arg0: i32) -> (i32, i32) {
    %c0_i32 = arith.constant 0 : i32
    %c0_i32_0 = arith.constant 0 : i32
    return %arg0, %c0_i32 : i32, i32
  }
  func.func @transform_1(%arg0: i32) -> (i32, i32) {
    %c0_i32 = arith.constant 0 : i32
    %c0_i32_0 = arith.constant 0 : i32
    %c0_i32_1 = arith.constant 0 : i32
    return %c0_i32, %c0_i32_0 : i32, i32
  }
  func.func @transform_2(%arg0: i32) -> (i32, i32) {
    %c0_i32 = arith.constant 0 : i32
    %c0_i32_0 = arith.constant 0 : i32
    %c0_i32_1 = arith.constant 0 : i32
    return %c0_i32, %c0_i32_0 : i32, i32
  }
  func.func @transform_3(%arg0: i32) -> (i32, i32) {
    %c0_i32 = arith.constant 0 : i32
    %c0_i32_0 = arith.constant 0 : i32
    return %arg0, %c0_i32 : i32, i32
  }
}

module attributes {stable_mosaic.version = 11 : i64} {
  func.func @_linear_kernel(%arg0: i32, %arg1: i32, %arg2: i32, %arg3: memref<16x32xbf16, #tpu.memory_space<vmem>>, %arg4: memref<32x64xbf16, #tpu.memory_space<vmem>>, %arg5: memref<1x64xf32, #tpu.memory_space<vmem>>, %arg6: memref<16x64xbf16, #tpu.memory_space<vmem>>, %arg7: memref<16x64xf32, #tpu.memory_space<vmem>>) attributes {dimension_semantics = [#tpu.dimension_semantics<parallel>, #tpu.dimension_semantics<parallel>, #tpu.dimension_semantics<arbitrary>], iteration_bounds = array<i64: 1, 1, 1>, scalar_prefetch = 0 : i64, scratch_operands = 1 : i64, tpu.core_type = #tpu.core_type<tc>, window_params = [{transform_indices = @transform_0, window_bounds = array<i64: 16, 32>}, {transform_indices = @transform_1, window_bounds = array<i64: 32, 64>}, {transform_indices = @transform_2, window_bounds = array<i64: 1, 64>}, {transform_indices = @transform_3, window_bounds = array<i64: 16, 64>}]} {
    %c0_i32 = arith.constant 0 : i32
    %0 = arith.cmpi eq, %arg2, %c0_i32 : i32
    %1 = arith.extui %0 : i1 to i32
    %c0_i32_0 = arith.constant 0 : i32
    %2 = arith.cmpi ne, %1, %c0_i32_0 : i32
    scf.if %2 {
      %cst_10 = arith.constant 0.000000e+00 : f32
      %12 = vector.broadcast %cst_10 : f32 to vector<16x64xf32>
      %c0_11 = arith.constant 0 : index
      %c0_12 = arith.constant 0 : index
      %13 = vector.load %arg7[%c0_11, %c0_12] : memref<16x64xf32, #tpu.memory_space<vmem>>, vector<16x64xf32>
      tpu.vector_store %arg7[%c0_11, %c0_12], %12 {strides = array<i32>} : memref<16x64xf32, #tpu.memory_space<vmem>>, vector<16x64xf32>,
    } else {
    }
    %c0 = arith.constant 0 : index
    %c0_1 = arith.constant 0 : index
    %3 = vector.load %arg7[%c0, %c0_1] : memref<16x64xf32, #tpu.memory_space<vmem>>, vector<16x64xf32>
    %c0_2 = arith.constant 0 : index
    %c0_3 = arith.constant 0 : index
    %4 = vector.load %arg3[%c0_2, %c0_3] : memref<16x32xbf16, #tpu.memory_space<vmem>>, vector<16x32xbf16>
    %c0_4 = arith.constant 0 : index
    %c0_5 = arith.constant 0 : index
    %5 = vector.load %arg4[%c0_4, %c0_5] : memref<32x64xbf16, #tpu.memory_space<vmem>>, vector<32x64xbf16>
    %cst = arith.constant dense<0.000000e+00> : vector<16x64xf32>
    %6 = tpu.matmul %4, %5, %cst {dimension_numbers = #tpu.dot_dimension_numbers<[1], [0], [0], [1], [0, 0, 1, 1], [], []>} : vector<16x32xbf16>, vector<32x64xbf16>, vector<16x64xf32> -> vector<16x64xf32>
    %7 = arith.addf %3, %6 : vector<16x64xf32>
    %c0_6 = arith.constant 0 : index
    %c0_7 = arith.constant 0 : index
    %8 = vector.load %arg7[%c0_6, %c0_7] : memref<16x64xf32, #tpu.memory_space<vmem>>, vector<16x64xf32>
    tpu.vector_store %arg7[%c0_6, %c0_7], %7 {strides = array<i32>} : memref<16x64xf32, #tpu.memory_space<vmem>>, vector<16x64xf32>,
    %c0_i32_8 = arith.constant 0 : i32
    %9 = arith.cmpi eq, %arg2, %c0_i32_8 : i32
    %10 = arith.extui %9 : i1 to i32
    %c0_i32_9 = arith.constant 0 : i32
    %11 = arith.cmpi ne, %10, %c0_i32_9 : i32
    scf.if %11 {
      %c0_10 = arith.constant 0 : index
      %c0_11 = arith.constant 0 : index
      %12 = vector.load %arg7[%c0_10, %c0_11] : memref<16x64xf32, #tpu.memory_space<vmem>>, vector<16x64xf32>
      %c0_12 = arith.constant 0 : index
      %c0_13 = arith.constant 0 : index
      %13 = vector.load %arg5[%c0_12, %c0_13] : memref<1x64xf32, #tpu.memory_space<vmem>>, vector<1x64xf32>
      %14 = vector.broadcast %13 : vector<1x64xf32> to vector<16x64xf32>
      %15 = arith.addf %12, %14 : vector<16x64xf32>
      %16 = arith.truncf %15 : vector<16x64xf32> to vector<16x64xbf16>
      %c0_14 = arith.constant 0 : index
      %c0_15 = arith.constant 0 : index
      %17 = vector.load %arg6[%c0_14, %c0_15] : memref<16x64xbf16, #tpu.memory_space<vmem>>, vector<16x64xbf16>
      tpu.vector_store %arg6[%c0_14, %c0_15], %16 {strides = array<i32>} : memref<16x64xbf16, #tpu.memory_space<vmem>>, vector<16x64xbf16>,
    } else {
    }
    return
  }
  func.func @transform_0(%arg0: i32, %arg1: i32, %arg2: i32) -> (i32, i32) {
    %c0_i32 = arith.constant 0 : i32
    return %arg0, %arg2 : i32, i32
  }
  func.func @transform_1(%arg0: i32, %arg1: i32, %arg2: i32) -> (i32, i32) {
    %c0_i32 = arith.constant 0 : i32
    return %arg2, %arg1 : i32, i32
  }
  func.func @transform_2(%arg0: i32, %arg1: i32, %arg2: i32) -> (i32, i32) {
    %c0_i32 = arith.constant 0 : i32
    %c0_i32_0 = arith.constant 0 : i32
    return %c0_i32, %arg1 : i32, i32
  }
  func.func @transform_3(%arg0: i32, %arg1: i32, %arg2: i32) -> (i32, i32) {
    %c0_i32 = arith.constant 0 : i32
    return %arg0, %arg1 : i32, i32
  }
}

module attributes {stable_mosaic.version = 11 : i64} {
  func.func @_inproj_pe_kernel(%arg0: i32, %arg1: i32, %arg2: memref<1x8x16xf32, #tpu.memory_space<vmem>>, %arg3: memref<16x32xbf16, #tpu.memory_space<vmem>>, %arg4: memref<1x32xf32, #tpu.memory_space<vmem>>, %arg5: memref<8x32xf32, #tpu.memory_space<vmem>>, %arg6: memref<1x8x32xbf16, #tpu.memory_space<vmem>>) attributes {dimension_semantics = [#tpu.dimension_semantics<parallel>, #tpu.dimension_semantics<parallel>], iteration_bounds = array<i64: 2, 1>, scalar_prefetch = 0 : i64, scratch_operands = 0 : i64, tpu.core_type = #tpu.core_type<tc>, window_params = [{transform_indices = @transform_0, window_bounds = array<i64: 1, 8, 16>}, {pipeline_mode = #tpu.pipeline_mode<synchronous>, transform_indices = @transform_1, window_bounds = array<i64: 16, 32>}, {pipeline_mode = #tpu.pipeline_mode<synchronous>, transform_indices = @transform_2, window_bounds = array<i64: 1, 32>}, {transform_indices = @transform_3, window_bounds = array<i64: 8, 32>}, {transform_indices = @transform_4, window_bounds = array<i64: 1, 8, 32>}]} {
    %c0 = arith.constant 0 : index
    %c0_0 = arith.constant 0 : index
    %c0_1 = arith.constant 0 : index
    %0 = vector.load %arg2[%c0, %c0_0, %c0_1] : memref<1x8x16xf32, #tpu.memory_space<vmem>>, vector<1x8x16xf32>
    %1 = vector.shape_cast %0 : vector<1x8x16xf32> to vector<8x16xf32>
    %2 = arith.truncf %1 : vector<8x16xf32> to vector<8x16xbf16>
    %c0_2 = arith.constant 0 : index
    %c0_3 = arith.constant 0 : index
    %3 = vector.load %arg3[%c0_2, %c0_3] : memref<16x32xbf16, #tpu.memory_space<vmem>>, vector<16x32xbf16>
    %cst = arith.constant dense<0.000000e+00> : vector<8x32xf32>
    %4 = tpu.matmul %2, %3, %cst {dimension_numbers = #tpu.dot_dimension_numbers<[1], [0], [0], [1], [0, 0, 1, 1], [], []>} : vector<8x16xbf16>, vector<16x32xbf16>, vector<8x32xf32> -> vector<8x32xf32>
    %c0_4 = arith.constant 0 : index
    %c0_5 = arith.constant 0 : index
    %5 = vector.load %arg4[%c0_4, %c0_5] : memref<1x32xf32, #tpu.memory_space<vmem>>, vector<1x32xf32>
    %6 = vector.broadcast %5 : vector<1x32xf32> to vector<8x32xf32>
    %7 = arith.addf %4, %6 : vector<8x32xf32>
    %cst_6 = arith.constant 2.000000e+00 : f32
    %8 = vector.broadcast %cst_6 : f32 to vector<8x32xf32>
    %9 = arith.mulf %8, %7 : vector<8x32xf32>
    %c0_7 = arith.constant 0 : index
    %c0_8 = arith.constant 0 : index
    %10 = vector.load %arg5[%c0_7, %c0_8] : memref<8x32xf32, #tpu.memory_space<vmem>>, vector<8x32xf32>
    %11 = arith.addf %9, %10 : vector<8x32xf32>
    %12 = arith.truncf %11 : vector<8x32xf32> to vector<8x32xbf16>
    %c0_9 = arith.constant 0 : index
    %c0_10 = arith.constant 0 : index
    %c0_11 = arith.constant 0 : index
    %13 = vector.load %arg6[%c0_9, %c0_10, %c0_11] : memref<1x8x32xbf16, #tpu.memory_space<vmem>>, vector<1x8x32xbf16>
    %14 = vector.shape_cast %13 : vector<1x8x32xbf16> to vector<8x32xbf16>
    %15 = vector.shape_cast %12 : vector<8x32xbf16> to vector<1x8x32xbf16>
    tpu.vector_store %arg6[%c0_9, %c0_10, %c0_11], %15 {strides = array<i32>} : memref<1x8x32xbf16, #tpu.memory_space<vmem>>, vector<1x8x32xbf16>,
    return
  }
  func.func @transform_0(%arg0: i32, %arg1: i32) -> (i32, i32, i32) {
    %c0_i32 = arith.constant 0 : i32
    %c0_i32_0 = arith.constant 0 : i32
    return %arg0, %arg1, %c0_i32 : i32, i32, i32
  }
  func.func @transform_1(%arg0: i32, %arg1: i32) -> (i32, i32) {
    %c0_i32 = arith.constant 0 : i32
    %c0_i32_0 = arith.constant 0 : i32
    %c0_i32_1 = arith.constant 0 : i32
    return %c0_i32, %c0_i32_0 : i32, i32
  }
  func.func @transform_2(%arg0: i32, %arg1: i32) -> (i32, i32) {
    %c0_i32 = arith.constant 0 : i32
    %c0_i32_0 = arith.constant 0 : i32
    %c0_i32_1 = arith.constant 0 : i32
    return %c0_i32, %c0_i32_0 : i32, i32
  }
  func.func @transform_3(%arg0: i32, %arg1: i32) -> (i32, i32) {
    %c0_i32 = arith.constant 0 : i32
    %c0_i32_0 = arith.constant 0 : i32
    return %arg1, %c0_i32 : i32, i32
  }
  func.func @transform_4(%arg0: i32, %arg1: i32) -> (i32, i32, i32) {
    %c0_i32 = arith.constant 0 : i32
    %c0_i32_0 = arith.constant 0 : i32
    return %arg0, %arg1, %c0_i32 : i32, i32, i32
  }
}

module attributes {stable_mosaic.version = 11 : i64} {
  func.func @_linear_kernel(%arg0: i32, %arg1: i32, %arg2: i32, %arg3: memref<16x32xbf16, #tpu.memory_space<vmem>>, %arg4: memref<32x32xbf16, #tpu.memory_space<vmem>>, %arg5: memref<1x32xf32, #tpu.memory_space<vmem>>, %arg6: memref<16x32xbf16, #tpu.memory_space<vmem>>, %arg7: memref<16x32xf32, #tpu.memory_space<vmem>>) attributes {dimension_semantics = [#tpu.dimension_semantics<parallel>, #tpu.dimension_semantics<parallel>, #tpu.dimension_semantics<arbitrary>], iteration_bounds = array<i64: 1, 1, 1>, scalar_prefetch = 0 : i64, scratch_operands = 1 : i64, tpu.core_type = #tpu.core_type<tc>, window_params = [{transform_indices = @transform_0, window_bounds = array<i64: 16, 32>}, {transform_indices = @transform_1, window_bounds = array<i64: 32, 32>}, {transform_indices = @transform_2, window_bounds = array<i64: 1, 32>}, {transform_indices = @transform_3, window_bounds = array<i64: 16, 32>}]} {
    %c0_i32 = arith.constant 0 : i32
    %0 = arith.cmpi eq, %arg2, %c0_i32 : i32
    %1 = arith.extui %0 : i1 to i32
    %c0_i32_0 = arith.constant 0 : i32
    %2 = arith.cmpi ne, %1, %c0_i32_0 : i32
    scf.if %2 {
      %cst_10 = arith.constant 0.000000e+00 : f32
      %12 = vector.broadcast %cst_10 : f32 to vector<16x32xf32>
      %c0_11 = arith.constant 0 : index
      %c0_12 = arith.constant 0 : index
      %13 = vector.load %arg7[%c0_11, %c0_12] : memref<16x32xf32, #tpu.memory_space<vmem>>, vector<16x32xf32>
      tpu.vector_store %arg7[%c0_11, %c0_12], %12 {strides = array<i32>} : memref<16x32xf32, #tpu.memory_space<vmem>>, vector<16x32xf32>,
    } else {
    }
    %c0 = arith.constant 0 : index
    %c0_1 = arith.constant 0 : index
    %3 = vector.load %arg7[%c0, %c0_1] : memref<16x32xf32, #tpu.memory_space<vmem>>, vector<16x32xf32>
    %c0_2 = arith.constant 0 : index
    %c0_3 = arith.constant 0 : index
    %4 = vector.load %arg3[%c0_2, %c0_3] : memref<16x32xbf16, #tpu.memory_space<vmem>>, vector<16x32xbf16>
    %c0_4 = arith.constant 0 : index
    %c0_5 = arith.constant 0 : index
    %5 = vector.load %arg4[%c0_4, %c0_5] : memref<32x32xbf16, #tpu.memory_space<vmem>>, vector<32x32xbf16>
    %cst = arith.constant dense<0.000000e+00> : vector<16x32xf32>
    %6 = tpu.matmul %4, %5, %cst {dimension_numbers = #tpu.dot_dimension_numbers<[1], [0], [0], [1], [0, 0, 1, 1], [], []>} : vector<16x32xbf16>, vector<32x32xbf16>, vector<16x32xf32> -> vector<16x32xf32>
    %7 = arith.addf %3, %6 : vector<16x32xf32>
    %c0_6 = arith.constant 0 : index
    %c0_7 = arith.constant 0 : index
    %8 = vector.load %arg7[%c0_6, %c0_7] : memref<16x32xf32, #tpu.memory_space<vmem>>, vector<16x32xf32>
    tpu.vector_store %arg7[%c0_6, %c0_7], %7 {strides = array<i32>} : memref<16x32xf32, #tpu.memory_space<vmem>>, vector<16x32xf32>,
    %c0_i32_8 = arith.constant 0 : i32
    %9 = arith.cmpi eq, %arg2, %c0_i32_8 : i32
    %10 = arith.extui %9 : i1 to i32
    %c0_i32_9 = arith.constant 0 : i32
    %11 = arith.cmpi ne, %10, %c0_i32_9 : i32
    scf.if %11 {
      %c0_10 = arith.constant 0 : index
      %c0_11 = arith.constant 0 : index
      %12 = vector.load %arg7[%c0_10, %c0_11] : memref<16x32xf32, #tpu.memory_space<vmem>>, vector<16x32xf32>
      %c0_12 = arith.constant 0 : index
      %c0_13 = arith.constant 0 : index
      %13 = vector.load %arg5[%c0_12, %c0_13] : memref<1x32xf32, #tpu.memory_space<vmem>>, vector<1x32xf32>
      %14 = vector.broadcast %13 : vector<1x32xf32> to vector<16x32xf32>
      %15 = arith.addf %12, %14 : vector<16x32xf32>
      %16 = arith.truncf %15 : vector<16x32xf32> to vector<16x32xbf16>
      %c0_14 = arith.constant 0 : index
      %c0_15 = arith.constant 0 : index
      %17 = vector.load %arg6[%c0_14, %c0_15] : memref<16x32xbf16, #tpu.memory_space<vmem>>, vector<16x32xbf16>
      tpu.vector_store %arg6[%c0_14, %c0_15], %16 {strides = array<i32>} : memref<16x32xbf16, #tpu.memory_space<vmem>>, vector<16x32xbf16>,
    } else {
    }
    return
  }
  func.func @transform_0(%arg0: i32, %arg1: i32, %arg2: i32) -> (i32, i32) {
    %c0_i32 = arith.constant 0 : i32
    return %arg0, %arg2 : i32, i32
  }
  func.func @transform_1(%arg0: i32, %arg1: i32, %arg2: i32) -> (i32, i32) {
    %c0_i32 = arith.constant 0 : i32
    return %arg2, %arg1 : i32, i32
  }
  func.func @transform_2(%arg0: i32, %arg1: i32, %arg2: i32) -> (i32, i32) {
    %c0_i32 = arith.constant 0 : i32
    %c0_i32_0 = arith.constant 0 : i32
    return %c0_i32, %arg1 : i32, i32
  }
  func.func @transform_3(%arg0: i32, %arg1: i32, %arg2: i32) -> (i32, i32) {
    %c0_i32 = arith.constant 0 : i32
    return %arg0, %arg1 : i32, i32
  }
}

module attributes {stable_mosaic.version = 11 : i64} {
  func.func @_attn_kernel(%arg0: i32, %arg1: i32, %arg2: memref<1x8x32xbf16, #tpu.memory_space<vmem>>, %arg3: memref<1x8x64xbf16, #tpu.memory_space<vmem>>, %arg4: memref<1x1x8xf32, #tpu.memory_space<vmem>>, %arg5: memref<1x8x32xbf16, #tpu.memory_space<vmem>>) attributes {dimension_semantics = [#tpu.dimension_semantics<parallel>, #tpu.dimension_semantics<parallel>], iteration_bounds = array<i64: 2, 1>, scalar_prefetch = 0 : i64, scratch_operands = 0 : i64, tpu.core_type = #tpu.core_type<tc>, window_params = [{transform_indices = @transform_0, window_bounds = array<i64: 1, 8, 32>}, {transform_indices = @transform_1, window_bounds = array<i64: 1, 8, 64>}, {transform_indices = @transform_2, window_bounds = array<i64: 1, 1, 8>}, {transform_indices = @transform_3, window_bounds = array<i64: 1, 8, 32>}]} {
    %c0 = arith.constant 0 : index
    %c0_0 = arith.constant 0 : index
    %c0_1 = arith.constant 0 : index
    %0 = vector.load %arg4[%c0, %c0_0, %c0_1] : memref<1x1x8xf32, #tpu.memory_space<vmem>>, vector<1x1x8xf32>
    %1 = vector.shape_cast %0 : vector<1x1x8xf32> to vector<1x8xf32>
    %c8_i32 = arith.constant 8 : i32
    %2 = arith.muli %arg1, %c8_i32 : i32
    %3 = tpu.iota {dimensions = array<i32: 0>} : vector<8x8xi32>
    %4 = vector.broadcast %2 : i32 to vector<8x8xi32>
    %5 = arith.addi %4, %3 : vector<8x8xi32>
    %6 = tpu.iota {dimensions = array<i32: 1>} : vector<8x8xi32>
    %7 = arith.cmpi sgt, %6, %5 : vector<8x8xi32>
    %cst = arith.constant -1.000000e+09 : f32
    %cst_2 = arith.constant 0.000000e+00 : f32
    %8 = vector.broadcast %cst : f32 to vector<8x8xf32>
    %9 = vector.broadcast %cst_2 : f32 to vector<8x8xf32>
    %10 = arith.select %7, %8, %9 : vector<8x8xi1>, vector<8x8xf32>
    %c0_3 = arith.constant 0 : index
    %c0_4 = arith.constant 0 : index
    %c0_5 = arith.constant 0 : index
    %11 = vector.load %arg2[%c0_3, %c0_4, %c0_5] : memref<1x8x32xbf16, #tpu.memory_space<vmem>>, vector<1x8x8xbf16>
    %12 = vector.shape_cast %11 : vector<1x8x8xbf16> to vector<8x8xbf16>
    %cst_6 = arith.constant 3.535160e-01 : bf16
    %13 = vector.broadcast %cst_6 : bf16 to vector<8x8xbf16>
    %14 = arith.mulf %12, %13 : vector<8x8xbf16>
    %c0_7 = arith.constant 0 : index
    %c0_8 = arith.constant 0 : index
    %c0_9 = arith.constant 0 : index
    %15 = vector.load %arg3[%c0_7, %c0_8, %c0_9] : memref<1x8x64xbf16, #tpu.memory_space<vmem>>, vector<1x8x8xbf16>
    %16 = vector.shape_cast %15 : vector<1x8x8xbf16> to vector<8x8xbf16>
    %c0_10 = arith.constant 0 : index
    %c0_11 = arith.constant 0 : index
    %c32 = arith.constant 32 : index
    %17 = vector.load %arg3[%c0_10, %c0_11, %c32] : memref<1x8x64xbf16, #tpu.memory_space<vmem>>, vector<1x8x8xbf16>
    %18 = vector.shape_cast %17 : vector<1x8x8xbf16> to vector<8x8xbf16>
    %cst_12 = arith.constant dense<0.000000e+00> : vector<8x8xf32>
    %19 = tpu.matmul %14, %16, %cst_12 {dimension_numbers = #tpu.dot_dimension_numbers<[1], [1], [0], [0], [0, 0, 1, 0], [], []>} : vector<8x8xbf16>, vector<8x8xbf16>, vector<8x8xf32> -> vector<8x8xf32>
    %20 = vector.broadcast %1 : vector<1x8xf32> to vector<8x8xf32>
    %21 = arith.addf %19, %20 : vector<8x8xf32>
    %22 = arith.addf %21, %10 : vector<8x8xf32>
    %cst_13 = arith.constant dense<0xFF800000> : vector<8xf32>
    %23 = vector.multi_reduction <maximumf>, %22, %cst_13 [1] : vector<8x8xf32> to vector<8xf32>
    %24 = vector.shape_cast %23 : vector<8xf32> to vector<8x1xf32>
    %25 = vector.broadcast %24 : vector<8x1xf32> to vector<8x8xf32>
    %26 = arith.subf %22, %25 : vector<8x8xf32>
    %27 = math.exp %26 : vector<8x8xf32>
    %cst_14 = arith.constant dense<0.000000e+00> : vector<8xf32>
    %28 = vector.multi_reduction <add>, %27, %cst_14 [1] : vector<8x8xf32> to vector<8xf32>
    %29 = vector.shape_cast %28 : vector<8xf32> to vector<8x1xf32>
    %30 = tpu.reciprocal %29 {approx = true} : vector<8x1xf32> -> vector<8x1xf32>
    %31 = arith.truncf %27 : vector<8x8xf32> to vector<8x8xbf16>
    %cst_15 = arith.constant dense<0.000000e+00> : vector<8x8xf32>
    %32 = tpu.matmul %31, %18, %cst_15 {dimension_numbers = #tpu.dot_dimension_numbers<[1], [0], [0], [1], [0, 0, 1, 1], [], []>} : vector<8x8xbf16>, vector<8x8xbf16>, vector<8x8xf32> -> vector<8x8xf32>
    %33 = vector.broadcast %30 : vector<8x1xf32> to vector<8x8xf32>
    %34 = arith.mulf %32, %33 : vector<8x8xf32>
    %35 = arith.truncf %34 : vector<8x8xf32> to vector<8x8xbf16>
    %c0_16 = arith.constant 0 : index
    %c0_17 = arith.constant 0 : index
    %c0_18 = arith.constant 0 : index
    %36 = vector.load %arg5[%c0_16, %c0_17, %c0_18] : memref<1x8x32xbf16, #tpu.memory_space<vmem>>, vector<1x8x8xbf16>
    %37 = vector.shape_cast %36 : vector<1x8x8xbf16> to vector<8x8xbf16>
    %38 = vector.shape_cast %35 : vector<8x8xbf16> to vector<1x8x8xbf16>
    tpu.vector_store %arg5[%c0_16, %c0_17, %c0_18], %38 {strides = array<i32>} : memref<1x8x32xbf16, #tpu.memory_space<vmem>>, vector<1x8x8xbf16>,
    %c0_19 = arith.constant 0 : index
    %c0_20 = arith.constant 0 : index
    %c8 = arith.constant 8 : index
    %39 = vector.load %arg2[%c0_19, %c0_20, %c8] : memref<1x8x32xbf16, #tpu.memory_space<vmem>>, vector<1x8x8xbf16>
    %40 = vector.shape_cast %39 : vector<1x8x8xbf16> to vector<8x8xbf16>
    %cst_21 = arith.constant 3.535160e-01 : bf16
    %41 = vector.broadcast %cst_21 : bf16 to vector<8x8xbf16>
    %42 = arith.mulf %40, %41 : vector<8x8xbf16>
    %c0_22 = arith.constant 0 : index
    %c0_23 = arith.constant 0 : index
    %c8_24 = arith.constant 8 : index
    %43 = vector.load %arg3[%c0_22, %c0_23, %c8_24] : memref<1x8x64xbf16, #tpu.memory_space<vmem>>, vector<1x8x8xbf16>
    %44 = vector.shape_cast %43 : vector<1x8x8xbf16> to vector<8x8xbf16>
    %c0_25 = arith.constant 0 : index
    %c0_26 = arith.constant 0 : index
    %c40 = arith.constant 40 : index
    %45 = vector.load %arg3[%c0_25, %c0_26, %c40] : memref<1x8x64xbf16, #tpu.memory_space<vmem>>, vector<1x8x8xbf16>
    %46 = vector.shape_cast %45 : vector<1x8x8xbf16> to vector<8x8xbf16>
    %cst_27 = arith.constant dense<0.000000e+00> : vector<8x8xf32>
    %47 = tpu.matmul %42, %44, %cst_27 {dimension_numbers = #tpu.dot_dimension_numbers<[1], [1], [0], [0], [0, 0, 1, 0], [], []>} : vector<8x8xbf16>, vector<8x8xbf16>, vector<8x8xf32> -> vector<8x8xf32>
    %48 = vector.broadcast %1 : vector<1x8xf32> to vector<8x8xf32>
    %49 = arith.addf %47, %48 : vector<8x8xf32>
    %50 = arith.addf %49, %10 : vector<8x8xf32>
    %cst_28 = arith.constant dense<0xFF800000> : vector<8xf32>
    %51 = vector.multi_reduction <maximumf>, %50, %cst_28 [1] : vector<8x8xf32> to vector<8xf32>
    %52 = vector.shape_cast %51 : vector<8xf32> to vector<8x1xf32>
    %53 = vector.broadcast %52 : vector<8x1xf32> to vector<8x8xf32>
    %54 = arith.subf %50, %53 : vector<8x8xf32>
    %55 = math.exp %54 : vector<8x8xf32>
    %cst_29 = arith.constant dense<0.000000e+00> : vector<8xf32>
    %56 = vector.multi_reduction <add>, %55, %cst_29 [1] : vector<8x8xf32> to vector<8xf32>
    %57 = vector.shape_cast %56 : vector<8xf32> to vector<8x1xf32>
    %58 = tpu.reciprocal %57 {approx = true} : vector<8x1xf32> -> vector<8x1xf32>
    %59 = arith.truncf %55 : vector<8x8xf32> to vector<8x8xbf16>
    %cst_30 = arith.constant dense<0.000000e+00> : vector<8x8xf32>
    %60 = tpu.matmul %59, %46, %cst_30 {dimension_numbers = #tpu.dot_dimension_numbers<[1], [0], [0], [1], [0, 0, 1, 1], [], []>} : vector<8x8xbf16>, vector<8x8xbf16>, vector<8x8xf32> -> vector<8x8xf32>
    %61 = vector.broadcast %58 : vector<8x1xf32> to vector<8x8xf32>
    %62 = arith.mulf %60, %61 : vector<8x8xf32>
    %63 = arith.truncf %62 : vector<8x8xf32> to vector<8x8xbf16>
    %c0_31 = arith.constant 0 : index
    %c0_32 = arith.constant 0 : index
    %c8_33 = arith.constant 8 : index
    %64 = vector.load %arg5[%c0_31, %c0_32, %c8_33] : memref<1x8x32xbf16, #tpu.memory_space<vmem>>, vector<1x8x8xbf16>
    %65 = vector.shape_cast %64 : vector<1x8x8xbf16> to vector<8x8xbf16>
    %66 = vector.shape_cast %63 : vector<8x8xbf16> to vector<1x8x8xbf16>
    tpu.vector_store %arg5[%c0_31, %c0_32, %c8_33], %66 {strides = array<i32>} : memref<1x8x32xbf16, #tpu.memory_space<vmem>>, vector<1x8x8xbf16>,
    %c0_34 = arith.constant 0 : index
    %c0_35 = arith.constant 0 : index
    %c16 = arith.constant 16 : index
    %67 = vector.load %arg2[%c0_34, %c0_35, %c16] : memref<1x8x32xbf16, #tpu.memory_space<vmem>>, vector<1x8x8xbf16>
    %68 = vector.shape_cast %67 : vector<1x8x8xbf16> to vector<8x8xbf16>
    %cst_36 = arith.constant 3.535160e-01 : bf16
    %69 = vector.broadcast %cst_36 : bf16 to vector<8x8xbf16>
    %70 = arith.mulf %68, %69 : vector<8x8xbf16>
    %c0_37 = arith.constant 0 : index
    %c0_38 = arith.constant 0 : index
    %c16_39 = arith.constant 16 : index
    %71 = vector.load %arg3[%c0_37, %c0_38, %c16_39] : memref<1x8x64xbf16, #tpu.memory_space<vmem>>, vector<1x8x8xbf16>
    %72 = vector.shape_cast %71 : vector<1x8x8xbf16> to vector<8x8xbf16>
    %c0_40 = arith.constant 0 : index
    %c0_41 = arith.constant 0 : index
    %c48 = arith.constant 48 : index
    %73 = vector.load %arg3[%c0_40, %c0_41, %c48] : memref<1x8x64xbf16, #tpu.memory_space<vmem>>, vector<1x8x8xbf16>
    %74 = vector.shape_cast %73 : vector<1x8x8xbf16> to vector<8x8xbf16>
    %cst_42 = arith.constant dense<0.000000e+00> : vector<8x8xf32>
    %75 = tpu.matmul %70, %72, %cst_42 {dimension_numbers = #tpu.dot_dimension_numbers<[1], [1], [0], [0], [0, 0, 1, 0], [], []>} : vector<8x8xbf16>, vector<8x8xbf16>, vector<8x8xf32> -> vector<8x8xf32>
    %76 = vector.broadcast %1 : vector<1x8xf32> to vector<8x8xf32>
    %77 = arith.addf %75, %76 : vector<8x8xf32>
    %78 = arith.addf %77, %10 : vector<8x8xf32>
    %cst_43 = arith.constant dense<0xFF800000> : vector<8xf32>
    %79 = vector.multi_reduction <maximumf>, %78, %cst_43 [1] : vector<8x8xf32> to vector<8xf32>
    %80 = vector.shape_cast %79 : vector<8xf32> to vector<8x1xf32>
    %81 = vector.broadcast %80 : vector<8x1xf32> to vector<8x8xf32>
    %82 = arith.subf %78, %81 : vector<8x8xf32>
    %83 = math.exp %82 : vector<8x8xf32>
    %cst_44 = arith.constant dense<0.000000e+00> : vector<8xf32>
    %84 = vector.multi_reduction <add>, %83, %cst_44 [1] : vector<8x8xf32> to vector<8xf32>
    %85 = vector.shape_cast %84 : vector<8xf32> to vector<8x1xf32>
    %86 = tpu.reciprocal %85 {approx = true} : vector<8x1xf32> -> vector<8x1xf32>
    %87 = arith.truncf %83 : vector<8x8xf32> to vector<8x8xbf16>
    %cst_45 = arith.constant dense<0.000000e+00> : vector<8x8xf32>
    %88 = tpu.matmul %87, %74, %cst_45 {dimension_numbers = #tpu.dot_dimension_numbers<[1], [0], [0], [1], [0, 0, 1, 1], [], []>} : vector<8x8xbf16>, vector<8x8xbf16>, vector<8x8xf32> -> vector<8x8xf32>
    %89 = vector.broadcast %86 : vector<8x1xf32> to vector<8x8xf32>
    %90 = arith.mulf %88, %89 : vector<8x8xf32>
    %91 = arith.truncf %90 : vector<8x8xf32> to vector<8x8xbf16>
    %c0_46 = arith.constant 0 : index
    %c0_47 = arith.constant 0 : index
    %c16_48 = arith.constant 16 : index
    %92 = vector.load %arg5[%c0_46, %c0_47, %c16_48] : memref<1x8x32xbf16, #tpu.memory_space<vmem>>, vector<1x8x8xbf16>
    %93 = vector.shape_cast %92 : vector<1x8x8xbf16> to vector<8x8xbf16>
    %94 = vector.shape_cast %91 : vector<8x8xbf16> to vector<1x8x8xbf16>
    tpu.vector_store %arg5[%c0_46, %c0_47, %c16_48], %94 {strides = array<i32>} : memref<1x8x32xbf16, #tpu.memory_space<vmem>>, vector<1x8x8xbf16>,
    %c0_49 = arith.constant 0 : index
    %c0_50 = arith.constant 0 : index
    %c24 = arith.constant 24 : index
    %95 = vector.load %arg2[%c0_49, %c0_50, %c24] : memref<1x8x32xbf16, #tpu.memory_space<vmem>>, vector<1x8x8xbf16>
    %96 = vector.shape_cast %95 : vector<1x8x8xbf16> to vector<8x8xbf16>
    %cst_51 = arith.constant 3.535160e-01 : bf16
    %97 = vector.broadcast %cst_51 : bf16 to vector<8x8xbf16>
    %98 = arith.mulf %96, %97 : vector<8x8xbf16>
    %c0_52 = arith.constant 0 : index
    %c0_53 = arith.constant 0 : index
    %c24_54 = arith.constant 24 : index
    %99 = vector.load %arg3[%c0_52, %c0_53, %c24_54] : memref<1x8x64xbf16, #tpu.memory_space<vmem>>, vector<1x8x8xbf16>
    %100 = vector.shape_cast %99 : vector<1x8x8xbf16> to vector<8x8xbf16>
    %c0_55 = arith.constant 0 : index
    %c0_56 = arith.constant 0 : index
    %c56 = arith.constant 56 : index
    %101 = vector.load %arg3[%c0_55, %c0_56, %c56] : memref<1x8x64xbf16, #tpu.memory_space<vmem>>, vector<1x8x8xbf16>
    %102 = vector.shape_cast %101 : vector<1x8x8xbf16> to vector<8x8xbf16>
    %cst_57 = arith.constant dense<0.000000e+00> : vector<8x8xf32>
    %103 = tpu.matmul %98, %100, %cst_57 {dimension_numbers = #tpu.dot_dimension_numbers<[1], [1], [0], [0], [0, 0, 1, 0], [], []>} : vector<8x8xbf16>, vector<8x8xbf16>, vector<8x8xf32> -> vector<8x8xf32>
    %104 = vector.broadcast %1 : vector<1x8xf32> to vector<8x8xf32>
    %105 = arith.addf %103, %104 : vector<8x8xf32>
    %106 = arith.addf %105, %10 : vector<8x8xf32>
    %cst_58 = arith.constant dense<0xFF800000> : vector<8xf32>
    %107 = vector.multi_reduction <maximumf>, %106, %cst_58 [1] : vector<8x8xf32> to vector<8xf32>
    %108 = vector.shape_cast %107 : vector<8xf32> to vector<8x1xf32>
    %109 = vector.broadcast %108 : vector<8x1xf32> to vector<8x8xf32>
    %110 = arith.subf %106, %109 : vector<8x8xf32>
    %111 = math.exp %110 : vector<8x8xf32>
    %cst_59 = arith.constant dense<0.000000e+00> : vector<8xf32>
    %112 = vector.multi_reduction <add>, %111, %cst_59 [1] : vector<8x8xf32> to vector<8xf32>
    %113 = vector.shape_cast %112 : vector<8xf32> to vector<8x1xf32>
    %114 = tpu.reciprocal %113 {approx = true} : vector<8x1xf32> -> vector<8x1xf32>
    %115 = arith.truncf %111 : vector<8x8xf32> to vector<8x8xbf16>
    %cst_60 = arith.constant dense<0.000000e+00> : vector<8x8xf32>
    %116 = tpu.matmul %115, %102, %cst_60 {dimension_numbers = #tpu.dot_dimension_numbers<[1], [0], [0], [1], [0, 0, 1, 1], [], []>} : vector<8x8xbf16>, vector<8x8xbf16>, vector<8x8xf32> -> vector<8x8xf32>
    %117 = vector.broadcast %114 : vector<8x1xf32> to vector<8x8xf32>
    %118 = arith.mulf %116, %117 : vector<8x8xf32>
    %119 = arith.truncf %118 : vector<8x8xf32> to vector<8x8xbf16>
    %c0_61 = arith.constant 0 : index
    %c0_62 = arith.constant 0 : index
    %c24_63 = arith.constant 24 : index
    %120 = vector.load %arg5[%c0_61, %c0_62, %c24_63] : memref<1x8x32xbf16, #tpu.memory_space<vmem>>, vector<1x8x8xbf16>
    %121 = vector.shape_cast %120 : vector<1x8x8xbf16> to vector<8x8xbf16>
    %122 = vector.shape_cast %119 : vector<8x8xbf16> to vector<1x8x8xbf16>
    tpu.vector_store %arg5[%c0_61, %c0_62, %c24_63], %122 {strides = array<i32>} : memref<1x8x32xbf16, #tpu.memory_space<vmem>>, vector<1x8x8xbf16>,
    return
  }
  func.func @transform_0(%arg0: i32, %arg1: i32) -> (i32, i32, i32) {
    %c0_i32 = arith.constant 0 : i32
    %c0_i32_0 = arith.constant 0 : i32
    return %arg0, %arg1, %c0_i32 : i32, i32, i32
  }
  func.func @transform_1(%arg0: i32, %arg1: i32) -> (i32, i32, i32) {
    %c0_i32 = arith.constant 0 : i32
    %c0_i32_0 = arith.constant 0 : i32
    %c0_i32_1 = arith.constant 0 : i32
    return %arg0, %c0_i32, %c0_i32_0 : i32, i32, i32
  }
  func.func @transform_2(%arg0: i32, %arg1: i32) -> (i32, i32, i32) {
    %c0_i32 = arith.constant 0 : i32
    %c0_i32_0 = arith.constant 0 : i32
    %c0_i32_1 = arith.constant 0 : i32
    return %arg0, %c0_i32, %c0_i32_0 : i32, i32, i32
  }
  func.func @transform_3(%arg0: i32, %arg1: i32) -> (i32, i32, i32) {
    %c0_i32 = arith.constant 0 : i32
    %c0_i32_0 = arith.constant 0 : i32
    return %arg0, %arg1, %c0_i32 : i32, i32, i32
  }
}

module attributes {stable_mosaic.version = 11 : i64} {
  func.func @_linear_add_ln_kernel(%arg0: i32, %arg1: i32, %arg2: memref<16x32xbf16, #tpu.memory_space<vmem>>, %arg3: memref<32x32xbf16, #tpu.memory_space<vmem>>, %arg4: memref<1x32xf32, #tpu.memory_space<vmem>>, %arg5: memref<16x32xbf16, #tpu.memory_space<vmem>>, %arg6: memref<1x32xf32, #tpu.memory_space<vmem>>, %arg7: memref<1x32xf32, #tpu.memory_space<vmem>>, %arg8: memref<16x32xbf16, #tpu.memory_space<vmem>>, %arg9: memref<16x32xf32, #tpu.memory_space<vmem>>) attributes {dimension_semantics = [#tpu.dimension_semantics<parallel>, #tpu.dimension_semantics<arbitrary>], iteration_bounds = array<i64: 1, 1>, scalar_prefetch = 0 : i64, scratch_operands = 1 : i64, tpu.core_type = #tpu.core_type<tc>, window_params = [{transform_indices = @transform_0, window_bounds = array<i64: 16, 32>}, {transform_indices = @transform_1, window_bounds = array<i64: 32, 32>}, {pipeline_mode = #tpu.pipeline_mode<synchronous>, transform_indices = @transform_2, window_bounds = array<i64: 1, 32>}, {transform_indices = @transform_3, window_bounds = array<i64: 16, 32>}, {pipeline_mode = #tpu.pipeline_mode<synchronous>, transform_indices = @transform_4, window_bounds = array<i64: 1, 32>}, {pipeline_mode = #tpu.pipeline_mode<synchronous>, transform_indices = @transform_5, window_bounds = array<i64: 1, 32>}, {transform_indices = @transform_6, window_bounds = array<i64: 16, 32>}]} {
    %c0_i32 = arith.constant 0 : i32
    %0 = arith.cmpi eq, %arg1, %c0_i32 : i32
    %1 = arith.extui %0 : i1 to i32
    %c0_i32_0 = arith.constant 0 : i32
    %2 = arith.cmpi ne, %1, %c0_i32_0 : i32
    scf.if %2 {
      %cst_10 = arith.constant 0.000000e+00 : f32
      %12 = vector.broadcast %cst_10 : f32 to vector<16x32xf32>
      %c0_11 = arith.constant 0 : index
      %c0_12 = arith.constant 0 : index
      %13 = vector.load %arg9[%c0_11, %c0_12] : memref<16x32xf32, #tpu.memory_space<vmem>>, vector<16x32xf32>
      tpu.vector_store %arg9[%c0_11, %c0_12], %12 {strides = array<i32>} : memref<16x32xf32, #tpu.memory_space<vmem>>, vector<16x32xf32>,
    } else {
    }
    %c0 = arith.constant 0 : index
    %c0_1 = arith.constant 0 : index
    %3 = vector.load %arg9[%c0, %c0_1] : memref<16x32xf32, #tpu.memory_space<vmem>>, vector<16x32xf32>
    %c0_2 = arith.constant 0 : index
    %c0_3 = arith.constant 0 : index
    %4 = vector.load %arg2[%c0_2, %c0_3] : memref<16x32xbf16, #tpu.memory_space<vmem>>, vector<16x32xbf16>
    %c0_4 = arith.constant 0 : index
    %c0_5 = arith.constant 0 : index
    %5 = vector.load %arg3[%c0_4, %c0_5] : memref<32x32xbf16, #tpu.memory_space<vmem>>, vector<32x32xbf16>
    %cst = arith.constant dense<0.000000e+00> : vector<16x32xf32>
    %6 = tpu.matmul %4, %5, %cst {dimension_numbers = #tpu.dot_dimension_numbers<[1], [0], [0], [1], [0, 0, 1, 1], [], []>} : vector<16x32xbf16>, vector<32x32xbf16>, vector<16x32xf32> -> vector<16x32xf32>
    %7 = arith.addf %3, %6 : vector<16x32xf32>
    %c0_6 = arith.constant 0 : index
    %c0_7 = arith.constant 0 : index
    %8 = vector.load %arg9[%c0_6, %c0_7] : memref<16x32xf32, #tpu.memory_space<vmem>>, vector<16x32xf32>
    tpu.vector_store %arg9[%c0_6, %c0_7], %7 {strides = array<i32>} : memref<16x32xf32, #tpu.memory_space<vmem>>, vector<16x32xf32>,
    %c0_i32_8 = arith.constant 0 : i32
    %9 = arith.cmpi eq, %arg1, %c0_i32_8 : i32
    %10 = arith.extui %9 : i1 to i32
    %c0_i32_9 = arith.constant 0 : i32
    %11 = arith.cmpi ne, %10, %c0_i32_9 : i32
    scf.if %11 {
      %c0_10 = arith.constant 0 : index
      %c0_11 = arith.constant 0 : index
      %12 = vector.load %arg9[%c0_10, %c0_11] : memref<16x32xf32, #tpu.memory_space<vmem>>, vector<16x32xf32>
      %c0_12 = arith.constant 0 : index
      %c0_13 = arith.constant 0 : index
      %13 = vector.load %arg4[%c0_12, %c0_13] : memref<1x32xf32, #tpu.memory_space<vmem>>, vector<1x32xf32>
      %14 = vector.broadcast %13 : vector<1x32xf32> to vector<16x32xf32>
      %15 = arith.addf %12, %14 : vector<16x32xf32>
      %c0_14 = arith.constant 0 : index
      %c0_15 = arith.constant 0 : index
      %16 = vector.load %arg5[%c0_14, %c0_15] : memref<16x32xbf16, #tpu.memory_space<vmem>>, vector<16x32xbf16>
      %17 = arith.extf %16 : vector<16x32xbf16> to vector<16x32xf32>
      %18 = arith.addf %15, %17 : vector<16x32xf32>
      %cst_16 = arith.constant dense<0.000000e+00> : vector<16xf32>
      %19 = vector.multi_reduction <add>, %18, %cst_16 [1] : vector<16x32xf32> to vector<16xf32>
      %20 = vector.shape_cast %19 : vector<16xf32> to vector<16x1xf32>
      %cst_17 = arith.constant 3.200000e+01 : f32
      %21 = vector.broadcast %cst_17 : f32 to vector<16x1xf32>
      %22 = arith.divf %20, %21 : vector<16x1xf32>
      %23 = vector.broadcast %22 : vector<16x1xf32> to vector<16x32xf32>
      %24 = arith.subf %18, %23 : vector<16x32xf32>
      %25 = arith.mulf %24, %24 : vector<16x32xf32>
      %cst_18 = arith.constant dense<0.000000e+00> : vector<16xf32>
      %26 = vector.multi_reduction <add>, %25, %cst_18 [1] : vector<16x32xf32> to vector<16xf32>
      %27 = vector.shape_cast %26 : vector<16xf32> to vector<16x1xf32>
      %cst_19 = arith.constant 3.200000e+01 : f32
      %28 = vector.broadcast %cst_19 : f32 to vector<16x1xf32>
      %29 = arith.divf %27, %28 : vector<16x1xf32>
      %cst_20 = arith.constant 9.99999974E-6 : f32
      %30 = vector.broadcast %cst_20 : f32 to vector<16x1xf32>
      %31 = arith.addf %29, %30 : vector<16x1xf32>
      %32 = math.rsqrt %31 : vector<16x1xf32>
      %33 = vector.broadcast %32 : vector<16x1xf32> to vector<16x32xf32>
      %34 = arith.mulf %24, %33 : vector<16x32xf32>
      %c0_21 = arith.constant 0 : index
      %c0_22 = arith.constant 0 : index
      %35 = vector.load %arg6[%c0_21, %c0_22] : memref<1x32xf32, #tpu.memory_space<vmem>>, vector<1x32xf32>
      %36 = vector.broadcast %35 : vector<1x32xf32> to vector<16x32xf32>
      %37 = arith.mulf %34, %36 : vector<16x32xf32>
      %c0_23 = arith.constant 0 : index
      %c0_24 = arith.constant 0 : index
      %38 = vector.load %arg7[%c0_23, %c0_24] : memref<1x32xf32, #tpu.memory_space<vmem>>, vector<1x32xf32>
      %39 = vector.broadcast %38 : vector<1x32xf32> to vector<16x32xf32>
      %40 = arith.addf %37, %39 : vector<16x32xf32>
      %41 = arith.truncf %40 : vector<16x32xf32> to vector<16x32xbf16>
      %c0_25 = arith.constant 0 : index
      %c0_26 = arith.constant 0 : index
      %42 = vector.load %arg8[%c0_25, %c0_26] : memref<16x32xbf16, #tpu.memory_space<vmem>>, vector<16x32xbf16>
      tpu.vector_store %arg8[%c0_25, %c0_26], %41 {strides = array<i32>} : memref<16x32xbf16, #tpu.memory_space<vmem>>, vector<16x32xbf16>,
    } else {
    }
    return
  }
  func.func @transform_0(%arg0: i32, %arg1: i32) -> (i32, i32) {
    %c0_i32 = arith.constant 0 : i32
    return %arg0, %arg1 : i32, i32
  }
  func.func @transform_1(%arg0: i32, %arg1: i32) -> (i32, i32) {
    %c0_i32 = arith.constant 0 : i32
    %c0_i32_0 = arith.constant 0 : i32
    return %arg1, %c0_i32 : i32, i32
  }
  func.func @transform_2(%arg0: i32, %arg1: i32) -> (i32, i32) {
    %c0_i32 = arith.constant 0 : i32
    %c0_i32_0 = arith.constant 0 : i32
    %c0_i32_1 = arith.constant 0 : i32
    return %c0_i32, %c0_i32_0 : i32, i32
  }
  func.func @transform_3(%arg0: i32, %arg1: i32) -> (i32, i32) {
    %c0_i32 = arith.constant 0 : i32
    %c0_i32_0 = arith.constant 0 : i32
    return %arg0, %c0_i32 : i32, i32
  }
  func.func @transform_4(%arg0: i32, %arg1: i32) -> (i32, i32) {
    %c0_i32 = arith.constant 0 : i32
    %c0_i32_0 = arith.constant 0 : i32
    %c0_i32_1 = arith.constant 0 : i32
    return %c0_i32, %c0_i32_0 : i32, i32
  }
  func.func @transform_5(%arg0: i32, %arg1: i32) -> (i32, i32) {
    %c0_i32 = arith.constant 0 : i32
    %c0_i32_0 = arith.constant 0 : i32
    %c0_i32_1 = arith.constant 0 : i32
    return %c0_i32, %c0_i32_0 : i32, i32
  }
  func.func @transform_6(%arg0: i32, %arg1: i32) -> (i32, i32) {
    %c0_i32 = arith.constant 0 : i32
    %c0_i32_0 = arith.constant 0 : i32
    return %arg0, %c0_i32 : i32, i32
  }
}

module attributes {stable_mosaic.version = 11 : i64} {
  func.func @_linear_kernel(%arg0: i32, %arg1: i32, %arg2: i32, %arg3: memref<16x32xbf16, #tpu.memory_space<vmem>>, %arg4: memref<32x128xbf16, #tpu.memory_space<vmem>>, %arg5: memref<1x128xf32, #tpu.memory_space<vmem>>, %arg6: memref<16x128xbf16, #tpu.memory_space<vmem>>, %arg7: memref<16x128xf32, #tpu.memory_space<vmem>>) attributes {dimension_semantics = [#tpu.dimension_semantics<parallel>, #tpu.dimension_semantics<parallel>, #tpu.dimension_semantics<arbitrary>], iteration_bounds = array<i64: 1, 1, 1>, scalar_prefetch = 0 : i64, scratch_operands = 1 : i64, tpu.core_type = #tpu.core_type<tc>, window_params = [{transform_indices = @transform_0, window_bounds = array<i64: 16, 32>}, {transform_indices = @transform_1, window_bounds = array<i64: 32, 128>}, {transform_indices = @transform_2, window_bounds = array<i64: 1, 128>}, {transform_indices = @transform_3, window_bounds = array<i64: 16, 128>}]} {
    %c0_i32 = arith.constant 0 : i32
    %0 = arith.cmpi eq, %arg2, %c0_i32 : i32
    %1 = arith.extui %0 : i1 to i32
    %c0_i32_0 = arith.constant 0 : i32
    %2 = arith.cmpi ne, %1, %c0_i32_0 : i32
    scf.if %2 {
      %cst_10 = arith.constant 0.000000e+00 : f32
      %12 = vector.broadcast %cst_10 : f32 to vector<16x128xf32>
      %c0_11 = arith.constant 0 : index
      %c0_12 = arith.constant 0 : index
      %13 = vector.load %arg7[%c0_11, %c0_12] : memref<16x128xf32, #tpu.memory_space<vmem>>, vector<16x128xf32>
      tpu.vector_store %arg7[%c0_11, %c0_12], %12 {strides = array<i32>} : memref<16x128xf32, #tpu.memory_space<vmem>>, vector<16x128xf32>,
    } else {
    }
    %c0 = arith.constant 0 : index
    %c0_1 = arith.constant 0 : index
    %3 = vector.load %arg7[%c0, %c0_1] : memref<16x128xf32, #tpu.memory_space<vmem>>, vector<16x128xf32>
    %c0_2 = arith.constant 0 : index
    %c0_3 = arith.constant 0 : index
    %4 = vector.load %arg3[%c0_2, %c0_3] : memref<16x32xbf16, #tpu.memory_space<vmem>>, vector<16x32xbf16>
    %c0_4 = arith.constant 0 : index
    %c0_5 = arith.constant 0 : index
    %5 = vector.load %arg4[%c0_4, %c0_5] : memref<32x128xbf16, #tpu.memory_space<vmem>>, vector<32x128xbf16>
    %cst = arith.constant dense<0.000000e+00> : vector<16x128xf32>
    %6 = tpu.matmul %4, %5, %cst {dimension_numbers = #tpu.dot_dimension_numbers<[1], [0], [0], [1], [0, 0, 1, 1], [], []>} : vector<16x32xbf16>, vector<32x128xbf16>, vector<16x128xf32> -> vector<16x128xf32>
    %7 = arith.addf %3, %6 : vector<16x128xf32>
    %c0_6 = arith.constant 0 : index
    %c0_7 = arith.constant 0 : index
    %8 = vector.load %arg7[%c0_6, %c0_7] : memref<16x128xf32, #tpu.memory_space<vmem>>, vector<16x128xf32>
    tpu.vector_store %arg7[%c0_6, %c0_7], %7 {strides = array<i32>} : memref<16x128xf32, #tpu.memory_space<vmem>>, vector<16x128xf32>,
    %c0_i32_8 = arith.constant 0 : i32
    %9 = arith.cmpi eq, %arg2, %c0_i32_8 : i32
    %10 = arith.extui %9 : i1 to i32
    %c0_i32_9 = arith.constant 0 : i32
    %11 = arith.cmpi ne, %10, %c0_i32_9 : i32
    scf.if %11 {
      %c0_10 = arith.constant 0 : index
      %c0_11 = arith.constant 0 : index
      %12 = vector.load %arg7[%c0_10, %c0_11] : memref<16x128xf32, #tpu.memory_space<vmem>>, vector<16x128xf32>
      %c0_12 = arith.constant 0 : index
      %c0_13 = arith.constant 0 : index
      %13 = vector.load %arg5[%c0_12, %c0_13] : memref<1x128xf32, #tpu.memory_space<vmem>>, vector<1x128xf32>
      %14 = vector.broadcast %13 : vector<1x128xf32> to vector<16x128xf32>
      %15 = arith.addf %12, %14 : vector<16x128xf32>
      %cst_14 = arith.constant 0.000000e+00 : f32
      %16 = vector.broadcast %cst_14 : f32 to vector<16x128xf32>
      %17 = arith.maximumf %15, %16 : vector<16x128xf32>
      %18 = arith.truncf %17 : vector<16x128xf32> to vector<16x128xbf16>
      %c0_15 = arith.constant 0 : index
      %c0_16 = arith.constant 0 : index
      %19 = vector.load %arg6[%c0_15, %c0_16] : memref<16x128xbf16, #tpu.memory_space<vmem>>, vector<16x128xbf16>
      tpu.vector_store %arg6[%c0_15, %c0_16], %18 {strides = array<i32>} : memref<16x128xbf16, #tpu.memory_space<vmem>>, vector<16x128xbf16>,
    } else {
    }
    return
  }
  func.func @transform_0(%arg0: i32, %arg1: i32, %arg2: i32) -> (i32, i32) {
    %c0_i32 = arith.constant 0 : i32
    return %arg0, %arg2 : i32, i32
  }
  func.func @transform_1(%arg0: i32, %arg1: i32, %arg2: i32) -> (i32, i32) {
    %c0_i32 = arith.constant 0 : i32
    return %arg2, %arg1 : i32, i32
  }
  func.func @transform_2(%arg0: i32, %arg1: i32, %arg2: i32) -> (i32, i32) {
    %c0_i32 = arith.constant 0 : i32
    %c0_i32_0 = arith.constant 0 : i32
    return %c0_i32, %arg1 : i32, i32
  }
  func.func @transform_3(%arg0: i32, %arg1: i32, %arg2: i32) -> (i32, i32) {
    %c0_i32 = arith.constant 0 : i32
    return %arg0, %arg1 : i32, i32
  }
}

module attributes {stable_mosaic.version = 11 : i64} {
  func.func @_linear_add_ln_kernel(%arg0: i32, %arg1: i32, %arg2: memref<16x128xbf16, #tpu.memory_space<vmem>>, %arg3: memref<128x32xbf16, #tpu.memory_space<vmem>>, %arg4: memref<1x32xf32, #tpu.memory_space<vmem>>, %arg5: memref<16x32xbf16, #tpu.memory_space<vmem>>, %arg6: memref<1x32xf32, #tpu.memory_space<vmem>>, %arg7: memref<1x32xf32, #tpu.memory_space<vmem>>, %arg8: memref<16x32xbf16, #tpu.memory_space<vmem>>, %arg9: memref<16x32xf32, #tpu.memory_space<vmem>>) attributes {dimension_semantics = [#tpu.dimension_semantics<parallel>, #tpu.dimension_semantics<arbitrary>], iteration_bounds = array<i64: 1, 1>, scalar_prefetch = 0 : i64, scratch_operands = 1 : i64, tpu.core_type = #tpu.core_type<tc>, window_params = [{transform_indices = @transform_0, window_bounds = array<i64: 16, 128>}, {transform_indices = @transform_1, window_bounds = array<i64: 128, 32>}, {pipeline_mode = #tpu.pipeline_mode<synchronous>, transform_indices = @transform_2, window_bounds = array<i64: 1, 32>}, {transform_indices = @transform_3, window_bounds = array<i64: 16, 32>}, {pipeline_mode = #tpu.pipeline_mode<synchronous>, transform_indices = @transform_4, window_bounds = array<i64: 1, 32>}, {pipeline_mode = #tpu.pipeline_mode<synchronous>, transform_indices = @transform_5, window_bounds = array<i64: 1, 32>}, {transform_indices = @transform_6, window_bounds = array<i64: 16, 32>}]} {
    %c0_i32 = arith.constant 0 : i32
    %0 = arith.cmpi eq, %arg1, %c0_i32 : i32
    %1 = arith.extui %0 : i1 to i32
    %c0_i32_0 = arith.constant 0 : i32
    %2 = arith.cmpi ne, %1, %c0_i32_0 : i32
    scf.if %2 {
      %cst_10 = arith.constant 0.000000e+00 : f32
      %12 = vector.broadcast %cst_10 : f32 to vector<16x32xf32>
      %c0_11 = arith.constant 0 : index
      %c0_12 = arith.constant 0 : index
      %13 = vector.load %arg9[%c0_11, %c0_12] : memref<16x32xf32, #tpu.memory_space<vmem>>, vector<16x32xf32>
      tpu.vector_store %arg9[%c0_11, %c0_12], %12 {strides = array<i32>} : memref<16x32xf32, #tpu.memory_space<vmem>>, vector<16x32xf32>,
    } else {
    }
    %c0 = arith.constant 0 : index
    %c0_1 = arith.constant 0 : index
    %3 = vector.load %arg9[%c0, %c0_1] : memref<16x32xf32, #tpu.memory_space<vmem>>, vector<16x32xf32>
    %c0_2 = arith.constant 0 : index
    %c0_3 = arith.constant 0 : index
    %4 = vector.load %arg2[%c0_2, %c0_3] : memref<16x128xbf16, #tpu.memory_space<vmem>>, vector<16x128xbf16>
    %c0_4 = arith.constant 0 : index
    %c0_5 = arith.constant 0 : index
    %5 = vector.load %arg3[%c0_4, %c0_5] : memref<128x32xbf16, #tpu.memory_space<vmem>>, vector<128x32xbf16>
    %cst = arith.constant dense<0.000000e+00> : vector<16x32xf32>
    %6 = tpu.matmul %4, %5, %cst {dimension_numbers = #tpu.dot_dimension_numbers<[1], [0], [0], [1], [0, 0, 1, 1], [], []>} : vector<16x128xbf16>, vector<128x32xbf16>, vector<16x32xf32> -> vector<16x32xf32>
    %7 = arith.addf %3, %6 : vector<16x32xf32>
    %c0_6 = arith.constant 0 : index
    %c0_7 = arith.constant 0 : index
    %8 = vector.load %arg9[%c0_6, %c0_7] : memref<16x32xf32, #tpu.memory_space<vmem>>, vector<16x32xf32>
    tpu.vector_store %arg9[%c0_6, %c0_7], %7 {strides = array<i32>} : memref<16x32xf32, #tpu.memory_space<vmem>>, vector<16x32xf32>,
    %c0_i32_8 = arith.constant 0 : i32
    %9 = arith.cmpi eq, %arg1, %c0_i32_8 : i32
    %10 = arith.extui %9 : i1 to i32
    %c0_i32_9 = arith.constant 0 : i32
    %11 = arith.cmpi ne, %10, %c0_i32_9 : i32
    scf.if %11 {
      %c0_10 = arith.constant 0 : index
      %c0_11 = arith.constant 0 : index
      %12 = vector.load %arg9[%c0_10, %c0_11] : memref<16x32xf32, #tpu.memory_space<vmem>>, vector<16x32xf32>
      %c0_12 = arith.constant 0 : index
      %c0_13 = arith.constant 0 : index
      %13 = vector.load %arg4[%c0_12, %c0_13] : memref<1x32xf32, #tpu.memory_space<vmem>>, vector<1x32xf32>
      %14 = vector.broadcast %13 : vector<1x32xf32> to vector<16x32xf32>
      %15 = arith.addf %12, %14 : vector<16x32xf32>
      %c0_14 = arith.constant 0 : index
      %c0_15 = arith.constant 0 : index
      %16 = vector.load %arg5[%c0_14, %c0_15] : memref<16x32xbf16, #tpu.memory_space<vmem>>, vector<16x32xbf16>
      %17 = arith.extf %16 : vector<16x32xbf16> to vector<16x32xf32>
      %18 = arith.addf %15, %17 : vector<16x32xf32>
      %cst_16 = arith.constant dense<0.000000e+00> : vector<16xf32>
      %19 = vector.multi_reduction <add>, %18, %cst_16 [1] : vector<16x32xf32> to vector<16xf32>
      %20 = vector.shape_cast %19 : vector<16xf32> to vector<16x1xf32>
      %cst_17 = arith.constant 3.200000e+01 : f32
      %21 = vector.broadcast %cst_17 : f32 to vector<16x1xf32>
      %22 = arith.divf %20, %21 : vector<16x1xf32>
      %23 = vector.broadcast %22 : vector<16x1xf32> to vector<16x32xf32>
      %24 = arith.subf %18, %23 : vector<16x32xf32>
      %25 = arith.mulf %24, %24 : vector<16x32xf32>
      %cst_18 = arith.constant dense<0.000000e+00> : vector<16xf32>
      %26 = vector.multi_reduction <add>, %25, %cst_18 [1] : vector<16x32xf32> to vector<16xf32>
      %27 = vector.shape_cast %26 : vector<16xf32> to vector<16x1xf32>
      %cst_19 = arith.constant 3.200000e+01 : f32
      %28 = vector.broadcast %cst_19 : f32 to vector<16x1xf32>
      %29 = arith.divf %27, %28 : vector<16x1xf32>
      %cst_20 = arith.constant 9.99999974E-6 : f32
      %30 = vector.broadcast %cst_20 : f32 to vector<16x1xf32>
      %31 = arith.addf %29, %30 : vector<16x1xf32>
      %32 = math.rsqrt %31 : vector<16x1xf32>
      %33 = vector.broadcast %32 : vector<16x1xf32> to vector<16x32xf32>
      %34 = arith.mulf %24, %33 : vector<16x32xf32>
      %c0_21 = arith.constant 0 : index
      %c0_22 = arith.constant 0 : index
      %35 = vector.load %arg6[%c0_21, %c0_22] : memref<1x32xf32, #tpu.memory_space<vmem>>, vector<1x32xf32>
      %36 = vector.broadcast %35 : vector<1x32xf32> to vector<16x32xf32>
      %37 = arith.mulf %34, %36 : vector<16x32xf32>
      %c0_23 = arith.constant 0 : index
      %c0_24 = arith.constant 0 : index
      %38 = vector.load %arg7[%c0_23, %c0_24] : memref<1x32xf32, #tpu.memory_space<vmem>>, vector<1x32xf32>
      %39 = vector.broadcast %38 : vector<1x32xf32> to vector<16x32xf32>
      %40 = arith.addf %37, %39 : vector<16x32xf32>
      %41 = arith.truncf %40 : vector<16x32xf32> to vector<16x32xbf16>
      %c0_25 = arith.constant 0 : index
      %c0_26 = arith.constant 0 : index
      %42 = vector.load %arg8[%c0_25, %c0_26] : memref<16x32xbf16, #tpu.memory_space<vmem>>, vector<16x32xbf16>
      tpu.vector_store %arg8[%c0_25, %c0_26], %41 {strides = array<i32>} : memref<16x32xbf16, #tpu.memory_space<vmem>>, vector<16x32xbf16>,
    } else {
    }
    return
  }
  func.func @transform_0(%arg0: i32, %arg1: i32) -> (i32, i32) {
    %c0_i32 = arith.constant 0 : i32
    return %arg0, %arg1 : i32, i32
  }
  func.func @transform_1(%arg0: i32, %arg1: i32) -> (i32, i32) {
    %c0_i32 = arith.constant 0 : i32
    %c0_i32_0 = arith.constant 0 : i32
    return %arg1, %c0_i32 : i32, i32
  }
  func.func @transform_2(%arg0: i32, %arg1: i32) -> (i32, i32) {
    %c0_i32 = arith.constant 0 : i32
    %c0_i32_0 = arith.constant 0 : i32
    %c0_i32_1 = arith.constant 0 : i32
    return %c0_i32, %c0_i32_0 : i32, i32
  }
  func.func @transform_3(%arg0: i32, %arg1: i32) -> (i32, i32) {
    %c0_i32 = arith.constant 0 : i32
    %c0_i32_0 = arith.constant 0 : i32
    return %arg0, %c0_i32 : i32, i32
  }
  func.func @transform_4(%arg0: i32, %arg1: i32) -> (i32, i32) {
    %c0_i32 = arith.constant 0 : i32
    %c0_i32_0 = arith.constant 0 : i32
    %c0_i32_1 = arith.constant 0 : i32
    return %c0_i32, %c0_i32_0 : i32, i32
  }
  func.func @transform_5(%arg0: i32, %arg1: i32) -> (i32, i32) {
    %c0_i32 = arith.constant 0 : i32
    %c0_i32_0 = arith.constant 0 : i32
    %c0_i32_1 = arith.constant 0 : i32
    return %c0_i32, %c0_i32_0 : i32, i32
  }
  func.func @transform_6(%arg0: i32, %arg1: i32) -> (i32, i32) {
    %c0_i32 = arith.constant 0 : i32
    %c0_i32_0 = arith.constant 0 : i32
    return %arg0, %c0_i32 : i32, i32
  }
}

module attributes {stable_mosaic.version = 11 : i64} {
  func.func @_linear_add_ln_kernel(%arg0: i32, %arg1: i32, %arg2: memref<16x32xbf16, #tpu.memory_space<vmem>>, %arg3: memref<32x32xbf16, #tpu.memory_space<vmem>>, %arg4: memref<1x32xf32, #tpu.memory_space<vmem>>, %arg5: memref<16x32xbf16, #tpu.memory_space<vmem>>, %arg6: memref<1x32xf32, #tpu.memory_space<vmem>>, %arg7: memref<1x32xf32, #tpu.memory_space<vmem>>, %arg8: memref<16x32xbf16, #tpu.memory_space<vmem>>, %arg9: memref<16x32xf32, #tpu.memory_space<vmem>>) attributes {dimension_semantics = [#tpu.dimension_semantics<parallel>, #tpu.dimension_semantics<arbitrary>], iteration_bounds = array<i64: 1, 1>, scalar_prefetch = 0 : i64, scratch_operands = 1 : i64, tpu.core_type = #tpu.core_type<tc>, window_params = [{transform_indices = @transform_0, window_bounds = array<i64: 16, 32>}, {transform_indices = @transform_1, window_bounds = array<i64: 32, 32>}, {pipeline_mode = #tpu.pipeline_mode<synchronous>, transform_indices = @transform_2, window_bounds = array<i64: 1, 32>}, {transform_indices = @transform_3, window_bounds = array<i64: 16, 32>}, {pipeline_mode = #tpu.pipeline_mode<synchronous>, transform_indices = @transform_4, window_bounds = array<i64: 1, 32>}, {pipeline_mode = #tpu.pipeline_mode<synchronous>, transform_indices = @transform_5, window_bounds = array<i64: 1, 32>}, {transform_indices = @transform_6, window_bounds = array<i64: 16, 32>}]} {
    %c0_i32 = arith.constant 0 : i32
    %0 = arith.cmpi eq, %arg1, %c0_i32 : i32
    %1 = arith.extui %0 : i1 to i32
    %c0_i32_0 = arith.constant 0 : i32
    %2 = arith.cmpi ne, %1, %c0_i32_0 : i32
    scf.if %2 {
      %cst_10 = arith.constant 0.000000e+00 : f32
      %12 = vector.broadcast %cst_10 : f32 to vector<16x32xf32>
      %c0_11 = arith.constant 0 : index
      %c0_12 = arith.constant 0 : index
      %13 = vector.load %arg9[%c0_11, %c0_12] : memref<16x32xf32, #tpu.memory_space<vmem>>, vector<16x32xf32>
      tpu.vector_store %arg9[%c0_11, %c0_12], %12 {strides = array<i32>} : memref<16x32xf32, #tpu.memory_space<vmem>>, vector<16x32xf32>,
    } else {
    }
    %c0 = arith.constant 0 : index
    %c0_1 = arith.constant 0 : index
    %3 = vector.load %arg9[%c0, %c0_1] : memref<16x32xf32, #tpu.memory_space<vmem>>, vector<16x32xf32>
    %c0_2 = arith.constant 0 : index
    %c0_3 = arith.constant 0 : index
    %4 = vector.load %arg2[%c0_2, %c0_3] : memref<16x32xbf16, #tpu.memory_space<vmem>>, vector<16x32xbf16>
    %c0_4 = arith.constant 0 : index
    %c0_5 = arith.constant 0 : index
    %5 = vector.load %arg3[%c0_4, %c0_5] : memref<32x32xbf16, #tpu.memory_space<vmem>>, vector<32x32xbf16>
    %cst = arith.constant dense<0.000000e+00> : vector<16x32xf32>
    %6 = tpu.matmul %4, %5, %cst {dimension_numbers = #tpu.dot_dimension_numbers<[1], [0], [0], [1], [0, 0, 1, 1], [], []>} : vector<16x32xbf16>, vector<32x32xbf16>, vector<16x32xf32> -> vector<16x32xf32>
    %7 = arith.addf %3, %6 : vector<16x32xf32>
    %c0_6 = arith.constant 0 : index
    %c0_7 = arith.constant 0 : index
    %8 = vector.load %arg9[%c0_6, %c0_7] : memref<16x32xf32, #tpu.memory_space<vmem>>, vector<16x32xf32>
    tpu.vector_store %arg9[%c0_6, %c0_7], %7 {strides = array<i32>} : memref<16x32xf32, #tpu.memory_space<vmem>>, vector<16x32xf32>,
    %c0_i32_8 = arith.constant 0 : i32
    %9 = arith.cmpi eq, %arg1, %c0_i32_8 : i32
    %10 = arith.extui %9 : i1 to i32
    %c0_i32_9 = arith.constant 0 : i32
    %11 = arith.cmpi ne, %10, %c0_i32_9 : i32
    scf.if %11 {
      %c0_10 = arith.constant 0 : index
      %c0_11 = arith.constant 0 : index
      %12 = vector.load %arg9[%c0_10, %c0_11] : memref<16x32xf32, #tpu.memory_space<vmem>>, vector<16x32xf32>
      %c0_12 = arith.constant 0 : index
      %c0_13 = arith.constant 0 : index
      %13 = vector.load %arg4[%c0_12, %c0_13] : memref<1x32xf32, #tpu.memory_space<vmem>>, vector<1x32xf32>
      %14 = vector.broadcast %13 : vector<1x32xf32> to vector<16x32xf32>
      %15 = arith.addf %12, %14 : vector<16x32xf32>
      %c0_14 = arith.constant 0 : index
      %c0_15 = arith.constant 0 : index
      %16 = vector.load %arg5[%c0_14, %c0_15] : memref<16x32xbf16, #tpu.memory_space<vmem>>, vector<16x32xbf16>
      %17 = arith.extf %16 : vector<16x32xbf16> to vector<16x32xf32>
      %18 = arith.addf %15, %17 : vector<16x32xf32>
      %cst_16 = arith.constant dense<0.000000e+00> : vector<16xf32>
      %19 = vector.multi_reduction <add>, %18, %cst_16 [1] : vector<16x32xf32> to vector<16xf32>
      %20 = vector.shape_cast %19 : vector<16xf32> to vector<16x1xf32>
      %cst_17 = arith.constant 3.200000e+01 : f32
      %21 = vector.broadcast %cst_17 : f32 to vector<16x1xf32>
      %22 = arith.divf %20, %21 : vector<16x1xf32>
      %23 = vector.broadcast %22 : vector<16x1xf32> to vector<16x32xf32>
      %24 = arith.subf %18, %23 : vector<16x32xf32>
      %25 = arith.mulf %24, %24 : vector<16x32xf32>
      %cst_18 = arith.constant dense<0.000000e+00> : vector<16xf32>
      %26 = vector.multi_reduction <add>, %25, %cst_18 [1] : vector<16x32xf32> to vector<16xf32>
      %27 = vector.shape_cast %26 : vector<16xf32> to vector<16x1xf32>
      %cst_19 = arith.constant 3.200000e+01 : f32
      %28 = vector.broadcast %cst_19 : f32 to vector<16x1xf32>
      %29 = arith.divf %27, %28 : vector<16x1xf32>
      %cst_20 = arith.constant 9.99999974E-6 : f32
      %30 = vector.broadcast %cst_20 : f32 to vector<16x1xf32>
      %31 = arith.addf %29, %30 : vector<16x1xf32>
      %32 = math.rsqrt %31 : vector<16x1xf32>
      %33 = vector.broadcast %32 : vector<16x1xf32> to vector<16x32xf32>
      %34 = arith.mulf %24, %33 : vector<16x32xf32>
      %c0_21 = arith.constant 0 : index
      %c0_22 = arith.constant 0 : index
      %35 = vector.load %arg6[%c0_21, %c0_22] : memref<1x32xf32, #tpu.memory_space<vmem>>, vector<1x32xf32>
      %36 = vector.broadcast %35 : vector<1x32xf32> to vector<16x32xf32>
      %37 = arith.mulf %34, %36 : vector<16x32xf32>
      %c0_23 = arith.constant 0 : index
      %c0_24 = arith.constant 0 : index
      %38 = vector.load %arg7[%c0_23, %c0_24] : memref<1x32xf32, #tpu.memory_space<vmem>>, vector<1x32xf32>
      %39 = vector.broadcast %38 : vector<1x32xf32> to vector<16x32xf32>
      %40 = arith.addf %37, %39 : vector<16x32xf32>
      %41 = arith.truncf %40 : vector<16x32xf32> to vector<16x32xbf16>
      %c0_25 = arith.constant 0 : index
      %c0_26 = arith.constant 0 : index
      %42 = vector.load %arg8[%c0_25, %c0_26] : memref<16x32xbf16, #tpu.memory_space<vmem>>, vector<16x32xbf16>
      tpu.vector_store %arg8[%c0_25, %c0_26], %41 {strides = array<i32>} : memref<16x32xbf16, #tpu.memory_space<vmem>>, vector<16x32xbf16>,
    } else {
    }
    return
  }
  func.func @transform_0(%arg0: i32, %arg1: i32) -> (i32, i32) {
    %c0_i32 = arith.constant 0 : i32
    return %arg0, %arg1 : i32, i32
  }
  func.func @transform_1(%arg0: i32, %arg1: i32) -> (i32, i32) {
    %c0_i32 = arith.constant 0 : i32
    %c0_i32_0 = arith.constant 0 : i32
    return %arg1, %c0_i32 : i32, i32
  }
  func.func @transform_2(%arg0: i32, %arg1: i32) -> (i32, i32) {
    %c0_i32 = arith.constant 0 : i32
    %c0_i32_0 = arith.constant 0 : i32
    %c0_i32_1 = arith.constant 0 : i32
    return %c0_i32, %c0_i32_0 : i32, i32
  }
  func.func @transform_3(%arg0: i32, %arg1: i32) -> (i32, i32) {
    %c0_i32 = arith.constant 0 : i32
    %c0_i32_0 = arith.constant 0 : i32
    return %arg0, %c0_i32 : i32, i32
  }
  func.func @transform_4(%arg0: i32, %arg1: i32) -> (i32, i32) {
    %c0_i32 = arith.constant 0 : i32
    %c0_i32_0 = arith.constant 0 : i32
    %c0_i32_1 = arith.constant 0 : i32
    return %c0_i32, %c0_i32_0 : i32, i32
  }
  func.func @transform_5(%arg0: i32, %arg1: i32) -> (i32, i32) {
    %c0_i32 = arith.constant 0 : i32
    %c0_i32_0 = arith.constant 0 : i32
    %c0_i32_1 = arith.constant 0 : i32
    return %c0_i32, %c0_i32_0 : i32, i32
  }
  func.func @transform_6(%arg0: i32, %arg1: i32) -> (i32, i32) {
    %c0_i32 = arith.constant 0 : i32
    %c0_i32_0 = arith.constant 0 : i32
    return %arg0, %c0_i32 : i32, i32
  }
}

module attributes {stable_mosaic.version = 11 : i64} {
  func.func @_ln_kernel(%arg0: i32, %arg1: memref<16x32xbf16, #tpu.memory_space<vmem>>, %arg2: memref<1x32xf32, #tpu.memory_space<vmem>>, %arg3: memref<1x32xf32, #tpu.memory_space<vmem>>, %arg4: memref<16x32xbf16, #tpu.memory_space<vmem>>) attributes {dimension_semantics = [#tpu.dimension_semantics<parallel>], iteration_bounds = array<i64: 1>, scalar_prefetch = 0 : i64, scratch_operands = 0 : i64, tpu.core_type = #tpu.core_type<tc>, window_params = [{transform_indices = @transform_0, window_bounds = array<i64: 16, 32>}, {pipeline_mode = #tpu.pipeline_mode<synchronous>, transform_indices = @transform_1, window_bounds = array<i64: 1, 32>}, {pipeline_mode = #tpu.pipeline_mode<synchronous>, transform_indices = @transform_2, window_bounds = array<i64: 1, 32>}, {transform_indices = @transform_3, window_bounds = array<i64: 16, 32>}]} {
    %c0 = arith.constant 0 : index
    %c0_0 = arith.constant 0 : index
    %0 = vector.load %arg1[%c0, %c0_0] : memref<16x32xbf16, #tpu.memory_space<vmem>>, vector<16x32xbf16>
    %1 = arith.extf %0 : vector<16x32xbf16> to vector<16x32xf32>
    %cst = arith.constant dense<0.000000e+00> : vector<16xf32>
    %2 = vector.multi_reduction <add>, %1, %cst [1] : vector<16x32xf32> to vector<16xf32>
    %3 = vector.shape_cast %2 : vector<16xf32> to vector<16x1xf32>
    %cst_1 = arith.constant 3.200000e+01 : f32
    %4 = vector.broadcast %cst_1 : f32 to vector<16x1xf32>
    %5 = arith.divf %3, %4 : vector<16x1xf32>
    %6 = vector.broadcast %5 : vector<16x1xf32> to vector<16x32xf32>
    %7 = arith.subf %1, %6 : vector<16x32xf32>
    %8 = arith.mulf %7, %7 : vector<16x32xf32>
    %cst_2 = arith.constant dense<0.000000e+00> : vector<16xf32>
    %9 = vector.multi_reduction <add>, %8, %cst_2 [1] : vector<16x32xf32> to vector<16xf32>
    %10 = vector.shape_cast %9 : vector<16xf32> to vector<16x1xf32>
    %cst_3 = arith.constant 3.200000e+01 : f32
    %11 = vector.broadcast %cst_3 : f32 to vector<16x1xf32>
    %12 = arith.divf %10, %11 : vector<16x1xf32>
    %cst_4 = arith.constant 9.99999974E-6 : f32
    %13 = vector.broadcast %cst_4 : f32 to vector<16x1xf32>
    %14 = arith.addf %12, %13 : vector<16x1xf32>
    %15 = math.rsqrt %14 : vector<16x1xf32>
    %16 = vector.broadcast %15 : vector<16x1xf32> to vector<16x32xf32>
    %17 = arith.mulf %7, %16 : vector<16x32xf32>
    %c0_5 = arith.constant 0 : index
    %c0_6 = arith.constant 0 : index
    %18 = vector.load %arg2[%c0_5, %c0_6] : memref<1x32xf32, #tpu.memory_space<vmem>>, vector<1x32xf32>
    %19 = vector.broadcast %18 : vector<1x32xf32> to vector<16x32xf32>
    %20 = arith.mulf %17, %19 : vector<16x32xf32>
    %c0_7 = arith.constant 0 : index
    %c0_8 = arith.constant 0 : index
    %21 = vector.load %arg3[%c0_7, %c0_8] : memref<1x32xf32, #tpu.memory_space<vmem>>, vector<1x32xf32>
    %22 = vector.broadcast %21 : vector<1x32xf32> to vector<16x32xf32>
    %23 = arith.addf %20, %22 : vector<16x32xf32>
    %24 = arith.truncf %23 : vector<16x32xf32> to vector<16x32xbf16>
    %c0_9 = arith.constant 0 : index
    %c0_10 = arith.constant 0 : index
    %25 = vector.load %arg4[%c0_9, %c0_10] : memref<16x32xbf16, #tpu.memory_space<vmem>>, vector<16x32xbf16>
    tpu.vector_store %arg4[%c0_9, %c0_10], %24 {strides = array<i32>} : memref<16x32xbf16, #tpu.memory_space<vmem>>, vector<16x32xbf16>,
    return
  }
  func.func @transform_0(%arg0: i32) -> (i32, i32) {
    %c0_i32 = arith.constant 0 : i32
    %c0_i32_0 = arith.constant 0 : i32
    return %arg0, %c0_i32 : i32, i32
  }
  func.func @transform_1(%arg0: i32) -> (i32, i32) {
    %c0_i32 = arith.constant 0 : i32
    %c0_i32_0 = arith.constant 0 : i32
    %c0_i32_1 = arith.constant 0 : i32
    return %c0_i32, %c0_i32_0 : i32, i32
  }
  func.func @transform_2(%arg0: i32) -> (i32, i32) {
    %c0_i32 = arith.constant 0 : i32
    %c0_i32_0 = arith.constant 0 : i32
    %c0_i32_1 = arith.constant 0 : i32
    return %c0_i32, %c0_i32_0 : i32, i32
  }
  func.func @transform_3(%arg0: i32) -> (i32, i32) {
    %c0_i32 = arith.constant 0 : i32
    %c0_i32_0 = arith.constant 0 : i32
    return %arg0, %c0_i32 : i32, i32
  }
}

module attributes {stable_mosaic.version = 11 : i64} {
  func.func @_linear_kernel(%arg0: i32, %arg1: i32, %arg2: i32, %arg3: memref<16x32xbf16, #tpu.memory_space<vmem>>, %arg4: memref<32x128xbf16, #tpu.memory_space<vmem>>, %arg5: memref<1x128xf32, #tpu.memory_space<vmem>>, %arg6: memref<16x128xf32, #tpu.memory_space<vmem>>, %arg7: memref<16x128xf32, #tpu.memory_space<vmem>>) attributes {dimension_semantics = [#tpu.dimension_semantics<parallel>, #tpu.dimension_semantics<parallel>, #tpu.dimension_semantics<arbitrary>], iteration_bounds = array<i64: 1, 1, 1>, scalar_prefetch = 0 : i64, scratch_operands = 1 : i64, tpu.core_type = #tpu.core_type<tc>, window_params = [{transform_indices = @transform_0, window_bounds = array<i64: 16, 32>}, {transform_indices = @transform_1, window_bounds = array<i64: 32, 128>}, {transform_indices = @transform_2, window_bounds = array<i64: 1, 128>}, {transform_indices = @transform_3, window_bounds = array<i64: 16, 128>}]} {
    %c0_i32 = arith.constant 0 : i32
    %0 = arith.cmpi eq, %arg2, %c0_i32 : i32
    %1 = arith.extui %0 : i1 to i32
    %c0_i32_0 = arith.constant 0 : i32
    %2 = arith.cmpi ne, %1, %c0_i32_0 : i32
    scf.if %2 {
      %cst_10 = arith.constant 0.000000e+00 : f32
      %12 = vector.broadcast %cst_10 : f32 to vector<16x128xf32>
      %c0_11 = arith.constant 0 : index
      %c0_12 = arith.constant 0 : index
      %13 = vector.load %arg7[%c0_11, %c0_12] : memref<16x128xf32, #tpu.memory_space<vmem>>, vector<16x128xf32>
      tpu.vector_store %arg7[%c0_11, %c0_12], %12 {strides = array<i32>} : memref<16x128xf32, #tpu.memory_space<vmem>>, vector<16x128xf32>,
    } else {
    }
    %c0 = arith.constant 0 : index
    %c0_1 = arith.constant 0 : index
    %3 = vector.load %arg7[%c0, %c0_1] : memref<16x128xf32, #tpu.memory_space<vmem>>, vector<16x128xf32>
    %c0_2 = arith.constant 0 : index
    %c0_3 = arith.constant 0 : index
    %4 = vector.load %arg3[%c0_2, %c0_3] : memref<16x32xbf16, #tpu.memory_space<vmem>>, vector<16x32xbf16>
    %c0_4 = arith.constant 0 : index
    %c0_5 = arith.constant 0 : index
    %5 = vector.load %arg4[%c0_4, %c0_5] : memref<32x128xbf16, #tpu.memory_space<vmem>>, vector<32x128xbf16>
    %cst = arith.constant dense<0.000000e+00> : vector<16x128xf32>
    %6 = tpu.matmul %4, %5, %cst {dimension_numbers = #tpu.dot_dimension_numbers<[1], [0], [0], [1], [0, 0, 1, 1], [], []>} : vector<16x32xbf16>, vector<32x128xbf16>, vector<16x128xf32> -> vector<16x128xf32>
    %7 = arith.addf %3, %6 : vector<16x128xf32>
    %c0_6 = arith.constant 0 : index
    %c0_7 = arith.constant 0 : index
    %8 = vector.load %arg7[%c0_6, %c0_7] : memref<16x128xf32, #tpu.memory_space<vmem>>, vector<16x128xf32>
    tpu.vector_store %arg7[%c0_6, %c0_7], %7 {strides = array<i32>} : memref<16x128xf32, #tpu.memory_space<vmem>>, vector<16x128xf32>,
    %c0_i32_8 = arith.constant 0 : i32
    %9 = arith.cmpi eq, %arg2, %c0_i32_8 : i32
    %10 = arith.extui %9 : i1 to i32
    %c0_i32_9 = arith.constant 0 : i32
    %11 = arith.cmpi ne, %10, %c0_i32_9 : i32
    scf.if %11 {
      %c0_10 = arith.constant 0 : index
      %c0_11 = arith.constant 0 : index
      %12 = vector.load %arg7[%c0_10, %c0_11] : memref<16x128xf32, #tpu.memory_space<vmem>>, vector<16x128xf32>
      %c0_12 = arith.constant 0 : index
      %c0_13 = arith.constant 0 : index
      %13 = vector.load %arg5[%c0_12, %c0_13] : memref<1x128xf32, #tpu.memory_space<vmem>>, vector<1x128xf32>
      %14 = vector.broadcast %13 : vector<1x128xf32> to vector<16x128xf32>
      %15 = arith.addf %12, %14 : vector<16x128xf32>
      %c0_14 = arith.constant 0 : index
      %c0_15 = arith.constant 0 : index
      %16 = vector.load %arg6[%c0_14, %c0_15] : memref<16x128xf32, #tpu.memory_space<vmem>>, vector<16x128xf32>
      tpu.vector_store %arg6[%c0_14, %c0_15], %15 {strides = array<i32>} : memref<16x128xf32, #tpu.memory_space<vmem>>, vector<16x128xf32>,
    } else {
    }
    return
  }
  func.func @transform_0(%arg0: i32, %arg1: i32, %arg2: i32) -> (i32, i32) {
    %c0_i32 = arith.constant 0 : i32
    return %arg0, %arg2 : i32, i32
  }
  func.func @transform_1(%arg0: i32, %arg1: i32, %arg2: i32) -> (i32, i32) {
    %c0_i32 = arith.constant 0 : i32
    return %arg2, %arg1 : i32, i32
  }
  func.func @transform_2(%arg0: i32, %arg1: i32, %arg2: i32) -> (i32, i32) {
    %c0_i32 = arith.constant 0 : i32
    %c0_i32_0 = arith.constant 0 : i32
    return %c0_i32, %arg1 : i32, i32
  }
  func.func @transform_3(%arg0: i32, %arg1: i32, %arg2: i32) -> (i32, i32) {
    %c0_i32 = arith.constant 0 : i32
    return %arg0, %arg1 : i32, i32
  }
}

</mosaic_0001>

<llo_original>
// kernel: transformer_tts_forward.37
$region0: #{transformer_tts_forward.37}
  #allocation0 [shape = 'u32[]', space=smem, size = 0x4, offset = 0x4, fixed_abs, tag = 'smem constant byte address 0x4 - core index']
  #allocation1 [shape = 'u32[72,128]{1,0:T(1,128)}', space=vmem, size = 0x9000, scoped, tag = 'internal scratch']
  %s0 = inlined_call_operand.vmem [shape: f32[2,8,32], index: 0, kind: input, shape index: {}]
  %s1 = inlined_call_operand.vmem [shape: f32[8,32], index: 1, kind: input, shape index: {}]
  %s2 = inlined_call_operand.vmem [shape: bf16[2,8,32], index: 2, kind: output, shape index: {}]
  %s3 = sld [smem:[#allocation0]]
  $region41: #{transformer_tts_forward.37} parent=0
    _
  %s5 = ssub.s32 1, %s3
  %s6 = scalar_select 0, %s5, %s3
  loop: start=0, step=1, limit=4
  $region2: #{transformer_tts_forward.37} parent=0 // loop_pre_header
    _
  $region3: #{transformer_tts_forward.37} parent=0 // loop_header
    %s8 = sphi 0, %s12
    %p9 = scmp.ge.s32.totalorder %s8, 4
    %s15 = sphi 0, %s27
    %s16 = sphi 0, %s23
    %s17 = sphi 0, %s15
    %s18 = sphi 0, %s16
    %s19 = sphi 0, %s17
    %s20 = sphi 0, %s18
    %s32 = sphi 0, %s34
    %s35 = sphi 0, %s32
    %s36 = sphi 0, %s35
    %s52 = sphi 0, %s36
    %s58 = sphi 0, %s60
    %s61 = sphi 0, %s58
    %s62 = sphi 0, %s61
    %s78 = sphi 0, %s62
    %s86 = sphi 0, %s88
    %s89 = sphi 0, %s86
    %s90 = sphi 0, %s89
    %s106 = sphi 0, %s90
  $region4: #{transformer_tts_forward.37} parent=0 // loop_header_branch
    %11 = sbr.rel (%p9) target = $region8
  $region5: #{transformer_tts_forward.37} parent=0 // loop_body
    %s13 = ssub.s32 %s8, 1
    %s14 = ssub.s32 %s8, 2
    %s21 = sadd.s32 1, %s16
    %p22 = scmp.ge.s32.totalorder %s21, 1
    %s23 = scalar_select %p22, 0, %s21
    %s24 = sadd.s32 1, %s15
    %s25 = scalar_select %p22, %s24, %s15
    %p26 = scmp.ge.s32.totalorder %s25, 2
    %s27 = scalar_select %p26, 0, %s25
    %s28 = ssub.s32 %s15, %s27
    %s29 = ssub.s32 %s16, %s23
    %s30 = sor.u32 %s28, %s29
    %p31 = scmp.eq.s32.totalorder %s30, 0
    %s33 = sadd.s32 %s32, 1
    %s34 = scalar_select %p31, %s32, %s33
    %p37 = pneg %p31
    %p38 = scmp.eq.s32.totalorder %s8, 1
    %p39 = por %p37, %p38
    %p40 = scmp.ne.s32.totalorder %s32, %s35
    %p41 = scmp.eq.s32.totalorder %s8, 0
    %p42 = por %p40, %p41
    %p43 = scmp.ne.s32.totalorder %s32, %s35
    %p44 = scmp.eq.s32.totalorder %s13, 1
    %p45 = por %p43, %p44
    %p46 = scmp.ne.s32.totalorder %s35, %s36
    %p47 = scmp.eq.s32.totalorder %s13, 0
    %p48 = por %p46, %p47
    %p49 = scmp.ne.s32.totalorder %s35, %s36
    %p50 = scmp.eq.s32.totalorder %s14, 1
    %p51 = por %p49, %p50
    %p53 = scmp.ne.s32.totalorder %s36, %s52
    %p54 = scmp.eq.s32.totalorder %s14, 0
    %p55 = por %p53, %p54
    %s56 = ssub.s32 %s16, %s23
    %p57 = scmp.eq.s32.totalorder %s56, 0
    %s59 = sadd.s32 %s58, 1
    %s60 = scalar_select %p57, %s58, %s59
    %p63 = pneg %p57
    %p64 = scmp.eq.s32.totalorder %s8, 1
    %p65 = por %p63, %p64
    %p66 = scmp.ne.s32.totalorder %s58, %s61
    %p67 = scmp.eq.s32.totalorder %s8, 0
    %p68 = por %p66, %p67
    %p69 = scmp.ne.s32.totalorder %s58, %s61
    %p70 = scmp.eq.s32.totalorder %s13, 1
    %p71 = por %p69, %p70
    %p72 = scmp.ne.s32.totalorder %s61, %s62
    %p73 = scmp.eq.s32.totalorder %s13, 0
    %p74 = por %p72, %p73
    %p75 = scmp.ne.s32.totalorder %s61, %s62
    %p76 = scmp.eq.s32.totalorder %s14, 1
    %p77 = por %p75, %p76
    %p79 = scmp.ne.s32.totalorder %s62, %s78
    %p80 = scmp.eq.s32.totalorder %s14, 0
    %p81 = por %p79, %p80
    %s82 = ssub.s32 %s15, %s27
    %s83 = ssub.s32 %s16, %s23
    %s84 = sor.u32 %s82, %s83
    %p85 = scmp.eq.s32.totalorder %s84, 0
    %s87 = sadd.s32 %s86, 1
    %s88 = scalar_select %p85, %s86, %s87
    %p91 = pneg %p85
    %p92 = scmp.eq.s32.totalorder %s8, 1
    %p93 = por %p91, %p92
    %p94 = scmp.ne.s32.totalorder %s86, %s89
    %p95 = scmp.eq.s32.totalorder %s8, 0
    %p96 = por %p94, %p95
    %p97 = scmp.ne.s32.totalorder %s86, %s89
    %p98 = scmp.eq.s32.totalorder %s13, 1
    %p99 = por %p97, %p98
    %p100 = scmp.ne.s32.totalorder %s89, %s90
    %p101 = scmp.eq.s32.totalorder %s13, 0
    %p102 = por %p100, %p101
    %p103 = scmp.ne.s32.totalorder %s89, %s90
    %p104 = scmp.eq.s32.totalorder %s14, 1
    %p105 = por %p103, %p104
    %p107 = scmp.ne.s32.totalorder %s90, %s106
    %p108 = scmp.eq.s32.totalorder %s14, 0
    %p109 = por %p107, %p108
    %p110 = scmp.le.s32.totalorder 1, %s8
    %p111 = scmp.lt.s32.totalorder %s8, 3
    %p112 = pnand %p110, %p111
    %p113 = pneg %p112
    // Predicated region
    $region9: #{transformer_tts_forward.37} parent=5 // pred_check
      _
    $region10: #{transformer_tts_forward.37} parent=5 // pred_check_branch
      %115 = sbr.rel (%p112) target = $region12
    $region11: #{transformer_tts_forward.37} parent=5 // pred_region
      %s116 = ssub.s32 %s8, 1
      // Predicated region
      $region13: #{transformer_tts_forward.37} parent=11 // pred_check
        %p117 = pneg %p74
      $region14: #{transformer_tts_forward.37} parent=11 // pred_check_branch
        %119 = sbr.rel (%p117) target = $region16
      $region15: #{transformer_tts_forward.37} parent=11 // pred_region
        %p120 = scmp.lt.s32.totalorder %s18, 0
        %s121 = scalar_select %p120, %s18, 0
        %s122 = smul.addr %s121, 8
        %s123 = scalar_lea.vmem %s1, %s122
      $region16: #{transformer_tts_forward.37} parent=11 // pred_fallthru
        _
    $region12: #{transformer_tts_forward.37} parent=5 // pred_fallthru
      _
    %p124 = scmp.lt.s32.totalorder %s8, 2
    // Predicated region
    $region17: #{transformer_tts_forward.37} parent=5 // pred_check
      %p125 = pneg %p124
    $region18: #{transformer_tts_forward.37} parent=5 // pred_check_branch
      %127 = sbr.rel (%p125) target = $region20
    $region19: #{transformer_tts_forward.37} parent=5 // pred_region
      // Predicated region
      $region21: #{transformer_tts_forward.37} parent=19 // pred_check
        %p128 = pneg %p42
      $region22: #{transformer_tts_forward.37} parent=19 // pred_check_branch
        %130 = sbr.rel (%p128) target = $region24
      $region23: #{transformer_tts_forward.37} parent=19 // pred_region
        %p131 = scmp.lt.s32.totalorder %s15, 1
        %s132 = scalar_select %p131, %s15, 1
        %p133 = scmp.lt.s32.totalorder %s16, 0
        %s134 = scalar_select %p133, %s16, 0
        %s135 = sadd.s32 %s134, %s132
        %s136 = smul.addr %s135, 8
        %s137 = scalar_lea.vmem %s0, %s136
      $region24: #{transformer_tts_forward.37} parent=19 // pred_fallthru
        _
    $region20: #{transformer_tts_forward.37} parent=5 // pred_fallthru
      _
    %p138 = scmp.le.s32.totalorder 1, %s8
    %p139 = scmp.lt.s32.totalorder %s8, 3
    %p140 = pnand %p138, %p139
    %p141 = pneg %p140
    // Predicated region
    $region25: #{transformer_tts_forward.37} parent=5 // pred_check
      _
    $region26: #{transformer_tts_forward.37} parent=5 // pred_check_branch
      %143 = sbr.rel (%p140) target = $region28
    $region27: #{transformer_tts_forward.37} parent=5 // pred_region
      %s144 = ssub.s32 %s8, 1
      %p145 = scmp.lt.s32.totalorder %s17, 1
      %s146 = scalar_select %p145, %s17, 1
      %p147 = scmp.lt.s32.totalorder %s18, 0
      %s148 = scalar_select %p147, %s18, 0
      %s149 = sadd.s32 %s148, %s146
      %s150 = smul.addr %s149, 8
      %s151 = scalar_lea.vmem %s0, %s150
      %p152 = pneg %p48
      %p153 = pneg %p45
      %p154 = scmp.lt.s32.totalorder %s18, 0
      %s155 = scalar_select %p154, %s18, 0
      %s156 = smul.addr %s155, 8
      %s157 = scalar_lea.vmem %s1, %s156
      %p158 = pneg %p74
      %p159 = pneg %p71
      %p160 = pneg %p102
      %p161 = pneg %p99
      %p162 = scmp.lt.s32.totalorder %s17, 1
      %s163 = scalar_select %p162, %s17, 1
      %p164 = scmp.lt.s32.totalorder %s18, 0
      %s165 = scalar_select %p164, %s18, 0
      %s166 = sadd.s32 %s165, %s163
      %s167 = smul.addr %s166, 4
      %s168 = scalar_lea.vmem %s2, %s167
      %p169 = scmp.lt.s32.totalorder %s17, 1
      %s170 = scalar_select %p169, %s17, 1
      %p171 = scmp.lt.s32.totalorder %s18, 0
      %s172 = scalar_select %p171, %s18, 0
      %s173 = sadd.s32 %s172, %s170
      %s174 = smul.addr %s173, 8
      %s175 = scalar_lea.vmem %s0, %s174
      %p176 = scmp.lt.s32.totalorder %s18, 0
      %s177 = scalar_select %p176, %s18, 0
      %s178 = smul.addr %s177, 8
      %s179 = scalar_lea.vmem %s1, %s178
      %p180 = scmp.lt.s32.totalorder %s17, 1
      %s181 = scalar_select %p180, %s17, 1
      %p182 = scmp.lt.s32.totalorder %s18, 0
      %s183 = scalar_select %p182, %s18, 0
      %s184 = sadd.s32 %s183, %s181
      %s185 = smul.addr %s184, 4
      %s186 = scalar_lea.vmem %s2, %s185
      %v187 = vld [vmem:[%s175] sm:$0xff]
      %v188 = vmul.f32 %v187, 2.0
      %v189 = vld [vmem:[%s179] sm:$0xff]
      %v190 = vadd.f32 %v188, %v189
      %v191 = vpack.c.bf16 %v190, %v190
      %vm192 = vcmask 257024
      %193 = vst.msk [vmem:[%s186] sm:$0xf] %vm192, %v191
      %p194 = scmp.lt.s32.totalorder %s17, 1
      %s195 = scalar_select %p194, %s17, 1
      %p196 = scmp.lt.s32.totalorder %s18, 0
      %s197 = scalar_select %p196, %s18, 0
      %s198 = sadd.s32 %s197, %s195
      %s199 = smul.addr %s198, 4
      %s200 = scalar_lea.vmem %s2, %s199
      // Predicated region
      $region29: #{transformer_tts_forward.37} parent=27 // pred_check
        %p201 = pneg %p99
      $region30: #{transformer_tts_forward.37} parent=27 // pred_check_branch
        %203 = sbr.rel (%p201) target = $region32
      $region31: #{transformer_tts_forward.37} parent=27 // pred_region
        _
      $region32: #{transformer_tts_forward.37} parent=27 // pred_fallthru
        _
    $region28: #{transformer_tts_forward.37} parent=5 // pred_fallthru
      _
    %p204 = scmp.le.s32.totalorder 2, %s8
    // Predicated region
    $region33: #{transformer_tts_forward.37} parent=5 // pred_check
      %p205 = pneg %p204
    $region34: #{transformer_tts_forward.37} parent=5 // pred_check_branch
      %207 = sbr.rel (%p205) target = $region36
    $region35: #{transformer_tts_forward.37} parent=5 // pred_region
      %s208 = ssub.s32 %s8, 2
      // Predicated region
      $region37: #{transformer_tts_forward.37} parent=35 // pred_check
        %p209 = pneg %p105
      $region38: #{transformer_tts_forward.37} parent=35 // pred_check_branch
        %211 = sbr.rel (%p209) target = $region40
      $region39: #{transformer_tts_forward.37} parent=35 // pred_region
        %p212 = scmp.lt.s32.totalorder %s19, 1
        %s213 = scalar_select %p212, %s19, 1
        %p214 = scmp.lt.s32.totalorder %s20, 0
        %s215 = scalar_select %p214, %s20, 0
        %s216 = sadd.s32 %s215, %s213
        %s217 = smul.addr %s216, 4
        %s218 = scalar_lea.vmem %s2, %s217
      $region40: #{transformer_tts_forward.37} parent=35 // pred_fallthru
        _
    $region36: #{transformer_tts_forward.37} parent=5 // pred_fallthru
      _
  $region6: #{transformer_tts_forward.37} parent=0 // loop_footer
    %s12 = sadd.s32 1, %s8
  $region7: #{transformer_tts_forward.37} parent=0 // loop_footer_branch
    %7 = sbr.rel target = $region3
  $region8: #{transformer_tts_forward.37} parent=0 // loop_exit
    _

// kernel: transformer_tts_forward.40
$region0: #{transformer_tts_forward.40}
  #allocation0 [shape = 'u32[]', space=smem, size = 0x4, offset = 0x4, fixed_abs, tag = 'smem constant byte address 0x4 - core index']
  #allocation1 [shape = 'u32[72,128]{1,0:T(1,128)}', space=vmem, size = 0x9000, scoped, tag = 'internal scratch']
  #allocation2 [shape = 'f32[16,64]{1,0:T(8,128)}', space=vmem, size = 0x2000, scoped, tag = 'scratch operand']
  %s0 = inlined_call_operand.vmem [shape: bf16[16,32], index: 0, kind: input, shape index: {}]
  %s1 = inlined_call_operand.vmem [shape: bf16[32,64], index: 1, kind: input, shape index: {}]
  %s2 = inlined_call_operand.vmem [shape: f32[1,64], index: 2, kind: input, shape index: {}]
  %s3 = inlined_call_operand.vmem [shape: bf16[16,64], index: 3, kind: output, shape index: {}]
  %s4 = sld [smem:[#allocation0]]
  $region30: #{transformer_tts_forward.40} parent=0
    _
  %s6 = ssub.s32 1, %s4
  %s7 = scalar_select 0, %s6, %s4
  // Predicated region
  $region2: #{transformer_tts_forward.40} parent=0 // pred_check
    _
  $region3: #{transformer_tts_forward.40} parent=0 // pred_check_branch
    %9 = sbr.rel (0) target = $region5
  $region4: #{transformer_tts_forward.40} parent=0 // pred_region
    _
  $region5: #{transformer_tts_forward.40} parent=0 // pred_fallthru
    _
  // Predicated region
  $region6: #{transformer_tts_forward.40} parent=0 // pred_check
    _
  $region7: #{transformer_tts_forward.40} parent=0 // pred_check_branch
    %11 = sbr.rel (0) target = $region9
  $region8: #{transformer_tts_forward.40} parent=0 // pred_region
    _
  $region9: #{transformer_tts_forward.40} parent=0 // pred_fallthru
    _
  // Predicated region
  $region10: #{transformer_tts_forward.40} parent=0 // pred_check
    _
  $region11: #{transformer_tts_forward.40} parent=0 // pred_check_branch
    %13 = sbr.rel (0) target = $region13
  $region12: #{transformer_tts_forward.40} parent=0 // pred_region
    _
  $region13: #{transformer_tts_forward.40} parent=0 // pred_fallthru
    _
  %p15 = scmp.eq.s32.totalorder 0, 0
  // Predicated region
  $region14: #{transformer_tts_forward.40} parent=0 // pred_check
    %p16 = pneg %p15
  $region15: #{transformer_tts_forward.40} parent=0 // pred_check_branch
    %18 = sbr.rel (%p16) target = $region17
  $region16: #{transformer_tts_forward.40} parent=0 // pred_region
    %vm19 = vcmask 523264
    %20 = vst.msk [vmem:[#allocation2] sm:$0xff] %vm19, 0.0
    %21 = vst.msk [vmem:[#allocation2 + $0x8] sm:$0xff] %vm19, 0.0
  $region17: #{transformer_tts_forward.40} parent=0 // pred_fallthru
    _
  %v22 = vld [vmem:[#allocation2] sm:$0xff]
  %v23 = vld [vmem:[#allocation2 + $0x8] sm:$0xff]
  %v24 = vld [vmem:[%s0] sm:$0xf]
  %v25 = vld [vmem:[%s0 + $0x4] sm:$0xf]
  %v26 = vld [vmem:[%s1] sm:$0xf]
  %v27 = vld [vmem:[%s1 + $0x4] sm:$0xf]
  %v28 = vld [vmem:[%s1 + $0x8] sm:$0xf]
  %v29 = vld [vmem:[%s1 + $0xc] sm:$0xf]
  %v32 = vunpack.c.l.b16 %v24
  %v33 = vunpack.c.l.b16 %v25
  %v34 = vpack.c.b16 %v33, %v32
  %v39 = vunpack.c.l.b16 %v26
  %v40 = vunpack.c.l.b16 %v27
  %v41 = vunpack.c.l.b16 %v28
  %v42 = vunpack.c.l.b16 %v29
  %v43 = vpack.c.b16 %v40, %v39
  %v44 = vpack.c.b16 %v42, %v41
  %vm47 = vcmask 261120
  %v49 = vsel %vm47, %v34, 0
  %51 = vmatpush.bf16.msra.mxu0 0
  %52 = vmatpush.bf16.msra.mxu0 0
  %53 = vmatpush.bf16.msra.mxu0 0
  %54 = vmatpush.bf16.msra.mxu0 0
  %55 = vmatpush.bf16.msra.mxu0 0
  %56 = vmatpush.bf16.msra.mxu0 0
  %57 = vmatpush.bf16.msra.mxu0 %v44
  %58 = vmatpush.bf16.msra.mxu0 %v43
  %59 = vmatmul.bf16.gmra.mxu0 %v49
  %v60 = vpop.f32.mrf.mxu0
  %v61 = vadd.f32 0.0, %v60
  %v62 = vpop.f32.mrf.mxu0
  %v63 = vadd.f32 0.0, %v62
  %64 = vdwg.mxu0
  %v65 = vadd.f32 %v22, %v61
  %v66 = vadd.f32 %v23, %v63
  %vm67 = vcmask 523264
  %68 = vst.msk [vmem:[#allocation2] sm:$0xff] %vm67, %v65
  %69 = vst.msk [vmem:[#allocation2 + $0x8] sm:$0xff] %vm67, %v66
  // Predicated region
  $region18: #{transformer_tts_forward.40} parent=0 // pred_check
    %p70 = pneg %p15
  $region19: #{transformer_tts_forward.40} parent=0 // pred_check_branch
    %72 = sbr.rel (%p70) target = $region21
  $region20: #{transformer_tts_forward.40} parent=0 // pred_region
    %v73 = vld [vmem:[#allocation2] sm:$0xff]
    %v74 = vld [vmem:[#allocation2 + $0x8] sm:$0xff]
    %v75 = vld [vmem:[%s2] sm:$0x1]
    %v77 = vperm.slane %v75, 0
    %v79 = vadd.f32 %v73, %v77
    %v80 = vadd.f32 %v74, %v77
    %v81 = vpack.c.bf16 %v79, %v79
    %v82 = vpack.c.bf16 %v80, %v80
    %vm83 = vcmask 519168
    %84 = vst.msk [vmem:[%s3] sm:$0xf] %vm83, %v81
    %85 = vst.msk [vmem:[%s3 + $0x4] sm:$0xf] %vm83, %v82
  $region21: #{transformer_tts_forward.40} parent=0 // pred_fallthru
    _
  // Predicated region
  $region22: #{transformer_tts_forward.40} parent=0 // pred_check
    _
  $region23: #{transformer_tts_forward.40} parent=0 // pred_check_branch
    %87 = sbr.rel (0) target = $region25
  $region24: #{transformer_tts_forward.40} parent=0 // pred_region
    _
  $region25: #{transformer_tts_forward.40} parent=0 // pred_fallthru
    _
  // Predicated region
  $region26: #{transformer_tts_forward.40} parent=0 // pred_check
    _
  $region27: #{transformer_tts_forward.40} parent=0 // pred_check_branch
    %89 = sbr.rel (0) target = $region29
  $region28: #{transformer_tts_forward.40} parent=0 // pred_region
    _
  $region29: #{transformer_tts_forward.40} parent=0 // pred_fallthru
    _

// kernel: transformer_tts_forward.39
$region0: #{transformer_tts_forward.39}
  #allocation0 [shape = 'u32[]', space=smem, size = 0x4, offset = 0x4, fixed_abs, tag = 'smem constant byte address 0x4 - core index']
  #allocation1 [shape = 'u32[72,128]{1,0:T(1,128)}', space=vmem, size = 0x9000, scoped, tag = 'internal scratch']
  #allocation2 [shape = 'f32[16,32]{1,0:T(8,128)}', space=vmem, size = 0x2000, scoped, tag = 'scratch operand']
  %s0 = inlined_call_operand.vmem [shape: bf16[16,32], index: 0, kind: input, shape index: {}]
  %s1 = inlined_call_operand.vmem [shape: bf16[32,32], index: 1, kind: input, shape index: {}]
  %s2 = inlined_call_operand.vmem [shape: f32[1,32], index: 2, kind: input, shape index: {}]
  %s3 = inlined_call_operand.vmem [shape: bf16[16,32], index: 3, kind: output, shape index: {}]
  %s4 = sld [smem:[#allocation0]]
  $region30: #{transformer_tts_forward.39} parent=0
    _
  %s6 = ssub.s32 1, %s4
  %s7 = scalar_select 0, %s6, %s4
  // Predicated region
  $region2: #{transformer_tts_forward.39} parent=0 // pred_check
    _
  $region3: #{transformer_tts_forward.39} parent=0 // pred_check_branch
    %9 = sbr.rel (0) target = $region5
  $region4: #{transformer_tts_forward.39} parent=0 // pred_region
    _
  $region5: #{transformer_tts_forward.39} parent=0 // pred_fallthru
    _
  // Predicated region
  $region6: #{transformer_tts_forward.39} parent=0 // pred_check
    _
  $region7: #{transformer_tts_forward.39} parent=0 // pred_check_branch
    %11 = sbr.rel (0) target = $region9
  $region8: #{transformer_tts_forward.39} parent=0 // pred_region
    _
  $region9: #{transformer_tts_forward.39} parent=0 // pred_fallthru
    _
  // Predicated region
  $region10: #{transformer_tts_forward.39} parent=0 // pred_check
    _
  $region11: #{transformer_tts_forward.39} parent=0 // pred_check_branch
    %13 = sbr.rel (0) target = $region13
  $region12: #{transformer_tts_forward.39} parent=0 // pred_region
    _
  $region13: #{transformer_tts_forward.39} parent=0 // pred_fallthru
    _
  %p15 = scmp.eq.s32.totalorder 0, 0
  // Predicated region
  $region14: #{transformer_tts_forward.39} parent=0 // pred_check
    %p16 = pneg %p15
  $region15: #{transformer_tts_forward.39} parent=0 // pred_check_branch
    %18 = sbr.rel (%p16) target = $region17
  $region16: #{transformer_tts_forward.39} parent=0 // pred_region
    %vm19 = vcmask 261120
    %20 = vst.msk [vmem:[#allocation2] sm:$0xff] %vm19, 0.0
    %21 = vst.msk [vmem:[#allocation2 + $0x8] sm:$0xff] %vm19, 0.0
  $region17: #{transformer_tts_forward.39} parent=0 // pred_fallthru
    _
  %v22 = vld [vmem:[#allocation2] sm:$0xff]
  %v23 = vld [vmem:[#allocation2 + $0x8] sm:$0xff]
  %v24 = vld [vmem:[%s0] sm:$0xf]
  %v25 = vld [vmem:[%s0 + $0x4] sm:$0xf]
  %v26 = vld [vmem:[%s1] sm:$0xf]
  %v27 = vld [vmem:[%s1 + $0x4] sm:$0xf]
  %v28 = vld [vmem:[%s1 + $0x8] sm:$0xf]
  %v29 = vld [vmem:[%s1 + $0xc] sm:$0xf]
  %v32 = vunpack.c.l.b16 %v24
  %v33 = vunpack.c.l.b16 %v25
  %v34 = vpack.c.b16 %v33, %v32
  %v39 = vunpack.c.l.b16 %v26
  %v40 = vunpack.c.l.b16 %v27
  %v41 = vunpack.c.l.b16 %v28
  %v42 = vunpack.c.l.b16 %v29
  %v43 = vpack.c.b16 %v40, %v39
  %v44 = vpack.c.b16 %v42, %v41
  %vm47 = vcmask 261120
  %v49 = vsel %vm47, %v34, 0
  %51 = vmatpush.bf16.msra.mxu0 0
  %52 = vmatpush.bf16.msra.mxu0 0
  %53 = vmatpush.bf16.msra.mxu0 0
  %54 = vmatpush.bf16.msra.mxu0 0
  %55 = vmatpush.bf16.msra.mxu0 0
  %56 = vmatpush.bf16.msra.mxu0 0
  %57 = vmatpush.bf16.msra.mxu0 %v44
  %58 = vmatpush.bf16.msra.mxu0 %v43
  %59 = vmatmul.bf16.gmra.mxu0 %v49
  %v60 = vpop.f32.mrf.mxu0
  %v61 = vadd.f32 0.0, %v60
  %v62 = vpop.f32.mrf.mxu0
  %v63 = vadd.f32 0.0, %v62
  %64 = vdwg.mxu0
  %v65 = vadd.f32 %v22, %v61
  %v66 = vadd.f32 %v23, %v63
  %67 = vst.msk [vmem:[#allocation2] sm:$0xff] %vm47, %v65
  %68 = vst.msk [vmem:[#allocation2 + $0x8] sm:$0xff] %vm47, %v66
  // Predicated region
  $region18: #{transformer_tts_forward.39} parent=0 // pred_check
    %p69 = pneg %p15
  $region19: #{transformer_tts_forward.39} parent=0 // pred_check_branch
    %71 = sbr.rel (%p69) target = $region21
  $region20: #{transformer_tts_forward.39} parent=0 // pred_region
    %v72 = vld [vmem:[#allocation2] sm:$0xff]
    %v73 = vld [vmem:[#allocation2 + $0x8] sm:$0xff]
    %v74 = vld [vmem:[%s2] sm:$0x1]
    %v76 = vperm.slane %v74, 0
    %v78 = vadd.f32 %v72, %v76
    %v79 = vadd.f32 %v73, %v76
    %v80 = vpack.c.bf16 %v78, %v78
    %v81 = vpack.c.bf16 %v79, %v79
    %vm82 = vcmask 257024
    %83 = vst.msk [vmem:[%s3] sm:$0xf] %vm82, %v80
    %84 = vst.msk [vmem:[%s3 + $0x4] sm:$0xf] %vm82, %v81
  $region21: #{transformer_tts_forward.39} parent=0 // pred_fallthru
    _
  // Predicated region
  $region22: #{transformer_tts_forward.39} parent=0 // pred_check
    _
  $region23: #{transformer_tts_forward.39} parent=0 // pred_check_branch
    %86 = sbr.rel (0) target = $region25
  $region24: #{transformer_tts_forward.39} parent=0 // pred_region
    _
  $region25: #{transformer_tts_forward.39} parent=0 // pred_fallthru
    _
  // Predicated region
  $region26: #{transformer_tts_forward.39} parent=0 // pred_check
    _
  $region27: #{transformer_tts_forward.39} parent=0 // pred_check_branch
    %88 = sbr.rel (0) target = $region29
  $region28: #{transformer_tts_forward.39} parent=0 // pred_region
    _
  $region29: #{transformer_tts_forward.39} parent=0 // pred_fallthru
    _

// kernel: transformer_tts_forward.41
$region0: #{transformer_tts_forward.41}
  #allocation0 [shape = 'u32[]', space=smem, size = 0x4, offset = 0x4, fixed_abs, tag = 'smem constant byte address 0x4 - core index']
  #allocation1 [shape = 'u32[72,128]{1,0:T(1,128)}', space=vmem, size = 0x9000, scoped, tag = 'internal scratch']
  %s0 = inlined_call_operand.vmem [shape: bf16[2,8,32], index: 0, kind: input, shape index: {}]
  %s1 = inlined_call_operand.vmem [shape: bf16[2,8,64], index: 1, kind: input, shape index: {}]
  %s2 = inlined_call_operand.vmem [shape: f32[2,1,8], index: 2, kind: input, shape index: {}]
  %s3 = inlined_call_operand.vmem [shape: bf16[2,8,32], index: 3, kind: output, shape index: {}]
  %s4 = sld [smem:[#allocation0]]
  $region45: #{transformer_tts_forward.41} parent=0
    _
  %s6 = ssub.s32 1, %s4
  %s7 = scalar_select 0, %s6, %s4
  loop: start=0, step=1, limit=4
  $region2: #{transformer_tts_forward.41} parent=0 // loop_pre_header
    _
  $region3: #{transformer_tts_forward.41} parent=0 // loop_header
    %s9 = sphi 0, %s13
    %p10 = scmp.ge.s32.totalorder %s9, 4
    %s16 = sphi 0, %s28
    %s17 = sphi 0, %s24
    %s18 = sphi 0, %s16
    %s19 = sphi 0, %s17
    %s20 = sphi 0, %s18
    %s21 = sphi 0, %s19
    %s33 = sphi 0, %s35
    %s36 = sphi 0, %s33
    %s37 = sphi 0, %s36
    %s53 = sphi 0, %s37
    %s59 = sphi 0, %s61
    %s62 = sphi 0, %s59
    %s63 = sphi 0, %s62
    %s79 = sphi 0, %s63
    %s85 = sphi 0, %s87
    %s88 = sphi 0, %s85
    %s89 = sphi 0, %s88
    %s105 = sphi 0, %s89
    %s113 = sphi 0, %s115
    %s116 = sphi 0, %s113
    %s117 = sphi 0, %s116
    %s133 = sphi 0, %s117
  $region4: #{transformer_tts_forward.41} parent=0 // loop_header_branch
    %12 = sbr.rel (%p10) target = $region8
  $region5: #{transformer_tts_forward.41} parent=0 // loop_body
    %s14 = ssub.s32 %s9, 1
    %s15 = ssub.s32 %s9, 2
    %s22 = sadd.s32 1, %s17
    %p23 = scmp.ge.s32.totalorder %s22, 1
    %s24 = scalar_select %p23, 0, %s22
    %s25 = sadd.s32 1, %s16
    %s26 = scalar_select %p23, %s25, %s16
    %p27 = scmp.ge.s32.totalorder %s26, 2
    %s28 = scalar_select %p27, 0, %s26
    %s29 = ssub.s32 %s16, %s28
    %s30 = ssub.s32 %s17, %s24
    %s31 = sor.u32 %s29, %s30
    %p32 = scmp.eq.s32.totalorder %s31, 0
    %s34 = sadd.s32 %s33, 1
    %s35 = scalar_select %p32, %s33, %s34
    %p38 = pneg %p32
    %p39 = scmp.eq.s32.totalorder %s9, 1
    %p40 = por %p38, %p39
    %p41 = scmp.ne.s32.totalorder %s33, %s36
    %p42 = scmp.eq.s32.totalorder %s9, 0
    %p43 = por %p41, %p42
    %p44 = scmp.ne.s32.totalorder %s33, %s36
    %p45 = scmp.eq.s32.totalorder %s14, 1
    %p46 = por %p44, %p45
    %p47 = scmp.ne.s32.totalorder %s36, %s37
    %p48 = scmp.eq.s32.totalorder %s14, 0
    %p49 = por %p47, %p48
    %p50 = scmp.ne.s32.totalorder %s36, %s37
    %p51 = scmp.eq.s32.totalorder %s15, 1
    %p52 = por %p50, %p51
    %p54 = scmp.ne.s32.totalorder %s37, %s53
    %p55 = scmp.eq.s32.totalorder %s15, 0
    %p56 = por %p54, %p55
    %s57 = ssub.s32 %s16, %s28
    %p58 = scmp.eq.s32.totalorder %s57, 0
    %s60 = sadd.s32 %s59, 1
    %s61 = scalar_select %p58, %s59, %s60
    %p64 = pneg %p58
    %p65 = scmp.eq.s32.totalorder %s9, 1
    %p66 = por %p64, %p65
    %p67 = scmp.ne.s32.totalorder %s59, %s62
    %p68 = scmp.eq.s32.totalorder %s9, 0
    %p69 = por %p67, %p68
    %p70 = scmp.ne.s32.totalorder %s59, %s62
    %p71 = scmp.eq.s32.totalorder %s14, 1
    %p72 = por %p70, %p71
    %p73 = scmp.ne.s32.totalorder %s62, %s63
    %p74 = scmp.eq.s32.totalorder %s14, 0
    %p75 = por %p73, %p74
    %p76 = scmp.ne.s32.totalorder %s62, %s63
    %p77 = scmp.eq.s32.totalorder %s15, 1
    %p78 = por %p76, %p77
    %p80 = scmp.ne.s32.totalorder %s63, %s79
    %p81 = scmp.eq.s32.totalorder %s15, 0
    %p82 = por %p80, %p81
    %s83 = ssub.s32 %s16, %s28
    %p84 = scmp.eq.s32.totalorder %s83, 0
    %s86 = sadd.s32 %s85, 1
    %s87 = scalar_select %p84, %s85, %s86
    %p90 = pneg %p84
    %p91 = scmp.eq.s32.totalorder %s9, 1
    %p92 = por %p90, %p91
    %p93 = scmp.ne.s32.totalorder %s85, %s88
    %p94 = scmp.eq.s32.totalorder %s9, 0
    %p95 = por %p93, %p94
    %p96 = scmp.ne.s32.totalorder %s85, %s88
    %p97 = scmp.eq.s32.totalorder %s14, 1
    %p98 = por %p96, %p97
    %p99 = scmp.ne.s32.totalorder %s88, %s89
    %p100 = scmp.eq.s32.totalorder %s14, 0
    %p101 = por %p99, %p100
    %p102 = scmp.ne.s32.totalorder %s88, %s89
    %p103 = scmp.eq.s32.totalorder %s15, 1
    %p104 = por %p102, %p103
    %p106 = scmp.ne.s32.totalorder %s89, %s105
    %p107 = scmp.eq.s32.totalorder %s15, 0
    %p108 = por %p106, %p107
    %s109 = ssub.s32 %s16, %s28
    %s110 = ssub.s32 %s17, %s24
    %s111 = sor.u32 %s109, %s110
    %p112 = scmp.eq.s32.totalorder %s111, 0
    %s114 = sadd.s32 %s113, 1
    %s115 = scalar_select %p112, %s113, %s114
    %p118 = pneg %p112
    %p119 = scmp.eq.s32.totalorder %s9, 1
    %p120 = por %p118, %p119
    %p121 = scmp.ne.s32.totalorder %s113, %s116
    %p122 = scmp.eq.s32.totalorder %s9, 0
    %p123 = por %p121, %p122
    %p124 = scmp.ne.s32.totalorder %s113, %s116
    %p125 = scmp.eq.s32.totalorder %s14, 1
    %p126 = por %p124, %p125
    %p127 = scmp.ne.s32.totalorder %s116, %s117
    %p128 = scmp.eq.s32.totalorder %s14, 0
    %p129 = por %p127, %p128
    %p130 = scmp.ne.s32.totalorder %s116, %s117
    %p131 = scmp.eq.s32.totalorder %s15, 1
    %p132 = por %p130, %p131
    %p134 = scmp.ne.s32.totalorder %s117, %s133
    %p135 = scmp.eq.s32.totalorder %s15, 0
    %p136 = por %p134, %p135
    %p137 = scmp.le.s32.totalorder 1, %s9
    %p138 = scmp.lt.s32.totalorder %s9, 3
    %p139 = pnand %p137, %p138
    %p140 = pneg %p139
    // Predicated region
    $region9: #{transformer_tts_forward.41} parent=5 // pred_check
      _
    $region10: #{transformer_tts_forward.41} parent=5 // pred_check_branch
      %142 = sbr.rel (%p139) target = $region12
    $region11: #{transformer_tts_forward.41} parent=5 // pred_region
      %s143 = ssub.s32 %s9, 1
    $region12: #{transformer_tts_forward.41} parent=5 // pred_fallthru
      _
    %p144 = scmp.lt.s32.totalorder %s9, 2
    // Predicated region
    $region13: #{transformer_tts_forward.41} parent=5 // pred_check
      %p145 = pneg %p144
    $region14: #{transformer_tts_forward.41} parent=5 // pred_check_branch
      %147 = sbr.rel (%p145) target = $region16
    $region15: #{transformer_tts_forward.41} parent=5 // pred_region
      // Predicated region
      $region17: #{transformer_tts_forward.41} parent=15 // pred_check
        %p148 = pneg %p43
      $region18: #{transformer_tts_forward.41} parent=15 // pred_check_branch
        %150 = sbr.rel (%p148) target = $region20
      $region19: #{transformer_tts_forward.41} parent=15 // pred_region
        %p151 = scmp.lt.s32.totalorder %s16, 1
        %s152 = scalar_select %p151, %s16, 1
        %p153 = scmp.lt.s32.totalorder %s17, 0
        %s154 = scalar_select %p153, %s17, 0
        %s155 = sadd.s32 %s154, %s152
        %s156 = smul.addr %s155, 4
        %s157 = scalar_lea.vmem %s0, %s156
      $region20: #{transformer_tts_forward.41} parent=15 // pred_fallthru
        _
      // Predicated region
      $region21: #{transformer_tts_forward.41} parent=15 // pred_check
        %p158 = pneg %p69
      $region22: #{transformer_tts_forward.41} parent=15 // pred_check_branch
        %160 = sbr.rel (%p158) target = $region24
      $region23: #{transformer_tts_forward.41} parent=15 // pred_region
        %p161 = scmp.lt.s32.totalorder %s16, 1
        %s162 = scalar_select %p161, %s16, 1
        %s163 = smul.addr %s162, 4
        %s164 = scalar_lea.vmem %s1, %s163
      $region24: #{transformer_tts_forward.41} parent=15 // pred_fallthru
        _
      // Predicated region
      $region25: #{transformer_tts_forward.41} parent=15 // pred_check
        %p165 = pneg %p95
      $region26: #{transformer_tts_forward.41} parent=15 // pred_check_branch
        %167 = sbr.rel (%p165) target = $region28
      $region27: #{transformer_tts_forward.41} parent=15 // pred_region
        %p168 = scmp.lt.s32.totalorder %s16, 1
        %s169 = scalar_select %p168, %s16, 1
        %s170 = scalar_lea.vmem %s2, %s169
      $region28: #{transformer_tts_forward.41} parent=15 // pred_fallthru
        _
    $region16: #{transformer_tts_forward.41} parent=5 // pred_fallthru
      _
    %p171 = scmp.le.s32.totalorder 1, %s9
    %p172 = scmp.lt.s32.totalorder %s9, 3
    %p173 = pnand %p171, %p172
    %p174 = pneg %p173
    // Predicated region
    $region29: #{transformer_tts_forward.41} parent=5 // pred_check
      _
    $region30: #{transformer_tts_forward.41} parent=5 // pred_check_branch
      %176 = sbr.rel (%p173) target = $region32
    $region31: #{transformer_tts_forward.41} parent=5 // pred_region
      %s177 = ssub.s32 %s9, 1
      %p178 = scmp.lt.s32.totalorder %s18, 1
      %s179 = scalar_select %p178, %s18, 1
      %p180 = scmp.lt.s32.totalorder %s19, 0
      %s181 = scalar_select %p180, %s19, 0
      %s182 = sadd.s32 %s181, %s179
      %s183 = smul.addr %s182, 4
      %s184 = scalar_lea.vmem %s0, %s183
      %p185 = pneg %p49
      %p186 = pneg %p46
      %p187 = scmp.lt.s32.totalorder %s18, 1
      %s188 = scalar_select %p187, %s18, 1
      %s189 = smul.addr %s188, 4
      %s190 = scalar_lea.vmem %s1, %s189
      %p191 = pneg %p75
      %p192 = pneg %p72
      %p193 = scmp.lt.s32.totalorder %s18, 1
      %s194 = scalar_select %p193, %s18, 1
      %s195 = scalar_lea.vmem %s2, %s194
      %p196 = pneg %p101
      %p197 = pneg %p98
      %p198 = pneg %p129
      %p199 = pneg %p126
      %p200 = scmp.lt.s32.totalorder %s18, 1
      %s201 = scalar_select %p200, %s18, 1
      %p202 = scmp.lt.s32.totalorder %s19, 0
      %s203 = scalar_select %p202, %s19, 0
      %s204 = sadd.s32 %s203, %s201
      %s205 = smul.addr %s204, 4
      %s206 = scalar_lea.vmem %s3, %s205
      %p207 = scmp.lt.s32.totalorder %s18, 1
      %s208 = scalar_select %p207, %s18, 1
      %p209 = scmp.lt.s32.totalorder %s19, 0
      %s210 = scalar_select %p209, %s19, 0
      %s211 = sadd.s32 %s210, %s208
      %s212 = smul.addr %s211, 4
      %s213 = scalar_lea.vmem %s0, %s212
      %p214 = scmp.lt.s32.totalorder %s18, 1
      %s215 = scalar_select %p214, %s18, 1
      %s216 = smul.addr %s215, 4
      %s217 = scalar_lea.vmem %s1, %s216
      %p218 = scmp.lt.s32.totalorder %s18, 1
      %s219 = scalar_select %p218, %s18, 1
      %s220 = scalar_lea.vmem %s2, %s219
      %p221 = scmp.lt.s32.totalorder %s18, 1
      %s222 = scalar_select %p221, %s18, 1
      %p223 = scmp.lt.s32.totalorder %s19, 0
      %s224 = scalar_select %p223, %s19, 0
      %s225 = sadd.s32 %s224, %s222
      %s226 = smul.addr %s225, 4
      %s227 = scalar_lea.vmem %s3, %s226
      %v229 = vld [vmem:[%s220] sm:$0x1]
      %v230 = vld [vmem:[%s213] sm:$0xf]
      %v231 = vunpack.c.l.bf16 %v230
      %v232 = vmul.f32 %v231, 0.35351563
      %v233 = vpack.c.bf16 %v232, %v232
      %v234 = vld [vmem:[%s217] sm:$0xf]
      %v236 = vperm.slane %v229, 0
      %vm238 = vcmask 64512
      %v240 = vsel %vm238, %v233, 0
      %v243 = vsel %vm238, %v234, 0
      %245 = vmatpush.bf16.xpose.msra.mxu0 0
      %246 = vmatpush.bf16.xpose.msra.mxu0 0
      %247 = vmatpush.bf16.xpose.msra.mxu0 0
      %248 = vmatpush.bf16.xpose.msra.mxu0 0
      %249 = vmatpush.bf16.xpose.msra.mxu0 0
      %250 = vmatpush.bf16.xpose.msra.mxu0 0
      %251 = vmatpush.bf16.xpose.msra.mxu0 0
      %252 = vmatpush.bf16.xpose.msra.mxu0 %v243
      %253 = vmatmul.bf16.gmra.mxu0 %v240
      %v254 = vpop.f32.mrf.mxu0
      %v255 = vadd.f32 %v236, %v254
      %v256 = vpop.f32.mrf.mxu0
      %257 = vdwg.mxu0
      %v258 = vsel %vm238, %v255, -inf
      %259 = vmax.xlane.f32.xlu0 %v258
      %v260 = vpop.xlane.xlu0 %259
      %v261 = vsub.f32 %v255, %v260
      %v262 = vmul.f32 %v261, 1.442695
      %v263 = vpow.pop %v262
      %v264 = vsel %vm238, %v263, 0.0
      %265 = vadd.xlane.f32.xlu0 %v264
      %v266 = vpop.xlane.xlu0 %265
      %v267 = vrcp.pop %v266
      %v268 = vpack.c.bf16 %v263, %v263
      %v270 = vunpack.c.l.b16 %v234
      %v271 = vpack.c.b16 %v270, %v270
      %272 = vrot.lane.b32.xlu0 %v271, 96
      %v273 = vpop.permute.xlu0 %272
      %v275 = vsel %vm238, %v268, 0
      %vm277 = vcmask 1043456
      %v279 = vsel %vm277, %v273, 0
      %281 = vmatpush.bf16.msra.mxu0 0
      %282 = vmatpush.bf16.msra.mxu0 0
      %283 = vmatpush.bf16.msra.mxu0 0
      %284 = vmatpush.bf16.msra.mxu0 0
      %285 = vmatpush.bf16.msra.mxu0 0
      %286 = vmatpush.bf16.msra.mxu0 0
      %287 = vmatpush.bf16.msra.mxu0 0
      %288 = vmatpush.bf16.msra.mxu0 %v279
      %289 = vmatmul.bf16.gmra.mxu0 %v275
      %v290 = vpop.f32.mrf.mxu0
      %v291 = vadd.f32 0.0, %v290
      %v292 = vpop.f32.mrf.mxu0
      %293 = vdwg.mxu0
      %v294 = vmul.f32 %v291, %v267
      %v295 = vpack.c.bf16 %v294, %v294
      %vm296 = vcmask 60416
      %297 = vst.msk [vmem:[%s227] sm:$0xf] %vm296, %v295
      %v298 = vld [vmem:[%s213] sm:$0xf]
      %v299 = vunpack.c.l.bf16 %v298
      %v300 = vmul.f32 %v299, 0.35351563
      %v301 = vpack.c.bf16 %v300, %v300
      %v302 = vld [vmem:[%s217] sm:$0xf]
      %304 = vrot.lane.b32.xlu0 %v301, 120
      %v305 = vpop.permute.xlu0 %304
      %v307 = vunpack.c.l.b16 %v302
      %v308 = vpack.c.b16 %v307, %v307
      %309 = vrot.lane.b32.xlu0 %v308, 120
      %v310 = vpop.permute.xlu0 %309
      %v312 = vsel %vm238, %v305, 0
      %v315 = vsel %vm238, %v310, 0
      %317 = vmatpush.bf16.xpose.msra.mxu0 0
      %318 = vmatpush.bf16.xpose.msra.mxu0 0
      %319 = vmatpush.bf16.xpose.msra.mxu0 0
      %320 = vmatpush.bf16.xpose.msra.mxu0 0
      %321 = vmatpush.bf16.xpose.msra.mxu0 0
      %322 = vmatpush.bf16.xpose.msra.mxu0 0
      %323 = vmatpush.bf16.xpose.msra.mxu0 0
      %324 = vmatpush.bf16.xpose.msra.mxu0 %v315
      %325 = vmatmul.bf16.gmra.mxu0 %v312
      %v326 = vpop.f32.mrf.mxu0
      %v327 = vadd.f32 %v236, %v326
      %v328 = vpop.f32.mrf.mxu0
      %329 = vdwg.mxu0
      %v330 = vsel %vm238, %v327, -inf
      %331 = vmax.xlane.f32.xlu0 %v330
      %v332 = vpop.xlane.xlu0 %331
      %v333 = vsub.f32 %v327, %v332
      %v334 = vmul.f32 %v333, 1.442695
      %v335 = vpow.pop %v334
      %v336 = vsel %vm238, %v335, 0.0
      %337 = vadd.xlane.f32.xlu0 %v336
      %v338 = vpop.xlane.xlu0 %337
      %v339 = vrcp.pop %v338
      %v340 = vpack.c.bf16 %v335, %v335
      %341 = vrot.lane.b32.xlu0 %v308, 88
      %v342 = vpop.permute.xlu0 %341
      %v344 = vsel %vm238, %v340, 0
      %v347 = vsel %vm277, %v342, 0
      %349 = vmatpush.bf16.msra.mxu0 0
      %350 = vmatpush.bf16.msra.mxu0 0
      %351 = vmatpush.bf16.msra.mxu0 0
      %352 = vmatpush.bf16.msra.mxu0 0
      %353 = vmatpush.bf16.msra.mxu0 0
      %354 = vmatpush.bf16.msra.mxu0 0
      %355 = vmatpush.bf16.msra.mxu0 0
      %356 = vmatpush.bf16.msra.mxu0 %v347
      %357 = vmatmul.bf16.gmra.mxu0 %v344
      %v358 = vpop.f32.mrf.mxu0
      %v359 = vadd.f32 0.0, %v358
      %v360 = vpop.f32.mrf.mxu0
      %361 = vdwg.mxu0
      %v362 = vmul.f32 %v359, %v339
      %v363 = vpack.c.bf16 %v362, %v362
      %365 = vrot.lane.b32.xlu0 %v363, 8
      %v366 = vpop.permute.xlu0 %365
      %vm368 = vcmask 126016
      %369 = vst.msk [vmem:[%s227] sm:$0xf] %vm368, %v366
      %v370 = vld [vmem:[%s213] sm:$0xf]
      %v371 = vunpack.c.l.bf16 %v370
      %v372 = vmul.f32 %v371, 0.35351563
      %v373 = vpack.c.bf16 %v372, %v372
      %v374 = vld [vmem:[%s217] sm:$0xf]
      %376 = vrot.lane.b32.xlu0 %v373, 112
      %v377 = vpop.permute.xlu0 %376
      %v379 = vunpack.c.l.b16 %v374
      %v380 = vpack.c.b16 %v379, %v379
      %381 = vrot.lane.b32.xlu0 %v380, 112
      %v382 = vpop.permute.xlu0 %381
      %v384 = vsel %vm238, %v377, 0
      %v387 = vsel %vm238, %v382, 0
      %389 = vmatpush.bf16.xpose.msra.mxu0 0
      %390 = vmatpush.bf16.xpose.msra.mxu0 0
      %391 = vmatpush.bf16.xpose.msra.mxu0 0
      %392 = vmatpush.bf16.xpose.msra.mxu0 0
      %393 = vmatpush.bf16.xpose.msra.mxu0 0
      %394 = vmatpush.bf16.xpose.msra.mxu0 0
      %395 = vmatpush.bf16.xpose.msra.mxu0 0
      %396 = vmatpush.bf16.xpose.msra.mxu0 %v387
      %397 = vmatmul.bf16.gmra.mxu0 %v384
      %v398 = vpop.f32.mrf.mxu0
      %v399 = vadd.f32 %v236, %v398
      %v400 = vpop.f32.mrf.mxu0
      %401 = vdwg.mxu0
      %v402 = vsel %vm238, %v399, -inf
      %403 = vmax.xlane.f32.xlu0 %v402
      %v404 = vpop.xlane.xlu0 %403
      %v405 = vsub.f32 %v399, %v404
      %v406 = vmul.f32 %v405, 1.442695
      %v407 = vpow.pop %v406
      %v408 = vsel %vm238, %v407, 0.0
      %409 = vadd.xlane.f32.xlu0 %v408
      %v410 = vpop.xlane.xlu0 %409
      %v411 = vrcp.pop %v410
      %v412 = vpack.c.bf16 %v407, %v407
      %413 = vrot.lane.b32.xlu0 %v380, 80
      %v414 = vpop.permute.xlu0 %413
      %v416 = vsel %vm238, %v412, 0
      %v419 = vsel %vm277, %v414, 0
      %421 = vmatpush.bf16.msra.mxu0 0
      %422 = vmatpush.bf16.msra.mxu0 0
      %423 = vmatpush.bf16.msra.mxu0 0
      %424 = vmatpush.bf16.msra.mxu0 0
      %425 = vmatpush.bf16.msra.mxu0 0
      %426 = vmatpush.bf16.msra.mxu0 0
      %427 = vmatpush.bf16.msra.mxu0 0
      %428 = vmatpush.bf16.msra.mxu0 %v419
      %429 = vmatmul.bf16.gmra.mxu0 %v416
      %v430 = vpop.f32.mrf.mxu0
      %v431 = vadd.f32 0.0, %v430
      %v432 = vpop.f32.mrf.mxu0
      %433 = vdwg.mxu0
      %v434 = vmul.f32 %v431, %v411
      %v435 = vpack.c.bf16 %v434, %v434
      %437 = vrot.lane.b32.xlu0 %v435, 16
      %v438 = vpop.permute.xlu0 %437
      %vm440 = vcmask 191616
      %441 = vst.msk [vmem:[%s227] sm:$0xf] %vm440, %v438
      %v442 = vld [vmem:[%s213] sm:$0xf]
      %v443 = vunpack.c.l.bf16 %v442
      %v444 = vmul.f32 %v443, 0.35351563
      %v445 = vpack.c.bf16 %v444, %v444
      %v446 = vld [vmem:[%s217] sm:$0xf]
      %448 = vrot.lane.b32.xlu0 %v445, 104
      %v449 = vpop.permute.xlu0 %448
      %v451 = vunpack.c.l.b16 %v446
      %v452 = vpack.c.b16 %v451, %v451
      %453 = vrot.lane.b32.xlu0 %v452, 104
      %v454 = vpop.permute.xlu0 %453
      %v456 = vsel %vm238, %v449, 0
      %v459 = vsel %vm238, %v454, 0
      %461 = vmatpush.bf16.xpose.msra.mxu0 0
      %462 = vmatpush.bf16.xpose.msra.mxu0 0
      %463 = vmatpush.bf16.xpose.msra.mxu0 0
      %464 = vmatpush.bf16.xpose.msra.mxu0 0
      %465 = vmatpush.bf16.xpose.msra.mxu0 0
      %466 = vmatpush.bf16.xpose.msra.mxu0 0
      %467 = vmatpush.bf16.xpose.msra.mxu0 0
      %468 = vmatpush.bf16.xpose.msra.mxu0 %v459
      %469 = vmatmul.bf16.gmra.mxu0 %v456
      %v470 = vpop.f32.mrf.mxu0
      %v471 = vadd.f32 %v236, %v470
      %v472 = vpop.f32.mrf.mxu0
      %473 = vdwg.mxu0
      %v474 = vsel %vm238, %v471, -inf
      %475 = vmax.xlane.f32.xlu0 %v474
      %v476 = vpop.xlane.xlu0 %475
      %v477 = vsub.f32 %v471, %v476
      %v478 = vmul.f32 %v477, 1.442695
      %v479 = vpow.pop %v478
      %v480 = vsel %vm238, %v479, 0.0
      %481 = vadd.xlane.f32.xlu0 %v480
      %v482 = vpop.xlane.xlu0 %481
      %v483 = vrcp.pop %v482
      %v484 = vpack.c.bf16 %v479, %v479
      %485 = vrot.lane.b32.xlu0 %v452, 72
      %v486 = vpop.permute.xlu0 %485
      %v488 = vsel %vm238, %v484, 0
      %v491 = vsel %vm277, %v486, 0
      %493 = vmatpush.bf16.msra.mxu0 0
      %494 = vmatpush.bf16.msra.mxu0 0
      %495 = vmatpush.bf16.msra.mxu0 0
      %496 = vmatpush.bf16.msra.mxu0 0
      %497 = vmatpush.bf16.msra.mxu0 0
      %498 = vmatpush.bf16.msra.mxu0 0
      %499 = vmatpush.bf16.msra.mxu0 0
      %500 = vmatpush.bf16.msra.mxu0 %v491
      %501 = vmatmul.bf16.gmra.mxu0 %v488
      %v502 = vpop.f32.mrf.mxu0
      %v503 = vadd.f32 0.0, %v502
      %v504 = vpop.f32.mrf.mxu0
      %505 = vdwg.mxu0
      %v506 = vmul.f32 %v503, %v483
      %v507 = vpack.c.bf16 %v506, %v506
      %509 = vrot.lane.b32.xlu0 %v507, 24
      %v510 = vpop.permute.xlu0 %509
      %vm512 = vcmask 257216
      %513 = vst.msk [vmem:[%s227] sm:$0xf] %vm512, %v510
      %p514 = scmp.lt.s32.totalorder %s18, 1
      %s515 = scalar_select %p514, %s18, 1
      %p516 = scmp.lt.s32.totalorder %s19, 0
      %s517 = scalar_select %p516, %s19, 0
      %s518 = sadd.s32 %s517, %s515
      %s519 = smul.addr %s518, 4
      %s520 = scalar_lea.vmem %s3, %s519
      // Predicated region
      $region33: #{transformer_tts_forward.41} parent=31 // pred_check
        %p521 = pneg %p126
      $region34: #{transformer_tts_forward.41} parent=31 // pred_check_branch
        %523 = sbr.rel (%p521) target = $region36
      $region35: #{transformer_tts_forward.41} parent=31 // pred_region
        _
      $region36: #{transformer_tts_forward.41} parent=31 // pred_fallthru
        _
    $region32: #{transformer_tts_forward.41} parent=5 // pred_fallthru
      _
    %p524 = scmp.le.s32.totalorder 2, %s9
    // Predicated region
    $region37: #{transformer_tts_forward.41} parent=5 // pred_check
      %p525 = pneg %p524
    $region38: #{transformer_tts_forward.41} parent=5 // pred_check_branch
      %527 = sbr.rel (%p525) target = $region40
    $region39: #{transformer_tts_forward.41} parent=5 // pred_region
      %s528 = ssub.s32 %s9, 2
      // Predicated region
      $region41: #{transformer_tts_forward.41} parent=39 // pred_check
        %p529 = pneg %p132
      $region42: #{transformer_tts_forward.41} parent=39 // pred_check_branch
        %531 = sbr.rel (%p529) target = $region44
      $region43: #{transformer_tts_forward.41} parent=39 // pred_region
        %p532 = scmp.lt.s32.totalorder %s20, 1
        %s533 = scalar_select %p532, %s20, 1
        %p534 = scmp.lt.s32.totalorder %s21, 0
        %s535 = scalar_select %p534, %s21, 0
        %s536 = sadd.s32 %s535, %s533
        %s537 = smul.addr %s536, 4
        %s538 = scalar_lea.vmem %s3, %s537
      $region44: #{transformer_tts_forward.41} parent=39 // pred_fallthru
        _
    $region40: #{transformer_tts_forward.41} parent=5 // pred_fallthru
      _
  $region6: #{transformer_tts_forward.41} parent=0 // loop_footer
    %s13 = sadd.s32 1, %s9
  $region7: #{transformer_tts_forward.41} parent=0 // loop_footer_branch
    %8 = sbr.rel target = $region3
  $region8: #{transformer_tts_forward.41} parent=0 // loop_exit
    _

// kernel: transformer_tts_forward.43
$region0: #{transformer_tts_forward.43}
  #allocation0 [shape = 'u32[]', space=smem, size = 0x4, offset = 0x4, fixed_abs, tag = 'smem constant byte address 0x4 - core index']
  #allocation1 [shape = 'u32[72,128]{1,0:T(1,128)}', space=vmem, size = 0x9000, scoped, tag = 'internal scratch']
  #allocation2 [shape = 'f32[16,128]{1,0:T(8,128)}', space=vmem, size = 0x2000, scoped, tag = 'scratch operand']
  %s0 = inlined_call_operand.vmem [shape: bf16[16,32], index: 0, kind: input, shape index: {}]
  %s1 = inlined_call_operand.vmem [shape: bf16[32,128], index: 1, kind: input, shape index: {}]
  %s2 = inlined_call_operand.vmem [shape: f32[1,128], index: 2, kind: input, shape index: {}]
  %s3 = inlined_call_operand.vmem [shape: bf16[16,128], index: 3, kind: output, shape index: {}]
  %s4 = sld [smem:[#allocation0]]
  $region30: #{transformer_tts_forward.43} parent=0
    _
  %s6 = ssub.s32 1, %s4
  %s7 = scalar_select 0, %s6, %s4
  // Predicated region
  $region2: #{transformer_tts_forward.43} parent=0 // pred_check
    _
  $region3: #{transformer_tts_forward.43} parent=0 // pred_check_branch
    %9 = sbr.rel (0) target = $region5
  $region4: #{transformer_tts_forward.43} parent=0 // pred_region
    _
  $region5: #{transformer_tts_forward.43} parent=0 // pred_fallthru
    _
  // Predicated region
  $region6: #{transformer_tts_forward.43} parent=0 // pred_check
    _
  $region7: #{transformer_tts_forward.43} parent=0 // pred_check_branch
    %11 = sbr.rel (0) target = $region9
  $region8: #{transformer_tts_forward.43} parent=0 // pred_region
    _
  $region9: #{transformer_tts_forward.43} parent=0 // pred_fallthru
    _
  // Predicated region
  $region10: #{transformer_tts_forward.43} parent=0 // pred_check
    _
  $region11: #{transformer_tts_forward.43} parent=0 // pred_check_branch
    %13 = sbr.rel (0) target = $region13
  $region12: #{transformer_tts_forward.43} parent=0 // pred_region
    _
  $region13: #{transformer_tts_forward.43} parent=0 // pred_fallthru
    _
  %p15 = scmp.eq.s32.totalorder 0, 0
  // Predicated region
  $region14: #{transformer_tts_forward.43} parent=0 // pred_check
    %p16 = pneg %p15
  $region15: #{transformer_tts_forward.43} parent=0 // pred_check_branch
    %18 = sbr.rel (%p16) target = $region17
  $region16: #{transformer_tts_forward.43} parent=0 // pred_region
    %19 = vst [vmem:[#allocation2] sm:$0xff] 0.0
    %20 = vst [vmem:[#allocation2 + $0x8] sm:$0xff] 0.0
  $region17: #{transformer_tts_forward.43} parent=0 // pred_fallthru
    _
  %v21 = vld [vmem:[#allocation2] sm:$0xff]
  %v22 = vld [vmem:[#allocation2 + $0x8] sm:$0xff]
  %v23 = vld [vmem:[%s0] sm:$0xf]
  %v24 = vld [vmem:[%s0 + $0x4] sm:$0xf]
  %v25 = vld [vmem:[%s1] sm:$0xf]
  %v26 = vld [vmem:[%s1 + $0x4] sm:$0xf]
  %v27 = vld [vmem:[%s1 + $0x8] sm:$0xf]
  %v28 = vld [vmem:[%s1 + $0xc] sm:$0xf]
  %v31 = vunpack.c.l.b16 %v23
  %v32 = vunpack.c.l.b16 %v24
  %v33 = vpack.c.b16 %v32, %v31
  %v38 = vunpack.c.l.b16 %v25
  %v39 = vunpack.c.l.b16 %v26
  %v40 = vunpack.c.l.b16 %v27
  %v41 = vunpack.c.l.b16 %v28
  %v42 = vpack.c.b16 %v39, %v38
  %v43 = vpack.c.b16 %v41, %v40
  %vm46 = vcmask 261120
  %v48 = vsel %vm46, %v33, 0
  %50 = vmatpush.bf16.msra.mxu0 0
  %51 = vmatpush.bf16.msra.mxu0 0
  %52 = vmatpush.bf16.msra.mxu0 0
  %53 = vmatpush.bf16.msra.mxu0 0
  %54 = vmatpush.bf16.msra.mxu0 0
  %55 = vmatpush.bf16.msra.mxu0 0
  %56 = vmatpush.bf16.msra.mxu0 %v43
  %57 = vmatpush.bf16.msra.mxu0 %v42
  %58 = vmatmul.bf16.gmra.mxu0 %v48
  %v59 = vpop.f32.mrf.mxu0
  %v60 = vadd.f32 0.0, %v59
  %v61 = vpop.f32.mrf.mxu0
  %v62 = vadd.f32 0.0, %v61
  %63 = vdwg.mxu0
  %v64 = vadd.f32 %v21, %v60
  %v65 = vadd.f32 %v22, %v62
  %66 = vst [vmem:[#allocation2] sm:$0xff] %v64
  %67 = vst [vmem:[#allocation2 + $0x8] sm:$0xff] %v65
  // Predicated region
  $region18: #{transformer_tts_forward.43} parent=0 // pred_check
    %p68 = pneg %p15
  $region19: #{transformer_tts_forward.43} parent=0 // pred_check_branch
    %70 = sbr.rel (%p68) target = $region21
  $region20: #{transformer_tts_forward.43} parent=0 // pred_region
    %v71 = vld [vmem:[#allocation2] sm:$0xff]
    %v72 = vld [vmem:[#allocation2 + $0x8] sm:$0xff]
    %v73 = vld [vmem:[%s2] sm:$0x1]
    %v75 = vperm.slane %v73, 0
    %v77 = vadd.f32 %v71, %v75
    %v78 = vadd.f32 %v72, %v75
    %v79 = vmax.f32 %v77, 0.0
    %v80 = vmax.f32 %v78, 0.0
    %v81 = vpack.c.bf16 %v79, %v79
    %v82 = vpack.c.bf16 %v80, %v80
    %83 = vst [vmem:[%s3] sm:$0xf] %v81
    %84 = vst [vmem:[%s3 + $0x4] sm:$0xf] %v82
  $region21: #{transformer_tts_forward.43} parent=0 // pred_fallthru
    _
  // Predicated region
  $region22: #{transformer_tts_forward.43} parent=0 // pred_check
    _
  $region23: #{transformer_tts_forward.43} parent=0 // pred_check_branch
    %86 = sbr.rel (0) target = $region25
  $region24: #{transformer_tts_forward.43} parent=0 // pred_region
    _
  $region25: #{transformer_tts_forward.43} parent=0 // pred_fallthru
    _
  // Predicated region
  $region26: #{transformer_tts_forward.43} parent=0 // pred_check
    _
  $region27: #{transformer_tts_forward.43} parent=0 // pred_check_branch
    %88 = sbr.rel (0) target = $region29
  $region28: #{transformer_tts_forward.43} parent=0 // pred_region
    _
  $region29: #{transformer_tts_forward.43} parent=0 // pred_fallthru
    _

// kernel: transformer_tts_forward.42
$region0: #{transformer_tts_forward.42}
  #allocation0 [shape = 'u32[]', space=smem, size = 0x4, offset = 0x4, fixed_abs, tag = 'smem constant byte address 0x4 - core index']
  #allocation1 [shape = 'u32[72,128]{1,0:T(1,128)}', space=vmem, size = 0x9000, scoped, tag = 'internal scratch']
  #allocation2 [shape = 'f32[16,32]{1,0:T(8,128)}', space=vmem, size = 0x2000, scoped, tag = 'scratch operand']
  %s0 = inlined_call_operand.vmem [shape: bf16[16,32], index: 0, kind: input, shape index: {}]
  %s1 = inlined_call_operand.vmem [shape: bf16[32,32], index: 1, kind: input, shape index: {}]
  %s2 = inlined_call_operand.vmem [shape: f32[1,32], index: 2, kind: input, shape index: {}]
  %s3 = inlined_call_operand.vmem [shape: bf16[16,32], index: 3, kind: input, shape index: {}]
  %s4 = inlined_call_operand.vmem [shape: f32[1,32], index: 4, kind: input, shape index: {}]
  %s5 = inlined_call_operand.vmem [shape: f32[1,32], index: 5, kind: input, shape index: {}]
  %s6 = inlined_call_operand.vmem [shape: bf16[16,32], index: 6, kind: output, shape index: {}]
  %s7 = sld [smem:[#allocation0]]
  $region42: #{transformer_tts_forward.42} parent=0
    _
  %s9 = ssub.s32 1, %s7
  %s10 = scalar_select 0, %s9, %s7
  // Predicated region
  $region2: #{transformer_tts_forward.42} parent=0 // pred_check
    _
  $region3: #{transformer_tts_forward.42} parent=0 // pred_check_branch
    %12 = sbr.rel (0) target = $region5
  $region4: #{transformer_tts_forward.42} parent=0 // pred_region
    _
  $region5: #{transformer_tts_forward.42} parent=0 // pred_fallthru
    _
  // Predicated region
  $region6: #{transformer_tts_forward.42} parent=0 // pred_check
    _
  $region7: #{transformer_tts_forward.42} parent=0 // pred_check_branch
    %14 = sbr.rel (0) target = $region9
  $region8: #{transformer_tts_forward.42} parent=0 // pred_region
    _
  $region9: #{transformer_tts_forward.42} parent=0 // pred_fallthru
    _
  // Predicated region
  $region10: #{transformer_tts_forward.42} parent=0 // pred_check
    _
  $region11: #{transformer_tts_forward.42} parent=0 // pred_check_branch
    %16 = sbr.rel (0) target = $region13
  $region12: #{transformer_tts_forward.42} parent=0 // pred_region
    _
  $region13: #{transformer_tts_forward.42} parent=0 // pred_fallthru
    _
  // Predicated region
  $region14: #{transformer_tts_forward.42} parent=0 // pred_check
    _
  $region15: #{transformer_tts_forward.42} parent=0 // pred_check_branch
    %18 = sbr.rel (0) target = $region17
  $region16: #{transformer_tts_forward.42} parent=0 // pred_region
    _
  $region17: #{transformer_tts_forward.42} parent=0 // pred_fallthru
    _
  // Predicated region
  $region18: #{transformer_tts_forward.42} parent=0 // pred_check
    _
  $region19: #{transformer_tts_forward.42} parent=0 // pred_check_branch
    %20 = sbr.rel (0) target = $region21
  $region20: #{transformer_tts_forward.42} parent=0 // pred_region
    _
  $region21: #{transformer_tts_forward.42} parent=0 // pred_fallthru
    _
  // Predicated region
  $region22: #{transformer_tts_forward.42} parent=0 // pred_check
    _
  $region23: #{transformer_tts_forward.42} parent=0 // pred_check_branch
    %22 = sbr.rel (0) target = $region25
  $region24: #{transformer_tts_forward.42} parent=0 // pred_region
    _
  $region25: #{transformer_tts_forward.42} parent=0 // pred_fallthru
    _
  %p24 = scmp.eq.s32.totalorder 0, 0
  // Predicated region
  $region26: #{transformer_tts_forward.42} parent=0 // pred_check
    %p25 = pneg %p24
  $region27: #{transformer_tts_forward.42} parent=0 // pred_check_branch
    %27 = sbr.rel (%p25) target = $region29
  $region28: #{transformer_tts_forward.42} parent=0 // pred_region
    %vm28 = vcmask 261120
    %29 = vst.msk [vmem:[#allocation2] sm:$0xff] %vm28, 0.0
    %30 = vst.msk [vmem:[#allocation2 + $0x8] sm:$0xff] %vm28, 0.0
  $region29: #{transformer_tts_forward.42} parent=0 // pred_fallthru
    _
  %v31 = vld [vmem:[#allocation2] sm:$0xff]
  %v32 = vld [vmem:[#allocation2 + $0x8] sm:$0xff]
  %v33 = vld [vmem:[%s0] sm:$0xf]
  %v34 = vld [vmem:[%s0 + $0x4] sm:$0xf]
  %v35 = vld [vmem:[%s1] sm:$0xf]
  %v36 = vld [vmem:[%s1 + $0x4] sm:$0xf]
  %v37 = vld [vmem:[%s1 + $0x8] sm:$0xf]
  %v38 = vld [vmem:[%s1 + $0xc] sm:$0xf]
  %v41 = vunpack.c.l.b16 %v33
  %v42 = vunpack.c.l.b16 %v34
  %v43 = vpack.c.b16 %v42, %v41
  %v48 = vunpack.c.l.b16 %v35
  %v49 = vunpack.c.l.b16 %v36
  %v50 = vunpack.c.l.b16 %v37
  %v51 = vunpack.c.l.b16 %v38
  %v52 = vpack.c.b16 %v49, %v48
  %v53 = vpack.c.b16 %v51, %v50
  %vm56 = vcmask 261120
  %v58 = vsel %vm56, %v43, 0
  %60 = vmatpush.bf16.msra.mxu0 0
  %61 = vmatpush.bf16.msra.mxu0 0
  %62 = vmatpush.bf16.msra.mxu0 0
  %63 = vmatpush.bf16.msra.mxu0 0
  %64 = vmatpush.bf16.msra.mxu0 0
  %65 = vmatpush.bf16.msra.mxu0 0
  %66 = vmatpush.bf16.msra.mxu0 %v53
  %67 = vmatpush.bf16.msra.mxu0 %v52
  %68 = vmatmul.bf16.gmra.mxu0 %v58
  %v69 = vpop.f32.mrf.mxu0
  %v70 = vadd.f32 0.0, %v69
  %v71 = vpop.f32.mrf.mxu0
  %v72 = vadd.f32 0.0, %v71
  %73 = vdwg.mxu0
  %v74 = vadd.f32 %v31, %v70
  %v75 = vadd.f32 %v32, %v72
  %76 = vst.msk [vmem:[#allocation2] sm:$0xff] %vm56, %v74
  %77 = vst.msk [vmem:[#allocation2 + $0x8] sm:$0xff] %vm56, %v75
  // Predicated region
  $region30: #{transformer_tts_forward.42} parent=0 // pred_check
    %p78 = pneg %p24
  $region31: #{transformer_tts_forward.42} parent=0 // pred_check_branch
    %80 = sbr.rel (%p78) target = $region33
  $region32: #{transformer_tts_forward.42} parent=0 // pred_region
    %v81 = vld [vmem:[#allocation2] sm:$0xff]
    %v82 = vld [vmem:[#allocation2 + $0x8] sm:$0xff]
    %v83 = vld [vmem:[%s2] sm:$0x1]
    %v85 = vperm.slane %v83, 0
    %v87 = vadd.f32 %v81, %v85
    %v88 = vadd.f32 %v82, %v85
    %v89 = vld [vmem:[%s3] sm:$0xf]
    %v90 = vld [vmem:[%s3 + $0x4] sm:$0xf]
    %v91 = vunpack.c.l.bf16 %v89
    %v92 = vunpack.c.l.bf16 %v90
    %v93 = vadd.f32 %v87, %v91
    %v94 = vadd.f32 %v88, %v92
    %v95 = vsel %vm56, %v93, 0.0
    %96 = vadd.xlane.f32.xlu0 %v95
    %v97 = vpop.xlane.xlu0 %96
    %v98 = vsel %vm56, %v94, 0.0
    %99 = vadd.xlane.f32.xlu0 %v98
    %v100 = vpop.xlane.xlu0 %99
    %v101 = vrcp.pop 32.0
    %v102 = vmul.f32 32.0, %v101
    %v103 = vsub.f32 1.0, %v102
    %v104 = vmul.f32 %v101, %v103
    %v105 = vadd.f32 %v101, %v104
    %vm106 = vweird.f32 %v101
    %v107 = vsel %vm106, %v101, %v105
    %v108 = vmul.f32 %v97, %v107
    %v109 = vmul.f32 %v100, %v107
    %v110 = vsub.f32 %v93, %v108
    %v111 = vsub.f32 %v94, %v109
    %v112 = vmul.f32 %v110, %v110
    %v113 = vmul.f32 %v111, %v111
    %v114 = vsel %vm56, %v112, 0.0
    %115 = vadd.xlane.f32.xlu0 %v114
    %v116 = vpop.xlane.xlu0 %115
    %v117 = vsel %vm56, %v113, 0.0
    %118 = vadd.xlane.f32.xlu0 %v117
    %v119 = vpop.xlane.xlu0 %118
    %v120 = vmul.f32 %v116, %v107
    %v121 = vmul.f32 %v119, %v107
    %v122 = vadd.f32 %v120, 1e-05
    %v123 = vadd.f32 %v121, 1e-05
    %v124 = vrsqrt.pop %v122
    %v125 = vmul.f32 %v124, %v122
    %v126 = vmul.f32 %v125, %v124
    %v127 = vmul.f32 0.5, %v126
    %v128 = vsub.f32 1.5, %v127
    %v129 = vmul.f32 %v124, %v128
    %vm130 = vweird.f32 %v122
    %vm131 = vweird.f32 %v124
    %vm132 = vmor %vm130, %vm131
    %v133 = vsel %vm132, %v124, %v129
    %v134 = vrsqrt.pop %v123
    %v135 = vmul.f32 %v134, %v123
    %v136 = vmul.f32 %v135, %v134
    %v137 = vmul.f32 0.5, %v136
    %v138 = vsub.f32 1.5, %v137
    %v139 = vmul.f32 %v134, %v138
    %vm140 = vweird.f32 %v123
    %vm141 = vweird.f32 %v134
    %vm142 = vmor %vm140, %vm141
    %v143 = vsel %vm142, %v134, %v139
    %v144 = vmul.f32 %v110, %v133
    %v145 = vmul.f32 %v111, %v143
    %v146 = vld [vmem:[%s4] sm:$0x1]
    %v148 = vperm.slane %v146, 0
    %v150 = vmul.f32 %v144, %v148
    %v151 = vmul.f32 %v145, %v148
    %v152 = vld [vmem:[%s5] sm:$0x1]
    %v154 = vperm.slane %v152, 0
    %v156 = vadd.f32 %v150, %v154
    %v157 = vadd.f32 %v151, %v154
    %v158 = vpack.c.bf16 %v156, %v156
    %v159 = vpack.c.bf16 %v157, %v157
    %vm160 = vcmask 257024
    %161 = vst.msk [vmem:[%s6] sm:$0xf] %vm160, %v158
    %162 = vst.msk [vmem:[%s6 + $0x4] sm:$0xf] %vm160, %v159
  $region33: #{transformer_tts_forward.42} parent=0 // pred_fallthru
    _
  // Predicated region
  $region34: #{transformer_tts_forward.42} parent=0 // pred_check
    _
  $region35: #{transformer_tts_forward.42} parent=0 // pred_check_branch
    %164 = sbr.rel (0) target = $region37
  $region36: #{transformer_tts_forward.42} parent=0 // pred_region
    _
  $region37: #{transformer_tts_forward.42} parent=0 // pred_fallthru
    _
  // Predicated region
  $region38: #{transformer_tts_forward.42} parent=0 // pred_check
    _
  $region39: #{transformer_tts_forward.42} parent=0 // pred_check_branch
    %166 = sbr.rel (0) target = $region41
  $region40: #{transformer_tts_forward.42} parent=0 // pred_region
    _
  $region41: #{transformer_tts_forward.42} parent=0 // pred_fallthru
    _

// kernel: transformer_tts_forward.44
$region0: #{transformer_tts_forward.44}
  #allocation0 [shape = 'u32[]', space=smem, size = 0x4, offset = 0x4, fixed_abs, tag = 'smem constant byte address 0x4 - core index']
  #allocation1 [shape = 'u32[72,128]{1,0:T(1,128)}', space=vmem, size = 0x9000, scoped, tag = 'internal scratch']
  #allocation2 [shape = 'f32[16,32]{1,0:T(8,128)}', space=vmem, size = 0x2000, scoped, tag = 'scratch operand']
  %s0 = inlined_call_operand.vmem [shape: bf16[16,128], index: 0, kind: input, shape index: {}]
  %s1 = inlined_call_operand.vmem [shape: bf16[128,32], index: 1, kind: input, shape index: {}]
  %s2 = inlined_call_operand.vmem [shape: f32[1,32], index: 2, kind: input, shape index: {}]
  %s3 = inlined_call_operand.vmem [shape: bf16[16,32], index: 3, kind: input, shape index: {}]
  %s4 = inlined_call_operand.vmem [shape: f32[1,32], index: 4, kind: input, shape index: {}]
  %s5 = inlined_call_operand.vmem [shape: f32[1,32], index: 5, kind: input, shape index: {}]
  %s6 = inlined_call_operand.vmem [shape: bf16[16,32], index: 6, kind: output, shape index: {}]
  %s7 = sld [smem:[#allocation0]]
  $region42: #{transformer_tts_forward.44} parent=0
    _
  %s9 = ssub.s32 1, %s7
  %s10 = scalar_select 0, %s9, %s7
  // Predicated region
  $region2: #{transformer_tts_forward.44} parent=0 // pred_check
    _
  $region3: #{transformer_tts_forward.44} parent=0 // pred_check_branch
    %12 = sbr.rel (0) target = $region5
  $region4: #{transformer_tts_forward.44} parent=0 // pred_region
    _
  $region5: #{transformer_tts_forward.44} parent=0 // pred_fallthru
    _
  // Predicated region
  $region6: #{transformer_tts_forward.44} parent=0 // pred_check
    _
  $region7: #{transformer_tts_forward.44} parent=0 // pred_check_branch
    %14 = sbr.rel (0) target = $region9
  $region8: #{transformer_tts_forward.44} parent=0 // pred_region
    _
  $region9: #{transformer_tts_forward.44} parent=0 // pred_fallthru
    _
  // Predicated region
  $region10: #{transformer_tts_forward.44} parent=0 // pred_check
    _
  $region11: #{transformer_tts_forward.44} parent=0 // pred_check_branch
    %16 = sbr.rel (0) target = $region13
  $region12: #{transformer_tts_forward.44} parent=0 // pred_region
    _
  $region13: #{transformer_tts_forward.44} parent=0 // pred_fallthru
    _
  // Predicated region
  $region14: #{transformer_tts_forward.44} parent=0 // pred_check
    _
  $region15: #{transformer_tts_forward.44} parent=0 // pred_check_branch
    %18 = sbr.rel (0) target = $region17
  $region16: #{transformer_tts_forward.44} parent=0 // pred_region
    _
  $region17: #{transformer_tts_forward.44} parent=0 // pred_fallthru
    _
  // Predicated region
  $region18: #{transformer_tts_forward.44} parent=0 // pred_check
    _
  $region19: #{transformer_tts_forward.44} parent=0 // pred_check_branch
    %20 = sbr.rel (0) target = $region21
  $region20: #{transformer_tts_forward.44} parent=0 // pred_region
    _
  $region21: #{transformer_tts_forward.44} parent=0 // pred_fallthru
    _
  // Predicated region
  $region22: #{transformer_tts_forward.44} parent=0 // pred_check
    _
  $region23: #{transformer_tts_forward.44} parent=0 // pred_check_branch
    %22 = sbr.rel (0) target = $region25
  $region24: #{transformer_tts_forward.44} parent=0 // pred_region
    _
  $region25: #{transformer_tts_forward.44} parent=0 // pred_fallthru
    _
  %p23 = scmp.eq.s32.totalorder 0, 0
  // Predicated region
  $region26: #{transformer_tts_forward.44} parent=0 // pred_check
    %p24 = pneg %p23
  $region27: #{transformer_tts_forward.44} parent=0 // pred_check_branch
    %26 = sbr.rel (%p24) target = $region29
  $region28: #{transformer_tts_forward.44} parent=0 // pred_region
    %vm27 = vcmask 261120
    %28 = vst.msk [vmem:[#allocation2] sm:$0xff] %vm27, 0.0
    %29 = vst.msk [vmem:[#allocation2 + $0x8] sm:$0xff] %vm27, 0.0
  $region29: #{transformer_tts_forward.44} parent=0 // pred_fallthru
    _
  %v30 = vld [vmem:[#allocation2] sm:$0xff]
  %v31 = vld [vmem:[#allocation2 + $0x8] sm:$0xff]
  %v32 = vld [vmem:[%s0] sm:$0xf]
  %v33 = vld [vmem:[%s0 + $0x4] sm:$0xf]
  %v34 = vld [vmem:[%s1] sm:$0xf]
  %v35 = vld [vmem:[%s1 + $0x4] sm:$0xf]
  %v36 = vld [vmem:[%s1 + $0x8] sm:$0xf]
  %v37 = vld [vmem:[%s1 + $0xc] sm:$0xf]
  %v38 = vld [vmem:[%s1 + $0x10] sm:$0xf]
  %v39 = vld [vmem:[%s1 + $0x14] sm:$0xf]
  %v40 = vld [vmem:[%s1 + $0x18] sm:$0xf]
  %v41 = vld [vmem:[%s1 + $0x1c] sm:$0xf]
  %v42 = vld [vmem:[%s1 + $0x20] sm:$0xf]
  %v43 = vld [vmem:[%s1 + $0x24] sm:$0xf]
  %v44 = vld [vmem:[%s1 + $0x28] sm:$0xf]
  %v45 = vld [vmem:[%s1 + $0x2c] sm:$0xf]
  %v46 = vld [vmem:[%s1 + $0x30] sm:$0xf]
  %v47 = vld [vmem:[%s1 + $0x34] sm:$0xf]
  %v48 = vld [vmem:[%s1 + $0x38] sm:$0xf]
  %v49 = vld [vmem:[%s1 + $0x3c] sm:$0xf]
  %v52 = vunpack.c.l.b16 %v32
  %v53 = vunpack.c.l.b16 %v33
  %v54 = vpack.c.b16 %v53, %v52
  %v72 = vunpack.c.l.b16 %v34
  %v73 = vunpack.c.l.b16 %v35
  %v74 = vunpack.c.l.b16 %v36
  %v75 = vunpack.c.l.b16 %v37
  %v76 = vunpack.c.l.b16 %v38
  %v77 = vunpack.c.l.b16 %v39
  %v78 = vunpack.c.l.b16 %v40
  %v79 = vunpack.c.l.b16 %v41
  %v80 = vunpack.c.l.b16 %v42
  %v81 = vunpack.c.l.b16 %v43
  %v82 = vunpack.c.l.b16 %v44
  %v83 = vunpack.c.l.b16 %v45
  %v84 = vunpack.c.l.b16 %v46
  %v85 = vunpack.c.l.b16 %v47
  %v86 = vunpack.c.l.b16 %v48
  %v87 = vunpack.c.l.b16 %v49
  %v88 = vpack.c.b16 %v73, %v72
  %v89 = vpack.c.b16 %v75, %v74
  %v90 = vpack.c.b16 %v77, %v76
  %v91 = vpack.c.b16 %v79, %v78
  %v92 = vpack.c.b16 %v81, %v80
  %v93 = vpack.c.b16 %v83, %v82
  %v94 = vpack.c.b16 %v85, %v84
  %v95 = vpack.c.b16 %v87, %v86
  %104 = vmatpush.bf16.msra.mxu0 %v95
  %105 = vmatpush.bf16.msra.mxu0 %v94
  %106 = vmatpush.bf16.msra.mxu0 %v93
  %107 = vmatpush.bf16.msra.mxu0 %v92
  %108 = vmatpush.bf16.msra.mxu0 %v91
  %109 = vmatpush.bf16.msra.mxu0 %v90
  %110 = vmatpush.bf16.msra.mxu0 %v89
  %111 = vmatpush.bf16.msra.mxu0 %v88
  %112 = vmatmul.bf16.gmra.mxu0 %v54
  %v113 = vpop.f32.mrf.mxu0
  %v114 = vadd.f32 0.0, %v113
  %v115 = vpop.f32.mrf.mxu0
  %v116 = vadd.f32 0.0, %v115
  %117 = vdwg.mxu0
  %v118 = vadd.f32 %v30, %v114
  %v119 = vadd.f32 %v31, %v116
  %vm120 = vcmask 261120
  %121 = vst.msk [vmem:[#allocation2] sm:$0xff] %vm120, %v118
  %122 = vst.msk [vmem:[#allocation2 + $0x8] sm:$0xff] %vm120, %v119
  // Predicated region
  $region30: #{transformer_tts_forward.44} parent=0 // pred_check
    %p123 = pneg %p23
  $region31: #{transformer_tts_forward.44} parent=0 // pred_check_branch
    %125 = sbr.rel (%p123) target = $region33
  $region32: #{transformer_tts_forward.44} parent=0 // pred_region
    %v126 = vld [vmem:[#allocation2] sm:$0xff]
    %v127 = vld [vmem:[#allocation2 + $0x8] sm:$0xff]
    %v128 = vld [vmem:[%s2] sm:$0x1]
    %v130 = vperm.slane %v128, 0
    %v132 = vadd.f32 %v126, %v130
    %v133 = vadd.f32 %v127, %v130
    %v134 = vld [vmem:[%s3] sm:$0xf]
    %v135 = vld [vmem:[%s3 + $0x4] sm:$0xf]
    %v136 = vunpack.c.l.bf16 %v134
    %v137 = vunpack.c.l.bf16 %v135
    %v138 = vadd.f32 %v132, %v136
    %v139 = vadd.f32 %v133, %v137
    %v140 = vsel %vm120, %v138, 0.0
    %141 = vadd.xlane.f32.xlu0 %v140
    %v142 = vpop.xlane.xlu0 %141
    %v143 = vsel %vm120, %v139, 0.0
    %144 = vadd.xlane.f32.xlu0 %v143
    %v145 = vpop.xlane.xlu0 %144
    %v146 = vrcp.pop 32.0
    %v147 = vmul.f32 32.0, %v146
    %v148 = vsub.f32 1.0, %v147
    %v149 = vmul.f32 %v146, %v148
    %v150 = vadd.f32 %v146, %v149
    %vm151 = vweird.f32 %v146
    %v152 = vsel %vm151, %v146, %v150
    %v153 = vmul.f32 %v142, %v152
    %v154 = vmul.f32 %v145, %v152
    %v155 = vsub.f32 %v138, %v153
    %v156 = vsub.f32 %v139, %v154
    %v157 = vmul.f32 %v155, %v155
    %v158 = vmul.f32 %v156, %v156
    %v159 = vsel %vm120, %v157, 0.0
    %160 = vadd.xlane.f32.xlu0 %v159
    %v161 = vpop.xlane.xlu0 %160
    %v162 = vsel %vm120, %v158, 0.0
    %163 = vadd.xlane.f32.xlu0 %v162
    %v164 = vpop.xlane.xlu0 %163
    %v165 = vmul.f32 %v161, %v152
    %v166 = vmul.f32 %v164, %v152
    %v167 = vadd.f32 %v165, 1e-05
    %v168 = vadd.f32 %v166, 1e-05
    %v169 = vrsqrt.pop %v167
    %v170 = vmul.f32 %v169, %v167
    %v171 = vmul.f32 %v170, %v169
    %v172 = vmul.f32 0.5, %v171
    %v173 = vsub.f32 1.5, %v172
    %v174 = vmul.f32 %v169, %v173
    %vm175 = vweird.f32 %v167
    %vm176 = vweird.f32 %v169
    %vm177 = vmor %vm175, %vm176
    %v178 = vsel %vm177, %v169, %v174
    %v179 = vrsqrt.pop %v168
    %v180 = vmul.f32 %v179, %v168
    %v181 = vmul.f32 %v180, %v179
    %v182 = vmul.f32 0.5, %v181
    %v183 = vsub.f32 1.5, %v182
    %v184 = vmul.f32 %v179, %v183
    %vm185 = vweird.f32 %v168
    %vm186 = vweird.f32 %v179
    %vm187 = vmor %vm185, %vm186
    %v188 = vsel %vm187, %v179, %v184
    %v189 = vmul.f32 %v155, %v178
    %v190 = vmul.f32 %v156, %v188
    %v191 = vld [vmem:[%s4] sm:$0x1]
    %v193 = vperm.slane %v191, 0
    %v195 = vmul.f32 %v189, %v193
    %v196 = vmul.f32 %v190, %v193
    %v197 = vld [vmem:[%s5] sm:$0x1]
    %v199 = vperm.slane %v197, 0
    %v201 = vadd.f32 %v195, %v199
    %v202 = vadd.f32 %v196, %v199
    %v203 = vpack.c.bf16 %v201, %v201
    %v204 = vpack.c.bf16 %v202, %v202
    %vm205 = vcmask 257024
    %206 = vst.msk [vmem:[%s6] sm:$0xf] %vm205, %v203
    %207 = vst.msk [vmem:[%s6 + $0x4] sm:$0xf] %vm205, %v204
  $region33: #{transformer_tts_forward.44} parent=0 // pred_fallthru
    _
  // Predicated region
  $region34: #{transformer_tts_forward.44} parent=0 // pred_check
    _
  $region35: #{transformer_tts_forward.44} parent=0 // pred_check_branch
    %209 = sbr.rel (0) target = $region37
  $region36: #{transformer_tts_forward.44} parent=0 // pred_region
    _
  $region37: #{transformer_tts_forward.44} parent=0 // pred_fallthru
    _
  // Predicated region
  $region38: #{transformer_tts_forward.44} parent=0 // pred_check
    _
  $region39: #{transformer_tts_forward.44} parent=0 // pred_check_branch
    %211 = sbr.rel (0) target = $region41
  $region40: #{transformer_tts_forward.44} parent=0 // pred_region
    _
  $region41: #{transformer_tts_forward.44} parent=0 // pred_fallthru
    _

// kernel: transformer_tts_forward.51
$region0: #{transformer_tts_forward.51}
  #allocation0 [shape = 'u32[]', space=smem, size = 0x4, offset = 0x4, fixed_abs, tag = 'smem constant byte address 0x4 - core index']
  #allocation1 [shape = 'u32[72,128]{1,0:T(1,128)}', space=vmem, size = 0x9000, scoped, tag = 'internal scratch']
  %s0 = inlined_call_operand.vmem [shape: bf16[16,32], index: 0, kind: input, shape index: {}]
  %s1 = inlined_call_operand.hbm [shape: f32[1,32], index: 1, kind: input, shape index: {}]
  %s2 = inlined_call_operand.hbm [shape: f32[1,32], index: 2, kind: input, shape index: {}]
  %s3 = inlined_call_operand.vmem [shape: bf16[16,32], index: 3, kind: output, shape index: {}]
  %s4 = sld [smem:[#allocation0]]
  $region30: #{transformer_tts_forward.51} parent=0
    _
  %s6 = ssub.s32 1, %s4
  %s7 = scalar_select 0, %s6, %s4
  $region1: #{transformer_tts_forward.51} parent=0
    #allocation2 [shape = 'u8[512]{0}', space=vmem, size = 0x400, scoped, tag = 'input window, operand 1, single buffered']
    #allocation3 [shape = 's32[1]{0}', space=sflag, size = 0x4, scoped, tag = 'scoped memory for transformer_tts_forward.51']
    #allocation4 [shape = 'u8[512]{0}', space=vmem, size = 0x400, scoped, tag = 'input window, operand 2, single buffered']
    #allocation5 [shape = 's32[1]{0}', space=sflag, size = 0x4, scoped, tag = 'scoped memory for transformer_tts_forward.51']
    %8 = vsyncpa [#allocation3], 0
    %9 = vsyncpa [#allocation5], 0
    // Predicated region
    $region2: #{transformer_tts_forward.51} parent=1 // pred_check
      _
    $region3: #{transformer_tts_forward.51} parent=1 // pred_check_branch
      %11 = sbr.rel (0) target = $region5
    $region4: #{transformer_tts_forward.51} parent=1 // pred_region
      _
    $region5: #{transformer_tts_forward.51} parent=1 // pred_fallthru
      _
    // Predicated region
    $region6: #{transformer_tts_forward.51} parent=1 // pred_check
      _
    $region7: #{transformer_tts_forward.51} parent=1 // pred_check_branch
      %13 = sbr.rel (0) target = $region9
    $region8: #{transformer_tts_forward.51} parent=1 // pred_region
      %15 = vsyncadd [#allocation3], 0
      %s17 = sshll.u32 %s1, 4
      %s18 = int_to_ptr.hbm [resolvable:$true] %s17
      %s19 = sshll.u32 [#allocation2], 4
      %s20 = int_to_ptr.vmem [resolvable:$true] %s19
      %22 = dma.hbm_to_vmem [thread:$0]  %s18, 16, %s20, [#allocation3]
    $region9: #{transformer_tts_forward.51} parent=1 // pred_fallthru
      _
    // Predicated region
    $region10: #{transformer_tts_forward.51} parent=1 // pred_check
      _
    $region11: #{transformer_tts_forward.51} parent=1 // pred_check_branch
      %24 = sbr.rel (0) target = $region13
    $region12: #{transformer_tts_forward.51} parent=1 // pred_region
      %26 = vsyncadd [#allocation5], 0
      %s28 = sshll.u32 %s2, 4
      %s29 = int_to_ptr.hbm [resolvable:$true] %s28
      %s30 = sshll.u32 [#allocation4], 4
      %s31 = int_to_ptr.vmem [resolvable:$true] %s30
      %33 = dma.hbm_to_vmem [thread:$0]  %s29, 16, %s31, [#allocation5]
    $region13: #{transformer_tts_forward.51} parent=1 // pred_fallthru
      _
    // Predicated region
    $region14: #{transformer_tts_forward.51} parent=1 // pred_check
      _
    $region15: #{transformer_tts_forward.51} parent=1 // pred_check_branch
      %35 = sbr.rel (0) target = $region17
    $region16: #{transformer_tts_forward.51} parent=1 // pred_region
      %37 = dma.done [#allocation3], 16
    $region17: #{transformer_tts_forward.51} parent=1 // pred_fallthru
      _
    // Predicated region
    $region18: #{transformer_tts_forward.51} parent=1 // pred_check
      _
    $region19: #{transformer_tts_forward.51} parent=1 // pred_check_branch
      %39 = sbr.rel (0) target = $region21
    $region20: #{transformer_tts_forward.51} parent=1 // pred_region
      %41 = dma.done [#allocation5], 16
    $region21: #{transformer_tts_forward.51} parent=1 // pred_fallthru
      _
    %v42 = vld [vmem:[%s0] sm:$0xf]
    %v43 = vld [vmem:[%s0 + $0x4] sm:$0xf]
    %v44 = vunpack.c.l.bf16 %v42
    %v45 = vunpack.c.l.bf16 %v43
    %vm46 = vcmask 261120
    %v47 = vsel %vm46, %v44, 0.0
    %48 = vadd.xlane.f32.xlu0 %v47
    %v49 = vpop.xlane.xlu0 %48
    %v50 = vsel %vm46, %v45, 0.0
    %51 = vadd.xlane.f32.xlu0 %v50
    %v52 = vpop.xlane.xlu0 %51
    %v53 = vrcp.pop 32.0
    %v54 = vmul.f32 32.0, %v53
    %v55 = vsub.f32 1.0, %v54
    %v56 = vmul.f32 %v53, %v55
    %v57 = vadd.f32 %v53, %v56
    %vm58 = vweird.f32 %v53
    %v59 = vsel %vm58, %v53, %v57
    %v60 = vmul.f32 %v49, %v59
    %v61 = vmul.f32 %v52, %v59
    %v62 = vsub.f32 %v44, %v60
    %v63 = vsub.f32 %v45, %v61
    %v64 = vmul.f32 %v62, %v62
    %v65 = vmul.f32 %v63, %v63
    %v66 = vsel %vm46, %v64, 0.0
    %67 = vadd.xlane.f32.xlu0 %v66
    %v68 = vpop.xlane.xlu0 %67
    %v69 = vsel %vm46, %v65, 0.0
    %70 = vadd.xlane.f32.xlu0 %v69
    %v71 = vpop.xlane.xlu0 %70
    %v72 = vmul.f32 %v68, %v59
    %v73 = vmul.f32 %v71, %v59
    %v74 = vadd.f32 %v72, 1e-05
    %v75 = vadd.f32 %v73, 1e-05
    %v76 = vrsqrt.pop %v74
    %v77 = vmul.f32 %v76, %v74
    %v78 = vmul.f32 %v77, %v76
    %v79 = vmul.f32 0.5, %v78
    %v80 = vsub.f32 1.5, %v79
    %v81 = vmul.f32 %v76, %v80
    %vm82 = vweird.f32 %v74
    %vm83 = vweird.f32 %v76
    %vm84 = vmor %vm82, %vm83
    %v85 = vsel %vm84, %v76, %v81
    %v86 = vrsqrt.pop %v75
    %v87 = vmul.f32 %v86, %v75
    %v88 = vmul.f32 %v87, %v86
    %v89 = vmul.f32 0.5, %v88
    %v90 = vsub.f32 1.5, %v89
    %v91 = vmul.f32 %v86, %v90
    %vm92 = vweird.f32 %v75
    %vm93 = vweird.f32 %v86
    %vm94 = vmor %vm92, %vm93
    %v95 = vsel %vm94, %v86, %v91
    %v96 = vmul.f32 %v62, %v85
    %v97 = vmul.f32 %v63, %v95
    %v98 = vld [vmem:[#allocation2] sm:$0x1]
    %v100 = vperm.slane %v98, 0
    %v102 = vmul.f32 %v96, %v100
    %v103 = vmul.f32 %v97, %v100
    %v104 = vld [vmem:[#allocation4] sm:$0x1]
    %v106 = vperm.slane %v104, 0
    %v108 = vadd.f32 %v102, %v106
    %v109 = vadd.f32 %v103, %v106
    %v110 = vpack.c.bf16 %v108, %v108
    %v111 = vpack.c.bf16 %v109, %v109
    %vm112 = vcmask 257024
    %113 = vst.msk [vmem:[%s3] sm:$0xf] %vm112, %v110
    %114 = vst.msk [vmem:[%s3 + $0x4] sm:$0xf] %vm112, %v111
    // Predicated region
    $region22: #{transformer_tts_forward.51} parent=1 // pred_check
      _
    $region23: #{transformer_tts_forward.51} parent=1 // pred_check_branch
      %116 = sbr.rel (0) target = $region25
    $region24: #{transformer_tts_forward.51} parent=1 // pred_region
      _
    $region25: #{transformer_tts_forward.51} parent=1 // pred_fallthru
      _
    // Predicated region
    $region26: #{transformer_tts_forward.51} parent=1 // pred_check
      _
    $region27: #{transformer_tts_forward.51} parent=1 // pred_check_branch
      %118 = sbr.rel (0) target = $region29
    $region28: #{transformer_tts_forward.51} parent=1 // pred_region
      _
    $region29: #{transformer_tts_forward.51} parent=1 // pred_fallthru
      _
    %119 = vsyncpa [#allocation3], 1
    %120 = vsyncpa [#allocation5], 1

// kernel: transformer_tts_forward.50
$region0: #{transformer_tts_forward.50}
  #allocation0 [shape = 'u32[]', space=smem, size = 0x4, offset = 0x4, fixed_abs, tag = 'smem constant byte address 0x4 - core index']
  #allocation1 [shape = 'u32[72,128]{1,0:T(1,128)}', space=vmem, size = 0x9000, scoped, tag = 'internal scratch']
  #allocation2 [shape = 'f32[16,32]{1,0:T(8,128)}', space=vmem, size = 0x2000, scoped, tag = 'scratch operand']
  %s0 = inlined_call_operand.vmem [shape: bf16[16,128], index: 0, kind: input, shape index: {}]
  %s1 = inlined_call_operand.vmem [shape: bf16[128,32], index: 1, kind: input, shape index: {}]
  %s2 = inlined_call_operand.vmem [shape: f32[1,32], index: 2, kind: input, shape index: {}]
  %s3 = inlined_call_operand.vmem [shape: bf16[16,32], index: 3, kind: input, shape index: {}]
  %s4 = inlined_call_operand.vmem [shape: f32[1,32], index: 4, kind: input, shape index: {}]
  %s5 = inlined_call_operand.hbm [shape: f32[1,32], index: 5, kind: input, shape index: {}]
  %s6 = inlined_call_operand.vmem [shape: bf16[16,32], index: 6, kind: output, shape index: {}]
  %s7 = sld [smem:[#allocation0]]
  $region46: #{transformer_tts_forward.50} parent=0
    _
  %s9 = ssub.s32 1, %s7
  %s10 = scalar_select 0, %s9, %s7
  $region1: #{transformer_tts_forward.50} parent=0
    #allocation3 [shape = 'u8[512]{0}', space=vmem, size = 0x400, scoped, tag = 'input window, operand 5, single buffered']
    #allocation4 [shape = 's32[1]{0}', space=sflag, size = 0x4, scoped, tag = 'scoped memory for transformer_tts_forward.50']
    %11 = vsyncpa [#allocation4], 0
    // Predicated region
    $region2: #{transformer_tts_forward.50} parent=1 // pred_check
      _
    $region3: #{transformer_tts_forward.50} parent=1 // pred_check_branch
      %13 = sbr.rel (0) target = $region5
    $region4: #{transformer_tts_forward.50} parent=1 // pred_region
      _
    $region5: #{transformer_tts_forward.50} parent=1 // pred_fallthru
      _
    // Predicated region
    $region6: #{transformer_tts_forward.50} parent=1 // pred_check
      _
    $region7: #{transformer_tts_forward.50} parent=1 // pred_check_branch
      %15 = sbr.rel (0) target = $region9
    $region8: #{transformer_tts_forward.50} parent=1 // pred_region
      _
    $region9: #{transformer_tts_forward.50} parent=1 // pred_fallthru
      _
    // Predicated region
    $region10: #{transformer_tts_forward.50} parent=1 // pred_check
      _
    $region11: #{transformer_tts_forward.50} parent=1 // pred_check_branch
      %17 = sbr.rel (0) target = $region13
    $region12: #{transformer_tts_forward.50} parent=1 // pred_region
      _
    $region13: #{transformer_tts_forward.50} parent=1 // pred_fallthru
      _
    // Predicated region
    $region14: #{transformer_tts_forward.50} parent=1 // pred_check
      _
    $region15: #{transformer_tts_forward.50} parent=1 // pred_check_branch
      %19 = sbr.rel (0) target = $region17
    $region16: #{transformer_tts_forward.50} parent=1 // pred_region
      _
    $region17: #{transformer_tts_forward.50} parent=1 // pred_fallthru
      _
    // Predicated region
    $region18: #{transformer_tts_forward.50} parent=1 // pred_check
      _
    $region19: #{transformer_tts_forward.50} parent=1 // pred_check_branch
      %21 = sbr.rel (0) target = $region21
    $region20: #{transformer_tts_forward.50} parent=1 // pred_region
      _
    $region21: #{transformer_tts_forward.50} parent=1 // pred_fallthru
      _
    // Predicated region
    $region22: #{transformer_tts_forward.50} parent=1 // pred_check
      _
    $region23: #{transformer_tts_forward.50} parent=1 // pred_check_branch
      %23 = sbr.rel (0) target = $region25
    $region24: #{transformer_tts_forward.50} parent=1 // pred_region
      %25 = vsyncadd [#allocation4], 0
      %s27 = sshll.u32 %s5, 4
      %s28 = int_to_ptr.hbm [resolvable:$true] %s27
      %s29 = sshll.u32 [#allocation3], 4
      %s30 = int_to_ptr.vmem [resolvable:$true] %s29
      %32 = dma.hbm_to_vmem [thread:$0]  %s28, 16, %s30, [#allocation4]
    $region25: #{transformer_tts_forward.50} parent=1 // pred_fallthru
      _
    // Predicated region
    $region26: #{transformer_tts_forward.50} parent=1 // pred_check
      _
    $region27: #{transformer_tts_forward.50} parent=1 // pred_check_branch
      %34 = sbr.rel (0) target = $region29
    $region28: #{transformer_tts_forward.50} parent=1 // pred_region
      %36 = dma.done [#allocation4], 16
    $region29: #{transformer_tts_forward.50} parent=1 // pred_fallthru
      _
    %p37 = scmp.eq.s32.totalorder 0, 0
    // Predicated region
    $region30: #{transformer_tts_forward.50} parent=1 // pred_check
      %p38 = pneg %p37
    $region31: #{transformer_tts_forward.50} parent=1 // pred_check_branch
      %40 = sbr.rel (%p38) target = $region33
    $region32: #{transformer_tts_forward.50} parent=1 // pred_region
      %vm41 = vcmask 261120
      %42 = vst.msk [vmem:[#allocation2] sm:$0xff] %vm41, 0.0
      %43 = vst.msk [vmem:[#allocation2 + $0x8] sm:$0xff] %vm41, 0.0
    $region33: #{transformer_tts_forward.50} parent=1 // pred_fallthru
      _
    %v44 = vld [vmem:[#allocation2] sm:$0xff]
    %v45 = vld [vmem:[#allocation2 + $0x8] sm:$0xff]
    %v46 = vld [vmem:[%s0] sm:$0xf]
    %v47 = vld [vmem:[%s0 + $0x4] sm:$0xf]
    %v48 = vld [vmem:[%s1] sm:$0xf]
    %v49 = vld [vmem:[%s1 + $0x4] sm:$0xf]
    %v50 = vld [vmem:[%s1 + $0x8] sm:$0xf]
    %v51 = vld [vmem:[%s1 + $0xc] sm:$0xf]
    %v52 = vld [vmem:[%s1 + $0x10] sm:$0xf]
    %v53 = vld [vmem:[%s1 + $0x14] sm:$0xf]
    %v54 = vld [vmem:[%s1 + $0x18] sm:$0xf]
    %v55 = vld [vmem:[%s1 + $0x1c] sm:$0xf]
    %v56 = vld [vmem:[%s1 + $0x20] sm:$0xf]
    %v57 = vld [vmem:[%s1 + $0x24] sm:$0xf]
    %v58 = vld [vmem:[%s1 + $0x28] sm:$0xf]
    %v59 = vld [vmem:[%s1 + $0x2c] sm:$0xf]
    %v60 = vld [vmem:[%s1 + $0x30] sm:$0xf]
    %v61 = vld [vmem:[%s1 + $0x34] sm:$0xf]
    %v62 = vld [vmem:[%s1 + $0x38] sm:$0xf]
    %v63 = vld [vmem:[%s1 + $0x3c] sm:$0xf]
    %v66 = vunpack.c.l.b16 %v46
    %v67 = vunpack.c.l.b16 %v47
    %v68 = vpack.c.b16 %v67, %v66
    %v86 = vunpack.c.l.b16 %v48
    %v87 = vunpack.c.l.b16 %v49
    %v88 = vunpack.c.l.b16 %v50
    %v89 = vunpack.c.l.b16 %v51
    %v90 = vunpack.c.l.b16 %v52
    %v91 = vunpack.c.l.b16 %v53
    %v92 = vunpack.c.l.b16 %v54
    %v93 = vunpack.c.l.b16 %v55
    %v94 = vunpack.c.l.b16 %v56
    %v95 = vunpack.c.l.b16 %v57
    %v96 = vunpack.c.l.b16 %v58
    %v97 = vunpack.c.l.b16 %v59
    %v98 = vunpack.c.l.b16 %v60
    %v99 = vunpack.c.l.b16 %v61
    %v100 = vunpack.c.l.b16 %v62
    %v101 = vunpack.c.l.b16 %v63
    %v102 = vpack.c.b16 %v87, %v86
    %v103 = vpack.c.b16 %v89, %v88
    %v104 = vpack.c.b16 %v91, %v90
    %v105 = vpack.c.b16 %v93, %v92
    %v106 = vpack.c.b16 %v95, %v94
    %v107 = vpack.c.b16 %v97, %v96
    %v108 = vpack.c.b16 %v99, %v98
    %v109 = vpack.c.b16 %v101, %v100
    %118 = vmatpush.bf16.msra.mxu0 %v109
    %119 = vmatpush.bf16.msra.mxu0 %v108
    %120 = vmatpush.bf16.msra.mxu0 %v107
    %121 = vmatpush.bf16.msra.mxu0 %v106
    %122 = vmatpush.bf16.msra.mxu0 %v105
    %123 = vmatpush.bf16.msra.mxu0 %v104
    %124 = vmatpush.bf16.msra.mxu0 %v103
    %125 = vmatpush.bf16.msra.mxu0 %v102
    %126 = vmatmul.bf16.gmra.mxu0 %v68
    %v127 = vpop.f32.mrf.mxu0
    %v128 = vadd.f32 0.0, %v127
    %v129 = vpop.f32.mrf.mxu0
    %v130 = vadd.f32 0.0, %v129
    %131 = vdwg.mxu0
    %v132 = vadd.f32 %v44, %v128
    %v133 = vadd.f32 %v45, %v130
    %vm134 = vcmask 261120
    %135 = vst.msk [vmem:[#allocation2] sm:$0xff] %vm134, %v132
    %136 = vst.msk [vmem:[#allocation2 + $0x8] sm:$0xff] %vm134, %v133
    // Predicated region
    $region34: #{transformer_tts_forward.50} parent=1 // pred_check
      %p137 = pneg %p37
    $region35: #{transformer_tts_forward.50} parent=1 // pred_check_branch
      %139 = sbr.rel (%p137) target = $region37
    $region36: #{transformer_tts_forward.50} parent=1 // pred_region
      %v140 = vld [vmem:[#allocation2] sm:$0xff]
      %v141 = vld [vmem:[#allocation2 + $0x8] sm:$0xff]
      %v142 = vld [vmem:[%s2] sm:$0x1]
      %v144 = vperm.slane %v142, 0
      %v146 = vadd.f32 %v140, %v144
      %v147 = vadd.f32 %v141, %v144
      %v148 = vld [vmem:[%s3] sm:$0xf]
      %v149 = vld [vmem:[%s3 + $0x4] sm:$0xf]
      %v150 = vunpack.c.l.bf16 %v148
      %v151 = vunpack.c.l.bf16 %v149
      %v152 = vadd.f32 %v146, %v150
      %v153 = vadd.f32 %v147, %v151
      %v154 = vsel %vm134, %v152, 0.0
      %155 = vadd.xlane.f32.xlu0 %v154
      %v156 = vpop.xlane.xlu0 %155
      %v157 = vsel %vm134, %v153, 0.0
      %158 = vadd.xlane.f32.xlu0 %v157
      %v159 = vpop.xlane.xlu0 %158
      %v160 = vrcp.pop 32.0
      %v161 = vmul.f32 32.0, %v160
      %v162 = vsub.f32 1.0, %v161
      %v163 = vmul.f32 %v160, %v162
      %v164 = vadd.f32 %v160, %v163
      %vm165 = vweird.f32 %v160
      %v166 = vsel %vm165, %v160, %v164
      %v167 = vmul.f32 %v156, %v166
      %v168 = vmul.f32 %v159, %v166
      %v169 = vsub.f32 %v152, %v167
      %v170 = vsub.f32 %v153, %v168
      %v171 = vmul.f32 %v169, %v169
      %v172 = vmul.f32 %v170, %v170
      %v173 = vsel %vm134, %v171, 0.0
      %174 = vadd.xlane.f32.xlu0 %v173
      %v175 = vpop.xlane.xlu0 %174
      %v176 = vsel %vm134, %v172, 0.0
      %177 = vadd.xlane.f32.xlu0 %v176
      %v178 = vpop.xlane.xlu0 %177
      %v179 = vmul.f32 %v175, %v166
      %v180 = vmul.f32 %v178, %v166
      %v181 = vadd.f32 %v179, 1e-05
      %v182 = vadd.f32 %v180, 1e-05
      %v183 = vrsqrt.pop %v181
      %v184 = vmul.f32 %v183, %v181
      %v185 = vmul.f32 %v184, %v183
      %v186 = vmul.f32 0.5, %v185
      %v187 = vsub.f32 1.5, %v186
      %v188 = vmul.f32 %v183, %v187
      %vm189 = vweird.f32 %v181
      %vm190 = vweird.f32 %v183
      %vm191 = vmor %vm189, %vm190
      %v192 = vsel %vm191, %v183, %v188
      %v193 = vrsqrt.pop %v182
      %v194 = vmul.f32 %v193, %v182
      %v195 = vmul.f32 %v194, %v193
      %v196 = vmul.f32 0.5, %v195
      %v197 = vsub.f32 1.5, %v196
      %v198 = vmul.f32 %v193, %v197
      %vm199 = vweird.f32 %v182
      %vm200 = vweird.f32 %v193
      %vm201 = vmor %vm199, %vm200
      %v202 = vsel %vm201, %v193, %v198
      %v203 = vmul.f32 %v169, %v192
      %v204 = vmul.f32 %v170, %v202
      %v205 = vld [vmem:[%s4] sm:$0x1]
      %v207 = vperm.slane %v205, 0
      %v209 = vmul.f32 %v203, %v207
      %v210 = vmul.f32 %v204, %v207
      %v211 = vld [vmem:[#allocation3] sm:$0x1]
      %v213 = vperm.slane %v211, 0
      %v215 = vadd.f32 %v209, %v213
      %v216 = vadd.f32 %v210, %v213
      %v217 = vpack.c.bf16 %v215, %v215
      %v218 = vpack.c.bf16 %v216, %v216
      %vm219 = vcmask 257024
      %220 = vst.msk [vmem:[%s6] sm:$0xf] %vm219, %v217
      %221 = vst.msk [vmem:[%s6 + $0x4] sm:$0xf] %vm219, %v218
    $region37: #{transformer_tts_forward.50} parent=1 // pred_fallthru
      _
    // Predicated region
    $region38: #{transformer_tts_forward.50} parent=1 // pred_check
      _
    $region39: #{transformer_tts_forward.50} parent=1 // pred_check_branch
      %223 = sbr.rel (0) target = $region41
    $region40: #{transformer_tts_forward.50} parent=1 // pred_region
      _
    $region41: #{transformer_tts_forward.50} parent=1 // pred_fallthru
      _
    // Predicated region
    $region42: #{transformer_tts_forward.50} parent=1 // pred_check
      _
    $region43: #{transformer_tts_forward.50} parent=1 // pred_check_branch
      %225 = sbr.rel (0) target = $region45
    $region44: #{transformer_tts_forward.50} parent=1 // pred_region
      _
    $region45: #{transformer_tts_forward.50} parent=1 // pred_fallthru
      _
    %226 = vsyncpa [#allocation4], 1

// kernel: transformer_tts_forward.57
$region0: #{transformer_tts_forward.57}
  #allocation0 [shape = 'u32[]', space=smem, size = 0x4, offset = 0x4, fixed_abs, tag = 'smem constant byte address 0x4 - core index']
  #allocation1 [shape = 'u32[72,128]{1,0:T(1,128)}', space=vmem, size = 0x9000, scoped, tag = 'internal scratch']
  #allocation2 [shape = 'f32[16,64]{1,0:T(8,128)}', space=vmem, size = 0x2000, scoped, tag = 'scratch operand']
  %s0 = inlined_call_operand.vmem [shape: bf16[16,32], index: 0, kind: input, shape index: {}]
  %s1 = inlined_call_operand.vmem [shape: bf16[32,64], index: 1, kind: input, shape index: {}]
  %s2 = inlined_call_operand.hbm [shape: f32[1,64], index: 2, kind: input, shape index: {}]
  %s3 = inlined_call_operand.vmem [shape: bf16[16,64], index: 3, kind: output, shape index: {}]
  %s4 = sld [smem:[#allocation0]]
  $region34: #{transformer_tts_forward.57} parent=0
    _
  %s6 = ssub.s32 1, %s4
  %s7 = scalar_select 0, %s6, %s4
  $region1: #{transformer_tts_forward.57} parent=0
    #allocation3 [shape = 'u8[512]{0}', space=vmem, size = 0x400, scoped, tag = 'input window, operand 2, single buffered']
    #allocation4 [shape = 's32[1]{0}', space=sflag, size = 0x4, scoped, tag = 'scoped memory for transformer_tts_forward.57']
    %8 = vsyncpa [#allocation4], 0
    // Predicated region
    $region2: #{transformer_tts_forward.57} parent=1 // pred_check
      _
    $region3: #{transformer_tts_forward.57} parent=1 // pred_check_branch
      %10 = sbr.rel (0) target = $region5
    $region4: #{transformer_tts_forward.57} parent=1 // pred_region
      _
    $region5: #{transformer_tts_forward.57} parent=1 // pred_fallthru
      _
    // Predicated region
    $region6: #{transformer_tts_forward.57} parent=1 // pred_check
      _
    $region7: #{transformer_tts_forward.57} parent=1 // pred_check_branch
      %12 = sbr.rel (0) target = $region9
    $region8: #{transformer_tts_forward.57} parent=1 // pred_region
      _
    $region9: #{transformer_tts_forward.57} parent=1 // pred_fallthru
      _
    // Predicated region
    $region10: #{transformer_tts_forward.57} parent=1 // pred_check
      _
    $region11: #{transformer_tts_forward.57} parent=1 // pred_check_branch
      %14 = sbr.rel (0) target = $region13
    $region12: #{transformer_tts_forward.57} parent=1 // pred_region
      %16 = vsyncadd [#allocation4], 0
      %s18 = sshll.u32 %s2, 4
      %s19 = int_to_ptr.hbm [resolvable:$true] %s18
      %s20 = sshll.u32 [#allocation3], 4
      %s21 = int_to_ptr.vmem [resolvable:$true] %s20
      %23 = dma.hbm_to_vmem [thread:$0]  %s19, 16, %s21, [#allocation4]
    $region13: #{transformer_tts_forward.57} parent=1 // pred_fallthru
      _
    // Predicated region
    $region14: #{transformer_tts_forward.57} parent=1 // pred_check
      _
    $region15: #{transformer_tts_forward.57} parent=1 // pred_check_branch
      %25 = sbr.rel (0) target = $region17
    $region16: #{transformer_tts_forward.57} parent=1 // pred_region
      %27 = dma.done [#allocation4], 16
    $region17: #{transformer_tts_forward.57} parent=1 // pred_fallthru
      _
    %p29 = scmp.eq.s32.totalorder 0, 0
    // Predicated region
    $region18: #{transformer_tts_forward.57} parent=1 // pred_check
      %p30 = pneg %p29
    $region19: #{transformer_tts_forward.57} parent=1 // pred_check_branch
      %32 = sbr.rel (%p30) target = $region21
    $region20: #{transformer_tts_forward.57} parent=1 // pred_region
      %vm33 = vcmask 523264
      %34 = vst.msk [vmem:[#allocation2] sm:$0xff] %vm33, 0.0
      %35 = vst.msk [vmem:[#allocation2 + $0x8] sm:$0xff] %vm33, 0.0
    $region21: #{transformer_tts_forward.57} parent=1 // pred_fallthru
      _
    %v36 = vld [vmem:[#allocation2] sm:$0xff]
    %v37 = vld [vmem:[#allocation2 + $0x8] sm:$0xff]
    %v38 = vld [vmem:[%s0] sm:$0xf]
    %v39 = vld [vmem:[%s0 + $0x4] sm:$0xf]
    %v40 = vld [vmem:[%s1] sm:$0xf]
    %v41 = vld [vmem:[%s1 + $0x4] sm:$0xf]
    %v42 = vld [vmem:[%s1 + $0x8] sm:$0xf]
    %v43 = vld [vmem:[%s1 + $0xc] sm:$0xf]
    %v46 = vunpack.c.l.b16 %v38
    %v47 = vunpack.c.l.b16 %v39
    %v48 = vpack.c.b16 %v47, %v46
    %v53 = vunpack.c.l.b16 %v40
    %v54 = vunpack.c.l.b16 %v41
    %v55 = vunpack.c.l.b16 %v42
    %v56 = vunpack.c.l.b16 %v43
    %v57 = vpack.c.b16 %v54, %v53
    %v58 = vpack.c.b16 %v56, %v55
    %vm61 = vcmask 261120
    %v63 = vsel %vm61, %v48, 0
    %65 = vmatpush.bf16.msra.mxu0 0
    %66 = vmatpush.bf16.msra.mxu0 0
    %67 = vmatpush.bf16.msra.mxu0 0
    %68 = vmatpush.bf16.msra.mxu0 0
    %69 = vmatpush.bf16.msra.mxu0 0
    %70 = vmatpush.bf16.msra.mxu0 0
    %71 = vmatpush.bf16.msra.mxu0 %v58
    %72 = vmatpush.bf16.msra.mxu0 %v57
    %73 = vmatmul.bf16.gmra.mxu0 %v63
    %v74 = vpop.f32.mrf.mxu0
    %v75 = vadd.f32 0.0, %v74
    %v76 = vpop.f32.mrf.mxu0
    %v77 = vadd.f32 0.0, %v76
    %78 = vdwg.mxu0
    %v79 = vadd.f32 %v36, %v75
    %v80 = vadd.f32 %v37, %v77
    %vm81 = vcmask 523264
    %82 = vst.msk [vmem:[#allocation2] sm:$0xff] %vm81, %v79
    %83 = vst.msk [vmem:[#allocation2 + $0x8] sm:$0xff] %vm81, %v80
    // Predicated region
    $region22: #{transformer_tts_forward.57} parent=1 // pred_check
      %p84 = pneg %p29
    $region23: #{transformer_tts_forward.57} parent=1 // pred_check_branch
      %86 = sbr.rel (%p84) target = $region25
    $region24: #{transformer_tts_forward.57} parent=1 // pred_region
      %v87 = vld [vmem:[#allocation2] sm:$0xff]
      %v88 = vld [vmem:[#allocation2 + $0x8] sm:$0xff]
      %v89 = vld [vmem:[#allocation3] sm:$0x1]
      %v91 = vperm.slane %v89, 0
      %v93 = vadd.f32 %v87, %v91
      %v94 = vadd.f32 %v88, %v91
      %v95 = vpack.c.bf16 %v93, %v93
      %v96 = vpack.c.bf16 %v94, %v94
      %vm97 = vcmask 519168
      %98 = vst.msk [vmem:[%s3] sm:$0xf] %vm97, %v95
      %99 = vst.msk [vmem:[%s3 + $0x4] sm:$0xf] %vm97, %v96
    $region25: #{transformer_tts_forward.57} parent=1 // pred_fallthru
      _
    // Predicated region
    $region26: #{transformer_tts_forward.57} parent=1 // pred_check
      _
    $region27: #{transformer_tts_forward.57} parent=1 // pred_check_branch
      %101 = sbr.rel (0) target = $region29
    $region28: #{transformer_tts_forward.57} parent=1 // pred_region
      _
    $region29: #{transformer_tts_forward.57} parent=1 // pred_fallthru
      _
    // Predicated region
    $region30: #{transformer_tts_forward.57} parent=1 // pred_check
      _
    $region31: #{transformer_tts_forward.57} parent=1 // pred_check_branch
      %103 = sbr.rel (0) target = $region33
    $region32: #{transformer_tts_forward.57} parent=1 // pred_region
      _
    $region33: #{transformer_tts_forward.57} parent=1 // pred_fallthru
      _
    %104 = vsyncpa [#allocation4], 1

// kernel: transformer_tts_forward.38
$region0: #{transformer_tts_forward.38}
  #allocation0 [shape = 'u32[]', space=smem, size = 0x4, offset = 0x4, fixed_abs, tag = 'smem constant byte address 0x4 - core index']
  #allocation1 [shape = 'u32[72,128]{1,0:T(1,128)}', space=vmem, size = 0x9000, scoped, tag = 'internal scratch']
  %s0 = inlined_call_operand.vmem [shape: f32[2,8,16], index: 0, kind: input, shape index: {}]
  %s1 = inlined_call_operand.vmem [shape: bf16[16,32], index: 1, kind: input, shape index: {}]
  %s2 = inlined_call_operand.hbm [shape: f32[1,32], index: 2, kind: input, shape index: {}]
  %s3 = inlined_call_operand.vmem [shape: f32[8,32], index: 3, kind: input, shape index: {}]
  %s4 = inlined_call_operand.vmem [shape: bf16[2,8,32], index: 4, kind: output, shape index: {}]
  %s5 = sld [smem:[#allocation0]]
  $region53: #{transformer_tts_forward.38} parent=0
    _
  %s7 = ssub.s32 1, %s5
  %s8 = scalar_select 0, %s7, %s5
  $region1: #{transformer_tts_forward.38} parent=0
    #allocation2 [shape = 'u8[512]{0}', space=vmem, size = 0x400, scoped, tag = 'input window, operand 2, single buffered']
    #allocation3 [shape = 's32[2]{0}', space=sflag, size = 0x8, scoped, tag = 'scoped memory for transformer_tts_forward.38']
    %9 = vsyncpa [#allocation3], 0
    loop: start=0, step=1, limit=4
    $region2: #{transformer_tts_forward.38} parent=1 // loop_pre_header
      _
    $region3: #{transformer_tts_forward.38} parent=1 // loop_header
      %s11 = sphi 0, %s15
      %p12 = scmp.ge.s32.totalorder %s11, 4
      %s18 = sphi 0, %s30
      %s19 = sphi 0, %s26
      %s20 = sphi 0, %s18
      %s21 = sphi 0, %s19
      %s22 = sphi 0, %s20
      %s23 = sphi 0, %s21
      %s35 = sphi 0, %s37
      %s38 = sphi 0, %s35
      %s39 = sphi 0, %s38
      %s55 = sphi 0, %s39
      %s59 = sphi 0, %s59
      %s61 = sphi 0, %s59
      %s62 = sphi 0, %s61
      %s76 = sphi 0, %s62
      %s80 = sphi 0, %s80
      %s82 = sphi 0, %s80
      %s83 = sphi 0, %s82
      %s97 = sphi 0, %s83
      %s103 = sphi 0, %s105
      %s106 = sphi 0, %s103
      %s107 = sphi 0, %s106
      %s123 = sphi 0, %s107
      %s131 = sphi 0, %s133
      %s134 = sphi 0, %s131
      %s135 = sphi 0, %s134
      %s151 = sphi 0, %s135
    $region4: #{transformer_tts_forward.38} parent=1 // loop_header_branch
      %14 = sbr.rel (%p12) target = $region8
    $region5: #{transformer_tts_forward.38} parent=1 // loop_body
      %s16 = ssub.s32 %s11, 1
      %s17 = ssub.s32 %s11, 2
      %s24 = sadd.s32 1, %s19
      %p25 = scmp.ge.s32.totalorder %s24, 1
      %s26 = scalar_select %p25, 0, %s24
      %s27 = sadd.s32 1, %s18
      %s28 = scalar_select %p25, %s27, %s18
      %p29 = scmp.ge.s32.totalorder %s28, 2
      %s30 = scalar_select %p29, 0, %s28
      %s31 = ssub.s32 %s18, %s30
      %s32 = ssub.s32 %s19, %s26
      %s33 = sor.u32 %s31, %s32
      %p34 = scmp.eq.s32.totalorder %s33, 0
      %s36 = sadd.s32 %s35, 1
      %s37 = scalar_select %p34, %s35, %s36
      %p40 = pneg %p34
      %p41 = scmp.eq.s32.totalorder %s11, 1
      %p42 = por %p40, %p41
      %p43 = scmp.ne.s32.totalorder %s35, %s38
      %p44 = scmp.eq.s32.totalorder %s11, 0
      %p45 = por %p43, %p44
      %p46 = scmp.ne.s32.totalorder %s35, %s38
      %p47 = scmp.eq.s32.totalorder %s16, 1
      %p48 = por %p46, %p47
      %p49 = scmp.ne.s32.totalorder %s38, %s39
      %p50 = scmp.eq.s32.totalorder %s16, 0
      %p51 = por %p49, %p50
      %p52 = scmp.ne.s32.totalorder %s38, %s39
      %p53 = scmp.eq.s32.totalorder %s17, 1
      %p54 = por %p52, %p53
      %p56 = scmp.ne.s32.totalorder %s39, %s55
      %p57 = scmp.eq.s32.totalorder %s17, 0
      %p58 = por %p56, %p57
      %s60 = sadd.s32 %s59, 1
      %p63 = scmp.eq.s32.totalorder %s11, 1
      %p64 = scmp.ne.s32.totalorder %s59, %s61
      %p65 = scmp.eq.s32.totalorder %s11, 0
      %p66 = por %p64, %p65
      %p67 = scmp.ne.s32.totalorder %s59, %s61
      %p68 = scmp.eq.s32.totalorder %s16, 1
      %p69 = por %p67, %p68
      %p70 = scmp.ne.s32.totalorder %s61, %s62
      %p71 = scmp.eq.s32.totalorder %s16, 0
      %p72 = por %p70, %p71
      %p73 = scmp.ne.s32.totalorder %s61, %s62
      %p74 = scmp.eq.s32.totalorder %s17, 1
      %p75 = por %p73, %p74
      %p77 = scmp.ne.s32.totalorder %s62, %s76
      %p78 = scmp.eq.s32.totalorder %s17, 0
      %p79 = por %p77, %p78
      %s81 = sadd.s32 %s80, 1
      %p84 = scmp.eq.s32.totalorder %s11, 1
      %p85 = scmp.ne.s32.totalorder %s80, %s82
      %p86 = scmp.eq.s32.totalorder %s11, 0
      %p87 = por %p85, %p86
      %p88 = scmp.ne.s32.totalorder %s80, %s82
      %p89 = scmp.eq.s32.totalorder %s16, 1
      %p90 = por %p88, %p89
      %p91 = scmp.ne.s32.totalorder %s82, %s83
      %p92 = scmp.eq.s32.totalorder %s16, 0
      %p93 = por %p91, %p92
      %p94 = scmp.ne.s32.totalorder %s82, %s83
      %p95 = scmp.eq.s32.totalorder %s17, 1
      %p96 = por %p94, %p95
      %p98 = scmp.ne.s32.totalorder %s83, %s97
      %p99 = scmp.eq.s32.totalorder %s17, 0
      %p100 = por %p98, %p99
      %s101 = ssub.s32 %s19, %s26
      %p102 = scmp.eq.s32.totalorder %s101, 0
      %s104 = sadd.s32 %s103, 1
      %s105 = scalar_select %p102, %s103, %s104
      %p108 = pneg %p102
      %p109 = scmp.eq.s32.totalorder %s11, 1
      %p110 = por %p108, %p109
      %p111 = scmp.ne.s32.totalorder %s103, %s106
      %p112 = scmp.eq.s32.totalorder %s11, 0
      %p113 = por %p111, %p112
      %p114 = scmp.ne.s32.totalorder %s103, %s106
      %p115 = scmp.eq.s32.totalorder %s16, 1
      %p116 = por %p114, %p115
      %p117 = scmp.ne.s32.totalorder %s106, %s107
      %p118 = scmp.eq.s32.totalorder %s16, 0
      %p119 = por %p117, %p118
      %p120 = scmp.ne.s32.totalorder %s106, %s107
      %p121 = scmp.eq.s32.totalorder %s17, 1
      %p122 = por %p120, %p121
      %p124 = scmp.ne.s32.totalorder %s107, %s123
      %p125 = scmp.eq.s32.totalorder %s17, 0
      %p126 = por %p124, %p125
      %s127 = ssub.s32 %s18, %s30
      %s128 = ssub.s32 %s19, %s26
      %s129 = sor.u32 %s127, %s128
      %p130 = scmp.eq.s32.totalorder %s129, 0
      %s132 = sadd.s32 %s131, 1
      %s133 = scalar_select %p130, %s131, %s132
      %p136 = pneg %p130
      %p137 = scmp.eq.s32.totalorder %s11, 1
      %p138 = por %p136, %p137
      %p139 = scmp.ne.s32.totalorder %s131, %s134
      %p140 = scmp.eq.s32.totalorder %s11, 0
      %p141 = por %p139, %p140
      %p142 = scmp.ne.s32.totalorder %s131, %s134
      %p143 = scmp.eq.s32.totalorder %s16, 1
      %p144 = por %p142, %p143
      %p145 = scmp.ne.s32.totalorder %s134, %s135
      %p146 = scmp.eq.s32.totalorder %s16, 0
      %p147 = por %p145, %p146
      %p148 = scmp.ne.s32.totalorder %s134, %s135
      %p149 = scmp.eq.s32.totalorder %s17, 1
      %p150 = por %p148, %p149
      %p152 = scmp.ne.s32.totalorder %s135, %s151
      %p153 = scmp.eq.s32.totalorder %s17, 0
      %p154 = por %p152, %p153
      %p155 = scmp.le.s32.totalorder 1, %s11
      %p156 = scmp.lt.s32.totalorder %s11, 3
      %p157 = pnand %p155, %p156
      %p158 = pneg %p157
      // Predicated region
      $region9: #{transformer_tts_forward.38} parent=5 // pred_check
        _
      $region10: #{transformer_tts_forward.38} parent=5 // pred_check_branch
        %160 = sbr.rel (%p157) target = $region12
      $region11: #{transformer_tts_forward.38} parent=5 // pred_region
        %s161 = ssub.s32 %s11, 1
        // Predicated region
        $region13: #{transformer_tts_forward.38} parent=11 // pred_check
          %p162 = pneg %p72
        $region14: #{transformer_tts_forward.38} parent=11 // pred_check_branch
          %164 = sbr.rel (%p162) target = $region16
        $region15: #{transformer_tts_forward.38} parent=11 // pred_region
          _
        $region16: #{transformer_tts_forward.38} parent=11 // pred_fallthru
          _
        // Predicated region
        $region17: #{transformer_tts_forward.38} parent=11 // pred_check
          %p165 = pneg %p93
        $region18: #{transformer_tts_forward.38} parent=11 // pred_check_branch
          %167 = sbr.rel (%p165) target = $region20
        $region19: #{transformer_tts_forward.38} parent=11 // pred_region
          %169 = vsyncadd [#allocation3], 0
          %s171 = sshll.u32 %s2, 4
          %s172 = int_to_ptr.hbm [resolvable:$true] %s171
          %s173 = sshll.u32 [#allocation2], 4
          %s174 = int_to_ptr.vmem [resolvable:$true] %s173
          %176 = dma.hbm_to_vmem [thread:$0]  %s172, 16, %s174, [#allocation3]
        $region20: #{transformer_tts_forward.38} parent=11 // pred_fallthru
          _
        // Predicated region
        $region21: #{transformer_tts_forward.38} parent=11 // pred_check
          %p177 = pneg %p119
        $region22: #{transformer_tts_forward.38} parent=11 // pred_check_branch
          %179 = sbr.rel (%p177) target = $region24
        $region23: #{transformer_tts_forward.38} parent=11 // pred_region
          %p180 = scmp.lt.s32.totalorder %s21, 0
          %s181 = scalar_select %p180, %s21, 0
          %s182 = smul.addr %s181, 8
          %s183 = scalar_lea.vmem %s3, %s182
        $region24: #{transformer_tts_forward.38} parent=11 // pred_fallthru
          _
      $region12: #{transformer_tts_forward.38} parent=5 // pred_fallthru
        _
      %p184 = scmp.lt.s32.totalorder %s11, 2
      // Predicated region
      $region25: #{transformer_tts_forward.38} parent=5 // pred_check
        %p185 = pneg %p184
      $region26: #{transformer_tts_forward.38} parent=5 // pred_check_branch
        %187 = sbr.rel (%p185) target = $region28
      $region27: #{transformer_tts_forward.38} parent=5 // pred_region
        // Predicated region
        $region29: #{transformer_tts_forward.38} parent=27 // pred_check
          %p188 = pneg %p45
        $region30: #{transformer_tts_forward.38} parent=27 // pred_check_branch
          %190 = sbr.rel (%p188) target = $region32
        $region31: #{transformer_tts_forward.38} parent=27 // pred_region
          %p191 = scmp.lt.s32.totalorder %s18, 1
          %s192 = scalar_select %p191, %s18, 1
          %p193 = scmp.lt.s32.totalorder %s19, 0
          %s194 = scalar_select %p193, %s19, 0
          %s195 = sadd.s32 %s194, %s192
          %s196 = smul.addr %s195, 8
          %s197 = scalar_lea.vmem %s0, %s196
        $region32: #{transformer_tts_forward.38} parent=27 // pred_fallthru
          _
      $region28: #{transformer_tts_forward.38} parent=5 // pred_fallthru
        _
      %p198 = scmp.le.s32.totalorder 1, %s11
      %p199 = scmp.lt.s32.totalorder %s11, 3
      %p200 = pnand %p198, %p199
      %p201 = pneg %p200
      // Predicated region
      $region33: #{transformer_tts_forward.38} parent=5 // pred_check
        _
      $region34: #{transformer_tts_forward.38} parent=5 // pred_check_branch
        %203 = sbr.rel (%p200) target = $region36
      $region35: #{transformer_tts_forward.38} parent=5 // pred_region
        %s204 = ssub.s32 %s11, 1
        // Predicated region
        $region37: #{transformer_tts_forward.38} parent=35 // pred_check
          %p205 = pneg %p93
        $region38: #{transformer_tts_forward.38} parent=35 // pred_check_branch
          %207 = sbr.rel (%p205) target = $region40
        $region39: #{transformer_tts_forward.38} parent=35 // pred_region
          %209 = dma.done [#allocation3], 16
        $region40: #{transformer_tts_forward.38} parent=35 // pred_fallthru
          _
        %p210 = scmp.lt.s32.totalorder %s20, 1
        %s211 = scalar_select %p210, %s20, 1
        %p212 = scmp.lt.s32.totalorder %s21, 0
        %s213 = scalar_select %p212, %s21, 0
        %s214 = sadd.s32 %s213, %s211
        %s215 = smul.addr %s214, 8
        %s216 = scalar_lea.vmem %s0, %s215
        %p217 = pneg %p51
        %p218 = pneg %p48
        %p219 = pneg %p72
        %p220 = pneg %p69
        %p221 = pneg %p93
        %p222 = pneg %p90
        %p223 = scmp.lt.s32.totalorder %s21, 0
        %s224 = scalar_select %p223, %s21, 0
        %s225 = smul.addr %s224, 8
        %s226 = scalar_lea.vmem %s3, %s225
        %p227 = pneg %p119
        %p228 = pneg %p116
        %p229 = pneg %p147
        %p230 = pneg %p144
        %p231 = scmp.lt.s32.totalorder %s20, 1
        %s232 = scalar_select %p231, %s20, 1
        %p233 = scmp.lt.s32.totalorder %s21, 0
        %s234 = scalar_select %p233, %s21, 0
        %s235 = sadd.s32 %s234, %s232
        %s236 = smul.addr %s235, 4
        %s237 = scalar_lea.vmem %s4, %s236
        %p238 = scmp.lt.s32.totalorder %s20, 1
        %s239 = scalar_select %p238, %s20, 1
        %p240 = scmp.lt.s32.totalorder %s21, 0
        %s241 = scalar_select %p240, %s21, 0
        %s242 = sadd.s32 %s241, %s239
        %s243 = smul.addr %s242, 8
        %s244 = scalar_lea.vmem %s0, %s243
        %p245 = scmp.lt.s32.totalorder %s21, 0
        %s246 = scalar_select %p245, %s21, 0
        %s247 = smul.addr %s246, 8
        %s248 = scalar_lea.vmem %s3, %s247
        %p249 = scmp.lt.s32.totalorder %s20, 1
        %s250 = scalar_select %p249, %s20, 1
        %p251 = scmp.lt.s32.totalorder %s21, 0
        %s252 = scalar_select %p251, %s21, 0
        %s253 = sadd.s32 %s252, %s250
        %s254 = smul.addr %s253, 4
        %s255 = scalar_lea.vmem %s4, %s254
        %v257 = vld [vmem:[%s244] sm:$0xff]
        %v258 = vpack.c.bf16 %v257, %v257
        %v259 = vld [vmem:[%s1] sm:$0xf]
        %v260 = vld [vmem:[%s1 + $0x4] sm:$0xf]
        %v261 = vld [vmem:[#allocation2] sm:$0x1]
        %v263 = vperm.slane %v261, 0
        %v267 = vunpack.c.l.b16 %v259
        %v268 = vunpack.c.l.b16 %v260
        %v269 = vpack.c.b16 %v268, %v267
        %vm271 = vcmask 130048
        %v273 = vsel %vm271, %v258, 0
        %275 = vmatpush.bf16.msra.mxu0 0
        %276 = vmatpush.bf16.msra.mxu0 0
        %277 = vmatpush.bf16.msra.mxu0 0
        %278 = vmatpush.bf16.msra.mxu0 0
        %279 = vmatpush.bf16.msra.mxu0 0
        %280 = vmatpush.bf16.msra.mxu0 0
        %281 = vmatpush.bf16.msra.mxu0 0
        %282 = vmatpush.bf16.msra.mxu0 %v269
        %283 = vmatmul.bf16.gmra.mxu0 %v273
        %v284 = vpop.f32.mrf.mxu0
        %v285 = vadd.f32 %v263, %v284
        %v286 = vpop.f32.mrf.mxu0
        %287 = vdwg.mxu0
        %v288 = vmul.f32 %v285, 2.0
        %v289 = vld [vmem:[%s248] sm:$0xff]
        %v290 = vadd.f32 %v288, %v289
        %v291 = vpack.c.bf16 %v290, %v290
        %vm292 = vcmask 257024
        %293 = vst.msk [vmem:[%s255] sm:$0xf] %vm292, %v291
        %p294 = scmp.lt.s32.totalorder %s20, 1
        %s295 = scalar_select %p294, %s20, 1
        %p296 = scmp.lt.s32.totalorder %s21, 0
        %s297 = scalar_select %p296, %s21, 0
        %s298 = sadd.s32 %s297, %s295
        %s299 = smul.addr %s298, 4
        %s300 = scalar_lea.vmem %s4, %s299
        // Predicated region
        $region41: #{transformer_tts_forward.38} parent=35 // pred_check
          %p301 = pneg %p144
        $region42: #{transformer_tts_forward.38} parent=35 // pred_check_branch
          %303 = sbr.rel (%p301) target = $region44
        $region43: #{transformer_tts_forward.38} parent=35 // pred_region
          _
        $region44: #{transformer_tts_forward.38} parent=35 // pred_fallthru
          _
      $region36: #{transformer_tts_forward.38} parent=5 // pred_fallthru
        _
      %p304 = scmp.le.s32.totalorder 2, %s11
      // Predicated region
      $region45: #{transformer_tts_forward.38} parent=5 // pred_check
        %p305 = pneg %p304
      $region46: #{transformer_tts_forward.38} parent=5 // pred_check_branch
        %307 = sbr.rel (%p305) target = $region48
      $region47: #{transformer_tts_forward.38} parent=5 // pred_region
        %s308 = ssub.s32 %s11, 2
        // Predicated region
        $region49: #{transformer_tts_forward.38} parent=47 // pred_check
          %p309 = pneg %p150
        $region50: #{transformer_tts_forward.38} parent=47 // pred_check_branch
          %311 = sbr.rel (%p309) target = $region52
        $region51: #{transformer_tts_forward.38} parent=47 // pred_region
          %p312 = scmp.lt.s32.totalorder %s22, 1
          %s313 = scalar_select %p312, %s22, 1
          %p314 = scmp.lt.s32.totalorder %s23, 0
          %s315 = scalar_select %p314, %s23, 0
          %s316 = sadd.s32 %s315, %s313
          %s317 = smul.addr %s316, 4
          %s318 = scalar_lea.vmem %s4, %s317
        $region52: #{transformer_tts_forward.38} parent=47 // pred_fallthru
          _
      $region48: #{transformer_tts_forward.38} parent=5 // pred_fallthru
        _
    $region6: #{transformer_tts_forward.38} parent=1 // loop_footer
      %s15 = sadd.s32 1, %s11
    $region7: #{transformer_tts_forward.38} parent=1 // loop_footer_branch
      %10 = sbr.rel target = $region3
    $region8: #{transformer_tts_forward.38} parent=1 // loop_exit
      _
    %319 = vsyncpa [#allocation3], 1
    %s320 = scalar_lea.sflag [#allocation3], 1
    %321 = vsyncpa %s320, 1

// kernel: transformer_tts_forward.52
$region0: #{transformer_tts_forward.52}
  #allocation0 [shape = 'u32[]', space=smem, size = 0x4, offset = 0x4, fixed_abs, tag = 'smem constant byte address 0x4 - core index']
  #allocation1 [shape = 'u32[72,128]{1,0:T(1,128)}', space=vmem, size = 0x9000, scoped, tag = 'internal scratch']
  #allocation2 [shape = 'f32[16,32]{1,0:T(8,128)}', space=vmem, size = 0x2000, scoped, tag = 'scratch operand']
  %s0 = inlined_call_operand.vmem [shape: bf16[16,32], index: 0, kind: input, shape index: {}]
  %s1 = inlined_call_operand.vmem [shape: bf16[32,32], index: 1, kind: input, shape index: {}]
  %s2 = inlined_call_operand.hbm [shape: f32[1,32], index: 2, kind: input, shape index: {}]
  %s3 = inlined_call_operand.vmem [shape: bf16[16,32], index: 3, kind: output, shape index: {}]
  %s4 = sld [smem:[#allocation0]]
  $region34: #{transformer_tts_forward.52} parent=0
    _
  %s6 = ssub.s32 1, %s4
  %s7 = scalar_select 0, %s6, %s4
  $region1: #{transformer_tts_forward.52} parent=0
    #allocation3 [shape = 'u8[512]{0}', space=vmem, size = 0x400, scoped, tag = 'input window, operand 2, single buffered']
    #allocation4 [shape = 's32[1]{0}', space=sflag, size = 0x4, scoped, tag = 'scoped memory for transformer_tts_forward.52']
    %8 = vsyncpa [#allocation4], 0
    // Predicated region
    $region2: #{transformer_tts_forward.52} parent=1 // pred_check
      _
    $region3: #{transformer_tts_forward.52} parent=1 // pred_check_branch
      %10 = sbr.rel (0) target = $region5
    $region4: #{transformer_tts_forward.52} parent=1 // pred_region
      _
    $region5: #{transformer_tts_forward.52} parent=1 // pred_fallthru
      _
    // Predicated region
    $region6: #{transformer_tts_forward.52} parent=1 // pred_check
      _
    $region7: #{transformer_tts_forward.52} parent=1 // pred_check_branch
      %12 = sbr.rel (0) target = $region9
    $region8: #{transformer_tts_forward.52} parent=1 // pred_region
      _
    $region9: #{transformer_tts_forward.52} parent=1 // pred_fallthru
      _
    // Predicated region
    $region10: #{transformer_tts_forward.52} parent=1 // pred_check
      _
    $region11: #{transformer_tts_forward.52} parent=1 // pred_check_branch
      %14 = sbr.rel (0) target = $region13
    $region12: #{transformer_tts_forward.52} parent=1 // pred_region
      %16 = vsyncadd [#allocation4], 0
      %s18 = sshll.u32 %s2, 4
      %s19 = int_to_ptr.hbm [resolvable:$true] %s18
      %s20 = sshll.u32 [#allocation3], 4
      %s21 = int_to_ptr.vmem [resolvable:$true] %s20
      %23 = dma.hbm_to_vmem [thread:$0]  %s19, 16, %s21, [#allocation4]
    $region13: #{transformer_tts_forward.52} parent=1 // pred_fallthru
      _
    // Predicated region
    $region14: #{transformer_tts_forward.52} parent=1 // pred_check
      _
    $region15: #{transformer_tts_forward.52} parent=1 // pred_check_branch
      %25 = sbr.rel (0) target = $region17
    $region16: #{transformer_tts_forward.52} parent=1 // pred_region
      %27 = dma.done [#allocation4], 16
    $region17: #{transformer_tts_forward.52} parent=1 // pred_fallthru
      _
    %p29 = scmp.eq.s32.totalorder 0, 0
    // Predicated region
    $region18: #{transformer_tts_forward.52} parent=1 // pred_check
      %p30 = pneg %p29
    $region19: #{transformer_tts_forward.52} parent=1 // pred_check_branch
      %32 = sbr.rel (%p30) target = $region21
    $region20: #{transformer_tts_forward.52} parent=1 // pred_region
      %vm33 = vcmask 261120
      %34 = vst.msk [vmem:[#allocation2] sm:$0xff] %vm33, 0.0
      %35 = vst.msk [vmem:[#allocation2 + $0x8] sm:$0xff] %vm33, 0.0
    $region21: #{transformer_tts_forward.52} parent=1 // pred_fallthru
      _
    %v36 = vld [vmem:[#allocation2] sm:$0xff]
    %v37 = vld [vmem:[#allocation2 + $0x8] sm:$0xff]
    %v38 = vld [vmem:[%s0] sm:$0xf]
    %v39 = vld [vmem:[%s0 + $0x4] sm:$0xf]
    %v40 = vld [vmem:[%s1] sm:$0xf]
    %v41 = vld [vmem:[%s1 + $0x4] sm:$0xf]
    %v42 = vld [vmem:[%s1 + $0x8] sm:$0xf]
    %v43 = vld [vmem:[%s1 + $0xc] sm:$0xf]
    %v46 = vunpack.c.l.b16 %v38
    %v47 = vunpack.c.l.b16 %v39
    %v48 = vpack.c.b16 %v47, %v46
    %v53 = vunpack.c.l.b16 %v40
    %v54 = vunpack.c.l.b16 %v41
    %v55 = vunpack.c.l.b16 %v42
    %v56 = vunpack.c.l.b16 %v43
    %v57 = vpack.c.b16 %v54, %v53
    %v58 = vpack.c.b16 %v56, %v55
    %vm61 = vcmask 261120
    %v63 = vsel %vm61, %v48, 0
    %65 = vmatpush.bf16.msra.mxu0 0
    %66 = vmatpush.bf16.msra.mxu0 0
    %67 = vmatpush.bf16.msra.mxu0 0
    %68 = vmatpush.bf16.msra.mxu0 0
    %69 = vmatpush.bf16.msra.mxu0 0
    %70 = vmatpush.bf16.msra.mxu0 0
    %71 = vmatpush.bf16.msra.mxu0 %v58
    %72 = vmatpush.bf16.msra.mxu0 %v57
    %73 = vmatmul.bf16.gmra.mxu0 %v63
    %v74 = vpop.f32.mrf.mxu0
    %v75 = vadd.f32 0.0, %v74
    %v76 = vpop.f32.mrf.mxu0
    %v77 = vadd.f32 0.0, %v76
    %78 = vdwg.mxu0
    %v79 = vadd.f32 %v36, %v75
    %v80 = vadd.f32 %v37, %v77
    %81 = vst.msk [vmem:[#allocation2] sm:$0xff] %vm61, %v79
    %82 = vst.msk [vmem:[#allocation2 + $0x8] sm:$0xff] %vm61, %v80
    // Predicated region
    $region22: #{transformer_tts_forward.52} parent=1 // pred_check
      %p83 = pneg %p29
    $region23: #{transformer_tts_forward.52} parent=1 // pred_check_branch
      %85 = sbr.rel (%p83) target = $region25
    $region24: #{transformer_tts_forward.52} parent=1 // pred_region
      %v86 = vld [vmem:[#allocation2] sm:$0xff]
      %v87 = vld [vmem:[#allocation2 + $0x8] sm:$0xff]
      %v88 = vld [vmem:[#allocation3] sm:$0x1]
      %v90 = vperm.slane %v88, 0
      %v92 = vadd.f32 %v86, %v90
      %v93 = vadd.f32 %v87, %v90
      %v94 = vpack.c.bf16 %v92, %v92
      %v95 = vpack.c.bf16 %v93, %v93
      %vm96 = vcmask 257024
      %97 = vst.msk [vmem:[%s3] sm:$0xf] %vm96, %v94
      %98 = vst.msk [vmem:[%s3 + $0x4] sm:$0xf] %vm96, %v95
    $region25: #{transformer_tts_forward.52} parent=1 // pred_fallthru
      _
    // Predicated region
    $region26: #{transformer_tts_forward.52} parent=1 // pred_check
      _
    $region27: #{transformer_tts_forward.52} parent=1 // pred_check_branch
      %100 = sbr.rel (0) target = $region29
    $region28: #{transformer_tts_forward.52} parent=1 // pred_region
      _
    $region29: #{transformer_tts_forward.52} parent=1 // pred_fallthru
      _
    // Predicated region
    $region30: #{transformer_tts_forward.52} parent=1 // pred_check
      _
    $region31: #{transformer_tts_forward.52} parent=1 // pred_check_branch
      %102 = sbr.rel (0) target = $region33
    $region32: #{transformer_tts_forward.52} parent=1 // pred_region
      _
    $region33: #{transformer_tts_forward.52} parent=1 // pred_fallthru
      _
    %103 = vsyncpa [#allocation4], 1

// kernel: transformer_tts_forward.59
$region0: #{transformer_tts_forward.59}
  #allocation0 [shape = 'u32[]', space=smem, size = 0x4, offset = 0x4, fixed_abs, tag = 'smem constant byte address 0x4 - core index']
  #allocation1 [shape = 'u32[72,128]{1,0:T(1,128)}', space=vmem, size = 0x9000, scoped, tag = 'internal scratch']
  #allocation2 [shape = 'f32[16,32]{1,0:T(8,128)}', space=vmem, size = 0x2000, scoped, tag = 'scratch operand']
  %s0 = inlined_call_operand.vmem [shape: bf16[16,32], index: 0, kind: input, shape index: {}]
  %s1 = inlined_call_operand.vmem [shape: bf16[32,32], index: 1, kind: input, shape index: {}]
  %s2 = inlined_call_operand.vmem [shape: f32[1,32], index: 2, kind: input, shape index: {}]
  %s3 = inlined_call_operand.vmem [shape: bf16[16,32], index: 3, kind: input, shape index: {}]
  %s4 = inlined_call_operand.hbm [shape: f32[1,32], index: 4, kind: input, shape index: {}]
  %s5 = inlined_call_operand.hbm [shape: f32[1,32], index: 5, kind: input, shape index: {}]
  %s6 = inlined_call_operand.vmem [shape: bf16[16,32], index: 6, kind: output, shape index: {}]
  %s7 = sld [smem:[#allocation0]]
  $region50: #{transformer_tts_forward.59} parent=0
    _
  %s9 = ssub.s32 1, %s7
  %s10 = scalar_select 0, %s9, %s7
  $region1: #{transformer_tts_forward.59} parent=0
    #allocation3 [shape = 'u8[512]{0}', space=vmem, size = 0x400, scoped, tag = 'input window, operand 4, single buffered']
    #allocation4 [shape = 's32[1]{0}', space=sflag, size = 0x4, scoped, tag = 'scoped memory for transformer_tts_forward.59']
    #allocation5 [shape = 'u8[512]{0}', space=vmem, size = 0x400, scoped, tag = 'input window, operand 5, single buffered']
    #allocation6 [shape = 's32[1]{0}', space=sflag, size = 0x4, scoped, tag = 'scoped memory for transformer_tts_forward.59']
    %11 = vsyncpa [#allocation4], 0
    %12 = vsyncpa [#allocation6], 0
    // Predicated region
    $region2: #{transformer_tts_forward.59} parent=1 // pred_check
      _
    $region3: #{transformer_tts_forward.59} parent=1 // pred_check_branch
      %14 = sbr.rel (0) target = $region5
    $region4: #{transformer_tts_forward.59} parent=1 // pred_region
      _
    $region5: #{transformer_tts_forward.59} parent=1 // pred_fallthru
      _
    // Predicated region
    $region6: #{transformer_tts_forward.59} parent=1 // pred_check
      _
    $region7: #{transformer_tts_forward.59} parent=1 // pred_check_branch
      %16 = sbr.rel (0) target = $region9
    $region8: #{transformer_tts_forward.59} parent=1 // pred_region
      _
    $region9: #{transformer_tts_forward.59} parent=1 // pred_fallthru
      _
    // Predicated region
    $region10: #{transformer_tts_forward.59} parent=1 // pred_check
      _
    $region11: #{transformer_tts_forward.59} parent=1 // pred_check_branch
      %18 = sbr.rel (0) target = $region13
    $region12: #{transformer_tts_forward.59} parent=1 // pred_region
      _
    $region13: #{transformer_tts_forward.59} parent=1 // pred_fallthru
      _
    // Predicated region
    $region14: #{transformer_tts_forward.59} parent=1 // pred_check
      _
    $region15: #{transformer_tts_forward.59} parent=1 // pred_check_branch
      %20 = sbr.rel (0) target = $region17
    $region16: #{transformer_tts_forward.59} parent=1 // pred_region
      _
    $region17: #{transformer_tts_forward.59} parent=1 // pred_fallthru
      _
    // Predicated region
    $region18: #{transformer_tts_forward.59} parent=1 // pred_check
      _
    $region19: #{transformer_tts_forward.59} parent=1 // pred_check_branch
      %22 = sbr.rel (0) target = $region21
    $region20: #{transformer_tts_forward.59} parent=1 // pred_region
      %24 = vsyncadd [#allocation4], 0
      %s26 = sshll.u32 %s4, 4
      %s27 = int_to_ptr.hbm [resolvable:$true] %s26
      %s28 = sshll.u32 [#allocation3], 4
      %s29 = int_to_ptr.vmem [resolvable:$true] %s28
      %31 = dma.hbm_to_vmem [thread:$0]  %s27, 16, %s29, [#allocation4]
    $region21: #{transformer_tts_forward.59} parent=1 // pred_fallthru
      _
    // Predicated region
    $region22: #{transformer_tts_forward.59} parent=1 // pred_check
      _
    $region23: #{transformer_tts_forward.59} parent=1 // pred_check_branch
      %33 = sbr.rel (0) target = $region25
    $region24: #{transformer_tts_forward.59} parent=1 // pred_region
      %35 = vsyncadd [#allocation6], 0
      %s37 = sshll.u32 %s5, 4
      %s38 = int_to_ptr.hbm [resolvable:$true] %s37
      %s39 = sshll.u32 [#allocation5], 4
      %s40 = int_to_ptr.vmem [resolvable:$true] %s39
      %42 = dma.hbm_to_vmem [thread:$0]  %s38, 16, %s40, [#allocation6]
    $region25: #{transformer_tts_forward.59} parent=1 // pred_fallthru
      _
    // Predicated region
    $region26: #{transformer_tts_forward.59} parent=1 // pred_check
      _
    $region27: #{transformer_tts_forward.59} parent=1 // pred_check_branch
      %44 = sbr.rel (0) target = $region29
    $region28: #{transformer_tts_forward.59} parent=1 // pred_region
      %46 = dma.done [#allocation4], 16
    $region29: #{transformer_tts_forward.59} parent=1 // pred_fallthru
      _
    // Predicated region
    $region30: #{transformer_tts_forward.59} parent=1 // pred_check
      _
    $region31: #{transformer_tts_forward.59} parent=1 // pred_check_branch
      %48 = sbr.rel (0) target = $region33
    $region32: #{transformer_tts_forward.59} parent=1 // pred_region
      %50 = dma.done [#allocation6], 16
    $region33: #{transformer_tts_forward.59} parent=1 // pred_fallthru
      _
    %p52 = scmp.eq.s32.totalorder 0, 0
    // Predicated region
    $region34: #{transformer_tts_forward.59} parent=1 // pred_check
      %p53 = pneg %p52
    $region35: #{transformer_tts_forward.59} parent=1 // pred_check_branch
      %55 = sbr.rel (%p53) target = $region37
    $region36: #{transformer_tts_forward.59} parent=1 // pred_region
      %vm56 = vcmask 261120
      %57 = vst.msk [vmem:[#allocation2] sm:$0xff] %vm56, 0.0
      %58 = vst.msk [vmem:[#allocation2 + $0x8] sm:$0xff] %vm56, 0.0
    $region37: #{transformer_tts_forward.59} parent=1 // pred_fallthru
      _
    %v59 = vld [vmem:[#allocation2] sm:$0xff]
    %v60 = vld [vmem:[#allocation2 + $0x8] sm:$0xff]
    %v61 = vld [vmem:[%s0] sm:$0xf]
    %v62 = vld [vmem:[%s0 + $0x4] sm:$0xf]
    %v63 = vld [vmem:[%s1] sm:$0xf]
    %v64 = vld [vmem:[%s1 + $0x4] sm:$0xf]
    %v65 = vld [vmem:[%s1 + $0x8] sm:$0xf]
    %v66 = vld [vmem:[%s1 + $0xc] sm:$0xf]
    %v69 = vunpack.c.l.b16 %v61
    %v70 = vunpack.c.l.b16 %v62
    %v71 = vpack.c.b16 %v70, %v69
    %v76 = vunpack.c.l.b16 %v63
    %v77 = vunpack.c.l.b16 %v64
    %v78 = vunpack.c.l.b16 %v65
    %v79 = vunpack.c.l.b16 %v66
    %v80 = vpack.c.b16 %v77, %v76
    %v81 = vpack.c.b16 %v79, %v78
    %vm84 = vcmask 261120
    %v86 = vsel %vm84, %v71, 0
    %88 = vmatpush.bf16.msra.mxu0 0
    %89 = vmatpush.bf16.msra.mxu0 0
    %90 = vmatpush.bf16.msra.mxu0 0
    %91 = vmatpush.bf16.msra.mxu0 0
    %92 = vmatpush.bf16.msra.mxu0 0
    %93 = vmatpush.bf16.msra.mxu0 0
    %94 = vmatpush.bf16.msra.mxu0 %v81
    %95 = vmatpush.bf16.msra.mxu0 %v80
    %96 = vmatmul.bf16.gmra.mxu0 %v86
    %v97 = vpop.f32.mrf.mxu0
    %v98 = vadd.f32 0.0, %v97
    %v99 = vpop.f32.mrf.mxu0
    %v100 = vadd.f32 0.0, %v99
    %101 = vdwg.mxu0
    %v102 = vadd.f32 %v59, %v98
    %v103 = vadd.f32 %v60, %v100
    %104 = vst.msk [vmem:[#allocation2] sm:$0xff] %vm84, %v102
    %105 = vst.msk [vmem:[#allocation2 + $0x8] sm:$0xff] %vm84, %v103
    // Predicated region
    $region38: #{transformer_tts_forward.59} parent=1 // pred_check
      %p106 = pneg %p52
    $region39: #{transformer_tts_forward.59} parent=1 // pred_check_branch
      %108 = sbr.rel (%p106) target = $region41
    $region40: #{transformer_tts_forward.59} parent=1 // pred_region
      %v109 = vld [vmem:[#allocation2] sm:$0xff]
      %v110 = vld [vmem:[#allocation2 + $0x8] sm:$0xff]
      %v111 = vld [vmem:[%s2] sm:$0x1]
      %v113 = vperm.slane %v111, 0
      %v115 = vadd.f32 %v109, %v113
      %v116 = vadd.f32 %v110, %v113
      %v117 = vld [vmem:[%s3] sm:$0xf]
      %v118 = vld [vmem:[%s3 + $0x4] sm:$0xf]
      %v119 = vunpack.c.l.bf16 %v117
      %v120 = vunpack.c.l.bf16 %v118
      %v121 = vadd.f32 %v115, %v119
      %v122 = vadd.f32 %v116, %v120
      %v123 = vsel %vm84, %v121, 0.0
      %124 = vadd.xlane.f32.xlu0 %v123
      %v125 = vpop.xlane.xlu0 %124
      %v126 = vsel %vm84, %v122, 0.0
      %127 = vadd.xlane.f32.xlu0 %v126
      %v128 = vpop.xlane.xlu0 %127
      %v129 = vrcp.pop 32.0
      %v130 = vmul.f32 32.0, %v129
      %v131 = vsub.f32 1.0, %v130
      %v132 = vmul.f32 %v129, %v131
      %v133 = vadd.f32 %v129, %v132
      %vm134 = vweird.f32 %v129
      %v135 = vsel %vm134, %v129, %v133
      %v136 = vmul.f32 %v125, %v135
      %v137 = vmul.f32 %v128, %v135
      %v138 = vsub.f32 %v121, %v136
      %v139 = vsub.f32 %v122, %v137
      %v140 = vmul.f32 %v138, %v138
      %v141 = vmul.f32 %v139, %v139
      %v142 = vsel %vm84, %v140, 0.0
      %143 = vadd.xlane.f32.xlu0 %v142
      %v144 = vpop.xlane.xlu0 %143
      %v145 = vsel %vm84, %v141, 0.0
      %146 = vadd.xlane.f32.xlu0 %v145
      %v147 = vpop.xlane.xlu0 %146
      %v148 = vmul.f32 %v144, %v135
      %v149 = vmul.f32 %v147, %v135
      %v150 = vadd.f32 %v148, 1e-05
      %v151 = vadd.f32 %v149, 1e-05
      %v152 = vrsqrt.pop %v150
      %v153 = vmul.f32 %v152, %v150
      %v154 = vmul.f32 %v153, %v152
      %v155 = vmul.f32 0.5, %v154
      %v156 = vsub.f32 1.5, %v155
      %v157 = vmul.f32 %v152, %v156
      %vm158 = vweird.f32 %v150
      %vm159 = vweird.f32 %v152
      %vm160 = vmor %vm158, %vm159
      %v161 = vsel %vm160, %v152, %v157
      %v162 = vrsqrt.pop %v151
      %v163 = vmul.f32 %v162, %v151
      %v164 = vmul.f32 %v163, %v162
      %v165 = vmul.f32 0.5, %v164
      %v166 = vsub.f32 1.5, %v165
      %v167 = vmul.f32 %v162, %v166
      %vm168 = vweird.f32 %v151
      %vm169 = vweird.f32 %v162
      %vm170 = vmor %vm168, %vm169
      %v171 = vsel %vm170, %v162, %v167
      %v172 = vmul.f32 %v138, %v161
      %v173 = vmul.f32 %v139, %v171
      %v174 = vld [vmem:[#allocation3] sm:$0x1]
      %v176 = vperm.slane %v174, 0
      %v178 = vmul.f32 %v172, %v176
      %v179 = vmul.f32 %v173, %v176
      %v180 = vld [vmem:[#allocation5] sm:$0x1]
      %v182 = vperm.slane %v180, 0
      %v184 = vadd.f32 %v178, %v182
      %v185 = vadd.f32 %v179, %v182
      %v186 = vpack.c.bf16 %v184, %v184
      %v187 = vpack.c.bf16 %v185, %v185
      %vm188 = vcmask 257024
      %189 = vst.msk [vmem:[%s6] sm:$0xf] %vm188, %v186
      %190 = vst.msk [vmem:[%s6 + $0x4] sm:$0xf] %vm188, %v187
    $region41: #{transformer_tts_forward.59} parent=1 // pred_fallthru
      _
    // Predicated region
    $region42: #{transformer_tts_forward.59} parent=1 // pred_check
      _
    $region43: #{transformer_tts_forward.59} parent=1 // pred_check_branch
      %192 = sbr.rel (0) target = $region45
    $region44: #{transformer_tts_forward.59} parent=1 // pred_region
      _
    $region45: #{transformer_tts_forward.59} parent=1 // pred_fallthru
      _
    // Predicated region
    $region46: #{transformer_tts_forward.59} parent=1 // pred_check
      _
    $region47: #{transformer_tts_forward.59} parent=1 // pred_check_branch
      %194 = sbr.rel (0) target = $region49
    $region48: #{transformer_tts_forward.59} parent=1 // pred_region
      _
    $region49: #{transformer_tts_forward.59} parent=1 // pred_fallthru
      _
    %195 = vsyncpa [#allocation4], 1
    %196 = vsyncpa [#allocation6], 1

// kernel: transformer_tts_forward.60
$region0: #{transformer_tts_forward.60}
  #allocation0 [shape = 'u32[]', space=smem, size = 0x4, offset = 0x4, fixed_abs, tag = 'smem constant byte address 0x4 - core index']
  #allocation1 [shape = 'u32[72,128]{1,0:T(1,128)}', space=vmem, size = 0x9000, scoped, tag = 'internal scratch']
  #allocation2 [shape = 'f32[16,128]{1,0:T(8,128)}', space=vmem, size = 0x2000, scoped, tag = 'scratch operand']
  %s0 = inlined_call_operand.vmem [shape: bf16[16,32], index: 0, kind: input, shape index: {}]
  %s1 = inlined_call_operand.vmem [shape: bf16[32,128], index: 1, kind: input, shape index: {}]
  %s2 = inlined_call_operand.hbm [shape: f32[1,128], index: 2, kind: input, shape index: {}]
  %s3 = inlined_call_operand.vmem [shape: bf16[16,128], index: 3, kind: output, shape index: {}]
  %s4 = sld [smem:[#allocation0]]
  $region34: #{transformer_tts_forward.60} parent=0
    _
  %s6 = ssub.s32 1, %s4
  %s7 = scalar_select 0, %s6, %s4
  $region1: #{transformer_tts_forward.60} parent=0
    #allocation3 [shape = 'u8[512]{0}', space=vmem, size = 0x400, scoped, tag = 'input window, operand 2, single buffered']
    #allocation4 [shape = 's32[1]{0}', space=sflag, size = 0x4, scoped, tag = 'scoped memory for transformer_tts_forward.60']
    %8 = vsyncpa [#allocation4], 0
    // Predicated region
    $region2: #{transformer_tts_forward.60} parent=1 // pred_check
      _
    $region3: #{transformer_tts_forward.60} parent=1 // pred_check_branch
      %10 = sbr.rel (0) target = $region5
    $region4: #{transformer_tts_forward.60} parent=1 // pred_region
      _
    $region5: #{transformer_tts_forward.60} parent=1 // pred_fallthru
      _
    // Predicated region
    $region6: #{transformer_tts_forward.60} parent=1 // pred_check
      _
    $region7: #{transformer_tts_forward.60} parent=1 // pred_check_branch
      %12 = sbr.rel (0) target = $region9
    $region8: #{transformer_tts_forward.60} parent=1 // pred_region
      _
    $region9: #{transformer_tts_forward.60} parent=1 // pred_fallthru
      _
    // Predicated region
    $region10: #{transformer_tts_forward.60} parent=1 // pred_check
      _
    $region11: #{transformer_tts_forward.60} parent=1 // pred_check_branch
      %14 = sbr.rel (0) target = $region13
    $region12: #{transformer_tts_forward.60} parent=1 // pred_region
      %16 = vsyncadd [#allocation4], 0
      %s18 = sshll.u32 %s2, 4
      %s19 = int_to_ptr.hbm [resolvable:$true] %s18
      %s20 = sshll.u32 [#allocation3], 4
      %s21 = int_to_ptr.vmem [resolvable:$true] %s20
      %23 = dma.hbm_to_vmem [thread:$0]  %s19, 16, %s21, [#allocation4]
    $region13: #{transformer_tts_forward.60} parent=1 // pred_fallthru
      _
    // Predicated region
    $region14: #{transformer_tts_forward.60} parent=1 // pred_check
      _
    $region15: #{transformer_tts_forward.60} parent=1 // pred_check_branch
      %25 = sbr.rel (0) target = $region17
    $region16: #{transformer_tts_forward.60} parent=1 // pred_region
      %27 = dma.done [#allocation4], 16
    $region17: #{transformer_tts_forward.60} parent=1 // pred_fallthru
      _
    %p29 = scmp.eq.s32.totalorder 0, 0
    // Predicated region
    $region18: #{transformer_tts_forward.60} parent=1 // pred_check
      %p30 = pneg %p29
    $region19: #{transformer_tts_forward.60} parent=1 // pred_check_branch
      %32 = sbr.rel (%p30) target = $region21
    $region20: #{transformer_tts_forward.60} parent=1 // pred_region
      %33 = vst [vmem:[#allocation2] sm:$0xff] 0.0
      %34 = vst [vmem:[#allocation2 + $0x8] sm:$0xff] 0.0
    $region21: #{transformer_tts_forward.60} parent=1 // pred_fallthru
      _
    %v35 = vld [vmem:[#allocation2] sm:$0xff]
    %v36 = vld [vmem:[#allocation2 + $0x8] sm:$0xff]
    %v37 = vld [vmem:[%s0] sm:$0xf]
    %v38 = vld [vmem:[%s0 + $0x4] sm:$0xf]
    %v39 = vld [vmem:[%s1] sm:$0xf]
    %v40 = vld [vmem:[%s1 + $0x4] sm:$0xf]
    %v41 = vld [vmem:[%s1 + $0x8] sm:$0xf]
    %v42 = vld [vmem:[%s1 + $0xc] sm:$0xf]
    %v45 = vunpack.c.l.b16 %v37
    %v46 = vunpack.c.l.b16 %v38
    %v47 = vpack.c.b16 %v46, %v45
    %v52 = vunpack.c.l.b16 %v39
    %v53 = vunpack.c.l.b16 %v40
    %v54 = vunpack.c.l.b16 %v41
    %v55 = vunpack.c.l.b16 %v42
    %v56 = vpack.c.b16 %v53, %v52
    %v57 = vpack.c.b16 %v55, %v54
    %vm60 = vcmask 261120
    %v62 = vsel %vm60, %v47, 0
    %64 = vmatpush.bf16.msra.mxu0 0
    %65 = vmatpush.bf16.msra.mxu0 0
    %66 = vmatpush.bf16.msra.mxu0 0
    %67 = vmatpush.bf16.msra.mxu0 0
    %68 = vmatpush.bf16.msra.mxu0 0
    %69 = vmatpush.bf16.msra.mxu0 0
    %70 = vmatpush.bf16.msra.mxu0 %v57
    %71 = vmatpush.bf16.msra.mxu0 %v56
    %72 = vmatmul.bf16.gmra.mxu0 %v62
    %v73 = vpop.f32.mrf.mxu0
    %v74 = vadd.f32 0.0, %v73
    %v75 = vpop.f32.mrf.mxu0
    %v76 = vadd.f32 0.0, %v75
    %77 = vdwg.mxu0
    %v78 = vadd.f32 %v35, %v74
    %v79 = vadd.f32 %v36, %v76
    %80 = vst [vmem:[#allocation2] sm:$0xff] %v78
    %81 = vst [vmem:[#allocation2 + $0x8] sm:$0xff] %v79
    // Predicated region
    $region22: #{transformer_tts_forward.60} parent=1 // pred_check
      %p82 = pneg %p29
    $region23: #{transformer_tts_forward.60} parent=1 // pred_check_branch
      %84 = sbr.rel (%p82) target = $region25
    $region24: #{transformer_tts_forward.60} parent=1 // pred_region
      %v85 = vld [vmem:[#allocation2] sm:$0xff]
      %v86 = vld [vmem:[#allocation2 + $0x8] sm:$0xff]
      %v87 = vld [vmem:[#allocation3] sm:$0x1]
      %v89 = vperm.slane %v87, 0
      %v91 = vadd.f32 %v85, %v89
      %v92 = vadd.f32 %v86, %v89
      %v93 = vmax.f32 %v91, 0.0
      %v94 = vmax.f32 %v92, 0.0
      %v95 = vpack.c.bf16 %v93, %v93
      %v96 = vpack.c.bf16 %v94, %v94
      %97 = vst [vmem:[%s3] sm:$0xf] %v95
      %98 = vst [vmem:[%s3 + $0x4] sm:$0xf] %v96
    $region25: #{transformer_tts_forward.60} parent=1 // pred_fallthru
      _
    // Predicated region
    $region26: #{transformer_tts_forward.60} parent=1 // pred_check
      _
    $region27: #{transformer_tts_forward.60} parent=1 // pred_check_branch
      %100 = sbr.rel (0) target = $region29
    $region28: #{transformer_tts_forward.60} parent=1 // pred_region
      _
    $region29: #{transformer_tts_forward.60} parent=1 // pred_fallthru
      _
    // Predicated region
    $region30: #{transformer_tts_forward.60} parent=1 // pred_check
      _
    $region31: #{transformer_tts_forward.60} parent=1 // pred_check_branch
      %102 = sbr.rel (0) target = $region33
    $region32: #{transformer_tts_forward.60} parent=1 // pred_region
      _
    $region33: #{transformer_tts_forward.60} parent=1 // pred_fallthru
      _
    %103 = vsyncpa [#allocation4], 1

// kernel: transformer_tts_forward.54
$region0: #{transformer_tts_forward.54}
  #allocation0 [shape = 'u32[]', space=smem, size = 0x4, offset = 0x4, fixed_abs, tag = 'smem constant byte address 0x4 - core index']
  #allocation1 [shape = 'u32[72,128]{1,0:T(1,128)}', space=vmem, size = 0x9000, scoped, tag = 'internal scratch']
  %s0 = inlined_call_operand.vmem [shape: bf16[2,8,32], index: 0, kind: input, shape index: {}]
  %s1 = inlined_call_operand.vmem [shape: bf16[2,8,64], index: 1, kind: input, shape index: {}]
  %s2 = inlined_call_operand.vmem [shape: f32[2,1,8], index: 2, kind: input, shape index: {}]
  %s3 = inlined_call_operand.vmem [shape: bf16[2,8,32], index: 3, kind: output, shape index: {}]
  %s4 = sld [smem:[#allocation0]]
  $region45: #{transformer_tts_forward.54} parent=0
    _
  %s6 = ssub.s32 1, %s4
  %s7 = scalar_select 0, %s6, %s4
  loop: start=0, step=1, limit=4
  $region2: #{transformer_tts_forward.54} parent=0 // loop_pre_header
    _
  $region3: #{transformer_tts_forward.54} parent=0 // loop_header
    %s9 = sphi 0, %s13
    %p10 = scmp.ge.s32.totalorder %s9, 4
    %s16 = sphi 0, %s28
    %s17 = sphi 0, %s24
    %s18 = sphi 0, %s16
    %s19 = sphi 0, %s17
    %s20 = sphi 0, %s18
    %s21 = sphi 0, %s19
    %s33 = sphi 0, %s35
    %s36 = sphi 0, %s33
    %s37 = sphi 0, %s36
    %s53 = sphi 0, %s37
    %s59 = sphi 0, %s61
    %s62 = sphi 0, %s59
    %s63 = sphi 0, %s62
    %s79 = sphi 0, %s63
    %s85 = sphi 0, %s87
    %s88 = sphi 0, %s85
    %s89 = sphi 0, %s88
    %s105 = sphi 0, %s89
    %s113 = sphi 0, %s115
    %s116 = sphi 0, %s113
    %s117 = sphi 0, %s116
    %s133 = sphi 0, %s117
  $region4: #{transformer_tts_forward.54} parent=0 // loop_header_branch
    %12 = sbr.rel (%p10) target = $region8
  $region5: #{transformer_tts_forward.54} parent=0 // loop_body
    %s14 = ssub.s32 %s9, 1
    %s15 = ssub.s32 %s9, 2
    %s22 = sadd.s32 1, %s17
    %p23 = scmp.ge.s32.totalorder %s22, 1
    %s24 = scalar_select %p23, 0, %s22
    %s25 = sadd.s32 1, %s16
    %s26 = scalar_select %p23, %s25, %s16
    %p27 = scmp.ge.s32.totalorder %s26, 2
    %s28 = scalar_select %p27, 0, %s26
    %s29 = ssub.s32 %s16, %s28
    %s30 = ssub.s32 %s17, %s24
    %s31 = sor.u32 %s29, %s30
    %p32 = scmp.eq.s32.totalorder %s31, 0
    %s34 = sadd.s32 %s33, 1
    %s35 = scalar_select %p32, %s33, %s34
    %p38 = pneg %p32
    %p39 = scmp.eq.s32.totalorder %s9, 1
    %p40 = por %p38, %p39
    %p41 = scmp.ne.s32.totalorder %s33, %s36
    %p42 = scmp.eq.s32.totalorder %s9, 0
    %p43 = por %p41, %p42
    %p44 = scmp.ne.s32.totalorder %s33, %s36
    %p45 = scmp.eq.s32.totalorder %s14, 1
    %p46 = por %p44, %p45
    %p47 = scmp.ne.s32.totalorder %s36, %s37
    %p48 = scmp.eq.s32.totalorder %s14, 0
    %p49 = por %p47, %p48
    %p50 = scmp.ne.s32.totalorder %s36, %s37
    %p51 = scmp.eq.s32.totalorder %s15, 1
    %p52 = por %p50, %p51
    %p54 = scmp.ne.s32.totalorder %s37, %s53
    %p55 = scmp.eq.s32.totalorder %s15, 0
    %p56 = por %p54, %p55
    %s57 = ssub.s32 %s16, %s28
    %p58 = scmp.eq.s32.totalorder %s57, 0
    %s60 = sadd.s32 %s59, 1
    %s61 = scalar_select %p58, %s59, %s60
    %p64 = pneg %p58
    %p65 = scmp.eq.s32.totalorder %s9, 1
    %p66 = por %p64, %p65
    %p67 = scmp.ne.s32.totalorder %s59, %s62
    %p68 = scmp.eq.s32.totalorder %s9, 0
    %p69 = por %p67, %p68
    %p70 = scmp.ne.s32.totalorder %s59, %s62
    %p71 = scmp.eq.s32.totalorder %s14, 1
    %p72 = por %p70, %p71
    %p73 = scmp.ne.s32.totalorder %s62, %s63
    %p74 = scmp.eq.s32.totalorder %s14, 0
    %p75 = por %p73, %p74
    %p76 = scmp.ne.s32.totalorder %s62, %s63
    %p77 = scmp.eq.s32.totalorder %s15, 1
    %p78 = por %p76, %p77
    %p80 = scmp.ne.s32.totalorder %s63, %s79
    %p81 = scmp.eq.s32.totalorder %s15, 0
    %p82 = por %p80, %p81
    %s83 = ssub.s32 %s16, %s28
    %p84 = scmp.eq.s32.totalorder %s83, 0
    %s86 = sadd.s32 %s85, 1
    %s87 = scalar_select %p84, %s85, %s86
    %p90 = pneg %p84
    %p91 = scmp.eq.s32.totalorder %s9, 1
    %p92 = por %p90, %p91
    %p93 = scmp.ne.s32.totalorder %s85, %s88
    %p94 = scmp.eq.s32.totalorder %s9, 0
    %p95 = por %p93, %p94
    %p96 = scmp.ne.s32.totalorder %s85, %s88
    %p97 = scmp.eq.s32.totalorder %s14, 1
    %p98 = por %p96, %p97
    %p99 = scmp.ne.s32.totalorder %s88, %s89
    %p100 = scmp.eq.s32.totalorder %s14, 0
    %p101 = por %p99, %p100
    %p102 = scmp.ne.s32.totalorder %s88, %s89
    %p103 = scmp.eq.s32.totalorder %s15, 1
    %p104 = por %p102, %p103
    %p106 = scmp.ne.s32.totalorder %s89, %s105
    %p107 = scmp.eq.s32.totalorder %s15, 0
    %p108 = por %p106, %p107
    %s109 = ssub.s32 %s16, %s28
    %s110 = ssub.s32 %s17, %s24
    %s111 = sor.u32 %s109, %s110
    %p112 = scmp.eq.s32.totalorder %s111, 0
    %s114 = sadd.s32 %s113, 1
    %s115 = scalar_select %p112, %s113, %s114
    %p118 = pneg %p112
    %p119 = scmp.eq.s32.totalorder %s9, 1
    %p120 = por %p118, %p119
    %p121 = scmp.ne.s32.totalorder %s113, %s116
    %p122 = scmp.eq.s32.totalorder %s9, 0
    %p123 = por %p121, %p122
    %p124 = scmp.ne.s32.totalorder %s113, %s116
    %p125 = scmp.eq.s32.totalorder %s14, 1
    %p126 = por %p124, %p125
    %p127 = scmp.ne.s32.totalorder %s116, %s117
    %p128 = scmp.eq.s32.totalorder %s14, 0
    %p129 = por %p127, %p128
    %p130 = scmp.ne.s32.totalorder %s116, %s117
    %p131 = scmp.eq.s32.totalorder %s15, 1
    %p132 = por %p130, %p131
    %p134 = scmp.ne.s32.totalorder %s117, %s133
    %p135 = scmp.eq.s32.totalorder %s15, 0
    %p136 = por %p134, %p135
    %p137 = scmp.le.s32.totalorder 1, %s9
    %p138 = scmp.lt.s32.totalorder %s9, 3
    %p139 = pnand %p137, %p138
    %p140 = pneg %p139
    // Predicated region
    $region9: #{transformer_tts_forward.54} parent=5 // pred_check
      _
    $region10: #{transformer_tts_forward.54} parent=5 // pred_check_branch
      %142 = sbr.rel (%p139) target = $region12
    $region11: #{transformer_tts_forward.54} parent=5 // pred_region
      %s143 = ssub.s32 %s9, 1
    $region12: #{transformer_tts_forward.54} parent=5 // pred_fallthru
      _
    %p144 = scmp.lt.s32.totalorder %s9, 2
    // Predicated region
    $region13: #{transformer_tts_forward.54} parent=5 // pred_check
      %p145 = pneg %p144
    $region14: #{transformer_tts_forward.54} parent=5 // pred_check_branch
      %147 = sbr.rel (%p145) target = $region16
    $region15: #{transformer_tts_forward.54} parent=5 // pred_region
      // Predicated region
      $region17: #{transformer_tts_forward.54} parent=15 // pred_check
        %p148 = pneg %p43
      $region18: #{transformer_tts_forward.54} parent=15 // pred_check_branch
        %150 = sbr.rel (%p148) target = $region20
      $region19: #{transformer_tts_forward.54} parent=15 // pred_region
        %p151 = scmp.lt.s32.totalorder %s16, 1
        %s152 = scalar_select %p151, %s16, 1
        %p153 = scmp.lt.s32.totalorder %s17, 0
        %s154 = scalar_select %p153, %s17, 0
        %s155 = sadd.s32 %s154, %s152
        %s156 = smul.addr %s155, 4
        %s157 = scalar_lea.vmem %s0, %s156
      $region20: #{transformer_tts_forward.54} parent=15 // pred_fallthru
        _
      // Predicated region
      $region21: #{transformer_tts_forward.54} parent=15 // pred_check
        %p158 = pneg %p69
      $region22: #{transformer_tts_forward.54} parent=15 // pred_check_branch
        %160 = sbr.rel (%p158) target = $region24
      $region23: #{transformer_tts_forward.54} parent=15 // pred_region
        %p161 = scmp.lt.s32.totalorder %s16, 1
        %s162 = scalar_select %p161, %s16, 1
        %s163 = smul.addr %s162, 4
        %s164 = scalar_lea.vmem %s1, %s163
      $region24: #{transformer_tts_forward.54} parent=15 // pred_fallthru
        _
      // Predicated region
      $region25: #{transformer_tts_forward.54} parent=15 // pred_check
        %p165 = pneg %p95
      $region26: #{transformer_tts_forward.54} parent=15 // pred_check_branch
        %167 = sbr.rel (%p165) target = $region28
      $region27: #{transformer_tts_forward.54} parent=15 // pred_region
        %p168 = scmp.lt.s32.totalorder %s16, 1
        %s169 = scalar_select %p168, %s16, 1
        %s170 = scalar_lea.vmem %s2, %s169
      $region28: #{transformer_tts_forward.54} parent=15 // pred_fallthru
        _
    $region16: #{transformer_tts_forward.54} parent=5 // pred_fallthru
      _
    %p171 = scmp.le.s32.totalorder 1, %s9
    %p172 = scmp.lt.s32.totalorder %s9, 3
    %p173 = pnand %p171, %p172
    %p174 = pneg %p173
    // Predicated region
    $region29: #{transformer_tts_forward.54} parent=5 // pred_check
      _
    $region30: #{transformer_tts_forward.54} parent=5 // pred_check_branch
      %176 = sbr.rel (%p173) target = $region32
    $region31: #{transformer_tts_forward.54} parent=5 // pred_region
      %s177 = ssub.s32 %s9, 1
      %p178 = scmp.lt.s32.totalorder %s18, 1
      %s179 = scalar_select %p178, %s18, 1
      %p180 = scmp.lt.s32.totalorder %s19, 0
      %s181 = scalar_select %p180, %s19, 0
      %s182 = sadd.s32 %s181, %s179
      %s183 = smul.addr %s182, 4
      %s184 = scalar_lea.vmem %s0, %s183
      %p185 = pneg %p49
      %p186 = pneg %p46
      %p187 = scmp.lt.s32.totalorder %s18, 1
      %s188 = scalar_select %p187, %s18, 1
      %s189 = smul.addr %s188, 4
      %s190 = scalar_lea.vmem %s1, %s189
      %p191 = pneg %p75
      %p192 = pneg %p72
      %p193 = scmp.lt.s32.totalorder %s18, 1
      %s194 = scalar_select %p193, %s18, 1
      %s195 = scalar_lea.vmem %s2, %s194
      %p196 = pneg %p101
      %p197 = pneg %p98
      %p198 = pneg %p129
      %p199 = pneg %p126
      %p200 = scmp.lt.s32.totalorder %s18, 1
      %s201 = scalar_select %p200, %s18, 1
      %p202 = scmp.lt.s32.totalorder %s19, 0
      %s203 = scalar_select %p202, %s19, 0
      %s204 = sadd.s32 %s203, %s201
      %s205 = smul.addr %s204, 4
      %s206 = scalar_lea.vmem %s3, %s205
      %p207 = scmp.lt.s32.totalorder %s18, 1
      %s208 = scalar_select %p207, %s18, 1
      %p209 = scmp.lt.s32.totalorder %s19, 0
      %s210 = scalar_select %p209, %s19, 0
      %s211 = sadd.s32 %s210, %s208
      %s212 = smul.addr %s211, 4
      %s213 = scalar_lea.vmem %s0, %s212
      %p214 = scmp.lt.s32.totalorder %s18, 1
      %s215 = scalar_select %p214, %s18, 1
      %s216 = smul.addr %s215, 4
      %s217 = scalar_lea.vmem %s1, %s216
      %p218 = scmp.lt.s32.totalorder %s18, 1
      %s219 = scalar_select %p218, %s18, 1
      %s220 = scalar_lea.vmem %s2, %s219
      %p221 = scmp.lt.s32.totalorder %s18, 1
      %s222 = scalar_select %p221, %s18, 1
      %p223 = scmp.lt.s32.totalorder %s19, 0
      %s224 = scalar_select %p223, %s19, 0
      %s225 = sadd.s32 %s224, %s222
      %s226 = smul.addr %s225, 4
      %s227 = scalar_lea.vmem %s3, %s226
      %v229 = vld [vmem:[%s220] sm:$0x1]
      %s230 = smul.u32 %s19, 8
      %v231 = vlaneseq
      %v232 = vshrl.u32 %v231, 7
      %v233 = vstv %s230
      %v234 = vadd.s32 %v233, %v232
      %v235 = vlaneseq
      %v236 = vand.u32 %v235, 127
      %vm237 = vcmp.gt.s32.totalorder %v236, %v234
      %v238 = vsel %vm237, -1e+09, 0.0
      %v239 = vld [vmem:[%s213] sm:$0xf]
      %v240 = vunpack.c.l.bf16 %v239
      %v241 = vmul.f32 %v240, 0.35351563
      %v242 = vpack.c.bf16 %v241, %v241
      %v243 = vld [vmem:[%s217] sm:$0xf]
      %v245 = vperm.slane %v229, 0
      %vm247 = vcmask 64512
      %v249 = vsel %vm247, %v242, 0
      %v252 = vsel %vm247, %v243, 0
      %254 = vmatpush.bf16.xpose.msra.mxu0 0
      %255 = vmatpush.bf16.xpose.msra.mxu0 0
      %256 = vmatpush.bf16.xpose.msra.mxu0 0
      %257 = vmatpush.bf16.xpose.msra.mxu0 0
      %258 = vmatpush.bf16.xpose.msra.mxu0 0
      %259 = vmatpush.bf16.xpose.msra.mxu0 0
      %260 = vmatpush.bf16.xpose.msra.mxu0 0
      %261 = vmatpush.bf16.xpose.msra.mxu0 %v252
      %262 = vmatmul.bf16.gmra.mxu0 %v249
      %v263 = vpop.f32.mrf.mxu0
      %v264 = vadd.f32 %v245, %v263
      %v265 = vpop.f32.mrf.mxu0
      %266 = vdwg.mxu0
      %v267 = vadd.f32 %v264, %v238
      %v268 = vsel %vm247, %v267, -inf
      %269 = vmax.xlane.f32.xlu0 %v268
      %v270 = vpop.xlane.xlu0 %269
      %v271 = vsub.f32 %v267, %v270
      %v272 = vmul.f32 %v271, 1.442695
      %v273 = vpow.pop %v272
      %v274 = vsel %vm247, %v273, 0.0
      %275 = vadd.xlane.f32.xlu0 %v274
      %v276 = vpop.xlane.xlu0 %275
      %v277 = vrcp.pop %v276
      %v278 = vpack.c.bf16 %v273, %v273
      %v280 = vunpack.c.l.b16 %v243
      %v281 = vpack.c.b16 %v280, %v280
      %282 = vrot.lane.b32.xlu0 %v281, 96
      %v283 = vpop.permute.xlu0 %282
      %v285 = vsel %vm247, %v278, 0
      %vm287 = vcmask 1043456
      %v289 = vsel %vm287, %v283, 0
      %291 = vmatpush.bf16.msra.mxu0 0
      %292 = vmatpush.bf16.msra.mxu0 0
      %293 = vmatpush.bf16.msra.mxu0 0
      %294 = vmatpush.bf16.msra.mxu0 0
      %295 = vmatpush.bf16.msra.mxu0 0
      %296 = vmatpush.bf16.msra.mxu0 0
      %297 = vmatpush.bf16.msra.mxu0 0
      %298 = vmatpush.bf16.msra.mxu0 %v289
      %299 = vmatmul.bf16.gmra.mxu0 %v285
      %v300 = vpop.f32.mrf.mxu0
      %v301 = vadd.f32 0.0, %v300
      %v302 = vpop.f32.mrf.mxu0
      %303 = vdwg.mxu0
      %v304 = vmul.f32 %v301, %v277
      %v305 = vpack.c.bf16 %v304, %v304
      %vm306 = vcmask 60416
      %307 = vst.msk [vmem:[%s227] sm:$0xf] %vm306, %v305
      %v308 = vld [vmem:[%s213] sm:$0xf]
      %v309 = vunpack.c.l.bf16 %v308
      %v310 = vmul.f32 %v309, 0.35351563
      %v311 = vpack.c.bf16 %v310, %v310
      %v312 = vld [vmem:[%s217] sm:$0xf]
      %314 = vrot.lane.b32.xlu0 %v311, 120
      %v315 = vpop.permute.xlu0 %314
      %v317 = vunpack.c.l.b16 %v312
      %v318 = vpack.c.b16 %v317, %v317
      %319 = vrot.lane.b32.xlu0 %v318, 120
      %v320 = vpop.permute.xlu0 %319
      %v322 = vsel %vm247, %v315, 0
      %v325 = vsel %vm247, %v320, 0
      %327 = vmatpush.bf16.xpose.msra.mxu0 0
      %328 = vmatpush.bf16.xpose.msra.mxu0 0
      %329 = vmatpush.bf16.xpose.msra.mxu0 0
      %330 = vmatpush.bf16.xpose.msra.mxu0 0
      %331 = vmatpush.bf16.xpose.msra.mxu0 0
      %332 = vmatpush.bf16.xpose.msra.mxu0 0
      %333 = vmatpush.bf16.xpose.msra.mxu0 0
      %334 = vmatpush.bf16.xpose.msra.mxu0 %v325
      %335 = vmatmul.bf16.gmra.mxu0 %v322
      %v336 = vpop.f32.mrf.mxu0
      %v337 = vadd.f32 %v245, %v336
      %v338 = vpop.f32.mrf.mxu0
      %339 = vdwg.mxu0
      %v340 = vadd.f32 %v337, %v238
      %v341 = vsel %vm247, %v340, -inf
      %342 = vmax.xlane.f32.xlu0 %v341
      %v343 = vpop.xlane.xlu0 %342
      %v344 = vsub.f32 %v340, %v343
      %v345 = vmul.f32 %v344, 1.442695
      %v346 = vpow.pop %v345
      %v347 = vsel %vm247, %v346, 0.0
      %348 = vadd.xlane.f32.xlu0 %v347
      %v349 = vpop.xlane.xlu0 %348
      %v350 = vrcp.pop %v349
      %v351 = vpack.c.bf16 %v346, %v346
      %352 = vrot.lane.b32.xlu0 %v318, 88
      %v353 = vpop.permute.xlu0 %352
      %v355 = vsel %vm247, %v351, 0
      %v358 = vsel %vm287, %v353, 0
      %360 = vmatpush.bf16.msra.mxu0 0
      %361 = vmatpush.bf16.msra.mxu0 0
      %362 = vmatpush.bf16.msra.mxu0 0
      %363 = vmatpush.bf16.msra.mxu0 0
      %364 = vmatpush.bf16.msra.mxu0 0
      %365 = vmatpush.bf16.msra.mxu0 0
      %366 = vmatpush.bf16.msra.mxu0 0
      %367 = vmatpush.bf16.msra.mxu0 %v358
      %368 = vmatmul.bf16.gmra.mxu0 %v355
      %v369 = vpop.f32.mrf.mxu0
      %v370 = vadd.f32 0.0, %v369
      %v371 = vpop.f32.mrf.mxu0
      %372 = vdwg.mxu0
      %v373 = vmul.f32 %v370, %v350
      %v374 = vpack.c.bf16 %v373, %v373
      %376 = vrot.lane.b32.xlu0 %v374, 8
      %v377 = vpop.permute.xlu0 %376
      %vm379 = vcmask 126016
      %380 = vst.msk [vmem:[%s227] sm:$0xf] %vm379, %v377
      %v381 = vld [vmem:[%s213] sm:$0xf]
      %v382 = vunpack.c.l.bf16 %v381
      %v383 = vmul.f32 %v382, 0.35351563
      %v384 = vpack.c.bf16 %v383, %v383
      %v385 = vld [vmem:[%s217] sm:$0xf]
      %387 = vrot.lane.b32.xlu0 %v384, 112
      %v388 = vpop.permute.xlu0 %387
      %v390 = vunpack.c.l.b16 %v385
      %v391 = vpack.c.b16 %v390, %v390
      %392 = vrot.lane.b32.xlu0 %v391, 112
      %v393 = vpop.permute.xlu0 %392
      %v395 = vsel %vm247, %v388, 0
      %v398 = vsel %vm247, %v393, 0
      %400 = vmatpush.bf16.xpose.msra.mxu0 0
      %401 = vmatpush.bf16.xpose.msra.mxu0 0
      %402 = vmatpush.bf16.xpose.msra.mxu0 0
      %403 = vmatpush.bf16.xpose.msra.mxu0 0
      %404 = vmatpush.bf16.xpose.msra.mxu0 0
      %405 = vmatpush.bf16.xpose.msra.mxu0 0
      %406 = vmatpush.bf16.xpose.msra.mxu0 0
      %407 = vmatpush.bf16.xpose.msra.mxu0 %v398
      %408 = vmatmul.bf16.gmra.mxu0 %v395
      %v409 = vpop.f32.mrf.mxu0
      %v410 = vadd.f32 %v245, %v409
      %v411 = vpop.f32.mrf.mxu0
      %412 = vdwg.mxu0
      %v413 = vadd.f32 %v410, %v238
      %v414 = vsel %vm247, %v413, -inf
      %415 = vmax.xlane.f32.xlu0 %v414
      %v416 = vpop.xlane.xlu0 %415
      %v417 = vsub.f32 %v413, %v416
      %v418 = vmul.f32 %v417, 1.442695
      %v419 = vpow.pop %v418
      %v420 = vsel %vm247, %v419, 0.0
      %421 = vadd.xlane.f32.xlu0 %v420
      %v422 = vpop.xlane.xlu0 %421
      %v423 = vrcp.pop %v422
      %v424 = vpack.c.bf16 %v419, %v419
      %425 = vrot.lane.b32.xlu0 %v391, 80
      %v426 = vpop.permute.xlu0 %425
      %v428 = vsel %vm247, %v424, 0
      %v431 = vsel %vm287, %v426, 0
      %433 = vmatpush.bf16.msra.mxu0 0
      %434 = vmatpush.bf16.msra.mxu0 0
      %435 = vmatpush.bf16.msra.mxu0 0
      %436 = vmatpush.bf16.msra.mxu0 0
      %437 = vmatpush.bf16.msra.mxu0 0
      %438 = vmatpush.bf16.msra.mxu0 0
      %439 = vmatpush.bf16.msra.mxu0 0
      %440 = vmatpush.bf16.msra.mxu0 %v431
      %441 = vmatmul.bf16.gmra.mxu0 %v428
      %v442 = vpop.f32.mrf.mxu0
      %v443 = vadd.f32 0.0, %v442
      %v444 = vpop.f32.mrf.mxu0
      %445 = vdwg.mxu0
      %v446 = vmul.f32 %v443, %v423
      %v447 = vpack.c.bf16 %v446, %v446
      %449 = vrot.lane.b32.xlu0 %v447, 16
      %v450 = vpop.permute.xlu0 %449
      %vm452 = vcmask 191616
      %453 = vst.msk [vmem:[%s227] sm:$0xf] %vm452, %v450
      %v454 = vld [vmem:[%s213] sm:$0xf]
      %v455 = vunpack.c.l.bf16 %v454
      %v456 = vmul.f32 %v455, 0.35351563
      %v457 = vpack.c.bf16 %v456, %v456
      %v458 = vld [vmem:[%s217] sm:$0xf]
      %460 = vrot.lane.b32.xlu0 %v457, 104
      %v461 = vpop.permute.xlu0 %460
      %v463 = vunpack.c.l.b16 %v458
      %v464 = vpack.c.b16 %v463, %v463
      %465 = vrot.lane.b32.xlu0 %v464, 104
      %v466 = vpop.permute.xlu0 %465
      %v468 = vsel %vm247, %v461, 0
      %v471 = vsel %vm247, %v466, 0
      %473 = vmatpush.bf16.xpose.msra.mxu0 0
      %474 = vmatpush.bf16.xpose.msra.mxu0 0
      %475 = vmatpush.bf16.xpose.msra.mxu0 0
      %476 = vmatpush.bf16.xpose.msra.mxu0 0
      %477 = vmatpush.bf16.xpose.msra.mxu0 0
      %478 = vmatpush.bf16.xpose.msra.mxu0 0
      %479 = vmatpush.bf16.xpose.msra.mxu0 0
      %480 = vmatpush.bf16.xpose.msra.mxu0 %v471
      %481 = vmatmul.bf16.gmra.mxu0 %v468
      %v482 = vpop.f32.mrf.mxu0
      %v483 = vadd.f32 %v245, %v482
      %v484 = vpop.f32.mrf.mxu0
      %485 = vdwg.mxu0
      %v486 = vadd.f32 %v483, %v238
      %v487 = vsel %vm247, %v486, -inf
      %488 = vmax.xlane.f32.xlu0 %v487
      %v489 = vpop.xlane.xlu0 %488
      %v490 = vsub.f32 %v486, %v489
      %v491 = vmul.f32 %v490, 1.442695
      %v492 = vpow.pop %v491
      %v493 = vsel %vm247, %v492, 0.0
      %494 = vadd.xlane.f32.xlu0 %v493
      %v495 = vpop.xlane.xlu0 %494
      %v496 = vrcp.pop %v495
      %v497 = vpack.c.bf16 %v492, %v492
      %498 = vrot.lane.b32.xlu0 %v464, 72
      %v499 = vpop.permute.xlu0 %498
      %v501 = vsel %vm247, %v497, 0
      %v504 = vsel %vm287, %v499, 0
      %506 = vmatpush.bf16.msra.mxu0 0
      %507 = vmatpush.bf16.msra.mxu0 0
      %508 = vmatpush.bf16.msra.mxu0 0
      %509 = vmatpush.bf16.msra.mxu0 0
      %510 = vmatpush.bf16.msra.mxu0 0
      %511 = vmatpush.bf16.msra.mxu0 0
      %512 = vmatpush.bf16.msra.mxu0 0
      %513 = vmatpush.bf16.msra.mxu0 %v504
      %514 = vmatmul.bf16.gmra.mxu0 %v501
      %v515 = vpop.f32.mrf.mxu0
      %v516 = vadd.f32 0.0, %v515
      %v517 = vpop.f32.mrf.mxu0
      %518 = vdwg.mxu0
      %v519 = vmul.f32 %v516, %v496
      %v520 = vpack.c.bf16 %v519, %v519
      %522 = vrot.lane.b32.xlu0 %v520, 24
      %v523 = vpop.permute.xlu0 %522
      %vm525 = vcmask 257216
      %526 = vst.msk [vmem:[%s227] sm:$0xf] %vm525, %v523
      %p527 = scmp.lt.s32.totalorder %s18, 1
      %s528 = scalar_select %p527, %s18, 1
      %p529 = scmp.lt.s32.totalorder %s19, 0
      %s530 = scalar_select %p529, %s19, 0
      %s531 = sadd.s32 %s530, %s528
      %s532 = smul.addr %s531, 4
      %s533 = scalar_lea.vmem %s3, %s532
      // Predicated region
      $region33: #{transformer_tts_forward.54} parent=31 // pred_check
        %p534 = pneg %p126
      $region34: #{transformer_tts_forward.54} parent=31 // pred_check_branch
        %536 = sbr.rel (%p534) target = $region36
      $region35: #{transformer_tts_forward.54} parent=31 // pred_region
        _
      $region36: #{transformer_tts_forward.54} parent=31 // pred_fallthru
        _
    $region32: #{transformer_tts_forward.54} parent=5 // pred_fallthru
      _
    %p537 = scmp.le.s32.totalorder 2, %s9
    // Predicated region
    $region37: #{transformer_tts_forward.54} parent=5 // pred_check
      %p538 = pneg %p537
    $region38: #{transformer_tts_forward.54} parent=5 // pred_check_branch
      %540 = sbr.rel (%p538) target = $region40
    $region39: #{transformer_tts_forward.54} parent=5 // pred_region
      %s541 = ssub.s32 %s9, 2
      // Predicated region
      $region41: #{transformer_tts_forward.54} parent=39 // pred_check
        %p542 = pneg %p132
      $region42: #{transformer_tts_forward.54} parent=39 // pred_check_branch
        %544 = sbr.rel (%p542) target = $region44
      $region43: #{transformer_tts_forward.54} parent=39 // pred_region
        %p545 = scmp.lt.s32.totalorder %s20, 1
        %s546 = scalar_select %p545, %s20, 1
        %p547 = scmp.lt.s32.totalorder %s21, 0
        %s548 = scalar_select %p547, %s21, 0
        %s549 = sadd.s32 %s548, %s546
        %s550 = smul.addr %s549, 4
        %s551 = scalar_lea.vmem %s3, %s550
      $region44: #{transformer_tts_forward.54} parent=39 // pred_fallthru
        _
    $region40: #{transformer_tts_forward.54} parent=5 // pred_fallthru
      _
  $region6: #{transformer_tts_forward.54} parent=0 // loop_footer
    %s13 = sadd.s32 1, %s9
  $region7: #{transformer_tts_forward.54} parent=0 // loop_footer_branch
    %8 = sbr.rel target = $region3
  $region8: #{transformer_tts_forward.54} parent=0 // loop_exit
    _

// kernel: transformer_tts_forward.72
$region0: #{transformer_tts_forward.72}
  #allocation0 [shape = 'u32[]', space=smem, size = 0x4, offset = 0x4, fixed_abs, tag = 'smem constant byte address 0x4 - core index']
  #allocation1 [shape = 'u32[72,128]{1,0:T(1,128)}', space=vmem, size = 0x9000, scoped, tag = 'internal scratch']
  %s0 = inlined_call_operand.vmem [shape: bf16[16,32], index: 0, kind: input, shape index: {}]
  %s1 = inlined_call_operand.vmem [shape: f32[1,32], index: 1, kind: input, shape index: {}]
  %s2 = inlined_call_operand.vmem [shape: f32[1,32], index: 2, kind: input, shape index: {}]
  %s3 = inlined_call_operand.vmem [shape: bf16[16,32], index: 3, kind: output, shape index: {}]
  %s4 = sld [smem:[#allocation0]]
  $region22: #{transformer_tts_forward.72} parent=0
    _
  %s6 = ssub.s32 1, %s4
  %s7 = scalar_select 0, %s6, %s4
  // Predicated region
  $region2: #{transformer_tts_forward.72} parent=0 // pred_check
    _
  $region3: #{transformer_tts_forward.72} parent=0 // pred_check_branch
    %9 = sbr.rel (0) target = $region5
  $region4: #{transformer_tts_forward.72} parent=0 // pred_region
    _
  $region5: #{transformer_tts_forward.72} parent=0 // pred_fallthru
    _
  // Predicated region
  $region6: #{transformer_tts_forward.72} parent=0 // pred_check
    _
  $region7: #{transformer_tts_forward.72} parent=0 // pred_check_branch
    %11 = sbr.rel (0) target = $region9
  $region8: #{transformer_tts_forward.72} parent=0 // pred_region
    _
  $region9: #{transformer_tts_forward.72} parent=0 // pred_fallthru
    _
  // Predicated region
  $region10: #{transformer_tts_forward.72} parent=0 // pred_check
    _
  $region11: #{transformer_tts_forward.72} parent=0 // pred_check_branch
    %13 = sbr.rel (0) target = $region13
  $region12: #{transformer_tts_forward.72} parent=0 // pred_region
    _
  $region13: #{transformer_tts_forward.72} parent=0 // pred_fallthru
    _
  %v14 = vld [vmem:[%s0] sm:$0xf]
  %v15 = vld [vmem:[%s0 + $0x4] sm:$0xf]
  %v16 = vunpack.c.l.bf16 %v14
  %v17 = vunpack.c.l.bf16 %v15
  %vm18 = vcmask 261120
  %v19 = vsel %vm18, %v16, 0.0
  %20 = vadd.xlane.f32.xlu0 %v19
  %v21 = vpop.xlane.xlu0 %20
  %v22 = vsel %vm18, %v17, 0.0
  %23 = vadd.xlane.f32.xlu0 %v22
  %v24 = vpop.xlane.xlu0 %23
  %v25 = vrcp.pop 32.0
  %v26 = vmul.f32 32.0, %v25
  %v27 = vsub.f32 1.0, %v26
  %v28 = vmul.f32 %v25, %v27
  %v29 = vadd.f32 %v25, %v28
  %vm30 = vweird.f32 %v25
  %v31 = vsel %vm30, %v25, %v29
  %v32 = vmul.f32 %v21, %v31
  %v33 = vmul.f32 %v24, %v31
  %v34 = vsub.f32 %v16, %v32
  %v35 = vsub.f32 %v17, %v33
  %v36 = vmul.f32 %v34, %v34
  %v37 = vmul.f32 %v35, %v35
  %v38 = vsel %vm18, %v36, 0.0
  %39 = vadd.xlane.f32.xlu0 %v38
  %v40 = vpop.xlane.xlu0 %39
  %v41 = vsel %vm18, %v37, 0.0
  %42 = vadd.xlane.f32.xlu0 %v41
  %v43 = vpop.xlane.xlu0 %42
  %v44 = vmul.f32 %v40, %v31
  %v45 = vmul.f32 %v43, %v31
  %v46 = vadd.f32 %v44, 1e-05
  %v47 = vadd.f32 %v45, 1e-05
  %v48 = vrsqrt.pop %v46
  %v49 = vmul.f32 %v48, %v46
  %v50 = vmul.f32 %v49, %v48
  %v51 = vmul.f32 0.5, %v50
  %v52 = vsub.f32 1.5, %v51
  %v53 = vmul.f32 %v48, %v52
  %vm54 = vweird.f32 %v46
  %vm55 = vweird.f32 %v48
  %vm56 = vmor %vm54, %vm55
  %v57 = vsel %vm56, %v48, %v53
  %v58 = vrsqrt.pop %v47
  %v59 = vmul.f32 %v58, %v47
  %v60 = vmul.f32 %v59, %v58
  %v61 = vmul.f32 0.5, %v60
  %v62 = vsub.f32 1.5, %v61
  %v63 = vmul.f32 %v58, %v62
  %vm64 = vweird.f32 %v47
  %vm65 = vweird.f32 %v58
  %vm66 = vmor %vm64, %vm65
  %v67 = vsel %vm66, %v58, %v63
  %v68 = vmul.f32 %v34, %v57
  %v69 = vmul.f32 %v35, %v67
  %v70 = vld [vmem:[%s1] sm:$0x1]
  %v72 = vperm.slane %v70, 0
  %v74 = vmul.f32 %v68, %v72
  %v75 = vmul.f32 %v69, %v72
  %v76 = vld [vmem:[%s2] sm:$0x1]
  %v78 = vperm.slane %v76, 0
  %v80 = vadd.f32 %v74, %v78
  %v81 = vadd.f32 %v75, %v78
  %v82 = vpack.c.bf16 %v80, %v80
  %v83 = vpack.c.bf16 %v81, %v81
  %vm84 = vcmask 257024
  %85 = vst.msk [vmem:[%s3] sm:$0xf] %vm84, %v82
  %86 = vst.msk [vmem:[%s3 + $0x4] sm:$0xf] %vm84, %v83
  // Predicated region
  $region14: #{transformer_tts_forward.72} parent=0 // pred_check
    _
  $region15: #{transformer_tts_forward.72} parent=0 // pred_check_branch
    %88 = sbr.rel (0) target = $region17
  $region16: #{transformer_tts_forward.72} parent=0 // pred_region
    _
  $region17: #{transformer_tts_forward.72} parent=0 // pred_fallthru
    _
  // Predicated region
  $region18: #{transformer_tts_forward.72} parent=0 // pred_check
    _
  $region19: #{transformer_tts_forward.72} parent=0 // pred_check_branch
    %90 = sbr.rel (0) target = $region21
  $region20: #{transformer_tts_forward.72} parent=0 // pred_region
    _
  $region21: #{transformer_tts_forward.72} parent=0 // pred_fallthru
    _

// kernel: transformer_tts_forward.61
$region0: #{transformer_tts_forward.61}
  #allocation0 [shape = 'u32[]', space=smem, size = 0x4, offset = 0x4, fixed_abs, tag = 'smem constant byte address 0x4 - core index']
  #allocation1 [shape = 'u32[72,128]{1,0:T(1,128)}', space=vmem, size = 0x9000, scoped, tag = 'internal scratch']
  #allocation2 [shape = 'f32[16,32]{1,0:T(8,128)}', space=vmem, size = 0x2000, scoped, tag = 'scratch operand']
  %s0 = inlined_call_operand.vmem [shape: bf16[16,128], index: 0, kind: input, shape index: {}]
  %s1 = inlined_call_operand.vmem [shape: bf16[128,32], index: 1, kind: input, shape index: {}]
  %s2 = inlined_call_operand.hbm [shape: f32[1,32], index: 2, kind: input, shape index: {}]
  %s3 = inlined_call_operand.vmem [shape: bf16[16,32], index: 3, kind: input, shape index: {}]
  %s4 = inlined_call_operand.hbm [shape: f32[1,32], index: 4, kind: input, shape index: {}]
  %s5 = inlined_call_operand.hbm [shape: f32[1,32], index: 5, kind: input, shape index: {}]
  %s6 = inlined_call_operand.vmem [shape: bf16[16,32], index: 6, kind: output, shape index: {}]
  %s7 = sld [smem:[#allocation0]]
  $region54: #{transformer_tts_forward.61} parent=0
    _
  %s9 = ssub.s32 1, %s7
  %s10 = scalar_select 0, %s9, %s7
  $region1: #{transformer_tts_forward.61} parent=0
    #allocation3 [shape = 'u8[512]{0}', space=vmem, size = 0x400, scoped, tag = 'input window, operand 2, single buffered']
    #allocation4 [shape = 's32[1]{0}', space=sflag, size = 0x4, scoped, tag = 'scoped memory for transformer_tts_forward.61']
    #allocation5 [shape = 'u8[512]{0}', space=vmem, size = 0x400, scoped, tag = 'input window, operand 4, single buffered']
    #allocation6 [shape = 's32[1]{0}', space=sflag, size = 0x4, scoped, tag = 'scoped memory for transformer_tts_forward.61']
    #allocation7 [shape = 'u8[512]{0}', space=vmem, size = 0x400, scoped, tag = 'input window, operand 5, single buffered']
    %11 = vsyncpa [#allocation4], 0
    %12 = vsyncpa [#allocation6], 0
    // Predicated region
    $region2: #{transformer_tts_forward.61} parent=1 // pred_check
      _
    $region3: #{transformer_tts_forward.61} parent=1 // pred_check_branch
      %14 = sbr.rel (0) target = $region5
    $region4: #{transformer_tts_forward.61} parent=1 // pred_region
      _
    $region5: #{transformer_tts_forward.61} parent=1 // pred_fallthru
      _
    // Predicated region
    $region6: #{transformer_tts_forward.61} parent=1 // pred_check
      _
    $region7: #{transformer_tts_forward.61} parent=1 // pred_check_branch
      %16 = sbr.rel (0) target = $region9
    $region8: #{transformer_tts_forward.61} parent=1 // pred_region
      _
    $region9: #{transformer_tts_forward.61} parent=1 // pred_fallthru
      _
    // Predicated region
    $region10: #{transformer_tts_forward.61} parent=1 // pred_check
      _
    $region11: #{transformer_tts_forward.61} parent=1 // pred_check_branch
      %18 = sbr.rel (0) target = $region13
    $region12: #{transformer_tts_forward.61} parent=1 // pred_region
      %20 = vsyncadd [#allocation4], 0
      %s22 = sshll.u32 %s2, 4
      %s23 = int_to_ptr.hbm [resolvable:$true] %s22
      %s24 = sshll.u32 [#allocation3], 4
      %s25 = int_to_ptr.vmem [resolvable:$true] %s24
      %27 = dma.hbm_to_vmem [thread:$0]  %s23, 16, %s25, [#allocation4]
    $region13: #{transformer_tts_forward.61} parent=1 // pred_fallthru
      _
    // Predicated region
    $region14: #{transformer_tts_forward.61} parent=1 // pred_check
      _
    $region15: #{transformer_tts_forward.61} parent=1 // pred_check_branch
      %29 = sbr.rel (0) target = $region17
    $region16: #{transformer_tts_forward.61} parent=1 // pred_region
      _
    $region17: #{transformer_tts_forward.61} parent=1 // pred_fallthru
      _
    // Predicated region
    $region18: #{transformer_tts_forward.61} parent=1 // pred_check
      _
    $region19: #{transformer_tts_forward.61} parent=1 // pred_check_branch
      %31 = sbr.rel (0) target = $region21
    $region20: #{transformer_tts_forward.61} parent=1 // pred_region
      %33 = vsyncadd [#allocation6], 0
      %s35 = sshll.u32 %s4, 4
      %s36 = int_to_ptr.hbm [resolvable:$true] %s35
      %s37 = sshll.u32 [#allocation5], 4
      %s38 = int_to_ptr.vmem [resolvable:$true] %s37
      %40 = dma.hbm_to_vmem [thread:$0]  %s36, 16, %s38, [#allocation6]
    $region21: #{transformer_tts_forward.61} parent=1 // pred_fallthru
      _
    // Predicated region
    $region22: #{transformer_tts_forward.61} parent=1 // pred_check
      _
    $region23: #{transformer_tts_forward.61} parent=1 // pred_check_branch
      %42 = sbr.rel (0) target = $region25
    $region24: #{transformer_tts_forward.61} parent=1 // pred_region
      %44 = vsyncadd [#allocation6], 0
      %s46 = sshll.u32 %s5, 4
      %s47 = int_to_ptr.hbm [resolvable:$true] %s46
      %s48 = sshll.u32 [#allocation7], 4
      %s49 = int_to_ptr.vmem [resolvable:$true] %s48
      %51 = dma.hbm_to_vmem [thread:$0]  %s47, 16, %s49, [#allocation6]
    $region25: #{transformer_tts_forward.61} parent=1 // pred_fallthru
      _
    // Predicated region
    $region26: #{transformer_tts_forward.61} parent=1 // pred_check
      _
    $region27: #{transformer_tts_forward.61} parent=1 // pred_check_branch
      %53 = sbr.rel (0) target = $region29
    $region28: #{transformer_tts_forward.61} parent=1 // pred_region
      %55 = dma.done [#allocation4], 16
    $region29: #{transformer_tts_forward.61} parent=1 // pred_fallthru
      _
    // Predicated region
    $region30: #{transformer_tts_forward.61} parent=1 // pred_check
      _
    $region31: #{transformer_tts_forward.61} parent=1 // pred_check_branch
      %57 = sbr.rel (0) target = $region33
    $region32: #{transformer_tts_forward.61} parent=1 // pred_region
      %59 = dma.done [#allocation6], 16
    $region33: #{transformer_tts_forward.61} parent=1 // pred_fallthru
      _
    // Predicated region
    $region34: #{transformer_tts_forward.61} parent=1 // pred_check
      _
    $region35: #{transformer_tts_forward.61} parent=1 // pred_check_branch
      %61 = sbr.rel (0) target = $region37
    $region36: #{transformer_tts_forward.61} parent=1 // pred_region
      %63 = dma.done [#allocation6], 16
    $region37: #{transformer_tts_forward.61} parent=1 // pred_fallthru
      _
    %p64 = scmp.eq.s32.totalorder 0, 0
    // Predicated region
    $region38: #{transformer_tts_forward.61} parent=1 // pred_check
      %p65 = pneg %p64
    $region39: #{transformer_tts_forward.61} parent=1 // pred_check_branch
      %67 = sbr.rel (%p65) target = $region41
    $region40: #{transformer_tts_forward.61} parent=1 // pred_region
      %vm68 = vcmask 261120
      %69 = vst.msk [vmem:[#allocation2] sm:$0xff] %vm68, 0.0
      %70 = vst.msk [vmem:[#allocation2 + $0x8] sm:$0xff] %vm68, 0.0
    $region41: #{transformer_tts_forward.61} parent=1 // pred_fallthru
      _
    %v71 = vld [vmem:[#allocation2] sm:$0xff]
    %v72 = vld [vmem:[#allocation2 + $0x8] sm:$0xff]
    %v73 = vld [vmem:[%s0] sm:$0xf]
    %v74 = vld [vmem:[%s0 + $0x4] sm:$0xf]
    %v75 = vld [vmem:[%s1] sm:$0xf]
    %v76 = vld [vmem:[%s1 + $0x4] sm:$0xf]
    %v77 = vld [vmem:[%s1 + $0x8] sm:$0xf]
    %v78 = vld [vmem:[%s1 + $0xc] sm:$0xf]
    %v79 = vld [vmem:[%s1 + $0x10] sm:$0xf]
    %v80 = vld [vmem:[%s1 + $0x14] sm:$0xf]
    %v81 = vld [vmem:[%s1 + $0x18] sm:$0xf]
    %v82 = vld [vmem:[%s1 + $0x1c] sm:$0xf]
    %v83 = vld [vmem:[%s1 + $0x20] sm:$0xf]
    %v84 = vld [vmem:[%s1 + $0x24] sm:$0xf]
    %v85 = vld [vmem:[%s1 + $0x28] sm:$0xf]
    %v86 = vld [vmem:[%s1 + $0x2c] sm:$0xf]
    %v87 = vld [vmem:[%s1 + $0x30] sm:$0xf]
    %v88 = vld [vmem:[%s1 + $0x34] sm:$0xf]
    %v89 = vld [vmem:[%s1 + $0x38] sm:$0xf]
    %v90 = vld [vmem:[%s1 + $0x3c] sm:$0xf]
    %v93 = vunpack.c.l.b16 %v73
    %v94 = vunpack.c.l.b16 %v74
    %v95 = vpack.c.b16 %v94, %v93
    %v113 = vunpack.c.l.b16 %v75
    %v114 = vunpack.c.l.b16 %v76
    %v115 = vunpack.c.l.b16 %v77
    %v116 = vunpack.c.l.b16 %v78
    %v117 = vunpack.c.l.b16 %v79
    %v118 = vunpack.c.l.b16 %v80
    %v119 = vunpack.c.l.b16 %v81
    %v120 = vunpack.c.l.b16 %v82
    %v121 = vunpack.c.l.b16 %v83
    %v122 = vunpack.c.l.b16 %v84
    %v123 = vunpack.c.l.b16 %v85
    %v124 = vunpack.c.l.b16 %v86
    %v125 = vunpack.c.l.b16 %v87
    %v126 = vunpack.c.l.b16 %v88
    %v127 = vunpack.c.l.b16 %v89
    %v128 = vunpack.c.l.b16 %v90
    %v129 = vpack.c.b16 %v114, %v113
    %v130 = vpack.c.b16 %v116, %v115
    %v131 = vpack.c.b16 %v118, %v117
    %v132 = vpack.c.b16 %v120, %v119
    %v133 = vpack.c.b16 %v122, %v121
    %v134 = vpack.c.b16 %v124, %v123
    %v135 = vpack.c.b16 %v126, %v125
    %v136 = vpack.c.b16 %v128, %v127
    %145 = vmatpush.bf16.msra.mxu0 %v136
    %146 = vmatpush.bf16.msra.mxu0 %v135
    %147 = vmatpush.bf16.msra.mxu0 %v134
    %148 = vmatpush.bf16.msra.mxu0 %v133
    %149 = vmatpush.bf16.msra.mxu0 %v132
    %150 = vmatpush.bf16.msra.mxu0 %v131
    %151 = vmatpush.bf16.msra.mxu0 %v130
    %152 = vmatpush.bf16.msra.mxu0 %v129
    %153 = vmatmul.bf16.gmra.mxu0 %v95
    %v154 = vpop.f32.mrf.mxu0
    %v155 = vadd.f32 0.0, %v154
    %v156 = vpop.f32.mrf.mxu0
    %v157 = vadd.f32 0.0, %v156
    %158 = vdwg.mxu0
    %v159 = vadd.f32 %v71, %v155
    %v160 = vadd.f32 %v72, %v157
    %vm161 = vcmask 261120
    %162 = vst.msk [vmem:[#allocation2] sm:$0xff] %vm161, %v159
    %163 = vst.msk [vmem:[#allocation2 + $0x8] sm:$0xff] %vm161, %v160
    // Predicated region
    $region42: #{transformer_tts_forward.61} parent=1 // pred_check
      %p164 = pneg %p64
    $region43: #{transformer_tts_forward.61} parent=1 // pred_check_branch
      %166 = sbr.rel (%p164) target = $region45
    $region44: #{transformer_tts_forward.61} parent=1 // pred_region
      %v167 = vld [vmem:[#allocation2] sm:$0xff]
      %v168 = vld [vmem:[#allocation2 + $0x8] sm:$0xff]
      %v169 = vld [vmem:[#allocation3] sm:$0x1]
      %v171 = vperm.slane %v169, 0
      %v173 = vadd.f32 %v167, %v171
      %v174 = vadd.f32 %v168, %v171
      %v175 = vld [vmem:[%s3] sm:$0xf]
      %v176 = vld [vmem:[%s3 + $0x4] sm:$0xf]
      %v177 = vunpack.c.l.bf16 %v175
      %v178 = vunpack.c.l.bf16 %v176
      %v179 = vadd.f32 %v173, %v177
      %v180 = vadd.f32 %v174, %v178
      %v181 = vsel %vm161, %v179, 0.0
      %182 = vadd.xlane.f32.xlu0 %v181
      %v183 = vpop.xlane.xlu0 %182
      %v184 = vsel %vm161, %v180, 0.0
      %185 = vadd.xlane.f32.xlu0 %v184
      %v186 = vpop.xlane.xlu0 %185
      %v187 = vrcp.pop 32.0
      %v188 = vmul.f32 32.0, %v187
      %v189 = vsub.f32 1.0, %v188
      %v190 = vmul.f32 %v187, %v189
      %v191 = vadd.f32 %v187, %v190
      %vm192 = vweird.f32 %v187
      %v193 = vsel %vm192, %v187, %v191
      %v194 = vmul.f32 %v183, %v193
      %v195 = vmul.f32 %v186, %v193
      %v196 = vsub.f32 %v179, %v194
      %v197 = vsub.f32 %v180, %v195
      %v198 = vmul.f32 %v196, %v196
      %v199 = vmul.f32 %v197, %v197
      %v200 = vsel %vm161, %v198, 0.0
      %201 = vadd.xlane.f32.xlu0 %v200
      %v202 = vpop.xlane.xlu0 %201
      %v203 = vsel %vm161, %v199, 0.0
      %204 = vadd.xlane.f32.xlu0 %v203
      %v205 = vpop.xlane.xlu0 %204
      %v206 = vmul.f32 %v202, %v193
      %v207 = vmul.f32 %v205, %v193
      %v208 = vadd.f32 %v206, 1e-05
      %v209 = vadd.f32 %v207, 1e-05
      %v210 = vrsqrt.pop %v208
      %v211 = vmul.f32 %v210, %v208
      %v212 = vmul.f32 %v211, %v210
      %v213 = vmul.f32 0.5, %v212
      %v214 = vsub.f32 1.5, %v213
      %v215 = vmul.f32 %v210, %v214
      %vm216 = vweird.f32 %v208
      %vm217 = vweird.f32 %v210
      %vm218 = vmor %vm216, %vm217
      %v219 = vsel %vm218, %v210, %v215
      %v220 = vrsqrt.pop %v209
      %v221 = vmul.f32 %v220, %v209
      %v222 = vmul.f32 %v221, %v220
      %v223 = vmul.f32 0.5, %v222
      %v224 = vsub.f32 1.5, %v223
      %v225 = vmul.f32 %v220, %v224
      %vm226 = vweird.f32 %v209
      %vm227 = vweird.f32 %v220
      %vm228 = vmor %vm226, %vm227
      %v229 = vsel %vm228, %v220, %v225
      %v230 = vmul.f32 %v196, %v219
      %v231 = vmul.f32 %v197, %v229
      %v232 = vld [vmem:[#allocation5] sm:$0x1]
      %v234 = vperm.slane %v232, 0
      %v236 = vmul.f32 %v230, %v234
      %v237 = vmul.f32 %v231, %v234
      %v238 = vld [vmem:[#allocation7] sm:$0x1]
      %v240 = vperm.slane %v238, 0
      %v242 = vadd.f32 %v236, %v240
      %v243 = vadd.f32 %v237, %v240
      %v244 = vpack.c.bf16 %v242, %v242
      %v245 = vpack.c.bf16 %v243, %v243
      %vm246 = vcmask 257024
      %247 = vst.msk [vmem:[%s6] sm:$0xf] %vm246, %v244
      %248 = vst.msk [vmem:[%s6 + $0x4] sm:$0xf] %vm246, %v245
    $region45: #{transformer_tts_forward.61} parent=1 // pred_fallthru
      _
    // Predicated region
    $region46: #{transformer_tts_forward.61} parent=1 // pred_check
      _
    $region47: #{transformer_tts_forward.61} parent=1 // pred_check_branch
      %250 = sbr.rel (0) target = $region49
    $region48: #{transformer_tts_forward.61} parent=1 // pred_region
      _
    $region49: #{transformer_tts_forward.61} parent=1 // pred_fallthru
      _
    // Predicated region
    $region50: #{transformer_tts_forward.61} parent=1 // pred_check
      _
    $region51: #{transformer_tts_forward.61} parent=1 // pred_check_branch
      %252 = sbr.rel (0) target = $region53
    $region52: #{transformer_tts_forward.61} parent=1 // pred_region
      _
    $region53: #{transformer_tts_forward.61} parent=1 // pred_fallthru
      _
    %253 = vsyncpa [#allocation4], 1
    %254 = vsyncpa [#allocation6], 1

// kernel: transformer_tts_forward.65
$region0: #{transformer_tts_forward.65}
  #allocation0 [shape = 'u32[]', space=smem, size = 0x4, offset = 0x4, fixed_abs, tag = 'smem constant byte address 0x4 - core index']
  #allocation1 [shape = 'u32[72,128]{1,0:T(1,128)}', space=vmem, size = 0x9000, scoped, tag = 'internal scratch']
  #allocation2 [shape = 'f32[16,32]{1,0:T(8,128)}', space=vmem, size = 0x2000, scoped, tag = 'scratch operand']
  %s0 = inlined_call_operand.vmem [shape: bf16[16,32], index: 0, kind: input, shape index: {}]
  %s1 = inlined_call_operand.vmem [shape: bf16[32,32], index: 1, kind: input, shape index: {}]
  %s2 = inlined_call_operand.hbm [shape: f32[1,32], index: 2, kind: input, shape index: {}]
  %s3 = inlined_call_operand.vmem [shape: bf16[16,32], index: 3, kind: input, shape index: {}]
  %s4 = inlined_call_operand.hbm [shape: f32[1,32], index: 4, kind: input, shape index: {}]
  %s5 = inlined_call_operand.hbm [shape: f32[1,32], index: 5, kind: input, shape index: {}]
  %s6 = inlined_call_operand.vmem [shape: bf16[16,32], index: 6, kind: output, shape index: {}]
  %s7 = sld [smem:[#allocation0]]
  $region54: #{transformer_tts_forward.65} parent=0
    _
  %s9 = ssub.s32 1, %s7
  %s10 = scalar_select 0, %s9, %s7
  $region1: #{transformer_tts_forward.65} parent=0
    #allocation3 [shape = 'u8[512]{0}', space=vmem, size = 0x400, scoped, tag = 'input window, operand 2, single buffered']
    #allocation4 [shape = 's32[1]{0}', space=sflag, size = 0x4, scoped, tag = 'scoped memory for transformer_tts_forward.65']
    #allocation5 [shape = 'u8[512]{0}', space=vmem, size = 0x400, scoped, tag = 'input window, operand 4, single buffered']
    #allocation6 [shape = 's32[1]{0}', space=sflag, size = 0x4, scoped, tag = 'scoped memory for transformer_tts_forward.65']
    #allocation7 [shape = 'u8[512]{0}', space=vmem, size = 0x400, scoped, tag = 'input window, operand 5, single buffered']
    %11 = vsyncpa [#allocation4], 0
    %12 = vsyncpa [#allocation6], 0
    // Predicated region
    $region2: #{transformer_tts_forward.65} parent=1 // pred_check
      _
    $region3: #{transformer_tts_forward.65} parent=1 // pred_check_branch
      %14 = sbr.rel (0) target = $region5
    $region4: #{transformer_tts_forward.65} parent=1 // pred_region
      _
    $region5: #{transformer_tts_forward.65} parent=1 // pred_fallthru
      _
    // Predicated region
    $region6: #{transformer_tts_forward.65} parent=1 // pred_check
      _
    $region7: #{transformer_tts_forward.65} parent=1 // pred_check_branch
      %16 = sbr.rel (0) target = $region9
    $region8: #{transformer_tts_forward.65} parent=1 // pred_region
      _
    $region9: #{transformer_tts_forward.65} parent=1 // pred_fallthru
      _
    // Predicated region
    $region10: #{transformer_tts_forward.65} parent=1 // pred_check
      _
    $region11: #{transformer_tts_forward.65} parent=1 // pred_check_branch
      %18 = sbr.rel (0) target = $region13
    $region12: #{transformer_tts_forward.65} parent=1 // pred_region
      %20 = vsyncadd [#allocation4], 0
      %s22 = sshll.u32 %s2, 4
      %s23 = int_to_ptr.hbm [resolvable:$true] %s22
      %s24 = sshll.u32 [#allocation3], 4
      %s25 = int_to_ptr.vmem [resolvable:$true] %s24
      %27 = dma.hbm_to_vmem [thread:$0]  %s23, 16, %s25, [#allocation4]
    $region13: #{transformer_tts_forward.65} parent=1 // pred_fallthru
      _
    // Predicated region
    $region14: #{transformer_tts_forward.65} parent=1 // pred_check
      _
    $region15: #{transformer_tts_forward.65} parent=1 // pred_check_branch
      %29 = sbr.rel (0) target = $region17
    $region16: #{transformer_tts_forward.65} parent=1 // pred_region
      _
    $region17: #{transformer_tts_forward.65} parent=1 // pred_fallthru
      _
    // Predicated region
    $region18: #{transformer_tts_forward.65} parent=1 // pred_check
      _
    $region19: #{transformer_tts_forward.65} parent=1 // pred_check_branch
      %31 = sbr.rel (0) target = $region21
    $region20: #{transformer_tts_forward.65} parent=1 // pred_region
      %33 = vsyncadd [#allocation6], 0
      %s35 = sshll.u32 %s4, 4
      %s36 = int_to_ptr.hbm [resolvable:$true] %s35
      %s37 = sshll.u32 [#allocation5], 4
      %s38 = int_to_ptr.vmem [resolvable:$true] %s37
      %40 = dma.hbm_to_vmem [thread:$0]  %s36, 16, %s38, [#allocation6]
    $region21: #{transformer_tts_forward.65} parent=1 // pred_fallthru
      _
    // Predicated region
    $region22: #{transformer_tts_forward.65} parent=1 // pred_check
      _
    $region23: #{transformer_tts_forward.65} parent=1 // pred_check_branch
      %42 = sbr.rel (0) target = $region25
    $region24: #{transformer_tts_forward.65} parent=1 // pred_region
      %44 = vsyncadd [#allocation6], 0
      %s46 = sshll.u32 %s5, 4
      %s47 = int_to_ptr.hbm [resolvable:$true] %s46
      %s48 = sshll.u32 [#allocation7], 4
      %s49 = int_to_ptr.vmem [resolvable:$true] %s48
      %51 = dma.hbm_to_vmem [thread:$0]  %s47, 16, %s49, [#allocation6]
    $region25: #{transformer_tts_forward.65} parent=1 // pred_fallthru
      _
    // Predicated region
    $region26: #{transformer_tts_forward.65} parent=1 // pred_check
      _
    $region27: #{transformer_tts_forward.65} parent=1 // pred_check_branch
      %53 = sbr.rel (0) target = $region29
    $region28: #{transformer_tts_forward.65} parent=1 // pred_region
      %55 = dma.done [#allocation4], 16
    $region29: #{transformer_tts_forward.65} parent=1 // pred_fallthru
      _
    // Predicated region
    $region30: #{transformer_tts_forward.65} parent=1 // pred_check
      _
    $region31: #{transformer_tts_forward.65} parent=1 // pred_check_branch
      %57 = sbr.rel (0) target = $region33
    $region32: #{transformer_tts_forward.65} parent=1 // pred_region
      %59 = dma.done [#allocation6], 16
    $region33: #{transformer_tts_forward.65} parent=1 // pred_fallthru
      _
    // Predicated region
    $region34: #{transformer_tts_forward.65} parent=1 // pred_check
      _
    $region35: #{transformer_tts_forward.65} parent=1 // pred_check_branch
      %61 = sbr.rel (0) target = $region37
    $region36: #{transformer_tts_forward.65} parent=1 // pred_region
      %63 = dma.done [#allocation6], 16
    $region37: #{transformer_tts_forward.65} parent=1 // pred_fallthru
      _
    %p65 = scmp.eq.s32.totalorder 0, 0
    // Predicated region
    $region38: #{transformer_tts_forward.65} parent=1 // pred_check
      %p66 = pneg %p65
    $region39: #{transformer_tts_forward.65} parent=1 // pred_check_branch
      %68 = sbr.rel (%p66) target = $region41
    $region40: #{transformer_tts_forward.65} parent=1 // pred_region
      %vm69 = vcmask 261120
      %70 = vst.msk [vmem:[#allocation2] sm:$0xff] %vm69, 0.0
      %71 = vst.msk [vmem:[#allocation2 + $0x8] sm:$0xff] %vm69, 0.0
    $region41: #{transformer_tts_forward.65} parent=1 // pred_fallthru
      _
    %v72 = vld [vmem:[#allocation2] sm:$0xff]
    %v73 = vld [vmem:[#allocation2 + $0x8] sm:$0xff]
    %v74 = vld [vmem:[%s0] sm:$0xf]
    %v75 = vld [vmem:[%s0 + $0x4] sm:$0xf]
    %v76 = vld [vmem:[%s1] sm:$0xf]
    %v77 = vld [vmem:[%s1 + $0x4] sm:$0xf]
    %v78 = vld [vmem:[%s1 + $0x8] sm:$0xf]
    %v79 = vld [vmem:[%s1 + $0xc] sm:$0xf]
    %v82 = vunpack.c.l.b16 %v74
    %v83 = vunpack.c.l.b16 %v75
    %v84 = vpack.c.b16 %v83, %v82
    %v89 = vunpack.c.l.b16 %v76
    %v90 = vunpack.c.l.b16 %v77
    %v91 = vunpack.c.l.b16 %v78
    %v92 = vunpack.c.l.b16 %v79
    %v93 = vpack.c.b16 %v90, %v89
    %v94 = vpack.c.b16 %v92, %v91
    %vm97 = vcmask 261120
    %v99 = vsel %vm97, %v84, 0
    %101 = vmatpush.bf16.msra.mxu0 0
    %102 = vmatpush.bf16.msra.mxu0 0
    %103 = vmatpush.bf16.msra.mxu0 0
    %104 = vmatpush.bf16.msra.mxu0 0
    %105 = vmatpush.bf16.msra.mxu0 0
    %106 = vmatpush.bf16.msra.mxu0 0
    %107 = vmatpush.bf16.msra.mxu0 %v94
    %108 = vmatpush.bf16.msra.mxu0 %v93
    %109 = vmatmul.bf16.gmra.mxu0 %v99
    %v110 = vpop.f32.mrf.mxu0
    %v111 = vadd.f32 0.0, %v110
    %v112 = vpop.f32.mrf.mxu0
    %v113 = vadd.f32 0.0, %v112
    %114 = vdwg.mxu0
    %v115 = vadd.f32 %v72, %v111
    %v116 = vadd.f32 %v73, %v113
    %117 = vst.msk [vmem:[#allocation2] sm:$0xff] %vm97, %v115
    %118 = vst.msk [vmem:[#allocation2 + $0x8] sm:$0xff] %vm97, %v116
    // Predicated region
    $region42: #{transformer_tts_forward.65} parent=1 // pred_check
      %p119 = pneg %p65
    $region43: #{transformer_tts_forward.65} parent=1 // pred_check_branch
      %121 = sbr.rel (%p119) target = $region45
    $region44: #{transformer_tts_forward.65} parent=1 // pred_region
      %v122 = vld [vmem:[#allocation2] sm:$0xff]
      %v123 = vld [vmem:[#allocation2 + $0x8] sm:$0xff]
      %v124 = vld [vmem:[#allocation3] sm:$0x1]
      %v126 = vperm.slane %v124, 0
      %v128 = vadd.f32 %v122, %v126
      %v129 = vadd.f32 %v123, %v126
      %v130 = vld [vmem:[%s3] sm:$0xf]
      %v131 = vld [vmem:[%s3 + $0x4] sm:$0xf]
      %v132 = vunpack.c.l.bf16 %v130
      %v133 = vunpack.c.l.bf16 %v131
      %v134 = vadd.f32 %v128, %v132
      %v135 = vadd.f32 %v129, %v133
      %v136 = vsel %vm97, %v134, 0.0
      %137 = vadd.xlane.f32.xlu0 %v136
      %v138 = vpop.xlane.xlu0 %137
      %v139 = vsel %vm97, %v135, 0.0
      %140 = vadd.xlane.f32.xlu0 %v139
      %v141 = vpop.xlane.xlu0 %140
      %v142 = vrcp.pop 32.0
      %v143 = vmul.f32 32.0, %v142
      %v144 = vsub.f32 1.0, %v143
      %v145 = vmul.f32 %v142, %v144
      %v146 = vadd.f32 %v142, %v145
      %vm147 = vweird.f32 %v142
      %v148 = vsel %vm147, %v142, %v146
      %v149 = vmul.f32 %v138, %v148
      %v150 = vmul.f32 %v141, %v148
      %v151 = vsub.f32 %v134, %v149
      %v152 = vsub.f32 %v135, %v150
      %v153 = vmul.f32 %v151, %v151
      %v154 = vmul.f32 %v152, %v152
      %v155 = vsel %vm97, %v153, 0.0
      %156 = vadd.xlane.f32.xlu0 %v155
      %v157 = vpop.xlane.xlu0 %156
      %v158 = vsel %vm97, %v154, 0.0
      %159 = vadd.xlane.f32.xlu0 %v158
      %v160 = vpop.xlane.xlu0 %159
      %v161 = vmul.f32 %v157, %v148
      %v162 = vmul.f32 %v160, %v148
      %v163 = vadd.f32 %v161, 1e-05
      %v164 = vadd.f32 %v162, 1e-05
      %v165 = vrsqrt.pop %v163
      %v166 = vmul.f32 %v165, %v163
      %v167 = vmul.f32 %v166, %v165
      %v168 = vmul.f32 0.5, %v167
      %v169 = vsub.f32 1.5, %v168
      %v170 = vmul.f32 %v165, %v169
      %vm171 = vweird.f32 %v163
      %vm172 = vweird.f32 %v165
      %vm173 = vmor %vm171, %vm172
      %v174 = vsel %vm173, %v165, %v170
      %v175 = vrsqrt.pop %v164
      %v176 = vmul.f32 %v175, %v164
      %v177 = vmul.f32 %v176, %v175
      %v178 = vmul.f32 0.5, %v177
      %v179 = vsub.f32 1.5, %v178
      %v180 = vmul.f32 %v175, %v179
      %vm181 = vweird.f32 %v164
      %vm182 = vweird.f32 %v175
      %vm183 = vmor %vm181, %vm182
      %v184 = vsel %vm183, %v175, %v180
      %v185 = vmul.f32 %v151, %v174
      %v186 = vmul.f32 %v152, %v184
      %v187 = vld [vmem:[#allocation5] sm:$0x1]
      %v189 = vperm.slane %v187, 0
      %v191 = vmul.f32 %v185, %v189
      %v192 = vmul.f32 %v186, %v189
      %v193 = vld [vmem:[#allocation7] sm:$0x1]
      %v195 = vperm.slane %v193, 0
      %v197 = vadd.f32 %v191, %v195
      %v198 = vadd.f32 %v192, %v195
      %v199 = vpack.c.bf16 %v197, %v197
      %v200 = vpack.c.bf16 %v198, %v198
      %vm201 = vcmask 257024
      %202 = vst.msk [vmem:[%s6] sm:$0xf] %vm201, %v199
      %203 = vst.msk [vmem:[%s6 + $0x4] sm:$0xf] %vm201, %v200
    $region45: #{transformer_tts_forward.65} parent=1 // pred_fallthru
      _
    // Predicated region
    $region46: #{transformer_tts_forward.65} parent=1 // pred_check
      _
    $region47: #{transformer_tts_forward.65} parent=1 // pred_check_branch
      %205 = sbr.rel (0) target = $region49
    $region48: #{transformer_tts_forward.65} parent=1 // pred_region
      _
    $region49: #{transformer_tts_forward.65} parent=1 // pred_fallthru
      _
    // Predicated region
    $region50: #{transformer_tts_forward.65} parent=1 // pred_check
      _
    $region51: #{transformer_tts_forward.65} parent=1 // pred_check_branch
      %207 = sbr.rel (0) target = $region53
    $region52: #{transformer_tts_forward.65} parent=1 // pred_region
      _
    $region53: #{transformer_tts_forward.65} parent=1 // pred_fallthru
      _
    %208 = vsyncpa [#allocation4], 1
    %209 = vsyncpa [#allocation6], 1

// kernel: transformer_tts_forward.73
$region0: #{transformer_tts_forward.73}
  #allocation0 [shape = 'u32[]', space=smem, size = 0x4, offset = 0x4, fixed_abs, tag = 'smem constant byte address 0x4 - core index']
  #allocation1 [shape = 'u32[72,128]{1,0:T(1,128)}', space=vmem, size = 0x9000, scoped, tag = 'internal scratch']
  #allocation2 [shape = 'f32[16,128]{1,0:T(8,128)}', space=vmem, size = 0x2000, scoped, tag = 'scratch operand']
  %s0 = inlined_call_operand.vmem [shape: bf16[16,32], index: 0, kind: input, shape index: {}]
  %s1 = inlined_call_operand.vmem [shape: bf16[32,128], index: 1, kind: input, shape index: {}]
  %s2 = inlined_call_operand.vmem [shape: f32[1,128], index: 2, kind: input, shape index: {}]
  %s3 = inlined_call_operand.vmem [shape: f32[16,128], index: 3, kind: output, shape index: {}]
  %s4 = sld [smem:[#allocation0]]
  $region30: #{transformer_tts_forward.73} parent=0
    _
  %s6 = ssub.s32 1, %s4
  %s7 = scalar_select 0, %s6, %s4
  // Predicated region
  $region2: #{transformer_tts_forward.73} parent=0 // pred_check
    _
  $region3: #{transformer_tts_forward.73} parent=0 // pred_check_branch
    %9 = sbr.rel (0) target = $region5
  $region4: #{transformer_tts_forward.73} parent=0 // pred_region
    _
  $region5: #{transformer_tts_forward.73} parent=0 // pred_fallthru
    _
  // Predicated region
  $region6: #{transformer_tts_forward.73} parent=0 // pred_check
    _
  $region7: #{transformer_tts_forward.73} parent=0 // pred_check_branch
    %11 = sbr.rel (0) target = $region9
  $region8: #{transformer_tts_forward.73} parent=0 // pred_region
    _
  $region9: #{transformer_tts_forward.73} parent=0 // pred_fallthru
    _
  // Predicated region
  $region10: #{transformer_tts_forward.73} parent=0 // pred_check
    _
  $region11: #{transformer_tts_forward.73} parent=0 // pred_check_branch
    %13 = sbr.rel (0) target = $region13
  $region12: #{transformer_tts_forward.73} parent=0 // pred_region
    _
  $region13: #{transformer_tts_forward.73} parent=0 // pred_fallthru
    _
  %p15 = scmp.eq.s32.totalorder 0, 0
  // Predicated region
  $region14: #{transformer_tts_forward.73} parent=0 // pred_check
    %p16 = pneg %p15
  $region15: #{transformer_tts_forward.73} parent=0 // pred_check_branch
    %18 = sbr.rel (%p16) target = $region17
  $region16: #{transformer_tts_forward.73} parent=0 // pred_region
    %19 = vst [vmem:[#allocation2] sm:$0xff] 0.0
    %20 = vst [vmem:[#allocation2 + $0x8] sm:$0xff] 0.0
  $region17: #{transformer_tts_forward.73} parent=0 // pred_fallthru
    _
  %v21 = vld [vmem:[#allocation2] sm:$0xff]
  %v22 = vld [vmem:[#allocation2 + $0x8] sm:$0xff]
  %v23 = vld [vmem:[%s0] sm:$0xf]
  %v24 = vld [vmem:[%s0 + $0x4] sm:$0xf]
  %v25 = vld [vmem:[%s1] sm:$0xf]
  %v26 = vld [vmem:[%s1 + $0x4] sm:$0xf]
  %v27 = vld [vmem:[%s1 + $0x8] sm:$0xf]
  %v28 = vld [vmem:[%s1 + $0xc] sm:$0xf]
  %v31 = vunpack.c.l.b16 %v23
  %v32 = vunpack.c.l.b16 %v24
  %v33 = vpack.c.b16 %v32, %v31
  %v38 = vunpack.c.l.b16 %v25
  %v39 = vunpack.c.l.b16 %v26
  %v40 = vunpack.c.l.b16 %v27
  %v41 = vunpack.c.l.b16 %v28
  %v42 = vpack.c.b16 %v39, %v38
  %v43 = vpack.c.b16 %v41, %v40
  %vm46 = vcmask 261120
  %v48 = vsel %vm46, %v33, 0
  %50 = vmatpush.bf16.msra.mxu0 0
  %51 = vmatpush.bf16.msra.mxu0 0
  %52 = vmatpush.bf16.msra.mxu0 0
  %53 = vmatpush.bf16.msra.mxu0 0
  %54 = vmatpush.bf16.msra.mxu0 0
  %55 = vmatpush.bf16.msra.mxu0 0
  %56 = vmatpush.bf16.msra.mxu0 %v43
  %57 = vmatpush.bf16.msra.mxu0 %v42
  %58 = vmatmul.bf16.gmra.mxu0 %v48
  %v59 = vpop.f32.mrf.mxu0
  %v60 = vadd.f32 0.0, %v59
  %v61 = vpop.f32.mrf.mxu0
  %v62 = vadd.f32 0.0, %v61
  %63 = vdwg.mxu0
  %v64 = vadd.f32 %v21, %v60
  %v65 = vadd.f32 %v22, %v62
  %66 = vst [vmem:[#allocation2] sm:$0xff] %v64
  %67 = vst [vmem:[#allocation2 + $0x8] sm:$0xff] %v65
  // Predicated region
  $region18: #{transformer_tts_forward.73} parent=0 // pred_check
    %p68 = pneg %p15
  $region19: #{transformer_tts_forward.73} parent=0 // pred_check_branch
    %70 = sbr.rel (%p68) target = $region21
  $region20: #{transformer_tts_forward.73} parent=0 // pred_region
    %v71 = vld [vmem:[#allocation2] sm:$0xff]
    %v72 = vld [vmem:[#allocation2 + $0x8] sm:$0xff]
    %v73 = vld [vmem:[%s2] sm:$0x1]
    %v75 = vperm.slane %v73, 0
    %v77 = vadd.f32 %v71, %v75
    %v78 = vadd.f32 %v72, %v75
    %79 = vst [vmem:[%s3] sm:$0xff] %v77
    %80 = vst [vmem:[%s3 + $0x8] sm:$0xff] %v78
  $region21: #{transformer_tts_forward.73} parent=0 // pred_fallthru
    _
  // Predicated region
  $region22: #{transformer_tts_forward.73} parent=0 // pred_check
    _
  $region23: #{transformer_tts_forward.73} parent=0 // pred_check_branch
    %82 = sbr.rel (0) target = $region25
  $region24: #{transformer_tts_forward.73} parent=0 // pred_region
    _
  $region25: #{transformer_tts_forward.73} parent=0 // pred_fallthru
    _
  // Predicated region
  $region26: #{transformer_tts_forward.73} parent=0 // pred_check
    _
  $region27: #{transformer_tts_forward.73} parent=0 // pred_check_branch
    %84 = sbr.rel (0) target = $region29
  $region28: #{transformer_tts_forward.73} parent=0 // pred_region
    _
  $region29: #{transformer_tts_forward.73} parent=0 // pred_fallthru
    _

</llo_original>
